<compile_context>
chip_gen: v5e
topology: v5e:2x2
jax: 0.10.0
libtpu: 0.0.40
codegen_flags: <defaults>
</compile_context>

<pallas_src>
import math

import numpy as np
import jax
import jax.numpy as jnp
from jax.experimental import pallas as pl
from jax.experimental.pallas import tpu as pltpu


# ----------------------------- static layout helpers ---------------------------------

def _layout(n, h, w):
    hp, wp = h + 2, w + 2                       # spatial zero-padding baked into the layout
    return dict(n=n, h=h, w=w, hp=hp, wp=wp, img=hp * wp, L=n * hp * wp)


def _interior_mask_np(lay):
    idx = np.arange(lay['L'])
    r = (idx // lay['wp']) % lay['hp']
    c = idx % lay['wp']
    valid = (r >= 1) & (r <= lay['h']) & (c >= 1) & (c <= lay['w'])
    return valid.astype(np.float32)


def _subsample_img_np(li, lo):
    """(img_in, img_out) 0/1: per-image ::2 subsample, padded layout -> padded layout."""
    B = np.zeros((li['img'], lo['img']), np.float32)
    for ro in range(1, lo['h'] + 1):
        for co in range(1, lo['w'] + 1):
            B[(2 * ro - 1) * li['wp'] + (2 * co - 1), ro * lo['wp'] + co] = 1.0
    return B


def _chanpad_np(cin, cout):
    E = np.zeros((cout, cin), np.float32)
    p = (cout - cin) // 2
    E[p:p + cin, :] = np.eye(cin, dtype=np.float32)
    return E


def _pool_np(lay):
    """(L, N): per-sample global average pool over interior pixels."""
    P = np.zeros((lay['L'], lay['n']), np.float32)
    m = _interior_mask_np(lay)
    for n in range(lay['n']):
        s = slice(n * lay['img'], (n + 1) * lay['img'])
        P[s, n] = m[s] / float(lay['h'] * lay['w'])
    return P


def _fold_conv_bn(w, bn, eps=1e-5):
    """Conv (Cout,Cin,3,3) + BN -> (Cout, 9*Cin+1) f32: taps (kh,kw,cin-major) | bias col."""
    scale = bn['gamma'] / jnp.sqrt(bn['var'] + eps)
    bias = bn['beta'] - bn['mean'] * scale
    cout, cin = w.shape[0], w.shape[1]
    wk = jnp.transpose(w * scale[:, None, None, None], (0, 2, 3, 1)).reshape(cout, 9 * cin)
    return jnp.concatenate([wk, bias[:, None]], axis=1)


# ----------------------------- fused forward ------------------------------------------

def resnet_forward(params, x, return_hidden=False):
    f32, bf16 = jnp.float32, jnp.bfloat16
    N, cin0, H, W = x.shape
    lays = [_layout(N, H, W), _layout(N, H // 2, W // 2), _layout(N, H // 4, W // 4)]
    l0, l2 = lays[0], lays[2]

    # ---------------- baked numpy constants ----------------
    mask_np = np.zeros((8, l0['L']), np.float32)
    for i, lay in enumerate(lays):
        mask_np[i, :lay['L']] = _interior_mask_np(lay)
    mask_slab = jnp.asarray(mask_np)                               # f32 (8, L0)
    B1 = jnp.asarray(_subsample_img_np(lays[0], lays[1]), bf16)    # per-image, batch-independent
    B2 = jnp.asarray(_subsample_img_np(lays[1], lays[2]), bf16)
    pool = jnp.asarray(_pool_np(l2), bf16)                         # (L2, N)

    # ---------------- static plan + scratch bookkeeping ----------------
    conv_ws, plan, e_entries = [], [], []
    scratch_shapes, slab_scr = [], {}

    def add_scratch(shape, dtype):
        scratch_shapes.append(pltpu.VMEM(shape, dtype))
        return len(scratch_shapes) - 1

    def get_slab(cin, L):                       # one im2col slab per distinct (9*Cin+1, L)
        key = (9 * cin + 1, L)
        if key not in slab_scr:
            slab_scr[key] = add_scratch(key, bf16)
        return slab_scr[key]

    def add_w(wf):
        conv_ws.append(wf)
        return len(conv_ws) - 1

    stem_cout = params['conv1_w'].shape[0]
    stem_store = add_scratch((stem_cout, l0['L']), bf16)
    plan.append(dict(kind='stem', w=add_w(_fold_conv_bn(params['conv1_w'], params['bn1'])),
                     cout=stem_cout, cin=cin0, li_in=0, li_out=0,
                     sub=None, shortcut=None, store=stem_store))

    cur_store, cur_li = stem_store, 0
    total_blocks = sum(len(params[f'layer{i}']) for i in (1, 2, 3))
    done = 0
    for li_idx, lname in enumerate(('layer1', 'layer2', 'layer3')):
        out_li = li_idx
        for bi, bp in enumerate(params[lname]):
            done += 1
            planes, in_planes = bp['conv1_w'].shape[0], bp['conv1_w'].shape[1]
            stride2 = (li_idx > 0 and bi == 0)
            in_li, block_in = cur_li, cur_store

            c1_store = add_scratch((planes, lays[out_li]['L']), bf16)
            plan.append(dict(kind='conv', w=add_w(_fold_conv_bn(bp['conv1_w'], bp['bn1'])),
                             cout=planes, cin=in_planes, src=block_in,
                             li_in=in_li, li_out=out_li,
                             slab=get_slab(in_planes, lays[in_li]['L']),
                             sub=out_li if stride2 else None, shortcut=None, store=c1_store))

            if stride2 or in_planes != planes:
                assert stride2, "option-A shortcut assumed only for downsampling blocks"
                e_entries.append((planes, in_planes, _chanpad_np(in_planes, planes)))
                shortcut = dict(kind='padsub', src=block_in, li_in=in_li, sub=out_li,
                                e=len(e_entries) - 1, cin=in_planes)
            else:
                shortcut = dict(kind='id', src=block_in)

            last = (done == total_blocks)
            out_store = None if last else add_scratch((planes, lays[out_li]['L']), bf16)
            plan.append(dict(kind='conv', w=add_w(_fold_conv_bn(bp['conv2_w'], bp['bn2'])),
                             cout=planes, cin=planes, src=c1_store,
                             li_in=out_li, li_out=out_li,
                             slab=get_slab(planes, lays[out_li]['L']),
                             sub=None, shortcut=shortcut, store=out_store))
            cur_store, cur_li = out_store, out_li

    # ---------------- pack ALL conv weights (+ bias columns) into ONE bf16 slab ----------------
    row_offs, r = [], 0
    for wf in conv_ws:
        row_offs.append(r)
        r += wf.shape[0]
    rows_pad = -(-r // 16) * 16
    cols_pad = -(-max(wf.shape[1] for wf in conv_ws) // 128) * 128
    w_slab = jnp.zeros((rows_pad, cols_pad), f32)
    for wf, r0 in zip(conv_ws, row_offs):
        w_slab = w_slab.at[r0:r0 + wf.shape[0], 0:wf.shape[1]].set(wf)
    w_slab = w_slab.astype(bf16)
    for st in plan:
        st['r0'] = row_offs[st['w']]

    # ---------------- pack option-A channel-pad matrices ----------------
    e_offs, ro = [], 0
    tot = sum(co for co, _, _ in e_entries)
    e_np = np.zeros((max(8, -(-max(tot, 1) // 8) * 8),
                     max(8, max((ci for _, ci, _ in e_entries), default=8))), np.float32)
    for co, ci, E in e_entries:
        e_np[ro:ro + co, 0:ci] = E
        e_offs.append(ro)
        ro += co
    e_slab = jnp.asarray(e_np, bf16)

    # ---------------- host-side im2col of the network input (stem slab, bias ones last) ----------------
    xpp = jnp.pad(x.astype(f32), ((0, 0), (0, 0), (2, 2), (2, 2)))
    taps = [xpp[:, :, kh:kh + l0['hp'], kw:kw + l0['wp']] for kh in range(3) for kw in range(3)]
    taps = jnp.transpose(jnp.stack(taps, axis=0), (0, 2, 1, 3, 4)).reshape(9 * cin0, l0['L'])
    stem_slab = jnp.concatenate([taps, jnp.ones((1, l0['L']), f32)], axis=0).astype(bf16)

    # ---------------- packed head ----------------
    rd, feat = params['reducer_w'].shape
    nc = params['classifier_w'].shape[0]
    if return_hidden:
        hw = jnp.zeros((-(-(rd + nc) // 8) * 8, feat), f32)
        hw = hw.at[0:rd, 0:feat].set(params['reducer_w'])
        hw = hw.at[rd:rd + nc, 0:rd].set(params['classifier_w'])
        hb = jnp.zeros((-(-max(rd, nc) // 8) * 8, 2), f32)
        hb = hb.at[0:rd, 0].set(params['reducer_b'])
        hb = hb.at[0:nc, 1].set(params['classifier_b'])
    else:  # fold classifier @ reducer host-side -> one head matmul
        wf = params['classifier_w'] @ params['reducer_w']
        bf = params['classifier_w'] @ params['reducer_b'] + params['classifier_b']
        hw = jnp.zeros((-(-nc // 8) * 8, feat), f32).at[0:nc, :].set(wf)
        hb = jnp.zeros((-(-max(nc, 8) // 8) * 8, 2), f32).at[0:nc, 0].set(bf)
    hw = hw.astype(bf16)

    operands = [stem_slab, w_slab, mask_slab, B1, B2, e_slab, pool, hw, hb]
    n_in = len(operands)
    n_out = 2 if return_hidden else 1
    slab_items = tuple(slab_scr.items())

    # ---------------- the fused kernel ----------------
    def kernel(*refs):
        (stem_ref, w_ref, mask_ref, b1_ref, b2_ref, e_ref,
         pool_ref, hw_ref, hb_ref) = refs[:n_in]
        outs = refs[n_in:n_in + n_out]
        scr = refs[n_in + n_out:]
        b_refs = (None, b1_ref, b2_ref)

        # bias ones-row of each im2col slab, written once (tap rows never touch it)
        for (rows, cols), si in slab_items:
            scr[si][rows - 1:rows, :] = jnp.ones((1, cols), jnp.bfloat16)

        def mask_of(li, L):
            return mask_ref[li:li + 1, 0:L] > 0.0

        def subsample(vb16, li_in, li_out):
            """Per-image stride-2 spatial subsample via a tiny constant 0/1 matmul."""
            img = lays[li_in]['img']
            B = b_refs[li_out][...]
            pieces = [jnp.dot(vb16[:, n * img:(n + 1) * img], B,
                              preferred_element_type=jnp.float32) for n in range(N)]
            return pieces[0] if N == 1 else jnp.concatenate(pieces, axis=1)

        val = None
        for st in plan:
            lin, lout = lays[st['li_in']], lays[st['li_out']]
            cin, cout, ncol = st['cin'], st['cout'], 9 * st['cin'] + 1

            if st['kind'] == 'stem':
                slab = stem_ref[...]
            else:
                # stacked im2col: 9 lane-shifted bf16 copies into one slab (rows cin-aligned)
                slab_ref, a_ref = scr[st['slab']], scr[st['src']]
                wp, L = lin['wp'], lin['L']
                t = 0
                for dh in (-1, 0, 1):
                    for dw in (-1, 0, 1):
                        s = dh * wp + dw
                        lo, hi = max(0, -s), L - max(0, s)
                        slab_ref[t * cin:(t + 1) * cin, lo:hi] = a_ref[:, lo + s:hi + s]
                        t += 1
                slab = slab_ref[...]

            # ONE deep MXU matmul per conv: folded-BN weights (+bias column) @ [taps | ones]
            acc = jnp.dot(w_ref[st['r0']:st['r0'] + cout, 0:ncol], slab,
                          preferred_element_type=jnp.float32)

            if st['sub'] is not None:            # stride-2 conv: per-image ::2 subsample
                acc = jnp.where(mask_of(st['li_in'], lin['L']), acc, 0.0)
                acc = subsample(acc.astype(jnp.bfloat16), st['li_in'], st['sub'])

            sc = st['shortcut']
            if sc is not None:
                if sc['kind'] == 'id':
                    acc = acc + scr[sc['src']][...].astype(jnp.float32)
                else:                            # option-A: ::2 subsample + channel zero-pad
                    sub = subsample(scr[sc['src']][...], sc['li_in'], sc['sub'])
                    r0e = e_offs[sc['e']]
                    acc = acc + jnp.dot(e_ref[r0e:r0e + cout, 0:sc['cin']],
                                        sub.astype(jnp.bfloat16),
                                        preferred_element_type=jnp.float32)

            out = jnp.where(mask_of(st['li_out'], lout['L']), jnp.maximum(acc, 0.0), 0.0)
            if st['store'] is not None:          # activation stays resident in VMEM (bf16)
                scr[st['store']][...] = out.astype(jnp.bfloat16)
            val = out

        # fused head: global average pool -> reducer -> classifier (bf16 matmuls, f32 acc)
        pooled = jnp.dot(val.astype(jnp.bfloat16), pool_ref[...],
                         preferred_element_type=jnp.float32)                 # (feat, N)
        if return_hidden:
            hid = jnp.dot(hw_ref[0:rd, 0:feat], pooled.astype(jnp.bfloat16),
                          preferred_element_type=jnp.float32) + hb_ref[0:rd, 0:1]
            logit = jnp.dot(hw_ref[rd:rd + nc, 0:rd], hid.astype(jnp.bfloat16),
                            preferred_element_type=jnp.float32) + hb_ref[0:nc, 1:2]
            outs[0][...] = logit
            outs[1][...] = hid
        else:
            logit = jnp.dot(hw_ref[0:nc, 0:feat], pooled.astype(jnp.bfloat16),
                            preferred_element_type=jnp.float32) + hb_ref[0:nc, 0:1]
            outs[0][...] = logit

    vmem = pl.BlockSpec(memory_space=pltpu.MemorySpace.VMEM)
    if return_hidden:
        out_shape = (jax.ShapeDtypeStruct((nc, N), jnp.float32),
                     jax.ShapeDtypeStruct((rd, N), jnp.float32))
        out_specs = (vmem, vmem)
    else:
        out_shape = jax.ShapeDtypeStruct((nc, N), jnp.float32)
        out_specs = vmem

    # NOTE: at larger batch, add a 'parallel' grid over batch (pad per-image lane segments
    # to 128) to use both v7x TensorCores and tile the lane axis; at this size a single
    # grid-less invocation fits in ~1 MiB of VMEM on every generation.
    res = pl.pallas_call(
        kernel,
        out_shape=out_shape,
        in_specs=[vmem] * n_in,
        out_specs=out_specs,
        scratch_shapes=scratch_shapes,
        compiler_params=pltpu.CompilerParams(vmem_limit_bytes=32 * 1024 * 1024),
    )(*operands)

    if return_hidden:
        return res[0].T, res[1].T
    return res.T


# ----------------------------- parameter construction --------------------------------

def _kaiming_conv(key, cout, cin, k=3):
    std = math.sqrt(2.0 / (cin * k * k))
    return jax.random.normal(key, (cout, cin, k, k), jnp.float32) * std


def _bn_params(c):
    return dict(gamma=jnp.ones((c,), jnp.float32), beta=jnp.zeros((c,), jnp.float32),
                mean=jnp.zeros((c,), jnp.float32), var=jnp.ones((c,), jnp.float32))


def make_params(key, num_blocks=(1, 1, 1), num_classes=10):
    # No Python ints in this pytree; the architecture is re-derived from array shapes.
    params = {}
    keys = iter(jax.random.split(key, 4 * sum(num_blocks) + 8))
    params['conv1_w'] = _kaiming_conv(next(keys), 16, 3)
    params['bn1'] = _bn_params(16)
    in_planes = 16
    for li, (planes, nb) in enumerate(zip((16, 32, 64), num_blocks), start=1):
        blocks = []
        for _ in range(nb):
            blocks.append(dict(conv1_w=_kaiming_conv(next(keys), planes, in_planes),
                               bn1=_bn_params(planes),
                               conv2_w=_kaiming_conv(next(keys), planes, planes),
                               bn2=_bn_params(planes)))
            in_planes = planes
        params[f'layer{li}'] = blocks
    kw, kb = jax.random.split(next(keys))
    params['reducer_w'] = jax.random.normal(kw, (8, 64), jnp.float32) * math.sqrt(2.0 / 64)
    params['reducer_b'] = jax.random.uniform(kb, (8,), jnp.float32,
                                             minval=-1.0 / math.sqrt(64), maxval=1.0 / math.sqrt(64))
    kw, kb = jax.random.split(next(keys))
    params['classifier_w'] = jax.random.normal(kw, (num_classes, 8), jnp.float32) * math.sqrt(2.0 / 8)
    params['classifier_b'] = jax.random.uniform(kb, (num_classes,), jnp.float32,
                                                minval=-1.0 / math.sqrt(8), maxval=1.0 / math.sqrt(8))
    return params


# ----------------------------- main ----------------------------------------------------

if __name__ == "__main__":
    key = jax.random.PRNGKey(0)
    k_param, k_x = jax.random.split(key)

    params = make_params(k_param, num_blocks=(1, 1, 1), num_classes=10)
    x = jax.random.normal(k_x, (2, 3, 16, 16), jnp.float32)   # NCHW input

    fwd = jax.jit(resnet_forward, static_argnames=("return_hidden",))
    logits, hidden = fwd(params, x, return_hidden=True)
    jax.block_until_ready(logits)
    jax.block_until_ready(hidden)

    assert logits.shape == (2, 10), logits.shape
    assert hidden.shape == (2, 8), hidden.shape
    assert bool(jnp.all(jnp.isfinite(logits)))
    assert bool(jnp.all(jnp.isfinite(hidden)))
    print("KERNEL_OK")
</pallas_src>

<mosaic_0001>
module attributes {stable_mosaic.version = 11 : i64} {
  func.func @kernel(%arg0: memref<28x648xbf16, #tpu.memory_space<vmem>>, %arg1: memref<240x640xbf16, #tpu.memory_space<vmem>>, %arg2: memref<8x648xf32, #tpu.memory_space<vmem>>, %arg3: memref<324x100xbf16, #tpu.memory_space<vmem>>, %arg4: memref<100x36xbf16, #tpu.memory_space<vmem>>, %arg5: memref<96x32xbf16, #tpu.memory_space<vmem>>, %arg6: memref<72x2xbf16, #tpu.memory_space<vmem>>, %arg7: memref<24x64xbf16, #tpu.memory_space<vmem>>, %arg8: memref<16x2xf32, #tpu.memory_space<vmem>>, %arg9: memref<10x2xf32, #tpu.memory_space<vmem>>, %arg10: memref<8x2xf32, #tpu.memory_space<vmem>>, %arg11: memref<16x648xbf16, #tpu.memory_space<vmem>>, %arg12: memref<16x648xbf16, #tpu.memory_space<vmem>>, %arg13: memref<145x648xbf16, #tpu.memory_space<vmem>>, %arg14: memref<16x648xbf16, #tpu.memory_space<vmem>>, %arg15: memref<32x200xbf16, #tpu.memory_space<vmem>>, %arg16: memref<32x200xbf16, #tpu.memory_space<vmem>>, %arg17: memref<289x200xbf16, #tpu.memory_space<vmem>>, %arg18: memref<64x72xbf16, #tpu.memory_space<vmem>>, %arg19: memref<577x72xbf16, #tpu.memory_space<vmem>>) attributes {dimension_semantics = [], scalar_prefetch = 0 : i64, scratch_operands = 9 : i64, tpu.core_type = #tpu.core_type<tc>} {
    %cst = arith.constant 1.000000e+00 : bf16
    %0 = vector.broadcast %cst : bf16 to vector<1x648xbf16>
    %c144 = arith.constant 144 : index
    %c0 = arith.constant 0 : index
    %1 = vector.load %arg13[%c144, %c0] : memref<145x648xbf16, #tpu.memory_space<vmem>>, vector<1x648xbf16>
    tpu.vector_store %arg13[%c144, %c0], %0 {strides = array<i32>} : memref<145x648xbf16, #tpu.memory_space<vmem>>, vector<1x648xbf16>,
    %cst_0 = arith.constant 1.000000e+00 : bf16
    %2 = vector.broadcast %cst_0 : bf16 to vector<1x200xbf16>
    %c288 = arith.constant 288 : index
    %c0_1 = arith.constant 0 : index
    %3 = vector.load %arg17[%c288, %c0_1] : memref<289x200xbf16, #tpu.memory_space<vmem>>, vector<1x200xbf16>
    tpu.vector_store %arg17[%c288, %c0_1], %2 {strides = array<i32>} : memref<289x200xbf16, #tpu.memory_space<vmem>>, vector<1x200xbf16>,
    %cst_2 = arith.constant 1.000000e+00 : bf16
    %4 = vector.broadcast %cst_2 : bf16 to vector<1x72xbf16>
    %c576 = arith.constant 576 : index
    %c0_3 = arith.constant 0 : index
    %5 = vector.load %arg19[%c576, %c0_3] : memref<577x72xbf16, #tpu.memory_space<vmem>>, vector<1x72xbf16>
    tpu.vector_store %arg19[%c576, %c0_3], %4 {strides = array<i32>} : memref<577x72xbf16, #tpu.memory_space<vmem>>, vector<1x72xbf16>,
    %c0_4 = arith.constant 0 : index
    %c0_5 = arith.constant 0 : index
    %6 = vector.load %arg0[%c0_4, %c0_5] : memref<28x648xbf16, #tpu.memory_space<vmem>>, vector<28x648xbf16>
    %c0_6 = arith.constant 0 : index
    %c0_7 = arith.constant 0 : index
    %7 = vector.load %arg1[%c0_6, %c0_7] : memref<240x640xbf16, #tpu.memory_space<vmem>>, vector<16x28xbf16>
    %cst_8 = arith.constant dense<0.000000e+00> : vector<16x648xf32>
    %8 = tpu.matmul %7, %6, %cst_8 {dimension_numbers = #tpu.dot_dimension_numbers<[1], [0], [0], [1], [0, 0, 1, 1], [], []>} : vector<16x28xbf16>, vector<28x648xbf16>, vector<16x648xf32> -> vector<16x648xf32>
    %c0_9 = arith.constant 0 : index
    %c0_10 = arith.constant 0 : index
    %9 = vector.load %arg2[%c0_9, %c0_10] : memref<8x648xf32, #tpu.memory_space<vmem>>, vector<1x648xf32>
    %cst_11 = arith.constant 0.000000e+00 : f32
    %10 = vector.broadcast %cst_11 : f32 to vector<1x648xf32>
    %11 = arith.cmpf ogt, %9, %10 : vector<1x648xf32>
    %cst_12 = arith.constant 0.000000e+00 : f32
    %12 = vector.broadcast %cst_12 : f32 to vector<16x648xf32>
    %13 = arith.maximumf %8, %12 : vector<16x648xf32>
    %cst_13 = arith.constant 0.000000e+00 : f32
    %14 = vector.shape_cast %11 : vector<1x648xi1> to vector<1x648xi1>
    %15 = vector.broadcast %14 : vector<1x648xi1> to vector<16x648xi1>
    %16 = vector.broadcast %cst_13 : f32 to vector<16x648xf32>
    %17 = arith.select %15, %13, %16 : vector<16x648xi1>, vector<16x648xf32>
    %18 = arith.truncf %17 : vector<16x648xf32> to vector<16x648xbf16>
    %c0_14 = arith.constant 0 : index
    %c0_15 = arith.constant 0 : index
    %19 = vector.load %arg11[%c0_14, %c0_15] : memref<16x648xbf16, #tpu.memory_space<vmem>>, vector<16x648xbf16>
    tpu.vector_store %arg11[%c0_14, %c0_15], %18 {strides = array<i32>} : memref<16x648xbf16, #tpu.memory_space<vmem>>, vector<16x648xbf16>,
    %c0_16 = arith.constant 0 : index
    %c0_17 = arith.constant 0 : index
    %20 = vector.load %arg11[%c0_16, %c0_17] : memref<16x648xbf16, #tpu.memory_space<vmem>>, vector<16x629xbf16>
    %c0_18 = arith.constant 0 : index
    %c19 = arith.constant 19 : index
    %21 = vector.load %arg13[%c0_18, %c19] : memref<145x648xbf16, #tpu.memory_space<vmem>>, vector<16x629xbf16>
    tpu.vector_store %arg13[%c0_18, %c19], %20 {strides = array<i32>} : memref<145x648xbf16, #tpu.memory_space<vmem>>, vector<16x629xbf16>,
    %c0_19 = arith.constant 0 : index
    %c0_20 = arith.constant 0 : index
    %22 = vector.load %arg11[%c0_19, %c0_20] : memref<16x648xbf16, #tpu.memory_space<vmem>>, vector<16x630xbf16>
    %c16 = arith.constant 16 : index
    %c18 = arith.constant 18 : index
    %23 = vector.load %arg13[%c16, %c18] : memref<145x648xbf16, #tpu.memory_space<vmem>>, vector<16x630xbf16>
    tpu.vector_store %arg13[%c16, %c18], %22 {strides = array<i32>} : memref<145x648xbf16, #tpu.memory_space<vmem>>, vector<16x630xbf16>,
    %c0_21 = arith.constant 0 : index
    %c0_22 = arith.constant 0 : index
    %24 = vector.load %arg11[%c0_21, %c0_22] : memref<16x648xbf16, #tpu.memory_space<vmem>>, vector<16x631xbf16>
    %c32 = arith.constant 32 : index
    %c17 = arith.constant 17 : index
    %25 = vector.load %arg13[%c32, %c17] : memref<145x648xbf16, #tpu.memory_space<vmem>>, vector<16x631xbf16>
    tpu.vector_store %arg13[%c32, %c17], %24 {strides = array<i32>} : memref<145x648xbf16, #tpu.memory_space<vmem>>, vector<16x631xbf16>,
    %c0_23 = arith.constant 0 : index
    %c0_24 = arith.constant 0 : index
    %26 = vector.load %arg11[%c0_23, %c0_24] : memref<16x648xbf16, #tpu.memory_space<vmem>>, vector<16x647xbf16>
    %c48 = arith.constant 48 : index
    %c1 = arith.constant 1 : index
    %27 = vector.load %arg13[%c48, %c1] : memref<145x648xbf16, #tpu.memory_space<vmem>>, vector<16x647xbf16>
    tpu.vector_store %arg13[%c48, %c1], %26 {strides = array<i32>} : memref<145x648xbf16, #tpu.memory_space<vmem>>, vector<16x647xbf16>,
    %c0_25 = arith.constant 0 : index
    %c0_26 = arith.constant 0 : index
    %28 = vector.load %arg11[%c0_25, %c0_26] : memref<16x648xbf16, #tpu.memory_space<vmem>>, vector<16x648xbf16>
    %c64 = arith.constant 64 : index
    %c0_27 = arith.constant 0 : index
    %29 = vector.load %arg13[%c64, %c0_27] : memref<145x648xbf16, #tpu.memory_space<vmem>>, vector<16x648xbf16>
    tpu.vector_store %arg13[%c64, %c0_27], %28 {strides = array<i32>} : memref<145x648xbf16, #tpu.memory_space<vmem>>, vector<16x648xbf16>,
    %c0_28 = arith.constant 0 : index
    %c1_29 = arith.constant 1 : index
    %30 = vector.load %arg11[%c0_28, %c1_29] : memref<16x648xbf16, #tpu.memory_space<vmem>>, vector<16x647xbf16>
    %c80 = arith.constant 80 : index
    %c0_30 = arith.constant 0 : index
    %31 = vector.load %arg13[%c80, %c0_30] : memref<145x648xbf16, #tpu.memory_space<vmem>>, vector<16x647xbf16>
    tpu.vector_store %arg13[%c80, %c0_30], %30 {strides = array<i32>} : memref<145x648xbf16, #tpu.memory_space<vmem>>, vector<16x647xbf16>,
    %c0_31 = arith.constant 0 : index
    %c17_32 = arith.constant 17 : index
    %32 = vector.load %arg11[%c0_31, %c17_32] : memref<16x648xbf16, #tpu.memory_space<vmem>>, vector<16x631xbf16>
    %c96 = arith.constant 96 : index
    %c0_33 = arith.constant 0 : index
    %33 = vector.load %arg13[%c96, %c0_33] : memref<145x648xbf16, #tpu.memory_space<vmem>>, vector<16x631xbf16>
    tpu.vector_store %arg13[%c96, %c0_33], %32 {strides = array<i32>} : memref<145x648xbf16, #tpu.memory_space<vmem>>, vector<16x631xbf16>,
    %c0_34 = arith.constant 0 : index
    %c18_35 = arith.constant 18 : index
    %34 = vector.load %arg11[%c0_34, %c18_35] : memref<16x648xbf16, #tpu.memory_space<vmem>>, vector<16x630xbf16>
    %c112 = arith.constant 112 : index
    %c0_36 = arith.constant 0 : index
    %35 = vector.load %arg13[%c112, %c0_36] : memref<145x648xbf16, #tpu.memory_space<vmem>>, vector<16x630xbf16>
    tpu.vector_store %arg13[%c112, %c0_36], %34 {strides = array<i32>} : memref<145x648xbf16, #tpu.memory_space<vmem>>, vector<16x630xbf16>,
    %c0_37 = arith.constant 0 : index
    %c19_38 = arith.constant 19 : index
    %36 = vector.load %arg11[%c0_37, %c19_38] : memref<16x648xbf16, #tpu.memory_space<vmem>>, vector<16x629xbf16>
    %c128 = arith.constant 128 : index
    %c0_39 = arith.constant 0 : index
    %37 = vector.load %arg13[%c128, %c0_39] : memref<145x648xbf16, #tpu.memory_space<vmem>>, vector<16x629xbf16>
    tpu.vector_store %arg13[%c128, %c0_39], %36 {strides = array<i32>} : memref<145x648xbf16, #tpu.memory_space<vmem>>, vector<16x629xbf16>,
    %c0_40 = arith.constant 0 : index
    %c0_41 = arith.constant 0 : index
    %38 = vector.load %arg13[%c0_40, %c0_41] : memref<145x648xbf16, #tpu.memory_space<vmem>>, vector<145x648xbf16>
    %c16_42 = arith.constant 16 : index
    %c0_43 = arith.constant 0 : index
    %39 = vector.load %arg1[%c16_42, %c0_43] : memref<240x640xbf16, #tpu.memory_space<vmem>>, vector<16x145xbf16>
    %cst_44 = arith.constant dense<0.000000e+00> : vector<16x648xf32>
    %40 = tpu.matmul %39, %38, %cst_44 {dimension_numbers = #tpu.dot_dimension_numbers<[1], [0], [0], [1], [0, 0, 1, 1], [], []>} : vector<16x145xbf16>, vector<145x648xbf16>, vector<16x648xf32> -> vector<16x648xf32>
    %c0_45 = arith.constant 0 : index
    %c0_46 = arith.constant 0 : index
    %41 = vector.load %arg2[%c0_45, %c0_46] : memref<8x648xf32, #tpu.memory_space<vmem>>, vector<1x648xf32>
    %cst_47 = arith.constant 0.000000e+00 : f32
    %42 = vector.broadcast %cst_47 : f32 to vector<1x648xf32>
    %43 = arith.cmpf ogt, %41, %42 : vector<1x648xf32>
    %cst_48 = arith.constant 0.000000e+00 : f32
    %44 = vector.broadcast %cst_48 : f32 to vector<16x648xf32>
    %45 = arith.maximumf %40, %44 : vector<16x648xf32>
    %cst_49 = arith.constant 0.000000e+00 : f32
    %46 = vector.shape_cast %43 : vector<1x648xi1> to vector<1x648xi1>
    %47 = vector.broadcast %46 : vector<1x648xi1> to vector<16x648xi1>
    %48 = vector.broadcast %cst_49 : f32 to vector<16x648xf32>
    %49 = arith.select %47, %45, %48 : vector<16x648xi1>, vector<16x648xf32>
    %50 = arith.truncf %49 : vector<16x648xf32> to vector<16x648xbf16>
    %c0_50 = arith.constant 0 : index
    %c0_51 = arith.constant 0 : index
    %51 = vector.load %arg12[%c0_50, %c0_51] : memref<16x648xbf16, #tpu.memory_space<vmem>>, vector<16x648xbf16>
    tpu.vector_store %arg12[%c0_50, %c0_51], %50 {strides = array<i32>} : memref<16x648xbf16, #tpu.memory_space<vmem>>, vector<16x648xbf16>,
    %c0_52 = arith.constant 0 : index
    %c0_53 = arith.constant 0 : index
    %52 = vector.load %arg12[%c0_52, %c0_53] : memref<16x648xbf16, #tpu.memory_space<vmem>>, vector<16x629xbf16>
    %c0_54 = arith.constant 0 : index
    %c19_55 = arith.constant 19 : index
    %53 = vector.load %arg13[%c0_54, %c19_55] : memref<145x648xbf16, #tpu.memory_space<vmem>>, vector<16x629xbf16>
    tpu.vector_store %arg13[%c0_54, %c19_55], %52 {strides = array<i32>} : memref<145x648xbf16, #tpu.memory_space<vmem>>, vector<16x629xbf16>,
    %c0_56 = arith.constant 0 : index
    %c0_57 = arith.constant 0 : index
    %54 = vector.load %arg12[%c0_56, %c0_57] : memref<16x648xbf16, #tpu.memory_space<vmem>>, vector<16x630xbf16>
    %c16_58 = arith.constant 16 : index
    %c18_59 = arith.constant 18 : index
    %55 = vector.load %arg13[%c16_58, %c18_59] : memref<145x648xbf16, #tpu.memory_space<vmem>>, vector<16x630xbf16>
    tpu.vector_store %arg13[%c16_58, %c18_59], %54 {strides = array<i32>} : memref<145x648xbf16, #tpu.memory_space<vmem>>, vector<16x630xbf16>,
    %c0_60 = arith.constant 0 : index
    %c0_61 = arith.constant 0 : index
    %56 = vector.load %arg12[%c0_60, %c0_61] : memref<16x648xbf16, #tpu.memory_space<vmem>>, vector<16x631xbf16>
    %c32_62 = arith.constant 32 : index
    %c17_63 = arith.constant 17 : index
    %57 = vector.load %arg13[%c32_62, %c17_63] : memref<145x648xbf16, #tpu.memory_space<vmem>>, vector<16x631xbf16>
    tpu.vector_store %arg13[%c32_62, %c17_63], %56 {strides = array<i32>} : memref<145x648xbf16, #tpu.memory_space<vmem>>, vector<16x631xbf16>,
    %c0_64 = arith.constant 0 : index
    %c0_65 = arith.constant 0 : index
    %58 = vector.load %arg12[%c0_64, %c0_65] : memref<16x648xbf16, #tpu.memory_space<vmem>>, vector<16x647xbf16>
    %c48_66 = arith.constant 48 : index
    %c1_67 = arith.constant 1 : index
    %59 = vector.load %arg13[%c48_66, %c1_67] : memref<145x648xbf16, #tpu.memory_space<vmem>>, vector<16x647xbf16>
    tpu.vector_store %arg13[%c48_66, %c1_67], %58 {strides = array<i32>} : memref<145x648xbf16, #tpu.memory_space<vmem>>, vector<16x647xbf16>,
    %c0_68 = arith.constant 0 : index
    %c0_69 = arith.constant 0 : index
    %60 = vector.load %arg12[%c0_68, %c0_69] : memref<16x648xbf16, #tpu.memory_space<vmem>>, vector<16x648xbf16>
    %c64_70 = arith.constant 64 : index
    %c0_71 = arith.constant 0 : index
    %61 = vector.load %arg13[%c64_70, %c0_71] : memref<145x648xbf16, #tpu.memory_space<vmem>>, vector<16x648xbf16>
    tpu.vector_store %arg13[%c64_70, %c0_71], %60 {strides = array<i32>} : memref<145x648xbf16, #tpu.memory_space<vmem>>, vector<16x648xbf16>,
    %c0_72 = arith.constant 0 : index
    %c1_73 = arith.constant 1 : index
    %62 = vector.load %arg12[%c0_72, %c1_73] : memref<16x648xbf16, #tpu.memory_space<vmem>>, vector<16x647xbf16>
    %c80_74 = arith.constant 80 : index
    %c0_75 = arith.constant 0 : index
    %63 = vector.load %arg13[%c80_74, %c0_75] : memref<145x648xbf16, #tpu.memory_space<vmem>>, vector<16x647xbf16>
    tpu.vector_store %arg13[%c80_74, %c0_75], %62 {strides = array<i32>} : memref<145x648xbf16, #tpu.memory_space<vmem>>, vector<16x647xbf16>,
    %c0_76 = arith.constant 0 : index
    %c17_77 = arith.constant 17 : index
    %64 = vector.load %arg12[%c0_76, %c17_77] : memref<16x648xbf16, #tpu.memory_space<vmem>>, vector<16x631xbf16>
    %c96_78 = arith.constant 96 : index
    %c0_79 = arith.constant 0 : index
    %65 = vector.load %arg13[%c96_78, %c0_79] : memref<145x648xbf16, #tpu.memory_space<vmem>>, vector<16x631xbf16>
    tpu.vector_store %arg13[%c96_78, %c0_79], %64 {strides = array<i32>} : memref<145x648xbf16, #tpu.memory_space<vmem>>, vector<16x631xbf16>,
    %c0_80 = arith.constant 0 : index
    %c18_81 = arith.constant 18 : index
    %66 = vector.load %arg12[%c0_80, %c18_81] : memref<16x648xbf16, #tpu.memory_space<vmem>>, vector<16x630xbf16>
    %c112_82 = arith.constant 112 : index
    %c0_83 = arith.constant 0 : index
    %67 = vector.load %arg13[%c112_82, %c0_83] : memref<145x648xbf16, #tpu.memory_space<vmem>>, vector<16x630xbf16>
    tpu.vector_store %arg13[%c112_82, %c0_83], %66 {strides = array<i32>} : memref<145x648xbf16, #tpu.memory_space<vmem>>, vector<16x630xbf16>,
    %c0_84 = arith.constant 0 : index
    %c19_85 = arith.constant 19 : index
    %68 = vector.load %arg12[%c0_84, %c19_85] : memref<16x648xbf16, #tpu.memory_space<vmem>>, vector<16x629xbf16>
    %c128_86 = arith.constant 128 : index
    %c0_87 = arith.constant 0 : index
    %69 = vector.load %arg13[%c128_86, %c0_87] : memref<145x648xbf16, #tpu.memory_space<vmem>>, vector<16x629xbf16>
    tpu.vector_store %arg13[%c128_86, %c0_87], %68 {strides = array<i32>} : memref<145x648xbf16, #tpu.memory_space<vmem>>, vector<16x629xbf16>,
    %c0_88 = arith.constant 0 : index
    %c0_89 = arith.constant 0 : index
    %70 = vector.load %arg13[%c0_88, %c0_89] : memref<145x648xbf16, #tpu.memory_space<vmem>>, vector<145x648xbf16>
    %c32_90 = arith.constant 32 : index
    %c0_91 = arith.constant 0 : index
    %71 = vector.load %arg1[%c32_90, %c0_91] : memref<240x640xbf16, #tpu.memory_space<vmem>>, vector<16x145xbf16>
    %cst_92 = arith.constant dense<0.000000e+00> : vector<16x648xf32>
    %72 = tpu.matmul %71, %70, %cst_92 {dimension_numbers = #tpu.dot_dimension_numbers<[1], [0], [0], [1], [0, 0, 1, 1], [], []>} : vector<16x145xbf16>, vector<145x648xbf16>, vector<16x648xf32> -> vector<16x648xf32>
    %c0_93 = arith.constant 0 : index
    %c0_94 = arith.constant 0 : index
    %73 = vector.load %arg11[%c0_93, %c0_94] : memref<16x648xbf16, #tpu.memory_space<vmem>>, vector<16x648xbf16>
    %74 = arith.extf %73 : vector<16x648xbf16> to vector<16x648xf32>
    %75 = arith.addf %72, %74 : vector<16x648xf32>
    %c0_95 = arith.constant 0 : index
    %c0_96 = arith.constant 0 : index
    %76 = vector.load %arg2[%c0_95, %c0_96] : memref<8x648xf32, #tpu.memory_space<vmem>>, vector<1x648xf32>
    %cst_97 = arith.constant 0.000000e+00 : f32
    %77 = vector.broadcast %cst_97 : f32 to vector<1x648xf32>
    %78 = arith.cmpf ogt, %76, %77 : vector<1x648xf32>
    %cst_98 = arith.constant 0.000000e+00 : f32
    %79 = vector.broadcast %cst_98 : f32 to vector<16x648xf32>
    %80 = arith.maximumf %75, %79 : vector<16x648xf32>
    %cst_99 = arith.constant 0.000000e+00 : f32
    %81 = vector.shape_cast %78 : vector<1x648xi1> to vector<1x648xi1>
    %82 = vector.broadcast %81 : vector<1x648xi1> to vector<16x648xi1>
    %83 = vector.broadcast %cst_99 : f32 to vector<16x648xf32>
    %84 = arith.select %82, %80, %83 : vector<16x648xi1>, vector<16x648xf32>
    %85 = arith.truncf %84 : vector<16x648xf32> to vector<16x648xbf16>
    %c0_100 = arith.constant 0 : index
    %c0_101 = arith.constant 0 : index
    %86 = vector.load %arg14[%c0_100, %c0_101] : memref<16x648xbf16, #tpu.memory_space<vmem>>, vector<16x648xbf16>
    tpu.vector_store %arg14[%c0_100, %c0_101], %85 {strides = array<i32>} : memref<16x648xbf16, #tpu.memory_space<vmem>>, vector<16x648xbf16>,
    %c0_102 = arith.constant 0 : index
    %c0_103 = arith.constant 0 : index
    %87 = vector.load %arg14[%c0_102, %c0_103] : memref<16x648xbf16, #tpu.memory_space<vmem>>, vector<16x629xbf16>
    %c0_104 = arith.constant 0 : index
    %c19_105 = arith.constant 19 : index
    %88 = vector.load %arg13[%c0_104, %c19_105] : memref<145x648xbf16, #tpu.memory_space<vmem>>, vector<16x629xbf16>
    tpu.vector_store %arg13[%c0_104, %c19_105], %87 {strides = array<i32>} : memref<145x648xbf16, #tpu.memory_space<vmem>>, vector<16x629xbf16>,
    %c0_106 = arith.constant 0 : index
    %c0_107 = arith.constant 0 : index
    %89 = vector.load %arg14[%c0_106, %c0_107] : memref<16x648xbf16, #tpu.memory_space<vmem>>, vector<16x630xbf16>
    %c16_108 = arith.constant 16 : index
    %c18_109 = arith.constant 18 : index
    %90 = vector.load %arg13[%c16_108, %c18_109] : memref<145x648xbf16, #tpu.memory_space<vmem>>, vector<16x630xbf16>
    tpu.vector_store %arg13[%c16_108, %c18_109], %89 {strides = array<i32>} : memref<145x648xbf16, #tpu.memory_space<vmem>>, vector<16x630xbf16>,
    %c0_110 = arith.constant 0 : index
    %c0_111 = arith.constant 0 : index
    %91 = vector.load %arg14[%c0_110, %c0_111] : memref<16x648xbf16, #tpu.memory_space<vmem>>, vector<16x631xbf16>
    %c32_112 = arith.constant 32 : index
    %c17_113 = arith.constant 17 : index
    %92 = vector.load %arg13[%c32_112, %c17_113] : memref<145x648xbf16, #tpu.memory_space<vmem>>, vector<16x631xbf16>
    tpu.vector_store %arg13[%c32_112, %c17_113], %91 {strides = array<i32>} : memref<145x648xbf16, #tpu.memory_space<vmem>>, vector<16x631xbf16>,
    %c0_114 = arith.constant 0 : index
    %c0_115 = arith.constant 0 : index
    %93 = vector.load %arg14[%c0_114, %c0_115] : memref<16x648xbf16, #tpu.memory_space<vmem>>, vector<16x647xbf16>
    %c48_116 = arith.constant 48 : index
    %c1_117 = arith.constant 1 : index
    %94 = vector.load %arg13[%c48_116, %c1_117] : memref<145x648xbf16, #tpu.memory_space<vmem>>, vector<16x647xbf16>
    tpu.vector_store %arg13[%c48_116, %c1_117], %93 {strides = array<i32>} : memref<145x648xbf16, #tpu.memory_space<vmem>>, vector<16x647xbf16>,
    %c0_118 = arith.constant 0 : index
    %c0_119 = arith.constant 0 : index
    %95 = vector.load %arg14[%c0_118, %c0_119] : memref<16x648xbf16, #tpu.memory_space<vmem>>, vector<16x648xbf16>
    %c64_120 = arith.constant 64 : index
    %c0_121 = arith.constant 0 : index
    %96 = vector.load %arg13[%c64_120, %c0_121] : memref<145x648xbf16, #tpu.memory_space<vmem>>, vector<16x648xbf16>
    tpu.vector_store %arg13[%c64_120, %c0_121], %95 {strides = array<i32>} : memref<145x648xbf16, #tpu.memory_space<vmem>>, vector<16x648xbf16>,
    %c0_122 = arith.constant 0 : index
    %c1_123 = arith.constant 1 : index
    %97 = vector.load %arg14[%c0_122, %c1_123] : memref<16x648xbf16, #tpu.memory_space<vmem>>, vector<16x647xbf16>
    %c80_124 = arith.constant 80 : index
    %c0_125 = arith.constant 0 : index
    %98 = vector.load %arg13[%c80_124, %c0_125] : memref<145x648xbf16, #tpu.memory_space<vmem>>, vector<16x647xbf16>
    tpu.vector_store %arg13[%c80_124, %c0_125], %97 {strides = array<i32>} : memref<145x648xbf16, #tpu.memory_space<vmem>>, vector<16x647xbf16>,
    %c0_126 = arith.constant 0 : index
    %c17_127 = arith.constant 17 : index
    %99 = vector.load %arg14[%c0_126, %c17_127] : memref<16x648xbf16, #tpu.memory_space<vmem>>, vector<16x631xbf16>
    %c96_128 = arith.constant 96 : index
    %c0_129 = arith.constant 0 : index
    %100 = vector.load %arg13[%c96_128, %c0_129] : memref<145x648xbf16, #tpu.memory_space<vmem>>, vector<16x631xbf16>
    tpu.vector_store %arg13[%c96_128, %c0_129], %99 {strides = array<i32>} : memref<145x648xbf16, #tpu.memory_space<vmem>>, vector<16x631xbf16>,
    %c0_130 = arith.constant 0 : index
    %c18_131 = arith.constant 18 : index
    %101 = vector.load %arg14[%c0_130, %c18_131] : memref<16x648xbf16, #tpu.memory_space<vmem>>, vector<16x630xbf16>
    %c112_132 = arith.constant 112 : index
    %c0_133 = arith.constant 0 : index
    %102 = vector.load %arg13[%c112_132, %c0_133] : memref<145x648xbf16, #tpu.memory_space<vmem>>, vector<16x630xbf16>
    tpu.vector_store %arg13[%c112_132, %c0_133], %101 {strides = array<i32>} : memref<145x648xbf16, #tpu.memory_space<vmem>>, vector<16x630xbf16>,
    %c0_134 = arith.constant 0 : index
    %c19_135 = arith.constant 19 : index
    %103 = vector.load %arg14[%c0_134, %c19_135] : memref<16x648xbf16, #tpu.memory_space<vmem>>, vector<16x629xbf16>
    %c128_136 = arith.constant 128 : index
    %c0_137 = arith.constant 0 : index
    %104 = vector.load %arg13[%c128_136, %c0_137] : memref<145x648xbf16, #tpu.memory_space<vmem>>, vector<16x629xbf16>
    tpu.vector_store %arg13[%c128_136, %c0_137], %103 {strides = array<i32>} : memref<145x648xbf16, #tpu.memory_space<vmem>>, vector<16x629xbf16>,
    %c0_138 = arith.constant 0 : index
    %c0_139 = arith.constant 0 : index
    %105 = vector.load %arg13[%c0_138, %c0_139] : memref<145x648xbf16, #tpu.memory_space<vmem>>, vector<145x648xbf16>
    %c48_140 = arith.constant 48 : index
    %c0_141 = arith.constant 0 : index
    %106 = vector.load %arg1[%c48_140, %c0_141] : memref<240x640xbf16, #tpu.memory_space<vmem>>, vector<32x145xbf16>
    %cst_142 = arith.constant dense<0.000000e+00> : vector<32x648xf32>
    %107 = tpu.matmul %106, %105, %cst_142 {dimension_numbers = #tpu.dot_dimension_numbers<[1], [0], [0], [1], [0, 0, 1, 1], [], []>} : vector<32x145xbf16>, vector<145x648xbf16>, vector<32x648xf32> -> vector<32x648xf32>
    %c0_143 = arith.constant 0 : index
    %c0_144 = arith.constant 0 : index
    %108 = vector.load %arg2[%c0_143, %c0_144] : memref<8x648xf32, #tpu.memory_space<vmem>>, vector<1x648xf32>
    %cst_145 = arith.constant 0.000000e+00 : f32
    %109 = vector.broadcast %cst_145 : f32 to vector<1x648xf32>
    %110 = arith.cmpf ogt, %108, %109 : vector<1x648xf32>
    %cst_146 = arith.constant 0.000000e+00 : f32
    %111 = vector.shape_cast %110 : vector<1x648xi1> to vector<1x648xi1>
    %112 = vector.broadcast %111 : vector<1x648xi1> to vector<32x648xi1>
    %113 = vector.broadcast %cst_146 : f32 to vector<32x648xf32>
    %114 = arith.select %112, %107, %113 : vector<32x648xi1>, vector<32x648xf32>
    %115 = arith.truncf %114 : vector<32x648xf32> to vector<32x648xbf16>
    %c0_147 = arith.constant 0 : index
    %c0_148 = arith.constant 0 : index
    %116 = vector.load %arg3[%c0_147, %c0_148] : memref<324x100xbf16, #tpu.memory_space<vmem>>, vector<324x100xbf16>
    %117 = vector.extract_strided_slice %115 {offsets = [0, 0], sizes = [32, 324], strides = [1, 1]} : vector<32x648xbf16> to vector<32x324xbf16>
    %cst_149 = arith.constant dense<0.000000e+00> : vector<32x100xf32>
    %118 = tpu.matmul %117, %116, %cst_149 {dimension_numbers = #tpu.dot_dimension_numbers<[1], [0], [0], [1], [0, 0, 1, 1], [], []>} : vector<32x324xbf16>, vector<324x100xbf16>, vector<32x100xf32> -> vector<32x100xf32>
    %119 = vector.extract_strided_slice %115 {offsets = [0, 324], sizes = [32, 324], strides = [1, 1]} : vector<32x648xbf16> to vector<32x324xbf16>
    %cst_150 = arith.constant dense<0.000000e+00> : vector<32x100xf32>
    %120 = tpu.matmul %119, %116, %cst_150 {dimension_numbers = #tpu.dot_dimension_numbers<[1], [0], [0], [1], [0, 0, 1, 1], [], []>} : vector<32x324xbf16>, vector<324x100xbf16>, vector<32x100xf32> -> vector<32x100xf32>
    %121 = tpu.concatenate %118, %120 in 1 : vector<32x100xf32>, vector<32x100xf32> -> vector<32x200xf32>
    %c1_151 = arith.constant 1 : index
    %c0_152 = arith.constant 0 : index
    %122 = vector.load %arg2[%c1_151, %c0_152] : memref<8x648xf32, #tpu.memory_space<vmem>>, vector<1x200xf32>
    %cst_153 = arith.constant 0.000000e+00 : f32
    %123 = vector.broadcast %cst_153 : f32 to vector<1x200xf32>
    %124 = arith.cmpf ogt, %122, %123 : vector<1x200xf32>
    %cst_154 = arith.constant 0.000000e+00 : f32
    %125 = vector.broadcast %cst_154 : f32 to vector<32x200xf32>
    %126 = arith.maximumf %121, %125 : vector<32x200xf32>
    %cst_155 = arith.constant 0.000000e+00 : f32
    %127 = vector.shape_cast %124 : vector<1x200xi1> to vector<1x200xi1>
    %128 = vector.broadcast %127 : vector<1x200xi1> to vector<32x200xi1>
    %129 = vector.broadcast %cst_155 : f32 to vector<32x200xf32>
    %130 = arith.select %128, %126, %129 : vector<32x200xi1>, vector<32x200xf32>
    %131 = arith.truncf %130 : vector<32x200xf32> to vector<32x200xbf16>
    %c0_156 = arith.constant 0 : index
    %c0_157 = arith.constant 0 : index
    %132 = vector.load %arg15[%c0_156, %c0_157] : memref<32x200xbf16, #tpu.memory_space<vmem>>, vector<32x200xbf16>
    tpu.vector_store %arg15[%c0_156, %c0_157], %131 {strides = array<i32>} : memref<32x200xbf16, #tpu.memory_space<vmem>>, vector<32x200xbf16>,
    %c0_158 = arith.constant 0 : index
    %c0_159 = arith.constant 0 : index
    %133 = vector.load %arg15[%c0_158, %c0_159] : memref<32x200xbf16, #tpu.memory_space<vmem>>, vector<32x189xbf16>
    %c0_160 = arith.constant 0 : index
    %c11 = arith.constant 11 : index
    %134 = vector.load %arg17[%c0_160, %c11] : memref<289x200xbf16, #tpu.memory_space<vmem>>, vector<32x189xbf16>
    tpu.vector_store %arg17[%c0_160, %c11], %133 {strides = array<i32>} : memref<289x200xbf16, #tpu.memory_space<vmem>>, vector<32x189xbf16>,
    %c0_161 = arith.constant 0 : index
    %c0_162 = arith.constant 0 : index
    %135 = vector.load %arg15[%c0_161, %c0_162] : memref<32x200xbf16, #tpu.memory_space<vmem>>, vector<32x190xbf16>
    %c32_163 = arith.constant 32 : index
    %c10 = arith.constant 10 : index
    %136 = vector.load %arg17[%c32_163, %c10] : memref<289x200xbf16, #tpu.memory_space<vmem>>, vector<32x190xbf16>
    tpu.vector_store %arg17[%c32_163, %c10], %135 {strides = array<i32>} : memref<289x200xbf16, #tpu.memory_space<vmem>>, vector<32x190xbf16>,
    %c0_164 = arith.constant 0 : index
    %c0_165 = arith.constant 0 : index
    %137 = vector.load %arg15[%c0_164, %c0_165] : memref<32x200xbf16, #tpu.memory_space<vmem>>, vector<32x191xbf16>
    %c64_166 = arith.constant 64 : index
    %c9 = arith.constant 9 : index
    %138 = vector.load %arg17[%c64_166, %c9] : memref<289x200xbf16, #tpu.memory_space<vmem>>, vector<32x191xbf16>
    tpu.vector_store %arg17[%c64_166, %c9], %137 {strides = array<i32>} : memref<289x200xbf16, #tpu.memory_space<vmem>>, vector<32x191xbf16>,
    %c0_167 = arith.constant 0 : index
    %c0_168 = arith.constant 0 : index
    %139 = vector.load %arg15[%c0_167, %c0_168] : memref<32x200xbf16, #tpu.memory_space<vmem>>, vector<32x199xbf16>
    %c96_169 = arith.constant 96 : index
    %c1_170 = arith.constant 1 : index
    %140 = vector.load %arg17[%c96_169, %c1_170] : memref<289x200xbf16, #tpu.memory_space<vmem>>, vector<32x199xbf16>
    tpu.vector_store %arg17[%c96_169, %c1_170], %139 {strides = array<i32>} : memref<289x200xbf16, #tpu.memory_space<vmem>>, vector<32x199xbf16>,
    %c0_171 = arith.constant 0 : index
    %c0_172 = arith.constant 0 : index
    %141 = vector.load %arg15[%c0_171, %c0_172] : memref<32x200xbf16, #tpu.memory_space<vmem>>, vector<32x200xbf16>
    %c128_173 = arith.constant 128 : index
    %c0_174 = arith.constant 0 : index
    %142 = vector.load %arg17[%c128_173, %c0_174] : memref<289x200xbf16, #tpu.memory_space<vmem>>, vector<32x200xbf16>
    tpu.vector_store %arg17[%c128_173, %c0_174], %141 {strides = array<i32>} : memref<289x200xbf16, #tpu.memory_space<vmem>>, vector<32x200xbf16>,
    %c0_175 = arith.constant 0 : index
    %c1_176 = arith.constant 1 : index
    %143 = vector.load %arg15[%c0_175, %c1_176] : memref<32x200xbf16, #tpu.memory_space<vmem>>, vector<32x199xbf16>
    %c160 = arith.constant 160 : index
    %c0_177 = arith.constant 0 : index
    %144 = vector.load %arg17[%c160, %c0_177] : memref<289x200xbf16, #tpu.memory_space<vmem>>, vector<32x199xbf16>
    tpu.vector_store %arg17[%c160, %c0_177], %143 {strides = array<i32>} : memref<289x200xbf16, #tpu.memory_space<vmem>>, vector<32x199xbf16>,
    %c0_178 = arith.constant 0 : index
    %c9_179 = arith.constant 9 : index
    %145 = vector.load %arg15[%c0_178, %c9_179] : memref<32x200xbf16, #tpu.memory_space<vmem>>, vector<32x191xbf16>
    %c192 = arith.constant 192 : index
    %c0_180 = arith.constant 0 : index
    %146 = vector.load %arg17[%c192, %c0_180] : memref<289x200xbf16, #tpu.memory_space<vmem>>, vector<32x191xbf16>
    tpu.vector_store %arg17[%c192, %c0_180], %145 {strides = array<i32>} : memref<289x200xbf16, #tpu.memory_space<vmem>>, vector<32x191xbf16>,
    %c0_181 = arith.constant 0 : index
    %c10_182 = arith.constant 10 : index
    %147 = vector.load %arg15[%c0_181, %c10_182] : memref<32x200xbf16, #tpu.memory_space<vmem>>, vector<32x190xbf16>
    %c224 = arith.constant 224 : index
    %c0_183 = arith.constant 0 : index
    %148 = vector.load %arg17[%c224, %c0_183] : memref<289x200xbf16, #tpu.memory_space<vmem>>, vector<32x190xbf16>
    tpu.vector_store %arg17[%c224, %c0_183], %147 {strides = array<i32>} : memref<289x200xbf16, #tpu.memory_space<vmem>>, vector<32x190xbf16>,
    %c0_184 = arith.constant 0 : index
    %c11_185 = arith.constant 11 : index
    %149 = vector.load %arg15[%c0_184, %c11_185] : memref<32x200xbf16, #tpu.memory_space<vmem>>, vector<32x189xbf16>
    %c256 = arith.constant 256 : index
    %c0_186 = arith.constant 0 : index
    %150 = vector.load %arg17[%c256, %c0_186] : memref<289x200xbf16, #tpu.memory_space<vmem>>, vector<32x189xbf16>
    tpu.vector_store %arg17[%c256, %c0_186], %149 {strides = array<i32>} : memref<289x200xbf16, #tpu.memory_space<vmem>>, vector<32x189xbf16>,
    %c0_187 = arith.constant 0 : index
    %c0_188 = arith.constant 0 : index
    %151 = vector.load %arg17[%c0_187, %c0_188] : memref<289x200xbf16, #tpu.memory_space<vmem>>, vector<289x200xbf16>
    %c80_189 = arith.constant 80 : index
    %c0_190 = arith.constant 0 : index
    %152 = vector.load %arg1[%c80_189, %c0_190] : memref<240x640xbf16, #tpu.memory_space<vmem>>, vector<32x289xbf16>
    %cst_191 = arith.constant dense<0.000000e+00> : vector<32x200xf32>
    %153 = tpu.matmul %152, %151, %cst_191 {dimension_numbers = #tpu.dot_dimension_numbers<[1], [0], [0], [1], [0, 0, 1, 1], [], []>} : vector<32x289xbf16>, vector<289x200xbf16>, vector<32x200xf32> -> vector<32x200xf32>
    %c0_192 = arith.constant 0 : index
    %c0_193 = arith.constant 0 : index
    %154 = vector.load %arg14[%c0_192, %c0_193] : memref<16x648xbf16, #tpu.memory_space<vmem>>, vector<16x648xbf16>
    %c0_194 = arith.constant 0 : index
    %c0_195 = arith.constant 0 : index
    %155 = vector.load %arg3[%c0_194, %c0_195] : memref<324x100xbf16, #tpu.memory_space<vmem>>, vector<324x100xbf16>
    %156 = vector.extract_strided_slice %154 {offsets = [0, 0], sizes = [16, 324], strides = [1, 1]} : vector<16x648xbf16> to vector<16x324xbf16>
    %cst_196 = arith.constant dense<0.000000e+00> : vector<16x100xf32>
    %157 = tpu.matmul %156, %155, %cst_196 {dimension_numbers = #tpu.dot_dimension_numbers<[1], [0], [0], [1], [0, 0, 1, 1], [], []>} : vector<16x324xbf16>, vector<324x100xbf16>, vector<16x100xf32> -> vector<16x100xf32>
    %158 = vector.extract_strided_slice %154 {offsets = [0, 324], sizes = [16, 324], strides = [1, 1]} : vector<16x648xbf16> to vector<16x324xbf16>
    %cst_197 = arith.constant dense<0.000000e+00> : vector<16x100xf32>
    %159 = tpu.matmul %158, %155, %cst_197 {dimension_numbers = #tpu.dot_dimension_numbers<[1], [0], [0], [1], [0, 0, 1, 1], [], []>} : vector<16x324xbf16>, vector<324x100xbf16>, vector<16x100xf32> -> vector<16x100xf32>
    %160 = tpu.concatenate %157, %159 in 1 : vector<16x100xf32>, vector<16x100xf32> -> vector<16x200xf32>
    %c0_198 = arith.constant 0 : index
    %c0_199 = arith.constant 0 : index
    %161 = vector.load %arg5[%c0_198, %c0_199] : memref<96x32xbf16, #tpu.memory_space<vmem>>, vector<32x16xbf16>
    %162 = arith.truncf %160 : vector<16x200xf32> to vector<16x200xbf16>
    %cst_200 = arith.constant dense<0.000000e+00> : vector<32x200xf32>
    %163 = tpu.matmul %161, %162, %cst_200 {dimension_numbers = #tpu.dot_dimension_numbers<[1], [0], [0], [1], [0, 0, 1, 1], [], []>} : vector<32x16xbf16>, vector<16x200xbf16>, vector<32x200xf32> -> vector<32x200xf32>
    %164 = arith.addf %153, %163 : vector<32x200xf32>
    %c1_201 = arith.constant 1 : index
    %c0_202 = arith.constant 0 : index
    %165 = vector.load %arg2[%c1_201, %c0_202] : memref<8x648xf32, #tpu.memory_space<vmem>>, vector<1x200xf32>
    %cst_203 = arith.constant 0.000000e+00 : f32
    %166 = vector.broadcast %cst_203 : f32 to vector<1x200xf32>
    %167 = arith.cmpf ogt, %165, %166 : vector<1x200xf32>
    %cst_204 = arith.constant 0.000000e+00 : f32
    %168 = vector.broadcast %cst_204 : f32 to vector<32x200xf32>
    %169 = arith.maximumf %164, %168 : vector<32x200xf32>
    %cst_205 = arith.constant 0.000000e+00 : f32
    %170 = vector.shape_cast %167 : vector<1x200xi1> to vector<1x200xi1>
    %171 = vector.broadcast %170 : vector<1x200xi1> to vector<32x200xi1>
    %172 = vector.broadcast %cst_205 : f32 to vector<32x200xf32>
    %173 = arith.select %171, %169, %172 : vector<32x200xi1>, vector<32x200xf32>
    %174 = arith.truncf %173 : vector<32x200xf32> to vector<32x200xbf16>
    %c0_206 = arith.constant 0 : index
    %c0_207 = arith.constant 0 : index
    %175 = vector.load %arg16[%c0_206, %c0_207] : memref<32x200xbf16, #tpu.memory_space<vmem>>, vector<32x200xbf16>
    tpu.vector_store %arg16[%c0_206, %c0_207], %174 {strides = array<i32>} : memref<32x200xbf16, #tpu.memory_space<vmem>>, vector<32x200xbf16>,
    %c0_208 = arith.constant 0 : index
    %c0_209 = arith.constant 0 : index
    %176 = vector.load %arg16[%c0_208, %c0_209] : memref<32x200xbf16, #tpu.memory_space<vmem>>, vector<32x189xbf16>
    %c0_210 = arith.constant 0 : index
    %c11_211 = arith.constant 11 : index
    %177 = vector.load %arg17[%c0_210, %c11_211] : memref<289x200xbf16, #tpu.memory_space<vmem>>, vector<32x189xbf16>
    tpu.vector_store %arg17[%c0_210, %c11_211], %176 {strides = array<i32>} : memref<289x200xbf16, #tpu.memory_space<vmem>>, vector<32x189xbf16>,
    %c0_212 = arith.constant 0 : index
    %c0_213 = arith.constant 0 : index
    %178 = vector.load %arg16[%c0_212, %c0_213] : memref<32x200xbf16, #tpu.memory_space<vmem>>, vector<32x190xbf16>
    %c32_214 = arith.constant 32 : index
    %c10_215 = arith.constant 10 : index
    %179 = vector.load %arg17[%c32_214, %c10_215] : memref<289x200xbf16, #tpu.memory_space<vmem>>, vector<32x190xbf16>
    tpu.vector_store %arg17[%c32_214, %c10_215], %178 {strides = array<i32>} : memref<289x200xbf16, #tpu.memory_space<vmem>>, vector<32x190xbf16>,
    %c0_216 = arith.constant 0 : index
    %c0_217 = arith.constant 0 : index
    %180 = vector.load %arg16[%c0_216, %c0_217] : memref<32x200xbf16, #tpu.memory_space<vmem>>, vector<32x191xbf16>
    %c64_218 = arith.constant 64 : index
    %c9_219 = arith.constant 9 : index
    %181 = vector.load %arg17[%c64_218, %c9_219] : memref<289x200xbf16, #tpu.memory_space<vmem>>, vector<32x191xbf16>
    tpu.vector_store %arg17[%c64_218, %c9_219], %180 {strides = array<i32>} : memref<289x200xbf16, #tpu.memory_space<vmem>>, vector<32x191xbf16>,
    %c0_220 = arith.constant 0 : index
    %c0_221 = arith.constant 0 : index
    %182 = vector.load %arg16[%c0_220, %c0_221] : memref<32x200xbf16, #tpu.memory_space<vmem>>, vector<32x199xbf16>
    %c96_222 = arith.constant 96 : index
    %c1_223 = arith.constant 1 : index
    %183 = vector.load %arg17[%c96_222, %c1_223] : memref<289x200xbf16, #tpu.memory_space<vmem>>, vector<32x199xbf16>
    tpu.vector_store %arg17[%c96_222, %c1_223], %182 {strides = array<i32>} : memref<289x200xbf16, #tpu.memory_space<vmem>>, vector<32x199xbf16>,
    %c0_224 = arith.constant 0 : index
    %c0_225 = arith.constant 0 : index
    %184 = vector.load %arg16[%c0_224, %c0_225] : memref<32x200xbf16, #tpu.memory_space<vmem>>, vector<32x200xbf16>
    %c128_226 = arith.constant 128 : index
    %c0_227 = arith.constant 0 : index
    %185 = vector.load %arg17[%c128_226, %c0_227] : memref<289x200xbf16, #tpu.memory_space<vmem>>, vector<32x200xbf16>
    tpu.vector_store %arg17[%c128_226, %c0_227], %184 {strides = array<i32>} : memref<289x200xbf16, #tpu.memory_space<vmem>>, vector<32x200xbf16>,
    %c0_228 = arith.constant 0 : index
    %c1_229 = arith.constant 1 : index
    %186 = vector.load %arg16[%c0_228, %c1_229] : memref<32x200xbf16, #tpu.memory_space<vmem>>, vector<32x199xbf16>
    %c160_230 = arith.constant 160 : index
    %c0_231 = arith.constant 0 : index
    %187 = vector.load %arg17[%c160_230, %c0_231] : memref<289x200xbf16, #tpu.memory_space<vmem>>, vector<32x199xbf16>
    tpu.vector_store %arg17[%c160_230, %c0_231], %186 {strides = array<i32>} : memref<289x200xbf16, #tpu.memory_space<vmem>>, vector<32x199xbf16>,
    %c0_232 = arith.constant 0 : index
    %c9_233 = arith.constant 9 : index
    %188 = vector.load %arg16[%c0_232, %c9_233] : memref<32x200xbf16, #tpu.memory_space<vmem>>, vector<32x191xbf16>
    %c192_234 = arith.constant 192 : index
    %c0_235 = arith.constant 0 : index
    %189 = vector.load %arg17[%c192_234, %c0_235] : memref<289x200xbf16, #tpu.memory_space<vmem>>, vector<32x191xbf16>
    tpu.vector_store %arg17[%c192_234, %c0_235], %188 {strides = array<i32>} : memref<289x200xbf16, #tpu.memory_space<vmem>>, vector<32x191xbf16>,
    %c0_236 = arith.constant 0 : index
    %c10_237 = arith.constant 10 : index
    %190 = vector.load %arg16[%c0_236, %c10_237] : memref<32x200xbf16, #tpu.memory_space<vmem>>, vector<32x190xbf16>
    %c224_238 = arith.constant 224 : index
    %c0_239 = arith.constant 0 : index
    %191 = vector.load %arg17[%c224_238, %c0_239] : memref<289x200xbf16, #tpu.memory_space<vmem>>, vector<32x190xbf16>
    tpu.vector_store %arg17[%c224_238, %c0_239], %190 {strides = array<i32>} : memref<289x200xbf16, #tpu.memory_space<vmem>>, vector<32x190xbf16>,
    %c0_240 = arith.constant 0 : index
    %c11_241 = arith.constant 11 : index
    %192 = vector.load %arg16[%c0_240, %c11_241] : memref<32x200xbf16, #tpu.memory_space<vmem>>, vector<32x189xbf16>
    %c256_242 = arith.constant 256 : index
    %c0_243 = arith.constant 0 : index
    %193 = vector.load %arg17[%c256_242, %c0_243] : memref<289x200xbf16, #tpu.memory_space<vmem>>, vector<32x189xbf16>
    tpu.vector_store %arg17[%c256_242, %c0_243], %192 {strides = array<i32>} : memref<289x200xbf16, #tpu.memory_space<vmem>>, vector<32x189xbf16>,
    %c0_244 = arith.constant 0 : index
    %c0_245 = arith.constant 0 : index
    %194 = vector.load %arg17[%c0_244, %c0_245] : memref<289x200xbf16, #tpu.memory_space<vmem>>, vector<289x200xbf16>
    %c112_246 = arith.constant 112 : index
    %c0_247 = arith.constant 0 : index
    %195 = vector.load %arg1[%c112_246, %c0_247] : memref<240x640xbf16, #tpu.memory_space<vmem>>, vector<64x289xbf16>
    %cst_248 = arith.constant dense<0.000000e+00> : vector<64x200xf32>
    %196 = tpu.matmul %195, %194, %cst_248 {dimension_numbers = #tpu.dot_dimension_numbers<[1], [0], [0], [1], [0, 0, 1, 1], [], []>} : vector<64x289xbf16>, vector<289x200xbf16>, vector<64x200xf32> -> vector<64x200xf32>
    %c1_249 = arith.constant 1 : index
    %c0_250 = arith.constant 0 : index
    %197 = vector.load %arg2[%c1_249, %c0_250] : memref<8x648xf32, #tpu.memory_space<vmem>>, vector<1x200xf32>
    %cst_251 = arith.constant 0.000000e+00 : f32
    %198 = vector.broadcast %cst_251 : f32 to vector<1x200xf32>
    %199 = arith.cmpf ogt, %197, %198 : vector<1x200xf32>
    %cst_252 = arith.constant 0.000000e+00 : f32
    %200 = vector.shape_cast %199 : vector<1x200xi1> to vector<1x200xi1>
    %201 = vector.broadcast %200 : vector<1x200xi1> to vector<64x200xi1>
    %202 = vector.broadcast %cst_252 : f32 to vector<64x200xf32>
    %203 = arith.select %201, %196, %202 : vector<64x200xi1>, vector<64x200xf32>
    %204 = arith.truncf %203 : vector<64x200xf32> to vector<64x200xbf16>
    %c0_253 = arith.constant 0 : index
    %c0_254 = arith.constant 0 : index
    %205 = vector.load %arg4[%c0_253, %c0_254] : memref<100x36xbf16, #tpu.memory_space<vmem>>, vector<100x36xbf16>
    %206 = vector.extract_strided_slice %204 {offsets = [0, 0], sizes = [64, 100], strides = [1, 1]} : vector<64x200xbf16> to vector<64x100xbf16>
    %cst_255 = arith.constant dense<0.000000e+00> : vector<64x36xf32>
    %207 = tpu.matmul %206, %205, %cst_255 {dimension_numbers = #tpu.dot_dimension_numbers<[1], [0], [0], [1], [0, 0, 1, 1], [], []>} : vector<64x100xbf16>, vector<100x36xbf16>, vector<64x36xf32> -> vector<64x36xf32>
    %208 = vector.extract_strided_slice %204 {offsets = [0, 100], sizes = [64, 100], strides = [1, 1]} : vector<64x200xbf16> to vector<64x100xbf16>
    %cst_256 = arith.constant dense<0.000000e+00> : vector<64x36xf32>
    %209 = tpu.matmul %208, %205, %cst_256 {dimension_numbers = #tpu.dot_dimension_numbers<[1], [0], [0], [1], [0, 0, 1, 1], [], []>} : vector<64x100xbf16>, vector<100x36xbf16>, vector<64x36xf32> -> vector<64x36xf32>
    %210 = tpu.concatenate %207, %209 in 1 : vector<64x36xf32>, vector<64x36xf32> -> vector<64x72xf32>
    %c2 = arith.constant 2 : index
    %c0_257 = arith.constant 0 : index
    %211 = vector.load %arg2[%c2, %c0_257] : memref<8x648xf32, #tpu.memory_space<vmem>>, vector<1x72xf32>
    %cst_258 = arith.constant 0.000000e+00 : f32
    %212 = vector.broadcast %cst_258 : f32 to vector<1x72xf32>
    %213 = arith.cmpf ogt, %211, %212 : vector<1x72xf32>
    %cst_259 = arith.constant 0.000000e+00 : f32
    %214 = vector.broadcast %cst_259 : f32 to vector<64x72xf32>
    %215 = arith.maximumf %210, %214 : vector<64x72xf32>
    %cst_260 = arith.constant 0.000000e+00 : f32
    %216 = vector.shape_cast %213 : vector<1x72xi1> to vector<1x72xi1>
    %217 = vector.broadcast %216 : vector<1x72xi1> to vector<64x72xi1>
    %218 = vector.broadcast %cst_260 : f32 to vector<64x72xf32>
    %219 = arith.select %217, %215, %218 : vector<64x72xi1>, vector<64x72xf32>
    %220 = arith.truncf %219 : vector<64x72xf32> to vector<64x72xbf16>
    %c0_261 = arith.constant 0 : index
    %c0_262 = arith.constant 0 : index
    %221 = vector.load %arg18[%c0_261, %c0_262] : memref<64x72xbf16, #tpu.memory_space<vmem>>, vector<64x72xbf16>
    tpu.vector_store %arg18[%c0_261, %c0_262], %220 {strides = array<i32>} : memref<64x72xbf16, #tpu.memory_space<vmem>>, vector<64x72xbf16>,
    %c0_263 = arith.constant 0 : index
    %c0_264 = arith.constant 0 : index
    %222 = vector.load %arg18[%c0_263, %c0_264] : memref<64x72xbf16, #tpu.memory_space<vmem>>, vector<64x65xbf16>
    %c0_265 = arith.constant 0 : index
    %c7 = arith.constant 7 : index
    %223 = vector.load %arg19[%c0_265, %c7] : memref<577x72xbf16, #tpu.memory_space<vmem>>, vector<64x65xbf16>
    tpu.vector_store %arg19[%c0_265, %c7], %222 {strides = array<i32>} : memref<577x72xbf16, #tpu.memory_space<vmem>>, vector<64x65xbf16>,
    %c0_266 = arith.constant 0 : index
    %c0_267 = arith.constant 0 : index
    %224 = vector.load %arg18[%c0_266, %c0_267] : memref<64x72xbf16, #tpu.memory_space<vmem>>, vector<64x66xbf16>
    %c64_268 = arith.constant 64 : index
    %c6 = arith.constant 6 : index
    %225 = vector.load %arg19[%c64_268, %c6] : memref<577x72xbf16, #tpu.memory_space<vmem>>, vector<64x66xbf16>
    tpu.vector_store %arg19[%c64_268, %c6], %224 {strides = array<i32>} : memref<577x72xbf16, #tpu.memory_space<vmem>>, vector<64x66xbf16>,
    %c0_269 = arith.constant 0 : index
    %c0_270 = arith.constant 0 : index
    %226 = vector.load %arg18[%c0_269, %c0_270] : memref<64x72xbf16, #tpu.memory_space<vmem>>, vector<64x67xbf16>
    %c128_271 = arith.constant 128 : index
    %c5 = arith.constant 5 : index
    %227 = vector.load %arg19[%c128_271, %c5] : memref<577x72xbf16, #tpu.memory_space<vmem>>, vector<64x67xbf16>
    tpu.vector_store %arg19[%c128_271, %c5], %226 {strides = array<i32>} : memref<577x72xbf16, #tpu.memory_space<vmem>>, vector<64x67xbf16>,
    %c0_272 = arith.constant 0 : index
    %c0_273 = arith.constant 0 : index
    %228 = vector.load %arg18[%c0_272, %c0_273] : memref<64x72xbf16, #tpu.memory_space<vmem>>, vector<64x71xbf16>
    %c192_274 = arith.constant 192 : index
    %c1_275 = arith.constant 1 : index
    %229 = vector.load %arg19[%c192_274, %c1_275] : memref<577x72xbf16, #tpu.memory_space<vmem>>, vector<64x71xbf16>
    tpu.vector_store %arg19[%c192_274, %c1_275], %228 {strides = array<i32>} : memref<577x72xbf16, #tpu.memory_space<vmem>>, vector<64x71xbf16>,
    %c0_276 = arith.constant 0 : index
    %c0_277 = arith.constant 0 : index
    %230 = vector.load %arg18[%c0_276, %c0_277] : memref<64x72xbf16, #tpu.memory_space<vmem>>, vector<64x72xbf16>
    %c256_278 = arith.constant 256 : index
    %c0_279 = arith.constant 0 : index
    %231 = vector.load %arg19[%c256_278, %c0_279] : memref<577x72xbf16, #tpu.memory_space<vmem>>, vector<64x72xbf16>
    tpu.vector_store %arg19[%c256_278, %c0_279], %230 {strides = array<i32>} : memref<577x72xbf16, #tpu.memory_space<vmem>>, vector<64x72xbf16>,
    %c0_280 = arith.constant 0 : index
    %c1_281 = arith.constant 1 : index
    %232 = vector.load %arg18[%c0_280, %c1_281] : memref<64x72xbf16, #tpu.memory_space<vmem>>, vector<64x71xbf16>
    %c320 = arith.constant 320 : index
    %c0_282 = arith.constant 0 : index
    %233 = vector.load %arg19[%c320, %c0_282] : memref<577x72xbf16, #tpu.memory_space<vmem>>, vector<64x71xbf16>
    tpu.vector_store %arg19[%c320, %c0_282], %232 {strides = array<i32>} : memref<577x72xbf16, #tpu.memory_space<vmem>>, vector<64x71xbf16>,
    %c0_283 = arith.constant 0 : index
    %c5_284 = arith.constant 5 : index
    %234 = vector.load %arg18[%c0_283, %c5_284] : memref<64x72xbf16, #tpu.memory_space<vmem>>, vector<64x67xbf16>
    %c384 = arith.constant 384 : index
    %c0_285 = arith.constant 0 : index
    %235 = vector.load %arg19[%c384, %c0_285] : memref<577x72xbf16, #tpu.memory_space<vmem>>, vector<64x67xbf16>
    tpu.vector_store %arg19[%c384, %c0_285], %234 {strides = array<i32>} : memref<577x72xbf16, #tpu.memory_space<vmem>>, vector<64x67xbf16>,
    %c0_286 = arith.constant 0 : index
    %c6_287 = arith.constant 6 : index
    %236 = vector.load %arg18[%c0_286, %c6_287] : memref<64x72xbf16, #tpu.memory_space<vmem>>, vector<64x66xbf16>
    %c448 = arith.constant 448 : index
    %c0_288 = arith.constant 0 : index
    %237 = vector.load %arg19[%c448, %c0_288] : memref<577x72xbf16, #tpu.memory_space<vmem>>, vector<64x66xbf16>
    tpu.vector_store %arg19[%c448, %c0_288], %236 {strides = array<i32>} : memref<577x72xbf16, #tpu.memory_space<vmem>>, vector<64x66xbf16>,
    %c0_289 = arith.constant 0 : index
    %c7_290 = arith.constant 7 : index
    %238 = vector.load %arg18[%c0_289, %c7_290] : memref<64x72xbf16, #tpu.memory_space<vmem>>, vector<64x65xbf16>
    %c512 = arith.constant 512 : index
    %c0_291 = arith.constant 0 : index
    %239 = vector.load %arg19[%c512, %c0_291] : memref<577x72xbf16, #tpu.memory_space<vmem>>, vector<64x65xbf16>
    tpu.vector_store %arg19[%c512, %c0_291], %238 {strides = array<i32>} : memref<577x72xbf16, #tpu.memory_space<vmem>>, vector<64x65xbf16>,
    %c0_292 = arith.constant 0 : index
    %c0_293 = arith.constant 0 : index
    %240 = vector.load %arg19[%c0_292, %c0_293] : memref<577x72xbf16, #tpu.memory_space<vmem>>, vector<577x72xbf16>
    %c176 = arith.constant 176 : index
    %c0_294 = arith.constant 0 : index
    %241 = vector.load %arg1[%c176, %c0_294] : memref<240x640xbf16, #tpu.memory_space<vmem>>, vector<64x577xbf16>
    %cst_295 = arith.constant dense<0.000000e+00> : vector<64x72xf32>
    %242 = tpu.matmul %241, %240, %cst_295 {dimension_numbers = #tpu.dot_dimension_numbers<[1], [0], [0], [1], [0, 0, 1, 1], [], []>} : vector<64x577xbf16>, vector<577x72xbf16>, vector<64x72xf32> -> vector<64x72xf32>
    %c0_296 = arith.constant 0 : index
    %c0_297 = arith.constant 0 : index
    %243 = vector.load %arg16[%c0_296, %c0_297] : memref<32x200xbf16, #tpu.memory_space<vmem>>, vector<32x200xbf16>
    %c0_298 = arith.constant 0 : index
    %c0_299 = arith.constant 0 : index
    %244 = vector.load %arg4[%c0_298, %c0_299] : memref<100x36xbf16, #tpu.memory_space<vmem>>, vector<100x36xbf16>
    %245 = vector.extract_strided_slice %243 {offsets = [0, 0], sizes = [32, 100], strides = [1, 1]} : vector<32x200xbf16> to vector<32x100xbf16>
    %cst_300 = arith.constant dense<0.000000e+00> : vector<32x36xf32>
    %246 = tpu.matmul %245, %244, %cst_300 {dimension_numbers = #tpu.dot_dimension_numbers<[1], [0], [0], [1], [0, 0, 1, 1], [], []>} : vector<32x100xbf16>, vector<100x36xbf16>, vector<32x36xf32> -> vector<32x36xf32>
    %247 = vector.extract_strided_slice %243 {offsets = [0, 100], sizes = [32, 100], strides = [1, 1]} : vector<32x200xbf16> to vector<32x100xbf16>
    %cst_301 = arith.constant dense<0.000000e+00> : vector<32x36xf32>
    %248 = tpu.matmul %247, %244, %cst_301 {dimension_numbers = #tpu.dot_dimension_numbers<[1], [0], [0], [1], [0, 0, 1, 1], [], []>} : vector<32x100xbf16>, vector<100x36xbf16>, vector<32x36xf32> -> vector<32x36xf32>
    %249 = tpu.concatenate %246, %248 in 1 : vector<32x36xf32>, vector<32x36xf32> -> vector<32x72xf32>
    %c32_302 = arith.constant 32 : index
    %c0_303 = arith.constant 0 : index
    %250 = vector.load %arg5[%c32_302, %c0_303] : memref<96x32xbf16, #tpu.memory_space<vmem>>, vector<64x32xbf16>
    %251 = arith.truncf %249 : vector<32x72xf32> to vector<32x72xbf16>
    %cst_304 = arith.constant dense<0.000000e+00> : vector<64x72xf32>
    %252 = tpu.matmul %250, %251, %cst_304 {dimension_numbers = #tpu.dot_dimension_numbers<[1], [0], [0], [1], [0, 0, 1, 1], [], []>} : vector<64x32xbf16>, vector<32x72xbf16>, vector<64x72xf32> -> vector<64x72xf32>
    %253 = arith.addf %242, %252 : vector<64x72xf32>
    %c2_305 = arith.constant 2 : index
    %c0_306 = arith.constant 0 : index
    %254 = vector.load %arg2[%c2_305, %c0_306] : memref<8x648xf32, #tpu.memory_space<vmem>>, vector<1x72xf32>
    %cst_307 = arith.constant 0.000000e+00 : f32
    %255 = vector.broadcast %cst_307 : f32 to vector<1x72xf32>
    %256 = arith.cmpf ogt, %254, %255 : vector<1x72xf32>
    %cst_308 = arith.constant 0.000000e+00 : f32
    %257 = vector.broadcast %cst_308 : f32 to vector<64x72xf32>
    %258 = arith.maximumf %253, %257 : vector<64x72xf32>
    %cst_309 = arith.constant 0.000000e+00 : f32
    %259 = vector.shape_cast %256 : vector<1x72xi1> to vector<1x72xi1>
    %260 = vector.broadcast %259 : vector<1x72xi1> to vector<64x72xi1>
    %261 = vector.broadcast %cst_309 : f32 to vector<64x72xf32>
    %262 = arith.select %260, %258, %261 : vector<64x72xi1>, vector<64x72xf32>
    %263 = arith.truncf %262 : vector<64x72xf32> to vector<64x72xbf16>
    %c0_310 = arith.constant 0 : index
    %c0_311 = arith.constant 0 : index
    %264 = vector.load %arg6[%c0_310, %c0_311] : memref<72x2xbf16, #tpu.memory_space<vmem>>, vector<72x2xbf16>
    %cst_312 = arith.constant dense<0.000000e+00> : vector<64x2xf32>
    %265 = tpu.matmul %263, %264, %cst_312 {dimension_numbers = #tpu.dot_dimension_numbers<[1], [0], [0], [1], [0, 0, 1, 1], [], []>} : vector<64x72xbf16>, vector<72x2xbf16>, vector<64x2xf32> -> vector<64x2xf32>
    %c0_313 = arith.constant 0 : index
    %c0_314 = arith.constant 0 : index
    %266 = vector.load %arg7[%c0_313, %c0_314] : memref<24x64xbf16, #tpu.memory_space<vmem>>, vector<8x64xbf16>
    %267 = arith.truncf %265 : vector<64x2xf32> to vector<64x2xbf16>
    %cst_315 = arith.constant dense<0.000000e+00> : vector<8x2xf32>
    %268 = tpu.matmul %266, %267, %cst_315 {dimension_numbers = #tpu.dot_dimension_numbers<[1], [0], [0], [1], [0, 0, 1, 1], [], []>} : vector<8x64xbf16>, vector<64x2xbf16>, vector<8x2xf32> -> vector<8x2xf32>
    %c0_316 = arith.constant 0 : index
    %c0_317 = arith.constant 0 : index
    %269 = vector.load %arg8[%c0_316, %c0_317] : memref<16x2xf32, #tpu.memory_space<vmem>>, vector<8x1xf32>
    %270 = vector.broadcast %269 : vector<8x1xf32> to vector<8x2xf32>
    %271 = arith.addf %268, %270 : vector<8x2xf32>
    %c8 = arith.constant 8 : index
    %c0_318 = arith.constant 0 : index
    %272 = vector.load %arg7[%c8, %c0_318] : memref<24x64xbf16, #tpu.memory_space<vmem>>, vector<10x8xbf16>
    %273 = arith.truncf %271 : vector<8x2xf32> to vector<8x2xbf16>
    %cst_319 = arith.constant dense<0.000000e+00> : vector<10x2xf32>
    %274 = tpu.matmul %272, %273, %cst_319 {dimension_numbers = #tpu.dot_dimension_numbers<[1], [0], [0], [1], [0, 0, 1, 1], [], []>} : vector<10x8xbf16>, vector<8x2xbf16>, vector<10x2xf32> -> vector<10x2xf32>
    %c0_320 = arith.constant 0 : index
    %c1_321 = arith.constant 1 : index
    %275 = vector.load %arg8[%c0_320, %c1_321] : memref<16x2xf32, #tpu.memory_space<vmem>>, vector<10x1xf32>
    %276 = vector.broadcast %275 : vector<10x1xf32> to vector<10x2xf32>
    %277 = arith.addf %274, %276 : vector<10x2xf32>
    %c0_322 = arith.constant 0 : index
    %c0_323 = arith.constant 0 : index
    %278 = vector.load %arg9[%c0_322, %c0_323] : memref<10x2xf32, #tpu.memory_space<vmem>>, vector<10x2xf32>
    tpu.vector_store %arg9[%c0_322, %c0_323], %277 {strides = array<i32>} : memref<10x2xf32, #tpu.memory_space<vmem>>, vector<10x2xf32>,
    %c0_324 = arith.constant 0 : index
    %c0_325 = arith.constant 0 : index
    %279 = vector.load %arg10[%c0_324, %c0_325] : memref<8x2xf32, #tpu.memory_space<vmem>>, vector<8x2xf32>
    tpu.vector_store %arg10[%c0_324, %c0_325], %271 {strides = array<i32>} : memref<8x2xf32, #tpu.memory_space<vmem>>, vector<8x2xf32>,
    return
  }
}

</mosaic_0001>

<llo_original>
// kernel: resnet_forward.1
$region0: #{resnet_forward.1}
  #allocation0 [shape = 'u32[]', space=smem, size = 0x4, offset = 0x4, fixed_abs, tag = 'smem constant byte address 0x4 - core index']
  #allocation1 [shape = 'u32[72,128]{1,0:T(1,128)}', space=vmem, size = 0x9000, scoped, tag = 'internal scratch']
  #allocation2 [shape = 'bf16[16,648]{1,0:T(8,128)(2,1)}', space=vmem, size = 0x6000, scoped, tag = 'scratch operand']
  #allocation3 [shape = 'bf16[16,648]{1,0:T(8,128)(2,1)}', space=vmem, size = 0x6000, scoped, tag = 'scratch operand']
  #allocation4 [shape = 'bf16[145,648]{1,0:T(8,128)(2,1)}', space=vmem, size = 0x39000, scoped, tag = 'scratch operand']
  #allocation5 [shape = 'bf16[16,648]{1,0:T(8,128)(2,1)}', space=vmem, size = 0x6000, scoped, tag = 'scratch operand']
  #allocation6 [shape = 'bf16[32,200]{1,0:T(8,128)(2,1)}', space=vmem, size = 0x4000, scoped, tag = 'scratch operand']
  #allocation7 [shape = 'bf16[32,200]{1,0:T(8,128)(2,1)}', space=vmem, size = 0x4000, scoped, tag = 'scratch operand']
  #allocation8 [shape = 'bf16[289,200]{1,0:T(8,128)(2,1)}', space=vmem, size = 0x25000, scoped, tag = 'scratch operand']
  #allocation9 [shape = 'bf16[64,72]{1,0:T(8,128)(2,1)}', space=vmem, size = 0x4000, scoped, tag = 'scratch operand']
  #allocation10 [shape = 'bf16[577,72]{1,0:T(8,128)(2,1)}', space=vmem, size = 0x24800, scoped, tag = 'scratch operand']
  %s0 = inlined_call_operand.vmem [shape: bf16[28,648], index: 0, kind: input, shape index: {}]
  %s1 = inlined_call_operand.vmem [shape: bf16[240,640], index: 1, kind: input, shape index: {}]
  %s2 = inlined_call_operand.vmem [shape: f32[8,648], index: 2, kind: input, shape index: {}]
  %s3 = inlined_call_operand.vmem [shape: bf16[324,100], index: 3, kind: input, shape index: {}]
  %s4 = inlined_call_operand.vmem [shape: bf16[100,36], index: 4, kind: input, shape index: {}]
  %s5 = inlined_call_operand.vmem [shape: bf16[96,32], index: 5, kind: input, shape index: {}]
  %s6 = inlined_call_operand.vmem [shape: bf16[72,2], index: 6, kind: input, shape index: {}]
  %s7 = inlined_call_operand.vmem [shape: bf16[24,64], index: 7, kind: input, shape index: {}]
  %s8 = inlined_call_operand.vmem [shape: f32[16,2], index: 8, kind: input, shape index: {}]
  %s9 = inlined_call_operand.vmem [shape: f32[10,2], index: 9, kind: output, shape index: {0}]
  %s10 = inlined_call_operand.vmem [shape: f32[8,2], index: 10, kind: output, shape index: {1}]
  %11 = xla_tuple %s9, %s10
  %s12 = sld [smem:[#allocation0]]
  $region54: #{resnet_forward.1} parent=0
    _
  %s14 = ssub.s32 1, %s12
  %s15 = scalar_select 0, %s14, %s12
  // Predicated region
  $region2: #{resnet_forward.1} parent=0 // pred_check
    _
  $region3: #{resnet_forward.1} parent=0 // pred_check_branch
    %17 = sbr.rel (0) target = $region5
  $region4: #{resnet_forward.1} parent=0 // pred_region
    _
  $region5: #{resnet_forward.1} parent=0 // pred_fallthru
    _
  // Predicated region
  $region6: #{resnet_forward.1} parent=0 // pred_check
    _
  $region7: #{resnet_forward.1} parent=0 // pred_check_branch
    %19 = sbr.rel (0) target = $region9
  $region8: #{resnet_forward.1} parent=0 // pred_region
    _
  $region9: #{resnet_forward.1} parent=0 // pred_fallthru
    _
  // Predicated region
  $region10: #{resnet_forward.1} parent=0 // pred_check
    _
  $region11: #{resnet_forward.1} parent=0 // pred_check_branch
    %21 = sbr.rel (0) target = $region13
  $region12: #{resnet_forward.1} parent=0 // pred_region
    _
  $region13: #{resnet_forward.1} parent=0 // pred_fallthru
    _
  // Predicated region
  $region14: #{resnet_forward.1} parent=0 // pred_check
    _
  $region15: #{resnet_forward.1} parent=0 // pred_check_branch
    %23 = sbr.rel (0) target = $region17
  $region16: #{resnet_forward.1} parent=0 // pred_region
    _
  $region17: #{resnet_forward.1} parent=0 // pred_fallthru
    _
  // Predicated region
  $region18: #{resnet_forward.1} parent=0 // pred_check
    _
  $region19: #{resnet_forward.1} parent=0 // pred_check_branch
    %25 = sbr.rel (0) target = $region21
  $region20: #{resnet_forward.1} parent=0 // pred_region
    _
  $region21: #{resnet_forward.1} parent=0 // pred_fallthru
    _
  // Predicated region
  $region22: #{resnet_forward.1} parent=0 // pred_check
    _
  $region23: #{resnet_forward.1} parent=0 // pred_check_branch
    %27 = sbr.rel (0) target = $region25
  $region24: #{resnet_forward.1} parent=0 // pred_region
    _
  $region25: #{resnet_forward.1} parent=0 // pred_fallthru
    _
  // Predicated region
  $region26: #{resnet_forward.1} parent=0 // pred_check
    _
  $region27: #{resnet_forward.1} parent=0 // pred_check_branch
    %29 = sbr.rel (0) target = $region29
  $region28: #{resnet_forward.1} parent=0 // pred_region
    _
  $region29: #{resnet_forward.1} parent=0 // pred_fallthru
    _
  // Predicated region
  $region30: #{resnet_forward.1} parent=0 // pred_check
    _
  $region31: #{resnet_forward.1} parent=0 // pred_check_branch
    %31 = sbr.rel (0) target = $region33
  $region32: #{resnet_forward.1} parent=0 // pred_region
    _
  $region33: #{resnet_forward.1} parent=0 // pred_fallthru
    _
  // Predicated region
  $region34: #{resnet_forward.1} parent=0 // pred_check
    _
  $region35: #{resnet_forward.1} parent=0 // pred_check_branch
    %33 = sbr.rel (0) target = $region37
  $region36: #{resnet_forward.1} parent=0 // pred_region
    _
  $region37: #{resnet_forward.1} parent=0 // pred_fallthru
    _
  %vm36 = vcmask 1040384
  %vm37 = vsmask.f32 256
  %vm38 = vmand %vm36, %vm37
  %vm39 = vcmask 1044484
  %vm40 = vsmask.f32 4352
  %vm41 = vmand %vm39, %vm40
  %vm42 = vmor %vm41, %vm38
  %v43 = vld [vmem:[#allocation4 + $0x1b0] sm:$0x11]
  %v44 = vsel %vm42, 1065369472, %v43
  %45 = vst [vmem:[#allocation4 + $0x1b0] sm:$0x11] %v44
  %v46 = vld [vmem:[#allocation4 + $0x1b8] sm:$0x11]
  %v47 = vsel %vm42, 1065369472, %v46
  %48 = vst [vmem:[#allocation4 + $0x1b8] sm:$0x11] %v47
  %vm49 = vcmask 61444
  %vm50 = vmand %vm49, %vm40
  %vm51 = vmor %vm50, %vm38
  %v52 = vld [vmem:[#allocation4 + $0x1c0] sm:$0x11]
  %v53 = vsel %vm51, 1065369472, %v52
  %54 = vst [vmem:[#allocation4 + $0x1c0] sm:$0x11] %v53
  %vm55 = vcmask 585732
  %vm56 = vmand %vm55, %vm40
  %vm57 = vmor %vm56, %vm38
  %v58 = vld [vmem:[#allocation8 + $0x120] sm:$0x11]
  %v59 = vsel %vm57, 1065369472, %v58
  %60 = vst [vmem:[#allocation8 + $0x120] sm:$0x11] %v59
  %vm61 = vcmask 581632
  %vm62 = vmand %vm61, %vm37
  %v63 = vld [vmem:[#allocation10 + $0x120] sm:$0x1]
  %v64 = vsel %vm62, 1065369472, %v63
  %65 = vst [vmem:[#allocation10 + $0x120] sm:$0x1] %v64
  %v66 = vld [vmem:[%s0] sm:$0xff]
  %v67 = vld [vmem:[%s0 + $0x8] sm:$0xff]
  %v68 = vld [vmem:[%s0 + $0x10] sm:$0xff]
  %v69 = vld [vmem:[%s0 + $0x18] sm:$0xff]
  %v70 = vld [vmem:[%s0 + $0x20] sm:$0xff]
  %v71 = vld [vmem:[%s0 + $0x28] sm:$0xff]
  %v72 = vld [vmem:[%s0 + $0x30] sm:$0xff]
  %v73 = vld [vmem:[%s0 + $0x38] sm:$0xff]
  %v74 = vld [vmem:[%s0 + $0x40] sm:$0xff]
  %v75 = vld [vmem:[%s0 + $0x48] sm:$0x33]
  %v76 = vld [vmem:[%s0 + $0x50] sm:$0x33]
  %v77 = vld [vmem:[%s0 + $0x58] sm:$0x33]
  %v78 = vld [vmem:[%s1] sm:$0xf]
  %v79 = vld [vmem:[%s1 + $0x14] sm:$0xf]
  %v82 = vunpack.c.l.b16 %v78
  %v83 = vunpack.c.l.b16 %v79
  %v84 = vpack.c.b16 %v83, %v82
  %v97 = vunpack.c.l.b16 %v66
  %v98 = vunpack.c.h.b16 %v66
  %v99 = vunpack.c.l.b16 %v67
  %v100 = vunpack.c.h.b16 %v67
  %v101 = vunpack.c.l.b16 %v68
  %v102 = vunpack.c.h.b16 %v68
  %v103 = vunpack.c.l.b16 %v69
  %v104 = vunpack.c.h.b16 %v69
  %v105 = vunpack.c.l.b16 %v70
  %v106 = vunpack.c.h.b16 %v70
  %v107 = vunpack.c.l.b16 %v71
  %v108 = vunpack.c.h.b16 %v71
  %v109 = vunpack.c.l.b16 %v72
  %v110 = vunpack.c.h.b16 %v72
  %v111 = vunpack.c.l.b16 %v73
  %v112 = vunpack.c.h.b16 %v73
  %v113 = vunpack.c.l.b16 %v74
  %v114 = vunpack.c.h.b16 %v74
  %v115 = vunpack.c.l.b16 %v75
  %v116 = vunpack.c.h.b16 %v75
  %v117 = vunpack.c.l.b16 %v76
  %v118 = vunpack.c.h.b16 %v76
  %v119 = vunpack.c.l.b16 %v77
  %v120 = vunpack.c.h.b16 %v77
  %v121 = vpack.c.b16 %v103, %v97
  %v122 = vpack.c.b16 %v104, %v98
  %v123 = vpack.c.b16 %v105, %v99
  %v124 = vpack.c.b16 %v106, %v100
  %v125 = vpack.c.b16 %v107, %v101
  %v126 = vpack.c.b16 %v108, %v102
  %v127 = vpack.c.b16 %v115, %v109
  %v128 = vpack.c.b16 %v116, %v110
  %v129 = vpack.c.b16 %v117, %v111
  %v130 = vpack.c.b16 %v118, %v112
  %v131 = vpack.c.b16 %v119, %v113
  %v132 = vpack.c.b16 %v120, %v114
  %vm139 = vcmask 228352
  %v141 = vsel %vm139, %v84, 0
  %vm143 = vcmask 1045504
  %v145 = vsel %vm143, %v127, 0
  %v148 = vsel %vm143, %v128, 0
  %v151 = vsel %vm143, %v129, 0
  %v154 = vsel %vm143, %v130, 0
  %v157 = vsel %vm143, %v131, 0
  %v160 = vsel %vm143, %v132, 0
  %162 = vmatpush.bf16.msra.mxu0 0
  %163 = vmatpush.bf16.msra.mxu0 0
  %164 = vmatpush.bf16.msra.mxu0 0
  %165 = vmatpush.bf16.msra.mxu0 0
  %166 = vmatpush.bf16.msra.mxu0 0
  %167 = vmatpush.bf16.msra.mxu0 0
  %168 = vmatpush.bf16.msra.mxu0 %v145
  %169 = vmatpush.bf16.msra.mxu0 %v121
  %170 = vmatmul.bf16.gmra.mxu0 %v141
  %v171 = vpop.f32.mrf.mxu0
  %v172 = vadd.f32 0.0, %v171
  %v173 = vpop.f32.mrf.mxu0
  %v174 = vadd.f32 0.0, %v173
  %175 = vdwg.mxu0
  %176 = vmatpush.bf16.msra.mxu0 0
  %177 = vmatpush.bf16.msra.mxu0 0
  %178 = vmatpush.bf16.msra.mxu0 0
  %179 = vmatpush.bf16.msra.mxu0 0
  %180 = vmatpush.bf16.msra.mxu0 0
  %181 = vmatpush.bf16.msra.mxu0 0
  %182 = vmatpush.bf16.msra.mxu0 %v148
  %183 = vmatpush.bf16.msra.mxu0 %v122
  %184 = vmatmul.bf16.gmra.mxu0 %v141
  %v185 = vpop.f32.mrf.mxu0
  %v186 = vadd.f32 0.0, %v185
  %v187 = vpop.f32.mrf.mxu0
  %v188 = vadd.f32 0.0, %v187
  %189 = vdwg.mxu0
  %190 = vmatpush.bf16.msra.mxu0 0
  %191 = vmatpush.bf16.msra.mxu0 0
  %192 = vmatpush.bf16.msra.mxu0 0
  %193 = vmatpush.bf16.msra.mxu0 0
  %194 = vmatpush.bf16.msra.mxu0 0
  %195 = vmatpush.bf16.msra.mxu0 0
  %196 = vmatpush.bf16.msra.mxu0 %v151
  %197 = vmatpush.bf16.msra.mxu0 %v123
  %198 = vmatmul.bf16.gmra.mxu0 %v141
  %v199 = vpop.f32.mrf.mxu0
  %v200 = vadd.f32 0.0, %v199
  %v201 = vpop.f32.mrf.mxu0
  %v202 = vadd.f32 0.0, %v201
  %203 = vdwg.mxu0
  %204 = vmatpush.bf16.msra.mxu0 0
  %205 = vmatpush.bf16.msra.mxu0 0
  %206 = vmatpush.bf16.msra.mxu0 0
  %207 = vmatpush.bf16.msra.mxu0 0
  %208 = vmatpush.bf16.msra.mxu0 0
  %209 = vmatpush.bf16.msra.mxu0 0
  %210 = vmatpush.bf16.msra.mxu0 %v154
  %211 = vmatpush.bf16.msra.mxu0 %v124
  %212 = vmatmul.bf16.gmra.mxu0 %v141
  %v213 = vpop.f32.mrf.mxu0
  %v214 = vadd.f32 0.0, %v213
  %v215 = vpop.f32.mrf.mxu0
  %v216 = vadd.f32 0.0, %v215
  %217 = vdwg.mxu0
  %218 = vmatpush.bf16.msra.mxu0 0
  %219 = vmatpush.bf16.msra.mxu0 0
  %220 = vmatpush.bf16.msra.mxu0 0
  %221 = vmatpush.bf16.msra.mxu0 0
  %222 = vmatpush.bf16.msra.mxu0 0
  %223 = vmatpush.bf16.msra.mxu0 0
  %224 = vmatpush.bf16.msra.mxu0 %v157
  %225 = vmatpush.bf16.msra.mxu0 %v125
  %226 = vmatmul.bf16.gmra.mxu0 %v141
  %v227 = vpop.f32.mrf.mxu0
  %v228 = vadd.f32 0.0, %v227
  %v229 = vpop.f32.mrf.mxu0
  %v230 = vadd.f32 0.0, %v229
  %231 = vdwg.mxu0
  %232 = vmatpush.bf16.msra.mxu0 0
  %233 = vmatpush.bf16.msra.mxu0 0
  %234 = vmatpush.bf16.msra.mxu0 0
  %235 = vmatpush.bf16.msra.mxu0 0
  %236 = vmatpush.bf16.msra.mxu0 0
  %237 = vmatpush.bf16.msra.mxu0 0
  %238 = vmatpush.bf16.msra.mxu0 %v160
  %239 = vmatpush.bf16.msra.mxu0 %v126
  %240 = vmatmul.bf16.gmra.mxu0 %v141
  %v241 = vpop.f32.mrf.mxu0
  %v242 = vadd.f32 0.0, %v241
  %v243 = vpop.f32.mrf.mxu0
  %v244 = vadd.f32 0.0, %v243
  %245 = vdwg.mxu0
  %v246 = vld [vmem:[%s2] ss:$8 sm:$0xf]
  %v247 = vld [vmem:[%s2] ss:$8 sm:$0x30]
  %v248 = vor.u32 %v246, %v247
  %vm249 = vcmp.gt.f32.partialorder %v248, 0.0
  %v250 = vmax.f32 %v172, 0.0
  %v251 = vmax.f32 %v186, 0.0
  %v252 = vmax.f32 %v200, 0.0
  %v253 = vmax.f32 %v214, 0.0
  %v254 = vmax.f32 %v228, 0.0
  %v255 = vmax.f32 %v242, 0.0
  %v256 = vmax.f32 %v174, 0.0
  %v257 = vmax.f32 %v188, 0.0
  %v258 = vmax.f32 %v202, 0.0
  %v259 = vmax.f32 %v216, 0.0
  %v260 = vmax.f32 %v230, 0.0
  %v261 = vmax.f32 %v244, 0.0
  %v262 = vsel %vm249, 1, 0
  %v263 = vperm.slane %v262, 0
  %v264 = vperm.slane %v262, 1
  %v265 = vperm.slane %v262, 2
  %v266 = vperm.slane %v262, 3
  %v267 = vperm.slane %v262, 4
  %v268 = vperm.slane %v262, 5
  %vm269 = vcmp.eq.s32.totalorder %v263, 1
  %vm270 = vcmp.eq.s32.totalorder %v264, 1
  %vm271 = vcmp.eq.s32.totalorder %v265, 1
  %vm272 = vcmp.eq.s32.totalorder %v266, 1
  %vm273 = vcmp.eq.s32.totalorder %v267, 1
  %vm274 = vcmp.eq.s32.totalorder %v268, 1
  %v275 = vsel %vm269, %v250, 0.0
  %v276 = vsel %vm270, %v251, 0.0
  %v277 = vsel %vm271, %v252, 0.0
  %v278 = vsel %vm272, %v253, 0.0
  %v279 = vsel %vm273, %v254, 0.0
  %v280 = vsel %vm274, %v255, 0.0
  %v281 = vsel %vm269, %v256, 0.0
  %v282 = vsel %vm270, %v257, 0.0
  %v283 = vsel %vm271, %v258, 0.0
  %v284 = vsel %vm272, %v259, 0.0
  %v285 = vsel %vm273, %v260, 0.0
  %v286 = vsel %vm274, %v261, 0.0
  %v287 = vpack.c.bf16 %v276, %v275
  %v288 = vpack.c.bf16 %v278, %v277
  %v289 = vpack.c.bf16 %v280, %v279
  %v290 = vpack.c.bf16 %v282, %v281
  %v291 = vpack.c.bf16 %v284, %v283
  %v292 = vpack.c.bf16 %v286, %v285
  %293 = vst [vmem:[#allocation2] sm:$0xff] %v287
  %294 = vst [vmem:[#allocation2 + $0x8] sm:$0xff] %v288
  %vm295 = vcmask 1043456
  %vm296 = vcmask 64516
  %vm297 = vmor %vm296, %vm295
  %298 = vst.msk [vmem:[#allocation2 + $0x10] sm:$0xff] %vm297, %v289
  %299 = vst [vmem:[#allocation2 + $0x18] sm:$0xff] %v290
  %300 = vst [vmem:[#allocation2 + $0x20] sm:$0xff] %v291
  %301 = vst.msk [vmem:[#allocation2 + $0x28] sm:$0xff] %vm297, %v292
  %v302 = vld [vmem:[#allocation2] sm:$0xff]
  %v303 = vld [vmem:[#allocation2 + $0x8] sm:$0xff]
  %v304 = vld [vmem:[#allocation2 + $0x10] sm:$0xf]
  %v305 = vld [vmem:[#allocation2 + $0x18] sm:$0xff]
  %v306 = vld [vmem:[#allocation2 + $0x20] sm:$0xff]
  %v307 = vld [vmem:[#allocation2 + $0x28] sm:$0xf]
  %314 = vrot.lane.b32.xlu0 %v302, 19
  %v315 = vpop.permute.xlu0 %314
  %316 = vrot.lane.b32.xlu0 %v303, 19
  %v317 = vpop.permute.xlu0 %316
  %318 = vrot.lane.b32.xlu0 %v304, 19
  %v319 = vpop.permute.xlu0 %318
  %320 = vrot.lane.b32.xlu0 %v305, 19
  %v321 = vpop.permute.xlu0 %320
  %322 = vrot.lane.b32.xlu0 %v306, 19
  %v323 = vpop.permute.xlu0 %322
  %324 = vrot.lane.b32.xlu0 %v307, 19
  %v325 = vpop.permute.xlu0 %324
  %v326 = vrot.slane %v315, 4
  %v327 = vrot.slane %v317, 4
  %v328 = vrot.slane %v319, 4
  %v329 = vrot.slane %v321, 4
  %v330 = vrot.slane %v323, 4
  %v331 = vrot.slane %v325, 4
  %vm332 = vcmask 154624
  %v333 = vsel %vm332, %v326, %v315
  %vm334 = vcmask 1043456
  %v335 = vsel %vm334, %v326, %v327
  %v336 = vsel %vm332, %v335, %v317
  %v337 = vsel %vm334, %v327, %v328
  %v338 = vsel %vm332, %v337, %v319
  %v339 = vsel %vm332, %v329, %v321
  %v340 = vsel %vm334, %v329, %v330
  %v341 = vsel %vm332, %v340, %v323
  %v342 = vsel %vm334, %v330, %v331
  %v343 = vsel %vm332, %v342, %v325
  %vm350 = vcmask 1043608
  %vm351 = vcmask 1047556
  %vm352 = vmor %vm351, %vm350
  %353 = vst.msk [vmem:[#allocation4] sm:$0xff] %vm352, %v333
  %354 = vst [vmem:[#allocation4 + $0x8] sm:$0xff] %v336
  %355 = vst.msk [vmem:[#allocation4 + $0x10] sm:$0xff] %vm297, %v338
  %356 = vst.msk [vmem:[#allocation4 + $0x18] sm:$0xff] %vm352, %v339
  %357 = vst [vmem:[#allocation4 + $0x20] sm:$0xff] %v341
  %358 = vst.msk [vmem:[#allocation4 + $0x28] sm:$0xff] %vm297, %v343
  %v359 = vld [vmem:[#allocation2] sm:$0xff]
  %v360 = vld [vmem:[#allocation2 + $0x8] sm:$0xff]
  %v361 = vld [vmem:[#allocation2 + $0x10] sm:$0xf]
  %v362 = vld [vmem:[#allocation2 + $0x18] sm:$0xff]
  %v363 = vld [vmem:[#allocation2 + $0x20] sm:$0xff]
  %v364 = vld [vmem:[#allocation2 + $0x28] sm:$0xf]
  %371 = vrot.lane.b32.xlu0 %v359, 18
  %v372 = vpop.permute.xlu0 %371
  %373 = vrot.lane.b32.xlu0 %v360, 18
  %v374 = vpop.permute.xlu0 %373
  %375 = vrot.lane.b32.xlu0 %v361, 18
  %v376 = vpop.permute.xlu0 %375
  %377 = vrot.lane.b32.xlu0 %v362, 18
  %v378 = vpop.permute.xlu0 %377
  %379 = vrot.lane.b32.xlu0 %v363, 18
  %v380 = vpop.permute.xlu0 %379
  %381 = vrot.lane.b32.xlu0 %v364, 18
  %v382 = vpop.permute.xlu0 %381
  %v383 = vrot.slane %v372, 4
  %v384 = vrot.slane %v374, 4
  %v385 = vrot.slane %v376, 4
  %v386 = vrot.slane %v378, 4
  %v387 = vrot.slane %v380, 4
  %v388 = vrot.slane %v382, 4
  %vm389 = vcmask 146432
  %v390 = vsel %vm389, %v383, %v372
  %v391 = vsel %vm334, %v383, %v384
  %v392 = vsel %vm389, %v391, %v374
  %v393 = vsel %vm334, %v384, %v385
  %v394 = vsel %vm389, %v393, %v376
  %v395 = vsel %vm389, %v386, %v378
  %v396 = vsel %vm334, %v386, %v387
  %v397 = vsel %vm389, %v396, %v380
  %v398 = vsel %vm334, %v387, %v388
  %v399 = vsel %vm389, %v398, %v382
  %vm406 = vcmask 1043600
  %vm407 = vmor %vm351, %vm406
  %408 = vst.msk [vmem:[#allocation4 + $0x30] sm:$0xff] %vm407, %v390
  %409 = vst [vmem:[#allocation4 + $0x38] sm:$0xff] %v392
  %410 = vst.msk [vmem:[#allocation4 + $0x40] sm:$0xff] %vm297, %v394
  %411 = vst.msk [vmem:[#allocation4 + $0x48] sm:$0xff] %vm407, %v395
  %412 = vst [vmem:[#allocation4 + $0x50] sm:$0xff] %v397
  %413 = vst.msk [vmem:[#allocation4 + $0x58] sm:$0xff] %vm297, %v399
  %v414 = vld [vmem:[#allocation2] sm:$0xff]
  %v415 = vld [vmem:[#allocation2 + $0x8] sm:$0xff]
  %v416 = vld [vmem:[#allocation2 + $0x10] sm:$0xf]
  %v417 = vld [vmem:[#allocation2 + $0x18] sm:$0xff]
  %v418 = vld [vmem:[#allocation2 + $0x20] sm:$0xff]
  %v419 = vld [vmem:[#allocation2 + $0x28] sm:$0xf]
  %426 = vrot.lane.b32.xlu0 %v414, 17
  %v427 = vpop.permute.xlu0 %426
  %428 = vrot.lane.b32.xlu0 %v415, 17
  %v429 = vpop.permute.xlu0 %428
  %430 = vrot.lane.b32.xlu0 %v416, 17
  %v431 = vpop.permute.xlu0 %430
  %432 = vrot.lane.b32.xlu0 %v417, 17
  %v433 = vpop.permute.xlu0 %432
  %434 = vrot.lane.b32.xlu0 %v418, 17
  %v435 = vpop.permute.xlu0 %434
  %436 = vrot.lane.b32.xlu0 %v419, 17
  %v437 = vpop.permute.xlu0 %436
  %v438 = vrot.slane %v427, 4
  %v439 = vrot.slane %v429, 4
  %v440 = vrot.slane %v431, 4
  %v441 = vrot.slane %v433, 4
  %v442 = vrot.slane %v435, 4
  %v443 = vrot.slane %v437, 4
  %vm444 = vcmask 138240
  %v445 = vsel %vm444, %v438, %v427
  %v446 = vsel %vm334, %v438, %v439
  %v447 = vsel %vm444, %v446, %v429
  %v448 = vsel %vm334, %v439, %v440
  %v449 = vsel %vm444, %v448, %v431
  %v450 = vsel %vm444, %v441, %v433
  %v451 = vsel %vm334, %v441, %v442
  %v452 = vsel %vm444, %v451, %v435
  %v453 = vsel %vm334, %v442, %v443
  %v454 = vsel %vm444, %v453, %v437
  %vm461 = vcmask 1043592
  %vm462 = vmor %vm351, %vm461
  %463 = vst.msk [vmem:[#allocation4 + $0x60] sm:$0xff] %vm462, %v445
  %464 = vst [vmem:[#allocation4 + $0x68] sm:$0xff] %v447
  %465 = vst.msk [vmem:[#allocation4 + $0x70] sm:$0xff] %vm297, %v449
  %466 = vst.msk [vmem:[#allocation4 + $0x78] sm:$0xff] %vm462, %v450
  %467 = vst [vmem:[#allocation4 + $0x80] sm:$0xff] %v452
  %468 = vst.msk [vmem:[#allocation4 + $0x88] sm:$0xff] %vm297, %v454
  %v469 = vld [vmem:[#allocation2] sm:$0xff]
  %v470 = vld [vmem:[#allocation2 + $0x8] sm:$0xff]
  %v471 = vld [vmem:[#allocation2 + $0x10] sm:$0xff]
  %v472 = vld [vmem:[#allocation2 + $0x18] sm:$0xff]
  %v473 = vld [vmem:[#allocation2 + $0x20] sm:$0xff]
  %v474 = vld [vmem:[#allocation2 + $0x28] sm:$0xff]
  %481 = vrot.lane.b32.xlu0 %v469, 1
  %v482 = vpop.permute.xlu0 %481
  %483 = vrot.lane.b32.xlu0 %v470, 1
  %v484 = vpop.permute.xlu0 %483
  %485 = vrot.lane.b32.xlu0 %v471, 1
  %v486 = vpop.permute.xlu0 %485
  %487 = vrot.lane.b32.xlu0 %v472, 1
  %v488 = vpop.permute.xlu0 %487
  %489 = vrot.lane.b32.xlu0 %v473, 1
  %v490 = vpop.permute.xlu0 %489
  %491 = vrot.lane.b32.xlu0 %v474, 1
  %v492 = vpop.permute.xlu0 %491
  %v493 = vrot.slane %v482, 4
  %v494 = vrot.slane %v484, 4
  %v495 = vrot.slane %v486, 4
  %v496 = vrot.slane %v488, 4
  %v497 = vrot.slane %v490, 4
  %v498 = vrot.slane %v492, 4
  %vm499 = vcmask 7168
  %v500 = vsel %vm499, %v493, %v482
  %v501 = vsel %vm334, %v493, %v494
  %v502 = vsel %vm499, %v501, %v484
  %v503 = vsel %vm334, %v494, %v495
  %v504 = vsel %vm499, %v503, %v486
  %v505 = vsel %vm499, %v496, %v488
  %v506 = vsel %vm334, %v496, %v497
  %v507 = vsel %vm499, %v506, %v490
  %v508 = vsel %vm334, %v497, %v498
  %v509 = vsel %vm499, %v508, %v492
  %vm516 = vcmask 1043464
  %vm517 = vmor %vm351, %vm516
  %518 = vst.msk [vmem:[#allocation4 + $0x90] sm:$0xff] %vm517, %v500
  %519 = vst [vmem:[#allocation4 + $0x98] sm:$0xff] %v502
  %520 = vst.msk [vmem:[#allocation4 + $0xa0] sm:$0xff] %vm297, %v504
  %521 = vst.msk [vmem:[#allocation4 + $0xa8] sm:$0xff] %vm517, %v505
  %522 = vst [vmem:[#allocation4 + $0xb0] sm:$0xff] %v507
  %523 = vst.msk [vmem:[#allocation4 + $0xb8] sm:$0xff] %vm297, %v509
  %v524 = vld [vmem:[#allocation2] sm:$0xff]
  %v525 = vld [vmem:[#allocation2 + $0x8] sm:$0xff]
  %v526 = vld [vmem:[#allocation2 + $0x10] sm:$0xff]
  %v527 = vld [vmem:[#allocation2 + $0x18] sm:$0xff]
  %v528 = vld [vmem:[#allocation2 + $0x20] sm:$0xff]
  %v529 = vld [vmem:[#allocation2 + $0x28] sm:$0xff]
  %530 = vst [vmem:[#allocation4 + $0xc0] sm:$0xff] %v524
  %531 = vst [vmem:[#allocation4 + $0xc8] sm:$0xff] %v525
  %532 = vst.msk [vmem:[#allocation4 + $0xd0] sm:$0xff] %vm297, %v526
  %533 = vst [vmem:[#allocation4 + $0xd8] sm:$0xff] %v527
  %534 = vst [vmem:[#allocation4 + $0xe0] sm:$0xff] %v528
  %535 = vst.msk [vmem:[#allocation4 + $0xe8] sm:$0xff] %vm297, %v529
  %v536 = vld [vmem:[#allocation2] sm:$0xff]
  %v537 = vld [vmem:[#allocation2 + $0x8] sm:$0xff]
  %v538 = vld [vmem:[#allocation2 + $0x10] sm:$0xff]
  %v539 = vld [vmem:[#allocation2 + $0x18] sm:$0xff]
  %v540 = vld [vmem:[#allocation2 + $0x20] sm:$0xff]
  %v541 = vld [vmem:[#allocation2 + $0x28] sm:$0xff]
  %548 = vrot.lane.b32.xlu0 %v536, 127
  %v549 = vpop.permute.xlu0 %548
  %550 = vrot.lane.b32.xlu0 %v537, 127
  %v551 = vpop.permute.xlu0 %550
  %552 = vrot.lane.b32.xlu0 %v538, 127
  %v553 = vpop.permute.xlu0 %552
  %554 = vrot.lane.b32.xlu0 %v539, 127
  %v555 = vpop.permute.xlu0 %554
  %556 = vrot.lane.b32.xlu0 %v540, 127
  %v557 = vpop.permute.xlu0 %556
  %558 = vrot.lane.b32.xlu0 %v541, 127
  %v559 = vpop.permute.xlu0 %558
  %v560 = vrot.slane %v549, 4
  %v561 = vrot.slane %v551, 4
  %v562 = vrot.slane %v553, 4
  %v563 = vrot.slane %v555, 4
  %v564 = vrot.slane %v557, 4
  %v565 = vrot.slane %v559, 4
  %v566 = vsel %vm334, %v560, %v561
  %vm567 = vcmask 1039360
  %v568 = vsel %vm567, %v549, %v566
  %v569 = vsel %vm334, %v561, %v562
  %v570 = vsel %vm567, %v551, %v569
  %v571 = vsel %vm567, %v553, %v562
  %v572 = vsel %vm334, %v563, %v564
  %v573 = vsel %vm567, %v555, %v572
  %v574 = vsel %vm334, %v564, %v565
  %v575 = vsel %vm567, %v557, %v574
  %v576 = vsel %vm567, %v559, %v565
  %583 = vst [vmem:[#allocation4 + $0xf0] sm:$0xff] %v568
  %584 = vst [vmem:[#allocation4 + $0xf8] sm:$0xff] %v570
  %vm585 = vcmask 56324
  %vm586 = vmor %vm585, %vm295
  %587 = vst.msk [vmem:[#allocation4 + $0x100] sm:$0xff] %vm586, %v571
  %588 = vst [vmem:[#allocation4 + $0x108] sm:$0xff] %v573
  %589 = vst [vmem:[#allocation4 + $0x110] sm:$0xff] %v575
  %590 = vst.msk [vmem:[#allocation4 + $0x118] sm:$0xff] %vm586, %v576
  %v591 = vld [vmem:[#allocation2] sm:$0xff]
  %v592 = vld [vmem:[#allocation2 + $0x8] sm:$0xff]
  %v593 = vld [vmem:[#allocation2 + $0x10] sm:$0xff]
  %v594 = vld [vmem:[#allocation2 + $0x18] sm:$0xff]
  %v595 = vld [vmem:[#allocation2 + $0x20] sm:$0xff]
  %v596 = vld [vmem:[#allocation2 + $0x28] sm:$0xff]
  %603 = vrot.lane.b32.xlu0 %v591, 111
  %v604 = vpop.permute.xlu0 %603
  %605 = vrot.lane.b32.xlu0 %v592, 111
  %v606 = vpop.permute.xlu0 %605
  %607 = vrot.lane.b32.xlu0 %v593, 111
  %v608 = vpop.permute.xlu0 %607
  %609 = vrot.lane.b32.xlu0 %v594, 111
  %v610 = vpop.permute.xlu0 %609
  %611 = vrot.lane.b32.xlu0 %v595, 111
  %v612 = vpop.permute.xlu0 %611
  %613 = vrot.lane.b32.xlu0 %v596, 111
  %v614 = vpop.permute.xlu0 %613
  %v615 = vrot.slane %v604, 4
  %v616 = vrot.slane %v606, 4
  %v617 = vrot.slane %v608, 4
  %v618 = vrot.slane %v610, 4
  %v619 = vrot.slane %v612, 4
  %v620 = vrot.slane %v614, 4
  %v621 = vsel %vm334, %v615, %v616
  %vm622 = vcmask 908288
  %v623 = vsel %vm622, %v604, %v621
  %v624 = vsel %vm334, %v616, %v617
  %v625 = vsel %vm622, %v606, %v624
  %v626 = vsel %vm622, %v608, %v617
  %v627 = vsel %vm334, %v618, %v619
  %v628 = vsel %vm622, %v610, %v627
  %v629 = vsel %vm334, %v619, %v620
  %v630 = vsel %vm622, %v612, %v629
  %v631 = vsel %vm622, %v614, %v620
  %638 = vst [vmem:[#allocation4 + $0x120] sm:$0xff] %v623
  %639 = vst [vmem:[#allocation4 + $0x128] sm:$0xff] %v625
  %vm640 = vcmask 969728
  %641 = vst.msk [vmem:[#allocation4 + $0x130] sm:$0xf] %vm640, %v626
  %642 = vst [vmem:[#allocation4 + $0x138] sm:$0xff] %v628
  %643 = vst [vmem:[#allocation4 + $0x140] sm:$0xff] %v630
  %644 = vst.msk [vmem:[#allocation4 + $0x148] sm:$0xf] %vm640, %v631
  %v645 = vld [vmem:[#allocation2] sm:$0xff]
  %v646 = vld [vmem:[#allocation2 + $0x8] sm:$0xff]
  %v647 = vld [vmem:[#allocation2 + $0x10] sm:$0xff]
  %v648 = vld [vmem:[#allocation2 + $0x18] sm:$0xff]
  %v649 = vld [vmem:[#allocation2 + $0x20] sm:$0xff]
  %v650 = vld [vmem:[#allocation2 + $0x28] sm:$0xff]
  %657 = vrot.lane.b32.xlu0 %v645, 110
  %v658 = vpop.permute.xlu0 %657
  %659 = vrot.lane.b32.xlu0 %v646, 110
  %v660 = vpop.permute.xlu0 %659
  %661 = vrot.lane.b32.xlu0 %v647, 110
  %v662 = vpop.permute.xlu0 %661
  %663 = vrot.lane.b32.xlu0 %v648, 110
  %v664 = vpop.permute.xlu0 %663
  %665 = vrot.lane.b32.xlu0 %v649, 110
  %v666 = vpop.permute.xlu0 %665
  %667 = vrot.lane.b32.xlu0 %v650, 110
  %v668 = vpop.permute.xlu0 %667
  %v669 = vrot.slane %v658, 4
  %v670 = vrot.slane %v660, 4
  %v671 = vrot.slane %v662, 4
  %v672 = vrot.slane %v664, 4
  %v673 = vrot.slane %v666, 4
  %v674 = vrot.slane %v668, 4
  %v675 = vsel %vm334, %v669, %v670
  %vm676 = vcmask 900096
  %v677 = vsel %vm676, %v658, %v675
  %v678 = vsel %vm334, %v670, %v671
  %v679 = vsel %vm676, %v660, %v678
  %v680 = vsel %vm676, %v662, %v671
  %v681 = vsel %vm334, %v672, %v673
  %v682 = vsel %vm676, %v664, %v681
  %v683 = vsel %vm334, %v673, %v674
  %v684 = vsel %vm676, %v666, %v683
  %v685 = vsel %vm676, %v668, %v674
  %692 = vst [vmem:[#allocation4 + $0x150] sm:$0xff] %v677
  %693 = vst [vmem:[#allocation4 + $0x158] sm:$0xff] %v679
  %vm694 = vcmask 961536
  %695 = vst.msk [vmem:[#allocation4 + $0x160] sm:$0xf] %vm694, %v680
  %696 = vst [vmem:[#allocation4 + $0x168] sm:$0xff] %v682
  %697 = vst [vmem:[#allocation4 + $0x170] sm:$0xff] %v684
  %698 = vst.msk [vmem:[#allocation4 + $0x178] sm:$0xf] %vm694, %v685
  %v699 = vld [vmem:[#allocation2] sm:$0xff]
  %v700 = vld [vmem:[#allocation2 + $0x8] sm:$0xff]
  %v701 = vld [vmem:[#allocation2 + $0x10] sm:$0xff]
  %v702 = vld [vmem:[#allocation2 + $0x18] sm:$0xff]
  %v703 = vld [vmem:[#allocation2 + $0x20] sm:$0xff]
  %v704 = vld [vmem:[#allocation2 + $0x28] sm:$0xff]
  %711 = vrot.lane.b32.xlu0 %v699, 109
  %v712 = vpop.permute.xlu0 %711
  %713 = vrot.lane.b32.xlu0 %v700, 109
  %v714 = vpop.permute.xlu0 %713
  %715 = vrot.lane.b32.xlu0 %v701, 109
  %v716 = vpop.permute.xlu0 %715
  %717 = vrot.lane.b32.xlu0 %v702, 109
  %v718 = vpop.permute.xlu0 %717
  %719 = vrot.lane.b32.xlu0 %v703, 109
  %v720 = vpop.permute.xlu0 %719
  %721 = vrot.lane.b32.xlu0 %v704, 109
  %v722 = vpop.permute.xlu0 %721
  %v723 = vrot.slane %v712, 4
  %v724 = vrot.slane %v714, 4
  %v725 = vrot.slane %v716, 4
  %v726 = vrot.slane %v718, 4
  %v727 = vrot.slane %v720, 4
  %v728 = vrot.slane %v722, 4
  %v729 = vsel %vm334, %v723, %v724
  %vm730 = vcmask 891904
  %v731 = vsel %vm730, %v712, %v729
  %v732 = vsel %vm334, %v724, %v725
  %v733 = vsel %vm730, %v714, %v732
  %v734 = vsel %vm730, %v716, %v725
  %v735 = vsel %vm334, %v726, %v727
  %v736 = vsel %vm730, %v718, %v735
  %v737 = vsel %vm334, %v727, %v728
  %v738 = vsel %vm730, %v720, %v737
  %v739 = vsel %vm730, %v722, %v728
  %746 = vst [vmem:[#allocation4 + $0x180] sm:$0xff] %v731
  %747 = vst [vmem:[#allocation4 + $0x188] sm:$0xff] %v733
  %vm748 = vcmask 953344
  %749 = vst.msk [vmem:[#allocation4 + $0x190] sm:$0xf] %vm748, %v734
  %750 = vst [vmem:[#allocation4 + $0x198] sm:$0xff] %v736
  %751 = vst [vmem:[#allocation4 + $0x1a0] sm:$0xff] %v738
  %752 = vst.msk [vmem:[#allocation4 + $0x1a8] sm:$0xf] %vm748, %v739
  %v753 = vld [vmem:[#allocation4] sm:$0xff]
  %v754 = vld [vmem:[#allocation4 + $0x8] sm:$0xff]
  %v755 = vld [vmem:[#allocation4 + $0x10] sm:$0xff]
  %v756 = vld [vmem:[#allocation4 + $0x18] sm:$0xff]
  %v757 = vld [vmem:[#allocation4 + $0x20] sm:$0xff]
  %v758 = vld [vmem:[#allocation4 + $0x28] sm:$0xff]
  %v759 = vld [vmem:[#allocation4 + $0x30] sm:$0xff]
  %v760 = vld [vmem:[#allocation4 + $0x38] sm:$0xff]
  %v761 = vld [vmem:[#allocation4 + $0x40] sm:$0xff]
  %v762 = vld [vmem:[#allocation4 + $0x48] sm:$0xff]
  %v763 = vld [vmem:[#allocation4 + $0x50] sm:$0xff]
  %v764 = vld [vmem:[#allocation4 + $0x58] sm:$0xff]
  %v765 = vld [vmem:[#allocation4 + $0x60] sm:$0xff]
  %v766 = vld [vmem:[#allocation4 + $0x68] sm:$0xff]
  %v767 = vld [vmem:[#allocation4 + $0x70] sm:$0xff]
  %v768 = vld [vmem:[#allocation4 + $0x78] sm:$0xff]
  %v769 = vld [vmem:[#allocation4 + $0x80] sm:$0xff]
  %v770 = vld [vmem:[#allocation4 + $0x88] sm:$0xff]
  %v771 = vld [vmem:[#allocation4 + $0x90] sm:$0xff]
  %v772 = vld [vmem:[#allocation4 + $0x98] sm:$0xff]
  %v773 = vld [vmem:[#allocation4 + $0xa0] sm:$0xff]
  %v774 = vld [vmem:[#allocation4 + $0xa8] sm:$0xff]
  %v775 = vld [vmem:[#allocation4 + $0xb0] sm:$0xff]
  %v776 = vld [vmem:[#allocation4 + $0xb8] sm:$0xff]
  %v777 = vld [vmem:[#allocation4 + $0xc0] sm:$0xff]
  %v778 = vld [vmem:[#allocation4 + $0xc8] sm:$0xff]
  %v779 = vld [vmem:[#allocation4 + $0xd0] sm:$0xff]
  %v780 = vld [vmem:[#allocation4 + $0xd8] sm:$0xff]
  %v781 = vld [vmem:[#allocation4 + $0xe0] sm:$0xff]
  %v782 = vld [vmem:[#allocation4 + $0xe8] sm:$0xff]
  %v783 = vld [vmem:[#allocation4 + $0xf0] sm:$0xff]
  %v784 = vld [vmem:[#allocation4 + $0xf8] sm:$0xff]
  %v785 = vld [vmem:[#allocation4 + $0x100] sm:$0xff]
  %v786 = vld [vmem:[#allocation4 + $0x108] sm:$0xff]
  %v787 = vld [vmem:[#allocation4 + $0x110] sm:$0xff]
  %v788 = vld [vmem:[#allocation4 + $0x118] sm:$0xff]
  %v789 = vld [vmem:[#allocation4 + $0x120] sm:$0xff]
  %v790 = vld [vmem:[#allocation4 + $0x128] sm:$0xff]
  %v791 = vld [vmem:[#allocation4 + $0x130] sm:$0xff]
  %v792 = vld [vmem:[#allocation4 + $0x138] sm:$0xff]
  %v793 = vld [vmem:[#allocation4 + $0x140] sm:$0xff]
  %v794 = vld [vmem:[#allocation4 + $0x148] sm:$0xff]
  %v795 = vld [vmem:[#allocation4 + $0x150] sm:$0xff]
  %v796 = vld [vmem:[#allocation4 + $0x158] sm:$0xff]
  %v797 = vld [vmem:[#allocation4 + $0x160] sm:$0xff]
  %v798 = vld [vmem:[#allocation4 + $0x168] sm:$0xff]
  %v799 = vld [vmem:[#allocation4 + $0x170] sm:$0xff]
  %v800 = vld [vmem:[#allocation4 + $0x178] sm:$0xff]
  %v801 = vld [vmem:[#allocation4 + $0x180] sm:$0xff]
  %v802 = vld [vmem:[#allocation4 + $0x188] sm:$0xff]
  %v803 = vld [vmem:[#allocation4 + $0x190] sm:$0xff]
  %v804 = vld [vmem:[#allocation4 + $0x198] sm:$0xff]
  %v805 = vld [vmem:[#allocation4 + $0x1a0] sm:$0xff]
  %v806 = vld [vmem:[#allocation4 + $0x1a8] sm:$0xff]
  %v807 = vld [vmem:[#allocation4 + $0x1b0] sm:$0x11]
  %v808 = vld [vmem:[#allocation4 + $0x1b8] sm:$0x11]
  %v809 = vld [vmem:[#allocation4 + $0x1c0] sm:$0x11]
  %v810 = vld [vmem:[%s1 + $0x28] sm:$0xff]
  %v811 = vld [vmem:[%s1 + $0x3c] sm:$0xff]
  %v814 = vunpack.c.l.b16 %v810
  %v815 = vunpack.c.h.b16 %v810
  %v816 = vunpack.c.l.b16 %v811
  %v817 = vunpack.c.h.b16 %v811
  %v818 = vpack.c.b16 %v816, %v814
  %v819 = vpack.c.b16 %v817, %v815
  %v878 = vunpack.c.l.b16 %v753
  %v879 = vunpack.c.h.b16 %v753
  %v880 = vunpack.c.l.b16 %v754
  %v881 = vunpack.c.h.b16 %v754
  %v882 = vunpack.c.l.b16 %v755
  %v883 = vunpack.c.h.b16 %v755
  %v884 = vunpack.c.l.b16 %v756
  %v885 = vunpack.c.h.b16 %v756
  %v886 = vunpack.c.l.b16 %v757
  %v887 = vunpack.c.h.b16 %v757
  %v888 = vunpack.c.l.b16 %v758
  %v889 = vunpack.c.h.b16 %v758
  %v890 = vunpack.c.l.b16 %v759
  %v891 = vunpack.c.h.b16 %v759
  %v892 = vunpack.c.l.b16 %v760
  %v893 = vunpack.c.h.b16 %v760
  %v894 = vunpack.c.l.b16 %v761
  %v895 = vunpack.c.h.b16 %v761
  %v896 = vunpack.c.l.b16 %v762
  %v897 = vunpack.c.h.b16 %v762
  %v898 = vunpack.c.l.b16 %v763
  %v899 = vunpack.c.h.b16 %v763
  %v900 = vunpack.c.l.b16 %v764
  %v901 = vunpack.c.h.b16 %v764
  %v902 = vunpack.c.l.b16 %v765
  %v903 = vunpack.c.h.b16 %v765
  %v904 = vunpack.c.l.b16 %v766
  %v905 = vunpack.c.h.b16 %v766
  %v906 = vunpack.c.l.b16 %v767
  %v907 = vunpack.c.h.b16 %v767
  %v908 = vunpack.c.l.b16 %v768
  %v909 = vunpack.c.h.b16 %v768
  %v910 = vunpack.c.l.b16 %v769
  %v911 = vunpack.c.h.b16 %v769
  %v912 = vunpack.c.l.b16 %v770
  %v913 = vunpack.c.h.b16 %v770
  %v914 = vunpack.c.l.b16 %v771
  %v915 = vunpack.c.h.b16 %v771
  %v916 = vunpack.c.l.b16 %v772
  %v917 = vunpack.c.h.b16 %v772
  %v918 = vunpack.c.l.b16 %v773
  %v919 = vunpack.c.h.b16 %v773
  %v920 = vunpack.c.l.b16 %v774
  %v921 = vunpack.c.h.b16 %v774
  %v922 = vunpack.c.l.b16 %v775
  %v923 = vunpack.c.h.b16 %v775
  %v924 = vunpack.c.l.b16 %v776
  %v925 = vunpack.c.h.b16 %v776
  %v926 = vunpack.c.l.b16 %v777
  %v927 = vunpack.c.h.b16 %v777
  %v928 = vunpack.c.l.b16 %v778
  %v929 = vunpack.c.h.b16 %v778
  %v930 = vunpack.c.l.b16 %v779
  %v931 = vunpack.c.h.b16 %v779
  %v932 = vunpack.c.l.b16 %v780
  %v933 = vunpack.c.h.b16 %v780
  %v934 = vunpack.c.l.b16 %v781
  %v935 = vunpack.c.h.b16 %v781
  %v936 = vunpack.c.l.b16 %v782
  %v937 = vunpack.c.h.b16 %v782
  %v938 = vunpack.c.l.b16 %v783
  %v939 = vunpack.c.h.b16 %v783
  %v940 = vunpack.c.l.b16 %v784
  %v941 = vunpack.c.h.b16 %v784
  %v942 = vunpack.c.l.b16 %v785
  %v943 = vunpack.c.h.b16 %v785
  %v944 = vunpack.c.l.b16 %v786
  %v945 = vunpack.c.h.b16 %v786
  %v946 = vunpack.c.l.b16 %v787
  %v947 = vunpack.c.h.b16 %v787
  %v948 = vunpack.c.l.b16 %v788
  %v949 = vunpack.c.h.b16 %v788
  %v950 = vunpack.c.l.b16 %v789
  %v951 = vunpack.c.h.b16 %v789
  %v952 = vunpack.c.l.b16 %v790
  %v953 = vunpack.c.h.b16 %v790
  %v954 = vunpack.c.l.b16 %v791
  %v955 = vunpack.c.h.b16 %v791
  %v956 = vunpack.c.l.b16 %v792
  %v957 = vunpack.c.h.b16 %v792
  %v958 = vunpack.c.l.b16 %v793
  %v959 = vunpack.c.h.b16 %v793
  %v960 = vunpack.c.l.b16 %v794
  %v961 = vunpack.c.h.b16 %v794
  %v962 = vunpack.c.l.b16 %v795
  %v963 = vunpack.c.h.b16 %v795
  %v964 = vunpack.c.l.b16 %v796
  %v965 = vunpack.c.h.b16 %v796
  %v966 = vunpack.c.l.b16 %v797
  %v967 = vunpack.c.h.b16 %v797
  %v968 = vunpack.c.l.b16 %v798
  %v969 = vunpack.c.h.b16 %v798
  %v970 = vunpack.c.l.b16 %v799
  %v971 = vunpack.c.h.b16 %v799
  %v972 = vunpack.c.l.b16 %v800
  %v973 = vunpack.c.h.b16 %v800
  %v974 = vunpack.c.l.b16 %v801
  %v975 = vunpack.c.h.b16 %v801
  %v976 = vunpack.c.l.b16 %v802
  %v977 = vunpack.c.h.b16 %v802
  %v978 = vunpack.c.l.b16 %v803
  %v979 = vunpack.c.h.b16 %v803
  %v980 = vunpack.c.l.b16 %v804
  %v981 = vunpack.c.h.b16 %v804
  %v982 = vunpack.c.l.b16 %v805
  %v983 = vunpack.c.h.b16 %v805
  %v984 = vunpack.c.l.b16 %v806
  %v985 = vunpack.c.h.b16 %v806
  %v986 = vunpack.c.l.b16 %v807
  %v987 = vunpack.c.h.b16 %v807
  %v988 = vunpack.c.l.b16 %v808
  %v989 = vunpack.c.h.b16 %v808
  %v990 = vunpack.c.l.b16 %v809
  %v991 = vunpack.c.h.b16 %v809
  %v992 = vpack.c.b16 %v884, %v878
  %v993 = vpack.c.b16 %v885, %v879
  %v994 = vpack.c.b16 %v886, %v880
  %v995 = vpack.c.b16 %v887, %v881
  %v996 = vpack.c.b16 %v888, %v882
  %v997 = vpack.c.b16 %v889, %v883
  %v998 = vpack.c.b16 %v896, %v890
  %v999 = vpack.c.b16 %v897, %v891
  %v1000 = vpack.c.b16 %v898, %v892
  %v1001 = vpack.c.b16 %v899, %v893
  %v1002 = vpack.c.b16 %v900, %v894
  %v1003 = vpack.c.b16 %v901, %v895
  %v1004 = vpack.c.b16 %v908, %v902
  %v1005 = vpack.c.b16 %v909, %v903
  %v1006 = vpack.c.b16 %v910, %v904
  %v1007 = vpack.c.b16 %v911, %v905
  %v1008 = vpack.c.b16 %v912, %v906
  %v1009 = vpack.c.b16 %v913, %v907
  %v1010 = vpack.c.b16 %v920, %v914
  %v1011 = vpack.c.b16 %v921, %v915
  %v1012 = vpack.c.b16 %v922, %v916
  %v1013 = vpack.c.b16 %v923, %v917
  %v1014 = vpack.c.b16 %v924, %v918
  %v1015 = vpack.c.b16 %v925, %v919
  %v1016 = vpack.c.b16 %v932, %v926
  %v1017 = vpack.c.b16 %v933, %v927
  %v1018 = vpack.c.b16 %v934, %v928
  %v1019 = vpack.c.b16 %v935, %v929
  %v1020 = vpack.c.b16 %v936, %v930
  %v1021 = vpack.c.b16 %v937, %v931
  %v1022 = vpack.c.b16 %v944, %v938
  %v1023 = vpack.c.b16 %v945, %v939
  %v1024 = vpack.c.b16 %v946, %v940
  %v1025 = vpack.c.b16 %v947, %v941
  %v1026 = vpack.c.b16 %v948, %v942
  %v1027 = vpack.c.b16 %v949, %v943
  %v1028 = vpack.c.b16 %v956, %v950
  %v1029 = vpack.c.b16 %v957, %v951
  %v1030 = vpack.c.b16 %v958, %v952
  %v1031 = vpack.c.b16 %v959, %v953
  %v1032 = vpack.c.b16 %v960, %v954
  %v1033 = vpack.c.b16 %v961, %v955
  %v1034 = vpack.c.b16 %v968, %v962
  %v1035 = vpack.c.b16 %v969, %v963
  %v1036 = vpack.c.b16 %v970, %v964
  %v1037 = vpack.c.b16 %v971, %v965
  %v1038 = vpack.c.b16 %v972, %v966
  %v1039 = vpack.c.b16 %v973, %v967
  %v1040 = vpack.c.b16 %v980, %v974
  %v1041 = vpack.c.b16 %v981, %v975
  %v1042 = vpack.c.b16 %v982, %v976
  %v1043 = vpack.c.b16 %v983, %v977
  %v1044 = vpack.c.b16 %v984, %v978
  %v1045 = vpack.c.b16 %v985, %v979
  %v1046 = vpack.c.b16 %v986, %v986
  %v1047 = vpack.c.b16 %v987, %v987
  %v1048 = vpack.c.b16 %v988, %v988
  %v1049 = vpack.c.b16 %v989, %v989
  %v1050 = vpack.c.b16 %v990, %v990
  %v1051 = vpack.c.b16 %v991, %v991
  %vm1106 = vcmask 138240
  %v1108 = vsel %vm1106, %v819, 0
  %vm1110 = vcmask 1040384
  %v1111 = vsel 0, 4294967295, 65535
  %v1112 = vsel %vm1110, %v1111, 0
  %v1114 = vand.u32 %v1046, %v1112
  %v1117 = vand.u32 %v1047, %v1112
  %v1120 = vand.u32 %v1048, %v1112
  %v1123 = vand.u32 %v1049, %v1112
  %v1126 = vand.u32 %v1050, %v1112
  %v1129 = vand.u32 %v1051, %v1112
  %1131 = vmatpush.bf16.msra.mxu0 %v1034
  %1132 = vmatpush.bf16.msra.mxu0 %v1028
  %1133 = vmatpush.bf16.msra.mxu0 %v1022
  %1134 = vmatpush.bf16.msra.mxu0 %v1016
  %1135 = vmatpush.bf16.msra.mxu0 %v1010
  %1136 = vmatpush.bf16.msra.mxu0 %v1004
  %1137 = vmatpush.bf16.msra.mxu0 %v998
  %1138 = vmatpush.bf16.msra.mxu0 %v992
  %1139 = vmatmul.bf16.gmra.mxu0 %v818
  %v1140 = vpop.f32.mrf.mxu0
  %v1141 = vadd.f32 0.0, %v1140
  %v1142 = vpop.f32.mrf.mxu0
  %v1143 = vadd.f32 0.0, %v1142
  %1144 = vdwg.mxu0
  %1145 = vmatpush.bf16.msra.mxu0 0
  %1146 = vmatpush.bf16.msra.mxu0 0
  %1147 = vmatpush.bf16.msra.mxu0 0
  %1148 = vmatpush.bf16.msra.mxu0 0
  %1149 = vmatpush.bf16.msra.mxu0 0
  %1150 = vmatpush.bf16.msra.mxu0 0
  %1151 = vmatpush.bf16.msra.mxu0 %v1114
  %1152 = vmatpush.bf16.msra.mxu0 %v1040
  %1153 = vmatmul.bf16.gmra.mxu0 %v1108
  %v1154 = vpop.f32.mrf.mxu0
  %v1155 = vadd.f32 %v1141, %v1154
  %v1156 = vpop.f32.mrf.mxu0
  %v1157 = vadd.f32 %v1143, %v1156
  %1158 = vdwg.mxu0
  %1159 = vmatpush.bf16.msra.mxu0 %v1035
  %1160 = vmatpush.bf16.msra.mxu0 %v1029
  %1161 = vmatpush.bf16.msra.mxu0 %v1023
  %1162 = vmatpush.bf16.msra.mxu0 %v1017
  %1163 = vmatpush.bf16.msra.mxu0 %v1011
  %1164 = vmatpush.bf16.msra.mxu0 %v1005
  %1165 = vmatpush.bf16.msra.mxu0 %v999
  %1166 = vmatpush.bf16.msra.mxu0 %v993
  %1167 = vmatmul.bf16.gmra.mxu0 %v818
  %v1168 = vpop.f32.mrf.mxu0
  %v1169 = vadd.f32 0.0, %v1168
  %v1170 = vpop.f32.mrf.mxu0
  %v1171 = vadd.f32 0.0, %v1170
  %1172 = vdwg.mxu0
  %1173 = vmatpush.bf16.msra.mxu0 0
  %1174 = vmatpush.bf16.msra.mxu0 0
  %1175 = vmatpush.bf16.msra.mxu0 0
  %1176 = vmatpush.bf16.msra.mxu0 0
  %1177 = vmatpush.bf16.msra.mxu0 0
  %1178 = vmatpush.bf16.msra.mxu0 0
  %1179 = vmatpush.bf16.msra.mxu0 %v1117
  %1180 = vmatpush.bf16.msra.mxu0 %v1041
  %1181 = vmatmul.bf16.gmra.mxu0 %v1108
  %v1182 = vpop.f32.mrf.mxu0
  %v1183 = vadd.f32 %v1169, %v1182
  %v1184 = vpop.f32.mrf.mxu0
  %v1185 = vadd.f32 %v1171, %v1184
  %1186 = vdwg.mxu0
  %1187 = vmatpush.bf16.msra.mxu0 %v1036
  %1188 = vmatpush.bf16.msra.mxu0 %v1030
  %1189 = vmatpush.bf16.msra.mxu0 %v1024
  %1190 = vmatpush.bf16.msra.mxu0 %v1018
  %1191 = vmatpush.bf16.msra.mxu0 %v1012
  %1192 = vmatpush.bf16.msra.mxu0 %v1006
  %1193 = vmatpush.bf16.msra.mxu0 %v1000
  %1194 = vmatpush.bf16.msra.mxu0 %v994
  %1195 = vmatmul.bf16.gmra.mxu0 %v818
  %v1196 = vpop.f32.mrf.mxu0
  %v1197 = vadd.f32 0.0, %v1196
  %v1198 = vpop.f32.mrf.mxu0
  %v1199 = vadd.f32 0.0, %v1198
  %1200 = vdwg.mxu0
  %1201 = vmatpush.bf16.msra.mxu0 0
  %1202 = vmatpush.bf16.msra.mxu0 0
  %1203 = vmatpush.bf16.msra.mxu0 0
  %1204 = vmatpush.bf16.msra.mxu0 0
  %1205 = vmatpush.bf16.msra.mxu0 0
  %1206 = vmatpush.bf16.msra.mxu0 0
  %1207 = vmatpush.bf16.msra.mxu0 %v1120
  %1208 = vmatpush.bf16.msra.mxu0 %v1042
  %1209 = vmatmul.bf16.gmra.mxu0 %v1108
  %v1210 = vpop.f32.mrf.mxu0
  %v1211 = vadd.f32 %v1197, %v1210
  %v1212 = vpop.f32.mrf.mxu0
  %v1213 = vadd.f32 %v1199, %v1212
  %1214 = vdwg.mxu0
  %1215 = vmatpush.bf16.msra.mxu0 %v1037
  %1216 = vmatpush.bf16.msra.mxu0 %v1031
  %1217 = vmatpush.bf16.msra.mxu0 %v1025
  %1218 = vmatpush.bf16.msra.mxu0 %v1019
  %1219 = vmatpush.bf16.msra.mxu0 %v1013
  %1220 = vmatpush.bf16.msra.mxu0 %v1007
  %1221 = vmatpush.bf16.msra.mxu0 %v1001
  %1222 = vmatpush.bf16.msra.mxu0 %v995
  %1223 = vmatmul.bf16.gmra.mxu0 %v818
  %v1224 = vpop.f32.mrf.mxu0
  %v1225 = vadd.f32 0.0, %v1224
  %v1226 = vpop.f32.mrf.mxu0
  %v1227 = vadd.f32 0.0, %v1226
  %1228 = vdwg.mxu0
  %1229 = vmatpush.bf16.msra.mxu0 0
  %1230 = vmatpush.bf16.msra.mxu0 0
  %1231 = vmatpush.bf16.msra.mxu0 0
  %1232 = vmatpush.bf16.msra.mxu0 0
  %1233 = vmatpush.bf16.msra.mxu0 0
  %1234 = vmatpush.bf16.msra.mxu0 0
  %1235 = vmatpush.bf16.msra.mxu0 %v1123
  %1236 = vmatpush.bf16.msra.mxu0 %v1043
  %1237 = vmatmul.bf16.gmra.mxu0 %v1108
  %v1238 = vpop.f32.mrf.mxu0
  %v1239 = vadd.f32 %v1225, %v1238
  %v1240 = vpop.f32.mrf.mxu0
  %v1241 = vadd.f32 %v1227, %v1240
  %1242 = vdwg.mxu0
  %1243 = vmatpush.bf16.msra.mxu0 %v1038
  %1244 = vmatpush.bf16.msra.mxu0 %v1032
  %1245 = vmatpush.bf16.msra.mxu0 %v1026
  %1246 = vmatpush.bf16.msra.mxu0 %v1020
  %1247 = vmatpush.bf16.msra.mxu0 %v1014
  %1248 = vmatpush.bf16.msra.mxu0 %v1008
  %1249 = vmatpush.bf16.msra.mxu0 %v1002
  %1250 = vmatpush.bf16.msra.mxu0 %v996
  %1251 = vmatmul.bf16.gmra.mxu0 %v818
  %v1252 = vpop.f32.mrf.mxu0
  %v1253 = vadd.f32 0.0, %v1252
  %v1254 = vpop.f32.mrf.mxu0
  %v1255 = vadd.f32 0.0, %v1254
  %1256 = vdwg.mxu0
  %1257 = vmatpush.bf16.msra.mxu0 0
  %1258 = vmatpush.bf16.msra.mxu0 0
  %1259 = vmatpush.bf16.msra.mxu0 0
  %1260 = vmatpush.bf16.msra.mxu0 0
  %1261 = vmatpush.bf16.msra.mxu0 0
  %1262 = vmatpush.bf16.msra.mxu0 0
  %1263 = vmatpush.bf16.msra.mxu0 %v1126
  %1264 = vmatpush.bf16.msra.mxu0 %v1044
  %1265 = vmatmul.bf16.gmra.mxu0 %v1108
  %v1266 = vpop.f32.mrf.mxu0
  %v1267 = vadd.f32 %v1253, %v1266
  %v1268 = vpop.f32.mrf.mxu0
  %v1269 = vadd.f32 %v1255, %v1268
  %1270 = vdwg.mxu0
  %1271 = vmatpush.bf16.msra.mxu0 %v1039
  %1272 = vmatpush.bf16.msra.mxu0 %v1033
  %1273 = vmatpush.bf16.msra.mxu0 %v1027
  %1274 = vmatpush.bf16.msra.mxu0 %v1021
  %1275 = vmatpush.bf16.msra.mxu0 %v1015
  %1276 = vmatpush.bf16.msra.mxu0 %v1009
  %1277 = vmatpush.bf16.msra.mxu0 %v1003
  %1278 = vmatpush.bf16.msra.mxu0 %v997
  %1279 = vmatmul.bf16.gmra.mxu0 %v818
  %v1280 = vpop.f32.mrf.mxu0
  %v1281 = vadd.f32 0.0, %v1280
  %v1282 = vpop.f32.mrf.mxu0
  %v1283 = vadd.f32 0.0, %v1282
  %1284 = vdwg.mxu0
  %1285 = vmatpush.bf16.msra.mxu0 0
  %1286 = vmatpush.bf16.msra.mxu0 0
  %1287 = vmatpush.bf16.msra.mxu0 0
  %1288 = vmatpush.bf16.msra.mxu0 0
  %1289 = vmatpush.bf16.msra.mxu0 0
  %1290 = vmatpush.bf16.msra.mxu0 0
  %1291 = vmatpush.bf16.msra.mxu0 %v1129
  %1292 = vmatpush.bf16.msra.mxu0 %v1045
  %1293 = vmatmul.bf16.gmra.mxu0 %v1108
  %v1294 = vpop.f32.mrf.mxu0
  %v1295 = vadd.f32 %v1281, %v1294
  %v1296 = vpop.f32.mrf.mxu0
  %v1297 = vadd.f32 %v1283, %v1296
  %1298 = vdwg.mxu0
  %v1299 = vld [vmem:[%s2] ss:$8 sm:$0xf]
  %v1300 = vld [vmem:[%s2] ss:$8 sm:$0x30]
  %v1301 = vor.u32 %v1299, %v1300
  %vm1302 = vcmp.gt.f32.partialorder %v1301, 0.0
  %v1303 = vmax.f32 %v1155, 0.0
  %v1304 = vmax.f32 %v1183, 0.0
  %v1305 = vmax.f32 %v1211, 0.0
  %v1306 = vmax.f32 %v1239, 0.0
  %v1307 = vmax.f32 %v1267, 0.0
  %v1308 = vmax.f32 %v1295, 0.0
  %v1309 = vmax.f32 %v1157, 0.0
  %v1310 = vmax.f32 %v1185, 0.0
  %v1311 = vmax.f32 %v1213, 0.0
  %v1312 = vmax.f32 %v1241, 0.0
  %v1313 = vmax.f32 %v1269, 0.0
  %v1314 = vmax.f32 %v1297, 0.0
  %v1315 = vsel %vm1302, 1, 0
  %v1316 = vperm.slane %v1315, 0
  %v1317 = vperm.slane %v1315, 1
  %v1318 = vperm.slane %v1315, 2
  %v1319 = vperm.slane %v1315, 3
  %v1320 = vperm.slane %v1315, 4
  %v1321 = vperm.slane %v1315, 5
  %vm1322 = vcmp.eq.s32.totalorder %v1316, 1
  %vm1323 = vcmp.eq.s32.totalorder %v1317, 1
  %vm1324 = vcmp.eq.s32.totalorder %v1318, 1
  %vm1325 = vcmp.eq.s32.totalorder %v1319, 1
  %vm1326 = vcmp.eq.s32.totalorder %v1320, 1
  %vm1327 = vcmp.eq.s32.totalorder %v1321, 1
  %v1328 = vsel %vm1322, %v1303, 0.0
  %v1329 = vsel %vm1323, %v1304, 0.0
  %v1330 = vsel %vm1324, %v1305, 0.0
  %v1331 = vsel %vm1325, %v1306, 0.0
  %v1332 = vsel %vm1326, %v1307, 0.0
  %v1333 = vsel %vm1327, %v1308, 0.0
  %v1334 = vsel %vm1322, %v1309, 0.0
  %v1335 = vsel %vm1323, %v1310, 0.0
  %v1336 = vsel %vm1324, %v1311, 0.0
  %v1337 = vsel %vm1325, %v1312, 0.0
  %v1338 = vsel %vm1326, %v1313, 0.0
  %v1339 = vsel %vm1327, %v1314, 0.0
  %v1340 = vpack.c.bf16 %v1329, %v1328
  %v1341 = vpack.c.bf16 %v1331, %v1330
  %v1342 = vpack.c.bf16 %v1333, %v1332
  %v1343 = vpack.c.bf16 %v1335, %v1334
  %v1344 = vpack.c.bf16 %v1337, %v1336
  %v1345 = vpack.c.bf16 %v1339, %v1338
  %1346 = vst [vmem:[#allocation3] sm:$0xff] %v1340
  %1347 = vst [vmem:[#allocation3 + $0x8] sm:$0xff] %v1341
  %1348 = vst.msk [vmem:[#allocation3 + $0x10] sm:$0xff] %vm297, %v1342
  %1349 = vst [vmem:[#allocation3 + $0x18] sm:$0xff] %v1343
  %1350 = vst [vmem:[#allocation3 + $0x20] sm:$0xff] %v1344
  %1351 = vst.msk [vmem:[#allocation3 + $0x28] sm:$0xff] %vm297, %v1345
  %v1352 = vld [vmem:[#allocation3] sm:$0xff]
  %v1353 = vld [vmem:[#allocation3 + $0x8] sm:$0xff]
  %v1354 = vld [vmem:[#allocation3 + $0x10] sm:$0xf]
  %v1355 = vld [vmem:[#allocation3 + $0x18] sm:$0xff]
  %v1356 = vld [vmem:[#allocation3 + $0x20] sm:$0xff]
  %v1357 = vld [vmem:[#allocation3 + $0x28] sm:$0xf]
  %1364 = vrot.lane.b32.xlu0 %v1352, 19
  %v1365 = vpop.permute.xlu0 %1364
  %1366 = vrot.lane.b32.xlu0 %v1353, 19
  %v1367 = vpop.permute.xlu0 %1366
  %1368 = vrot.lane.b32.xlu0 %v1354, 19
  %v1369 = vpop.permute.xlu0 %1368
  %1370 = vrot.lane.b32.xlu0 %v1355, 19
  %v1371 = vpop.permute.xlu0 %1370
  %1372 = vrot.lane.b32.xlu0 %v1356, 19
  %v1373 = vpop.permute.xlu0 %1372
  %1374 = vrot.lane.b32.xlu0 %v1357, 19
  %v1375 = vpop.permute.xlu0 %1374
  %v1376 = vrot.slane %v1365, 4
  %v1377 = vrot.slane %v1367, 4
  %v1378 = vrot.slane %v1369, 4
  %v1379 = vrot.slane %v1371, 4
  %v1380 = vrot.slane %v1373, 4
  %v1381 = vrot.slane %v1375, 4
  %v1382 = vsel %vm332, %v1376, %v1365
  %v1383 = vsel %vm334, %v1376, %v1377
  %v1384 = vsel %vm332, %v1383, %v1367
  %v1385 = vsel %vm334, %v1377, %v1378
  %v1386 = vsel %vm332, %v1385, %v1369
  %v1387 = vsel %vm332, %v1379, %v1371
  %v1388 = vsel %vm334, %v1379, %v1380
  %v1389 = vsel %vm332, %v1388, %v1373
  %v1390 = vsel %vm334, %v1380, %v1381
  %v1391 = vsel %vm332, %v1390, %v1375
  %1398 = vst.msk [vmem:[#allocation4] sm:$0xff] %vm352, %v1382
  %1399 = vst [vmem:[#allocation4 + $0x8] sm:$0xff] %v1384
  %1400 = vst.msk [vmem:[#allocation4 + $0x10] sm:$0xff] %vm297, %v1386
  %1401 = vst.msk [vmem:[#allocation4 + $0x18] sm:$0xff] %vm352, %v1387
  %1402 = vst [vmem:[#allocation4 + $0x20] sm:$0xff] %v1389
  %1403 = vst.msk [vmem:[#allocation4 + $0x28] sm:$0xff] %vm297, %v1391
  %v1404 = vld [vmem:[#allocation3] sm:$0xff]
  %v1405 = vld [vmem:[#allocation3 + $0x8] sm:$0xff]
  %v1406 = vld [vmem:[#allocation3 + $0x10] sm:$0xf]
  %v1407 = vld [vmem:[#allocation3 + $0x18] sm:$0xff]
  %v1408 = vld [vmem:[#allocation3 + $0x20] sm:$0xff]
  %v1409 = vld [vmem:[#allocation3 + $0x28] sm:$0xf]
  %1416 = vrot.lane.b32.xlu0 %v1404, 18
  %v1417 = vpop.permute.xlu0 %1416
  %1418 = vrot.lane.b32.xlu0 %v1405, 18
  %v1419 = vpop.permute.xlu0 %1418
  %1420 = vrot.lane.b32.xlu0 %v1406, 18
  %v1421 = vpop.permute.xlu0 %1420
  %1422 = vrot.lane.b32.xlu0 %v1407, 18
  %v1423 = vpop.permute.xlu0 %1422
  %1424 = vrot.lane.b32.xlu0 %v1408, 18
  %v1425 = vpop.permute.xlu0 %1424
  %1426 = vrot.lane.b32.xlu0 %v1409, 18
  %v1427 = vpop.permute.xlu0 %1426
  %v1428 = vrot.slane %v1417, 4
  %v1429 = vrot.slane %v1419, 4
  %v1430 = vrot.slane %v1421, 4
  %v1431 = vrot.slane %v1423, 4
  %v1432 = vrot.slane %v1425, 4
  %v1433 = vrot.slane %v1427, 4
  %v1434 = vsel %vm389, %v1428, %v1417
  %v1435 = vsel %vm334, %v1428, %v1429
  %v1436 = vsel %vm389, %v1435, %v1419
  %v1437 = vsel %vm334, %v1429, %v1430
  %v1438 = vsel %vm389, %v1437, %v1421
  %v1439 = vsel %vm389, %v1431, %v1423
  %v1440 = vsel %vm334, %v1431, %v1432
  %v1441 = vsel %vm389, %v1440, %v1425
  %v1442 = vsel %vm334, %v1432, %v1433
  %v1443 = vsel %vm389, %v1442, %v1427
  %1450 = vst.msk [vmem:[#allocation4 + $0x30] sm:$0xff] %vm407, %v1434
  %1451 = vst [vmem:[#allocation4 + $0x38] sm:$0xff] %v1436
  %1452 = vst.msk [vmem:[#allocation4 + $0x40] sm:$0xff] %vm297, %v1438
  %1453 = vst.msk [vmem:[#allocation4 + $0x48] sm:$0xff] %vm407, %v1439
  %1454 = vst [vmem:[#allocation4 + $0x50] sm:$0xff] %v1441
  %1455 = vst.msk [vmem:[#allocation4 + $0x58] sm:$0xff] %vm297, %v1443
  %v1456 = vld [vmem:[#allocation3] sm:$0xff]
  %v1457 = vld [vmem:[#allocation3 + $0x8] sm:$0xff]
  %v1458 = vld [vmem:[#allocation3 + $0x10] sm:$0xf]
  %v1459 = vld [vmem:[#allocation3 + $0x18] sm:$0xff]
  %v1460 = vld [vmem:[#allocation3 + $0x20] sm:$0xff]
  %v1461 = vld [vmem:[#allocation3 + $0x28] sm:$0xf]
  %1468 = vrot.lane.b32.xlu0 %v1456, 17
  %v1469 = vpop.permute.xlu0 %1468
  %1470 = vrot.lane.b32.xlu0 %v1457, 17
  %v1471 = vpop.permute.xlu0 %1470
  %1472 = vrot.lane.b32.xlu0 %v1458, 17
  %v1473 = vpop.permute.xlu0 %1472
  %1474 = vrot.lane.b32.xlu0 %v1459, 17
  %v1475 = vpop.permute.xlu0 %1474
  %1476 = vrot.lane.b32.xlu0 %v1460, 17
  %v1477 = vpop.permute.xlu0 %1476
  %1478 = vrot.lane.b32.xlu0 %v1461, 17
  %v1479 = vpop.permute.xlu0 %1478
  %v1480 = vrot.slane %v1469, 4
  %v1481 = vrot.slane %v1471, 4
  %v1482 = vrot.slane %v1473, 4
  %v1483 = vrot.slane %v1475, 4
  %v1484 = vrot.slane %v1477, 4
  %v1485 = vrot.slane %v1479, 4
  %v1486 = vsel %vm444, %v1480, %v1469
  %v1487 = vsel %vm334, %v1480, %v1481
  %v1488 = vsel %vm444, %v1487, %v1471
  %v1489 = vsel %vm334, %v1481, %v1482
  %v1490 = vsel %vm444, %v1489, %v1473
  %v1491 = vsel %vm444, %v1483, %v1475
  %v1492 = vsel %vm334, %v1483, %v1484
  %v1493 = vsel %vm444, %v1492, %v1477
  %v1494 = vsel %vm334, %v1484, %v1485
  %v1495 = vsel %vm444, %v1494, %v1479
  %1502 = vst.msk [vmem:[#allocation4 + $0x60] sm:$0xff] %vm462, %v1486
  %1503 = vst [vmem:[#allocation4 + $0x68] sm:$0xff] %v1488
  %1504 = vst.msk [vmem:[#allocation4 + $0x70] sm:$0xff] %vm297, %v1490
  %1505 = vst.msk [vmem:[#allocation4 + $0x78] sm:$0xff] %vm462, %v1491
  %1506 = vst [vmem:[#allocation4 + $0x80] sm:$0xff] %v1493
  %1507 = vst.msk [vmem:[#allocation4 + $0x88] sm:$0xff] %vm297, %v1495
  %v1508 = vld [vmem:[#allocation3] sm:$0xff]
  %v1509 = vld [vmem:[#allocation3 + $0x8] sm:$0xff]
  %v1510 = vld [vmem:[#allocation3 + $0x10] sm:$0xff]
  %v1511 = vld [vmem:[#allocation3 + $0x18] sm:$0xff]
  %v1512 = vld [vmem:[#allocation3 + $0x20] sm:$0xff]
  %v1513 = vld [vmem:[#allocation3 + $0x28] sm:$0xff]
  %1520 = vrot.lane.b32.xlu0 %v1508, 1
  %v1521 = vpop.permute.xlu0 %1520
  %1522 = vrot.lane.b32.xlu0 %v1509, 1
  %v1523 = vpop.permute.xlu0 %1522
  %1524 = vrot.lane.b32.xlu0 %v1510, 1
  %v1525 = vpop.permute.xlu0 %1524
  %1526 = vrot.lane.b32.xlu0 %v1511, 1
  %v1527 = vpop.permute.xlu0 %1526
  %1528 = vrot.lane.b32.xlu0 %v1512, 1
  %v1529 = vpop.permute.xlu0 %1528
  %1530 = vrot.lane.b32.xlu0 %v1513, 1
  %v1531 = vpop.permute.xlu0 %1530
  %v1532 = vrot.slane %v1521, 4
  %v1533 = vrot.slane %v1523, 4
  %v1534 = vrot.slane %v1525, 4
  %v1535 = vrot.slane %v1527, 4
  %v1536 = vrot.slane %v1529, 4
  %v1537 = vrot.slane %v1531, 4
  %v1538 = vsel %vm499, %v1532, %v1521
  %v1539 = vsel %vm334, %v1532, %v1533
  %v1540 = vsel %vm499, %v1539, %v1523
  %v1541 = vsel %vm334, %v1533, %v1534
  %v1542 = vsel %vm499, %v1541, %v1525
  %v1543 = vsel %vm499, %v1535, %v1527
  %v1544 = vsel %vm334, %v1535, %v1536
  %v1545 = vsel %vm499, %v1544, %v1529
  %v1546 = vsel %vm334, %v1536, %v1537
  %v1547 = vsel %vm499, %v1546, %v1531
  %1554 = vst.msk [vmem:[#allocation4 + $0x90] sm:$0xff] %vm517, %v1538
  %1555 = vst [vmem:[#allocation4 + $0x98] sm:$0xff] %v1540
  %1556 = vst.msk [vmem:[#allocation4 + $0xa0] sm:$0xff] %vm297, %v1542
  %1557 = vst.msk [vmem:[#allocation4 + $0xa8] sm:$0xff] %vm517, %v1543
  %1558 = vst [vmem:[#allocation4 + $0xb0] sm:$0xff] %v1545
  %1559 = vst.msk [vmem:[#allocation4 + $0xb8] sm:$0xff] %vm297, %v1547
  %v1560 = vld [vmem:[#allocation3] sm:$0xff]
  %v1561 = vld [vmem:[#allocation3 + $0x8] sm:$0xff]
  %v1562 = vld [vmem:[#allocation3 + $0x10] sm:$0xff]
  %v1563 = vld [vmem:[#allocation3 + $0x18] sm:$0xff]
  %v1564 = vld [vmem:[#allocation3 + $0x20] sm:$0xff]
  %v1565 = vld [vmem:[#allocation3 + $0x28] sm:$0xff]
  %1566 = vst [vmem:[#allocation4 + $0xc0] sm:$0xff] %v1560
  %1567 = vst [vmem:[#allocation4 + $0xc8] sm:$0xff] %v1561
  %1568 = vst.msk [vmem:[#allocation4 + $0xd0] sm:$0xff] %vm297, %v1562
  %1569 = vst [vmem:[#allocation4 + $0xd8] sm:$0xff] %v1563
  %1570 = vst [vmem:[#allocation4 + $0xe0] sm:$0xff] %v1564
  %1571 = vst.msk [vmem:[#allocation4 + $0xe8] sm:$0xff] %vm297, %v1565
  %v1572 = vld [vmem:[#allocation3] sm:$0xff]
  %v1573 = vld [vmem:[#allocation3 + $0x8] sm:$0xff]
  %v1574 = vld [vmem:[#allocation3 + $0x10] sm:$0xff]
  %v1575 = vld [vmem:[#allocation3 + $0x18] sm:$0xff]
  %v1576 = vld [vmem:[#allocation3 + $0x20] sm:$0xff]
  %v1577 = vld [vmem:[#allocation3 + $0x28] sm:$0xff]
  %1584 = vrot.lane.b32.xlu0 %v1572, 127
  %v1585 = vpop.permute.xlu0 %1584
  %1586 = vrot.lane.b32.xlu0 %v1573, 127
  %v1587 = vpop.permute.xlu0 %1586
  %1588 = vrot.lane.b32.xlu0 %v1574, 127
  %v1589 = vpop.permute.xlu0 %1588
  %1590 = vrot.lane.b32.xlu0 %v1575, 127
  %v1591 = vpop.permute.xlu0 %1590
  %1592 = vrot.lane.b32.xlu0 %v1576, 127
  %v1593 = vpop.permute.xlu0 %1592
  %1594 = vrot.lane.b32.xlu0 %v1577, 127
  %v1595 = vpop.permute.xlu0 %1594
  %v1596 = vrot.slane %v1585, 4
  %v1597 = vrot.slane %v1587, 4
  %v1598 = vrot.slane %v1589, 4
  %v1599 = vrot.slane %v1591, 4
  %v1600 = vrot.slane %v1593, 4
  %v1601 = vrot.slane %v1595, 4
  %v1602 = vsel %vm334, %v1596, %v1597
  %v1603 = vsel %vm567, %v1585, %v1602
  %v1604 = vsel %vm334, %v1597, %v1598
  %v1605 = vsel %vm567, %v1587, %v1604
  %v1606 = vsel %vm567, %v1589, %v1598
  %v1607 = vsel %vm334, %v1599, %v1600
  %v1608 = vsel %vm567, %v1591, %v1607
  %v1609 = vsel %vm334, %v1600, %v1601
  %v1610 = vsel %vm567, %v1593, %v1609
  %v1611 = vsel %vm567, %v1595, %v1601
  %1618 = vst [vmem:[#allocation4 + $0xf0] sm:$0xff] %v1603
  %1619 = vst [vmem:[#allocation4 + $0xf8] sm:$0xff] %v1605
  %1620 = vst.msk [vmem:[#allocation4 + $0x100] sm:$0xff] %vm586, %v1606
  %1621 = vst [vmem:[#allocation4 + $0x108] sm:$0xff] %v1608
  %1622 = vst [vmem:[#allocation4 + $0x110] sm:$0xff] %v1610
  %1623 = vst.msk [vmem:[#allocation4 + $0x118] sm:$0xff] %vm586, %v1611
  %v1624 = vld [vmem:[#allocation3] sm:$0xff]
  %v1625 = vld [vmem:[#allocation3 + $0x8] sm:$0xff]
  %v1626 = vld [vmem:[#allocation3 + $0x10] sm:$0xff]
  %v1627 = vld [vmem:[#allocation3 + $0x18] sm:$0xff]
  %v1628 = vld [vmem:[#allocation3 + $0x20] sm:$0xff]
  %v1629 = vld [vmem:[#allocation3 + $0x28] sm:$0xff]
  %1636 = vrot.lane.b32.xlu0 %v1624, 111
  %v1637 = vpop.permute.xlu0 %1636
  %1638 = vrot.lane.b32.xlu0 %v1625, 111
  %v1639 = vpop.permute.xlu0 %1638
  %1640 = vrot.lane.b32.xlu0 %v1626, 111
  %v1641 = vpop.permute.xlu0 %1640
  %1642 = vrot.lane.b32.xlu0 %v1627, 111
  %v1643 = vpop.permute.xlu0 %1642
  %1644 = vrot.lane.b32.xlu0 %v1628, 111
  %v1645 = vpop.permute.xlu0 %1644
  %1646 = vrot.lane.b32.xlu0 %v1629, 111
  %v1647 = vpop.permute.xlu0 %1646
  %v1648 = vrot.slane %v1637, 4
  %v1649 = vrot.slane %v1639, 4
  %v1650 = vrot.slane %v1641, 4
  %v1651 = vrot.slane %v1643, 4
  %v1652 = vrot.slane %v1645, 4
  %v1653 = vrot.slane %v1647, 4
  %v1654 = vsel %vm334, %v1648, %v1649
  %v1655 = vsel %vm622, %v1637, %v1654
  %v1656 = vsel %vm334, %v1649, %v1650
  %v1657 = vsel %vm622, %v1639, %v1656
  %v1658 = vsel %vm622, %v1641, %v1650
  %v1659 = vsel %vm334, %v1651, %v1652
  %v1660 = vsel %vm622, %v1643, %v1659
  %v1661 = vsel %vm334, %v1652, %v1653
  %v1662 = vsel %vm622, %v1645, %v1661
  %v1663 = vsel %vm622, %v1647, %v1653
  %1670 = vst [vmem:[#allocation4 + $0x120] sm:$0xff] %v1655
  %1671 = vst [vmem:[#allocation4 + $0x128] sm:$0xff] %v1657
  %1672 = vst.msk [vmem:[#allocation4 + $0x130] sm:$0xf] %vm640, %v1658
  %1673 = vst [vmem:[#allocation4 + $0x138] sm:$0xff] %v1660
  %1674 = vst [vmem:[#allocation4 + $0x140] sm:$0xff] %v1662
  %1675 = vst.msk [vmem:[#allocation4 + $0x148] sm:$0xf] %vm640, %v1663
  %v1676 = vld [vmem:[#allocation3] sm:$0xff]
  %v1677 = vld [vmem:[#allocation3 + $0x8] sm:$0xff]
  %v1678 = vld [vmem:[#allocation3 + $0x10] sm:$0xff]
  %v1679 = vld [vmem:[#allocation3 + $0x18] sm:$0xff]
  %v1680 = vld [vmem:[#allocation3 + $0x20] sm:$0xff]
  %v1681 = vld [vmem:[#allocation3 + $0x28] sm:$0xff]
  %1688 = vrot.lane.b32.xlu0 %v1676, 110
  %v1689 = vpop.permute.xlu0 %1688
  %1690 = vrot.lane.b32.xlu0 %v1677, 110
  %v1691 = vpop.permute.xlu0 %1690
  %1692 = vrot.lane.b32.xlu0 %v1678, 110
  %v1693 = vpop.permute.xlu0 %1692
  %1694 = vrot.lane.b32.xlu0 %v1679, 110
  %v1695 = vpop.permute.xlu0 %1694
  %1696 = vrot.lane.b32.xlu0 %v1680, 110
  %v1697 = vpop.permute.xlu0 %1696
  %1698 = vrot.lane.b32.xlu0 %v1681, 110
  %v1699 = vpop.permute.xlu0 %1698
  %v1700 = vrot.slane %v1689, 4
  %v1701 = vrot.slane %v1691, 4
  %v1702 = vrot.slane %v1693, 4
  %v1703 = vrot.slane %v1695, 4
  %v1704 = vrot.slane %v1697, 4
  %v1705 = vrot.slane %v1699, 4
  %v1706 = vsel %vm334, %v1700, %v1701
  %v1707 = vsel %vm676, %v1689, %v1706
  %v1708 = vsel %vm334, %v1701, %v1702
  %v1709 = vsel %vm676, %v1691, %v1708
  %v1710 = vsel %vm676, %v1693, %v1702
  %v1711 = vsel %vm334, %v1703, %v1704
  %v1712 = vsel %vm676, %v1695, %v1711
  %v1713 = vsel %vm334, %v1704, %v1705
  %v1714 = vsel %vm676, %v1697, %v1713
  %v1715 = vsel %vm676, %v1699, %v1705
  %1722 = vst [vmem:[#allocation4 + $0x150] sm:$0xff] %v1707
  %1723 = vst [vmem:[#allocation4 + $0x158] sm:$0xff] %v1709
  %1724 = vst.msk [vmem:[#allocation4 + $0x160] sm:$0xf] %vm694, %v1710
  %1725 = vst [vmem:[#allocation4 + $0x168] sm:$0xff] %v1712
  %1726 = vst [vmem:[#allocation4 + $0x170] sm:$0xff] %v1714
  %1727 = vst.msk [vmem:[#allocation4 + $0x178] sm:$0xf] %vm694, %v1715
  %v1728 = vld [vmem:[#allocation3] sm:$0xff]
  %v1729 = vld [vmem:[#allocation3 + $0x8] sm:$0xff]
  %v1730 = vld [vmem:[#allocation3 + $0x10] sm:$0xff]
  %v1731 = vld [vmem:[#allocation3 + $0x18] sm:$0xff]
  %v1732 = vld [vmem:[#allocation3 + $0x20] sm:$0xff]
  %v1733 = vld [vmem:[#allocation3 + $0x28] sm:$0xff]
  %1740 = vrot.lane.b32.xlu0 %v1728, 109
  %v1741 = vpop.permute.xlu0 %1740
  %1742 = vrot.lane.b32.xlu0 %v1729, 109
  %v1743 = vpop.permute.xlu0 %1742
  %1744 = vrot.lane.b32.xlu0 %v1730, 109
  %v1745 = vpop.permute.xlu0 %1744
  %1746 = vrot.lane.b32.xlu0 %v1731, 109
  %v1747 = vpop.permute.xlu0 %1746
  %1748 = vrot.lane.b32.xlu0 %v1732, 109
  %v1749 = vpop.permute.xlu0 %1748
  %1750 = vrot.lane.b32.xlu0 %v1733, 109
  %v1751 = vpop.permute.xlu0 %1750
  %v1752 = vrot.slane %v1741, 4
  %v1753 = vrot.slane %v1743, 4
  %v1754 = vrot.slane %v1745, 4
  %v1755 = vrot.slane %v1747, 4
  %v1756 = vrot.slane %v1749, 4
  %v1757 = vrot.slane %v1751, 4
  %v1758 = vsel %vm334, %v1752, %v1753
  %v1759 = vsel %vm730, %v1741, %v1758
  %v1760 = vsel %vm334, %v1753, %v1754
  %v1761 = vsel %vm730, %v1743, %v1760
  %v1762 = vsel %vm730, %v1745, %v1754
  %v1763 = vsel %vm334, %v1755, %v1756
  %v1764 = vsel %vm730, %v1747, %v1763
  %v1765 = vsel %vm334, %v1756, %v1757
  %v1766 = vsel %vm730, %v1749, %v1765
  %v1767 = vsel %vm730, %v1751, %v1757
  %1774 = vst [vmem:[#allocation4 + $0x180] sm:$0xff] %v1759
  %1775 = vst [vmem:[#allocation4 + $0x188] sm:$0xff] %v1761
  %1776 = vst.msk [vmem:[#allocation4 + $0x190] sm:$0xf] %vm748, %v1762
  %1777 = vst [vmem:[#allocation4 + $0x198] sm:$0xff] %v1764
  %1778 = vst [vmem:[#allocation4 + $0x1a0] sm:$0xff] %v1766
  %1779 = vst.msk [vmem:[#allocation4 + $0x1a8] sm:$0xf] %vm748, %v1767
  %v1780 = vld [vmem:[#allocation4] sm:$0xff]
  %v1781 = vld [vmem:[#allocation4 + $0x8] sm:$0xff]
  %v1782 = vld [vmem:[#allocation4 + $0x10] sm:$0xff]
  %v1783 = vld [vmem:[#allocation4 + $0x18] sm:$0xff]
  %v1784 = vld [vmem:[#allocation4 + $0x20] sm:$0xff]
  %v1785 = vld [vmem:[#allocation4 + $0x28] sm:$0xff]
  %v1786 = vld [vmem:[#allocation4 + $0x30] sm:$0xff]
  %v1787 = vld [vmem:[#allocation4 + $0x38] sm:$0xff]
  %v1788 = vld [vmem:[#allocation4 + $0x40] sm:$0xff]
  %v1789 = vld [vmem:[#allocation4 + $0x48] sm:$0xff]
  %v1790 = vld [vmem:[#allocation4 + $0x50] sm:$0xff]
  %v1791 = vld [vmem:[#allocation4 + $0x58] sm:$0xff]
  %v1792 = vld [vmem:[#allocation4 + $0x60] sm:$0xff]
  %v1793 = vld [vmem:[#allocation4 + $0x68] sm:$0xff]
  %v1794 = vld [vmem:[#allocation4 + $0x70] sm:$0xff]
  %v1795 = vld [vmem:[#allocation4 + $0x78] sm:$0xff]
  %v1796 = vld [vmem:[#allocation4 + $0x80] sm:$0xff]
  %v1797 = vld [vmem:[#allocation4 + $0x88] sm:$0xff]
  %v1798 = vld [vmem:[#allocation4 + $0x90] sm:$0xff]
  %v1799 = vld [vmem:[#allocation4 + $0x98] sm:$0xff]
  %v1800 = vld [vmem:[#allocation4 + $0xa0] sm:$0xff]
  %v1801 = vld [vmem:[#allocation4 + $0xa8] sm:$0xff]
  %v1802 = vld [vmem:[#allocation4 + $0xb0] sm:$0xff]
  %v1803 = vld [vmem:[#allocation4 + $0xb8] sm:$0xff]
  %v1804 = vld [vmem:[#allocation4 + $0xc0] sm:$0xff]
  %v1805 = vld [vmem:[#allocation4 + $0xc8] sm:$0xff]
  %v1806 = vld [vmem:[#allocation4 + $0xd0] sm:$0xff]
  %v1807 = vld [vmem:[#allocation4 + $0xd8] sm:$0xff]
  %v1808 = vld [vmem:[#allocation4 + $0xe0] sm:$0xff]
  %v1809 = vld [vmem:[#allocation4 + $0xe8] sm:$0xff]
  %v1810 = vld [vmem:[#allocation4 + $0xf0] sm:$0xff]
  %v1811 = vld [vmem:[#allocation4 + $0xf8] sm:$0xff]
  %v1812 = vld [vmem:[#allocation4 + $0x100] sm:$0xff]
  %v1813 = vld [vmem:[#allocation4 + $0x108] sm:$0xff]
  %v1814 = vld [vmem:[#allocation4 + $0x110] sm:$0xff]
  %v1815 = vld [vmem:[#allocation4 + $0x118] sm:$0xff]
  %v1816 = vld [vmem:[#allocation4 + $0x120] sm:$0xff]
  %v1817 = vld [vmem:[#allocation4 + $0x128] sm:$0xff]
  %v1818 = vld [vmem:[#allocation4 + $0x130] sm:$0xff]
  %v1819 = vld [vmem:[#allocation4 + $0x138] sm:$0xff]
  %v1820 = vld [vmem:[#allocation4 + $0x140] sm:$0xff]
  %v1821 = vld [vmem:[#allocation4 + $0x148] sm:$0xff]
  %v1822 = vld [vmem:[#allocation4 + $0x150] sm:$0xff]
  %v1823 = vld [vmem:[#allocation4 + $0x158] sm:$0xff]
  %v1824 = vld [vmem:[#allocation4 + $0x160] sm:$0xff]
  %v1825 = vld [vmem:[#allocation4 + $0x168] sm:$0xff]
  %v1826 = vld [vmem:[#allocation4 + $0x170] sm:$0xff]
  %v1827 = vld [vmem:[#allocation4 + $0x178] sm:$0xff]
  %v1828 = vld [vmem:[#allocation4 + $0x180] sm:$0xff]
  %v1829 = vld [vmem:[#allocation4 + $0x188] sm:$0xff]
  %v1830 = vld [vmem:[#allocation4 + $0x190] sm:$0xff]
  %v1831 = vld [vmem:[#allocation4 + $0x198] sm:$0xff]
  %v1832 = vld [vmem:[#allocation4 + $0x1a0] sm:$0xff]
  %v1833 = vld [vmem:[#allocation4 + $0x1a8] sm:$0xff]
  %v1834 = vld [vmem:[#allocation4 + $0x1b0] sm:$0x11]
  %v1835 = vld [vmem:[#allocation4 + $0x1b8] sm:$0x11]
  %v1836 = vld [vmem:[#allocation4 + $0x1c0] sm:$0x11]
  %v1837 = vld [vmem:[%s1 + $0x50] sm:$0xff]
  %v1838 = vld [vmem:[%s1 + $0x64] sm:$0xff]
  %v1839 = vld [vmem:[#allocation2] sm:$0xff]
  %v1840 = vld [vmem:[#allocation2 + $0x8] sm:$0xff]
  %v1841 = vld [vmem:[#allocation2 + $0x10] sm:$0xff]
  %v1842 = vld [vmem:[#allocation2 + $0x18] sm:$0xff]
  %v1843 = vld [vmem:[#allocation2 + $0x20] sm:$0xff]
  %v1844 = vld [vmem:[#allocation2 + $0x28] sm:$0xff]
  %v1845 = vunpack.c.l.bf16 %v1839
  %v1846 = vunpack.c.h.bf16 %v1839
  %v1847 = vunpack.c.l.bf16 %v1840
  %v1848 = vunpack.c.h.bf16 %v1840
  %v1849 = vunpack.c.l.bf16 %v1841
  %v1850 = vunpack.c.h.bf16 %v1841
  %v1851 = vunpack.c.l.bf16 %v1842
  %v1852 = vunpack.c.h.bf16 %v1842
  %v1853 = vunpack.c.l.bf16 %v1843
  %v1854 = vunpack.c.h.bf16 %v1843
  %v1855 = vunpack.c.l.bf16 %v1844
  %v1856 = vunpack.c.h.bf16 %v1844
  %v1859 = vunpack.c.l.b16 %v1837
  %v1860 = vunpack.c.h.b16 %v1837
  %v1861 = vunpack.c.l.b16 %v1838
  %v1862 = vunpack.c.h.b16 %v1838
  %v1863 = vpack.c.b16 %v1861, %v1859
  %v1864 = vpack.c.b16 %v1862, %v1860
  %v1923 = vunpack.c.l.b16 %v1780
  %v1924 = vunpack.c.h.b16 %v1780
  %v1925 = vunpack.c.l.b16 %v1781
  %v1926 = vunpack.c.h.b16 %v1781
  %v1927 = vunpack.c.l.b16 %v1782
  %v1928 = vunpack.c.h.b16 %v1782
  %v1929 = vunpack.c.l.b16 %v1783
  %v1930 = vunpack.c.h.b16 %v1783
  %v1931 = vunpack.c.l.b16 %v1784
  %v1932 = vunpack.c.h.b16 %v1784
  %v1933 = vunpack.c.l.b16 %v1785
  %v1934 = vunpack.c.h.b16 %v1785
  %v1935 = vunpack.c.l.b16 %v1786
  %v1936 = vunpack.c.h.b16 %v1786
  %v1937 = vunpack.c.l.b16 %v1787
  %v1938 = vunpack.c.h.b16 %v1787
  %v1939 = vunpack.c.l.b16 %v1788
  %v1940 = vunpack.c.h.b16 %v1788
  %v1941 = vunpack.c.l.b16 %v1789
  %v1942 = vunpack.c.h.b16 %v1789
  %v1943 = vunpack.c.l.b16 %v1790
  %v1944 = vunpack.c.h.b16 %v1790
  %v1945 = vunpack.c.l.b16 %v1791
  %v1946 = vunpack.c.h.b16 %v1791
  %v1947 = vunpack.c.l.b16 %v1792
  %v1948 = vunpack.c.h.b16 %v1792
  %v1949 = vunpack.c.l.b16 %v1793
  %v1950 = vunpack.c.h.b16 %v1793
  %v1951 = vunpack.c.l.b16 %v1794
  %v1952 = vunpack.c.h.b16 %v1794
  %v1953 = vunpack.c.l.b16 %v1795
  %v1954 = vunpack.c.h.b16 %v1795
  %v1955 = vunpack.c.l.b16 %v1796
  %v1956 = vunpack.c.h.b16 %v1796
  %v1957 = vunpack.c.l.b16 %v1797
  %v1958 = vunpack.c.h.b16 %v1797
  %v1959 = vunpack.c.l.b16 %v1798
  %v1960 = vunpack.c.h.b16 %v1798
  %v1961 = vunpack.c.l.b16 %v1799
  %v1962 = vunpack.c.h.b16 %v1799
  %v1963 = vunpack.c.l.b16 %v1800
  %v1964 = vunpack.c.h.b16 %v1800
  %v1965 = vunpack.c.l.b16 %v1801
  %v1966 = vunpack.c.h.b16 %v1801
  %v1967 = vunpack.c.l.b16 %v1802
  %v1968 = vunpack.c.h.b16 %v1802
  %v1969 = vunpack.c.l.b16 %v1803
  %v1970 = vunpack.c.h.b16 %v1803
  %v1971 = vunpack.c.l.b16 %v1804
  %v1972 = vunpack.c.h.b16 %v1804
  %v1973 = vunpack.c.l.b16 %v1805
  %v1974 = vunpack.c.h.b16 %v1805
  %v1975 = vunpack.c.l.b16 %v1806
  %v1976 = vunpack.c.h.b16 %v1806
  %v1977 = vunpack.c.l.b16 %v1807
  %v1978 = vunpack.c.h.b16 %v1807
  %v1979 = vunpack.c.l.b16 %v1808
  %v1980 = vunpack.c.h.b16 %v1808
  %v1981 = vunpack.c.l.b16 %v1809
  %v1982 = vunpack.c.h.b16 %v1809
  %v1983 = vunpack.c.l.b16 %v1810
  %v1984 = vunpack.c.h.b16 %v1810
  %v1985 = vunpack.c.l.b16 %v1811
  %v1986 = vunpack.c.h.b16 %v1811
  %v1987 = vunpack.c.l.b16 %v1812
  %v1988 = vunpack.c.h.b16 %v1812
  %v1989 = vunpack.c.l.b16 %v1813
  %v1990 = vunpack.c.h.b16 %v1813
  %v1991 = vunpack.c.l.b16 %v1814
  %v1992 = vunpack.c.h.b16 %v1814
  %v1993 = vunpack.c.l.b16 %v1815
  %v1994 = vunpack.c.h.b16 %v1815
  %v1995 = vunpack.c.l.b16 %v1816
  %v1996 = vunpack.c.h.b16 %v1816
  %v1997 = vunpack.c.l.b16 %v1817
  %v1998 = vunpack.c.h.b16 %v1817
  %v1999 = vunpack.c.l.b16 %v1818
  %v2000 = vunpack.c.h.b16 %v1818
  %v2001 = vunpack.c.l.b16 %v1819
  %v2002 = vunpack.c.h.b16 %v1819
  %v2003 = vunpack.c.l.b16 %v1820
  %v2004 = vunpack.c.h.b16 %v1820
  %v2005 = vunpack.c.l.b16 %v1821
  %v2006 = vunpack.c.h.b16 %v1821
  %v2007 = vunpack.c.l.b16 %v1822
  %v2008 = vunpack.c.h.b16 %v1822
  %v2009 = vunpack.c.l.b16 %v1823
  %v2010 = vunpack.c.h.b16 %v1823
  %v2011 = vunpack.c.l.b16 %v1824
  %v2012 = vunpack.c.h.b16 %v1824
  %v2013 = vunpack.c.l.b16 %v1825
  %v2014 = vunpack.c.h.b16 %v1825
  %v2015 = vunpack.c.l.b16 %v1826
  %v2016 = vunpack.c.h.b16 %v1826
  %v2017 = vunpack.c.l.b16 %v1827
  %v2018 = vunpack.c.h.b16 %v1827
  %v2019 = vunpack.c.l.b16 %v1828
  %v2020 = vunpack.c.h.b16 %v1828
  %v2021 = vunpack.c.l.b16 %v1829
  %v2022 = vunpack.c.h.b16 %v1829
  %v2023 = vunpack.c.l.b16 %v1830
  %v2024 = vunpack.c.h.b16 %v1830
  %v2025 = vunpack.c.l.b16 %v1831
  %v2026 = vunpack.c.h.b16 %v1831
  %v2027 = vunpack.c.l.b16 %v1832
  %v2028 = vunpack.c.h.b16 %v1832
  %v2029 = vunpack.c.l.b16 %v1833
  %v2030 = vunpack.c.h.b16 %v1833
  %v2031 = vunpack.c.l.b16 %v1834
  %v2032 = vunpack.c.h.b16 %v1834
  %v2033 = vunpack.c.l.b16 %v1835
  %v2034 = vunpack.c.h.b16 %v1835
  %v2035 = vunpack.c.l.b16 %v1836
  %v2036 = vunpack.c.h.b16 %v1836
  %v2037 = vpack.c.b16 %v1929, %v1923
  %v2038 = vpack.c.b16 %v1930, %v1924
  %v2039 = vpack.c.b16 %v1931, %v1925
  %v2040 = vpack.c.b16 %v1932, %v1926
  %v2041 = vpack.c.b16 %v1933, %v1927
  %v2042 = vpack.c.b16 %v1934, %v1928
  %v2043 = vpack.c.b16 %v1941, %v1935
  %v2044 = vpack.c.b16 %v1942, %v1936
  %v2045 = vpack.c.b16 %v1943, %v1937
  %v2046 = vpack.c.b16 %v1944, %v1938
  %v2047 = vpack.c.b16 %v1945, %v1939
  %v2048 = vpack.c.b16 %v1946, %v1940
  %v2049 = vpack.c.b16 %v1953, %v1947
  %v2050 = vpack.c.b16 %v1954, %v1948
  %v2051 = vpack.c.b16 %v1955, %v1949
  %v2052 = vpack.c.b16 %v1956, %v1950
  %v2053 = vpack.c.b16 %v1957, %v1951
  %v2054 = vpack.c.b16 %v1958, %v1952
  %v2055 = vpack.c.b16 %v1965, %v1959
  %v2056 = vpack.c.b16 %v1966, %v1960
  %v2057 = vpack.c.b16 %v1967, %v1961
  %v2058 = vpack.c.b16 %v1968, %v1962
  %v2059 = vpack.c.b16 %v1969, %v1963
  %v2060 = vpack.c.b16 %v1970, %v1964
  %v2061 = vpack.c.b16 %v1977, %v1971
  %v2062 = vpack.c.b16 %v1978, %v1972
  %v2063 = vpack.c.b16 %v1979, %v1973
  %v2064 = vpack.c.b16 %v1980, %v1974
  %v2065 = vpack.c.b16 %v1981, %v1975
  %v2066 = vpack.c.b16 %v1982, %v1976
  %v2067 = vpack.c.b16 %v1989, %v1983
  %v2068 = vpack.c.b16 %v1990, %v1984
  %v2069 = vpack.c.b16 %v1991, %v1985
  %v2070 = vpack.c.b16 %v1992, %v1986
  %v2071 = vpack.c.b16 %v1993, %v1987
  %v2072 = vpack.c.b16 %v1994, %v1988
  %v2073 = vpack.c.b16 %v2001, %v1995
  %v2074 = vpack.c.b16 %v2002, %v1996
  %v2075 = vpack.c.b16 %v2003, %v1997
  %v2076 = vpack.c.b16 %v2004, %v1998
  %v2077 = vpack.c.b16 %v2005, %v1999
  %v2078 = vpack.c.b16 %v2006, %v2000
  %v2079 = vpack.c.b16 %v2013, %v2007
  %v2080 = vpack.c.b16 %v2014, %v2008
  %v2081 = vpack.c.b16 %v2015, %v2009
  %v2082 = vpack.c.b16 %v2016, %v2010
  %v2083 = vpack.c.b16 %v2017, %v2011
  %v2084 = vpack.c.b16 %v2018, %v2012
  %v2085 = vpack.c.b16 %v2025, %v2019
  %v2086 = vpack.c.b16 %v2026, %v2020
  %v2087 = vpack.c.b16 %v2027, %v2021
  %v2088 = vpack.c.b16 %v2028, %v2022
  %v2089 = vpack.c.b16 %v2029, %v2023
  %v2090 = vpack.c.b16 %v2030, %v2024
  %v2091 = vpack.c.b16 %v2031, %v2031
  %v2092 = vpack.c.b16 %v2032, %v2032
  %v2093 = vpack.c.b16 %v2033, %v2033
  %v2094 = vpack.c.b16 %v2034, %v2034
  %v2095 = vpack.c.b16 %v2035, %v2035
  %v2096 = vpack.c.b16 %v2036, %v2036
  %v2152 = vsel %vm1106, %v1864, 0
  %v2155 = vand.u32 %v2091, %v1112
  %v2158 = vand.u32 %v2092, %v1112
  %v2161 = vand.u32 %v2093, %v1112
  %v2164 = vand.u32 %v2094, %v1112
  %v2167 = vand.u32 %v2095, %v1112
  %v2170 = vand.u32 %v2096, %v1112
  %2172 = vmatpush.bf16.msra.mxu0 %v2079
  %2173 = vmatpush.bf16.msra.mxu0 %v2073
  %2174 = vmatpush.bf16.msra.mxu0 %v2067
  %2175 = vmatpush.bf16.msra.mxu0 %v2061
  %2176 = vmatpush.bf16.msra.mxu0 %v2055
  %2177 = vmatpush.bf16.msra.mxu0 %v2049
  %2178 = vmatpush.bf16.msra.mxu0 %v2043
  %2179 = vmatpush.bf16.msra.mxu0 %v2037
  %2180 = vmatmul.bf16.gmra.mxu0 %v1863
  %v2181 = vpop.f32.mrf.mxu0
  %v2182 = vadd.f32 %v1845, %v2181
  %v2183 = vpop.f32.mrf.mxu0
  %v2184 = vadd.f32 %v1851, %v2183
  %2185 = vdwg.mxu0
  %2186 = vmatpush.bf16.msra.mxu0 0
  %2187 = vmatpush.bf16.msra.mxu0 0
  %2188 = vmatpush.bf16.msra.mxu0 0
  %2189 = vmatpush.bf16.msra.mxu0 0
  %2190 = vmatpush.bf16.msra.mxu0 0
  %2191 = vmatpush.bf16.msra.mxu0 0
  %2192 = vmatpush.bf16.msra.mxu0 %v2155
  %2193 = vmatpush.bf16.msra.mxu0 %v2085
  %2194 = vmatmul.bf16.gmra.mxu0 %v2152
  %v2195 = vpop.f32.mrf.mxu0
  %v2196 = vadd.f32 %v2182, %v2195
  %v2197 = vpop.f32.mrf.mxu0
  %v2198 = vadd.f32 %v2184, %v2197
  %2199 = vdwg.mxu0
  %2200 = vmatpush.bf16.msra.mxu0 %v2080
  %2201 = vmatpush.bf16.msra.mxu0 %v2074
  %2202 = vmatpush.bf16.msra.mxu0 %v2068
  %2203 = vmatpush.bf16.msra.mxu0 %v2062
  %2204 = vmatpush.bf16.msra.mxu0 %v2056
  %2205 = vmatpush.bf16.msra.mxu0 %v2050
  %2206 = vmatpush.bf16.msra.mxu0 %v2044
  %2207 = vmatpush.bf16.msra.mxu0 %v2038
  %2208 = vmatmul.bf16.gmra.mxu0 %v1863
  %v2209 = vpop.f32.mrf.mxu0
  %v2210 = vadd.f32 %v1846, %v2209
  %v2211 = vpop.f32.mrf.mxu0
  %v2212 = vadd.f32 %v1852, %v2211
  %2213 = vdwg.mxu0
  %2214 = vmatpush.bf16.msra.mxu0 0
  %2215 = vmatpush.bf16.msra.mxu0 0
  %2216 = vmatpush.bf16.msra.mxu0 0
  %2217 = vmatpush.bf16.msra.mxu0 0
  %2218 = vmatpush.bf16.msra.mxu0 0
  %2219 = vmatpush.bf16.msra.mxu0 0
  %2220 = vmatpush.bf16.msra.mxu0 %v2158
  %2221 = vmatpush.bf16.msra.mxu0 %v2086
  %2222 = vmatmul.bf16.gmra.mxu0 %v2152
  %v2223 = vpop.f32.mrf.mxu0
  %v2224 = vadd.f32 %v2210, %v2223
  %v2225 = vpop.f32.mrf.mxu0
  %v2226 = vadd.f32 %v2212, %v2225
  %2227 = vdwg.mxu0
  %2228 = vmatpush.bf16.msra.mxu0 %v2081
  %2229 = vmatpush.bf16.msra.mxu0 %v2075
  %2230 = vmatpush.bf16.msra.mxu0 %v2069
  %2231 = vmatpush.bf16.msra.mxu0 %v2063
  %2232 = vmatpush.bf16.msra.mxu0 %v2057
  %2233 = vmatpush.bf16.msra.mxu0 %v2051
  %2234 = vmatpush.bf16.msra.mxu0 %v2045
  %2235 = vmatpush.bf16.msra.mxu0 %v2039
  %2236 = vmatmul.bf16.gmra.mxu0 %v1863
  %v2237 = vpop.f32.mrf.mxu0
  %v2238 = vadd.f32 %v1847, %v2237
  %v2239 = vpop.f32.mrf.mxu0
  %v2240 = vadd.f32 %v1853, %v2239
  %2241 = vdwg.mxu0
  %2242 = vmatpush.bf16.msra.mxu0 0
  %2243 = vmatpush.bf16.msra.mxu0 0
  %2244 = vmatpush.bf16.msra.mxu0 0
  %2245 = vmatpush.bf16.msra.mxu0 0
  %2246 = vmatpush.bf16.msra.mxu0 0
  %2247 = vmatpush.bf16.msra.mxu0 0
  %2248 = vmatpush.bf16.msra.mxu0 %v2161
  %2249 = vmatpush.bf16.msra.mxu0 %v2087
  %2250 = vmatmul.bf16.gmra.mxu0 %v2152
  %v2251 = vpop.f32.mrf.mxu0
  %v2252 = vadd.f32 %v2238, %v2251
  %v2253 = vpop.f32.mrf.mxu0
  %v2254 = vadd.f32 %v2240, %v2253
  %2255 = vdwg.mxu0
  %2256 = vmatpush.bf16.msra.mxu0 %v2082
  %2257 = vmatpush.bf16.msra.mxu0 %v2076
  %2258 = vmatpush.bf16.msra.mxu0 %v2070
  %2259 = vmatpush.bf16.msra.mxu0 %v2064
  %2260 = vmatpush.bf16.msra.mxu0 %v2058
  %2261 = vmatpush.bf16.msra.mxu0 %v2052
  %2262 = vmatpush.bf16.msra.mxu0 %v2046
  %2263 = vmatpush.bf16.msra.mxu0 %v2040
  %2264 = vmatmul.bf16.gmra.mxu0 %v1863
  %v2265 = vpop.f32.mrf.mxu0
  %v2266 = vadd.f32 %v1848, %v2265
  %v2267 = vpop.f32.mrf.mxu0
  %v2268 = vadd.f32 %v1854, %v2267
  %2269 = vdwg.mxu0
  %2270 = vmatpush.bf16.msra.mxu0 0
  %2271 = vmatpush.bf16.msra.mxu0 0
  %2272 = vmatpush.bf16.msra.mxu0 0
  %2273 = vmatpush.bf16.msra.mxu0 0
  %2274 = vmatpush.bf16.msra.mxu0 0
  %2275 = vmatpush.bf16.msra.mxu0 0
  %2276 = vmatpush.bf16.msra.mxu0 %v2164
  %2277 = vmatpush.bf16.msra.mxu0 %v2088
  %2278 = vmatmul.bf16.gmra.mxu0 %v2152
  %v2279 = vpop.f32.mrf.mxu0
  %v2280 = vadd.f32 %v2266, %v2279
  %v2281 = vpop.f32.mrf.mxu0
  %v2282 = vadd.f32 %v2268, %v2281
  %2283 = vdwg.mxu0
  %2284 = vmatpush.bf16.msra.mxu0 %v2083
  %2285 = vmatpush.bf16.msra.mxu0 %v2077
  %2286 = vmatpush.bf16.msra.mxu0 %v2071
  %2287 = vmatpush.bf16.msra.mxu0 %v2065
  %2288 = vmatpush.bf16.msra.mxu0 %v2059
  %2289 = vmatpush.bf16.msra.mxu0 %v2053
  %2290 = vmatpush.bf16.msra.mxu0 %v2047
  %2291 = vmatpush.bf16.msra.mxu0 %v2041
  %2292 = vmatmul.bf16.gmra.mxu0 %v1863
  %v2293 = vpop.f32.mrf.mxu0
  %v2294 = vadd.f32 %v1849, %v2293
  %v2295 = vpop.f32.mrf.mxu0
  %v2296 = vadd.f32 %v1855, %v2295
  %2297 = vdwg.mxu0
  %2298 = vmatpush.bf16.msra.mxu0 0
  %2299 = vmatpush.bf16.msra.mxu0 0
  %2300 = vmatpush.bf16.msra.mxu0 0
  %2301 = vmatpush.bf16.msra.mxu0 0
  %2302 = vmatpush.bf16.msra.mxu0 0
  %2303 = vmatpush.bf16.msra.mxu0 0
  %2304 = vmatpush.bf16.msra.mxu0 %v2167
  %2305 = vmatpush.bf16.msra.mxu0 %v2089
  %2306 = vmatmul.bf16.gmra.mxu0 %v2152
  %v2307 = vpop.f32.mrf.mxu0
  %v2308 = vadd.f32 %v2294, %v2307
  %v2309 = vpop.f32.mrf.mxu0
  %v2310 = vadd.f32 %v2296, %v2309
  %2311 = vdwg.mxu0
  %2312 = vmatpush.bf16.msra.mxu0 %v2084
  %2313 = vmatpush.bf16.msra.mxu0 %v2078
  %2314 = vmatpush.bf16.msra.mxu0 %v2072
  %2315 = vmatpush.bf16.msra.mxu0 %v2066
  %2316 = vmatpush.bf16.msra.mxu0 %v2060
  %2317 = vmatpush.bf16.msra.mxu0 %v2054
  %2318 = vmatpush.bf16.msra.mxu0 %v2048
  %2319 = vmatpush.bf16.msra.mxu0 %v2042
  %2320 = vmatmul.bf16.gmra.mxu0 %v1863
  %v2321 = vpop.f32.mrf.mxu0
  %v2322 = vadd.f32 %v1850, %v2321
  %v2323 = vpop.f32.mrf.mxu0
  %v2324 = vadd.f32 %v1856, %v2323
  %2325 = vdwg.mxu0
  %2326 = vmatpush.bf16.msra.mxu0 0
  %2327 = vmatpush.bf16.msra.mxu0 0
  %2328 = vmatpush.bf16.msra.mxu0 0
  %2329 = vmatpush.bf16.msra.mxu0 0
  %2330 = vmatpush.bf16.msra.mxu0 0
  %2331 = vmatpush.bf16.msra.mxu0 0
  %2332 = vmatpush.bf16.msra.mxu0 %v2170
  %2333 = vmatpush.bf16.msra.mxu0 %v2090
  %2334 = vmatmul.bf16.gmra.mxu0 %v2152
  %v2335 = vpop.f32.mrf.mxu0
  %v2336 = vadd.f32 %v2322, %v2335
  %v2337 = vpop.f32.mrf.mxu0
  %v2338 = vadd.f32 %v2324, %v2337
  %2339 = vdwg.mxu0
  %v2340 = vld [vmem:[%s2] ss:$8 sm:$0xf]
  %v2341 = vld [vmem:[%s2] ss:$8 sm:$0x30]
  %v2342 = vor.u32 %v2340, %v2341
  %vm2343 = vcmp.gt.f32.partialorder %v2342, 0.0
  %v2344 = vmax.f32 %v2196, 0.0
  %v2345 = vmax.f32 %v2224, 0.0
  %v2346 = vmax.f32 %v2252, 0.0
  %v2347 = vmax.f32 %v2280, 0.0
  %v2348 = vmax.f32 %v2308, 0.0
  %v2349 = vmax.f32 %v2336, 0.0
  %v2350 = vmax.f32 %v2198, 0.0
  %v2351 = vmax.f32 %v2226, 0.0
  %v2352 = vmax.f32 %v2254, 0.0
  %v2353 = vmax.f32 %v2282, 0.0
  %v2354 = vmax.f32 %v2310, 0.0
  %v2355 = vmax.f32 %v2338, 0.0
  %v2356 = vsel %vm2343, 1, 0
  %v2357 = vperm.slane %v2356, 0
  %v2358 = vperm.slane %v2356, 1
  %v2359 = vperm.slane %v2356, 2
  %v2360 = vperm.slane %v2356, 3
  %v2361 = vperm.slane %v2356, 4
  %v2362 = vperm.slane %v2356, 5
  %vm2363 = vcmp.eq.s32.totalorder %v2357, 1
  %vm2364 = vcmp.eq.s32.totalorder %v2358, 1
  %vm2365 = vcmp.eq.s32.totalorder %v2359, 1
  %vm2366 = vcmp.eq.s32.totalorder %v2360, 1
  %vm2367 = vcmp.eq.s32.totalorder %v2361, 1
  %vm2368 = vcmp.eq.s32.totalorder %v2362, 1
  %v2369 = vsel %vm2363, %v2344, 0.0
  %v2370 = vsel %vm2364, %v2345, 0.0
  %v2371 = vsel %vm2365, %v2346, 0.0
  %v2372 = vsel %vm2366, %v2347, 0.0
  %v2373 = vsel %vm2367, %v2348, 0.0
  %v2374 = vsel %vm2368, %v2349, 0.0
  %v2375 = vsel %vm2363, %v2350, 0.0
  %v2376 = vsel %vm2364, %v2351, 0.0
  %v2377 = vsel %vm2365, %v2352, 0.0
  %v2378 = vsel %vm2366, %v2353, 0.0
  %v2379 = vsel %vm2367, %v2354, 0.0
  %v2380 = vsel %vm2368, %v2355, 0.0
  %v2381 = vpack.c.bf16 %v2370, %v2369
  %v2382 = vpack.c.bf16 %v2372, %v2371
  %v2383 = vpack.c.bf16 %v2374, %v2373
  %v2384 = vpack.c.bf16 %v2376, %v2375
  %v2385 = vpack.c.bf16 %v2378, %v2377
  %v2386 = vpack.c.bf16 %v2380, %v2379
  %2387 = vst [vmem:[#allocation5] sm:$0xff] %v2381
  %2388 = vst [vmem:[#allocation5 + $0x8] sm:$0xff] %v2382
  %2389 = vst.msk [vmem:[#allocation5 + $0x10] sm:$0xff] %vm297, %v2383
  %2390 = vst [vmem:[#allocation5 + $0x18] sm:$0xff] %v2384
  %2391 = vst [vmem:[#allocation5 + $0x20] sm:$0xff] %v2385
  %2392 = vst.msk [vmem:[#allocation5 + $0x28] sm:$0xff] %vm297, %v2386
  %v2393 = vld [vmem:[#allocation5] sm:$0xff]
  %v2394 = vld [vmem:[#allocation5 + $0x8] sm:$0xff]
  %v2395 = vld [vmem:[#allocation5 + $0x10] sm:$0xf]
  %v2396 = vld [vmem:[#allocation5 + $0x18] sm:$0xff]
  %v2397 = vld [vmem:[#allocation5 + $0x20] sm:$0xff]
  %v2398 = vld [vmem:[#allocation5 + $0x28] sm:$0xf]
  %2405 = vrot.lane.b32.xlu0 %v2393, 19
  %v2406 = vpop.permute.xlu0 %2405
  %2407 = vrot.lane.b32.xlu0 %v2394, 19
  %v2408 = vpop.permute.xlu0 %2407
  %2409 = vrot.lane.b32.xlu0 %v2395, 19
  %v2410 = vpop.permute.xlu0 %2409
  %2411 = vrot.lane.b32.xlu0 %v2396, 19
  %v2412 = vpop.permute.xlu0 %2411
  %2413 = vrot.lane.b32.xlu0 %v2397, 19
  %v2414 = vpop.permute.xlu0 %2413
  %2415 = vrot.lane.b32.xlu0 %v2398, 19
  %v2416 = vpop.permute.xlu0 %2415
  %v2417 = vrot.slane %v2406, 4
  %v2418 = vrot.slane %v2408, 4
  %v2419 = vrot.slane %v2410, 4
  %v2420 = vrot.slane %v2412, 4
  %v2421 = vrot.slane %v2414, 4
  %v2422 = vrot.slane %v2416, 4
  %v2423 = vsel %vm332, %v2417, %v2406
  %v2424 = vsel %vm334, %v2417, %v2418
  %v2425 = vsel %vm332, %v2424, %v2408
  %v2426 = vsel %vm334, %v2418, %v2419
  %v2427 = vsel %vm332, %v2426, %v2410
  %v2428 = vsel %vm332, %v2420, %v2412
  %v2429 = vsel %vm334, %v2420, %v2421
  %v2430 = vsel %vm332, %v2429, %v2414
  %v2431 = vsel %vm334, %v2421, %v2422
  %v2432 = vsel %vm332, %v2431, %v2416
  %2439 = vst.msk [vmem:[#allocation4] sm:$0xff] %vm352, %v2423
  %2440 = vst [vmem:[#allocation4 + $0x8] sm:$0xff] %v2425
  %2441 = vst.msk [vmem:[#allocation4 + $0x10] sm:$0xff] %vm297, %v2427
  %2442 = vst.msk [vmem:[#allocation4 + $0x18] sm:$0xff] %vm352, %v2428
  %2443 = vst [vmem:[#allocation4 + $0x20] sm:$0xff] %v2430
  %2444 = vst.msk [vmem:[#allocation4 + $0x28] sm:$0xff] %vm297, %v2432
  %v2445 = vld [vmem:[#allocation5] sm:$0xff]
  %v2446 = vld [vmem:[#allocation5 + $0x8] sm:$0xff]
  %v2447 = vld [vmem:[#allocation5 + $0x10] sm:$0xf]
  %v2448 = vld [vmem:[#allocation5 + $0x18] sm:$0xff]
  %v2449 = vld [vmem:[#allocation5 + $0x20] sm:$0xff]
  %v2450 = vld [vmem:[#allocation5 + $0x28] sm:$0xf]
  %2457 = vrot.lane.b32.xlu0 %v2445, 18
  %v2458 = vpop.permute.xlu0 %2457
  %2459 = vrot.lane.b32.xlu0 %v2446, 18
  %v2460 = vpop.permute.xlu0 %2459
  %2461 = vrot.lane.b32.xlu0 %v2447, 18
  %v2462 = vpop.permute.xlu0 %2461
  %2463 = vrot.lane.b32.xlu0 %v2448, 18
  %v2464 = vpop.permute.xlu0 %2463
  %2465 = vrot.lane.b32.xlu0 %v2449, 18
  %v2466 = vpop.permute.xlu0 %2465
  %2467 = vrot.lane.b32.xlu0 %v2450, 18
  %v2468 = vpop.permute.xlu0 %2467
  %v2469 = vrot.slane %v2458, 4
  %v2470 = vrot.slane %v2460, 4
  %v2471 = vrot.slane %v2462, 4
  %v2472 = vrot.slane %v2464, 4
  %v2473 = vrot.slane %v2466, 4
  %v2474 = vrot.slane %v2468, 4
  %v2475 = vsel %vm389, %v2469, %v2458
  %v2476 = vsel %vm334, %v2469, %v2470
  %v2477 = vsel %vm389, %v2476, %v2460
  %v2478 = vsel %vm334, %v2470, %v2471
  %v2479 = vsel %vm389, %v2478, %v2462
  %v2480 = vsel %vm389, %v2472, %v2464
  %v2481 = vsel %vm334, %v2472, %v2473
  %v2482 = vsel %vm389, %v2481, %v2466
  %v2483 = vsel %vm334, %v2473, %v2474
  %v2484 = vsel %vm389, %v2483, %v2468
  %2491 = vst.msk [vmem:[#allocation4 + $0x30] sm:$0xff] %vm407, %v2475
  %2492 = vst [vmem:[#allocation4 + $0x38] sm:$0xff] %v2477
  %2493 = vst.msk [vmem:[#allocation4 + $0x40] sm:$0xff] %vm297, %v2479
  %2494 = vst.msk [vmem:[#allocation4 + $0x48] sm:$0xff] %vm407, %v2480
  %2495 = vst [vmem:[#allocation4 + $0x50] sm:$0xff] %v2482
  %2496 = vst.msk [vmem:[#allocation4 + $0x58] sm:$0xff] %vm297, %v2484
  %v2497 = vld [vmem:[#allocation5] sm:$0xff]
  %v2498 = vld [vmem:[#allocation5 + $0x8] sm:$0xff]
  %v2499 = vld [vmem:[#allocation5 + $0x10] sm:$0xf]
  %v2500 = vld [vmem:[#allocation5 + $0x18] sm:$0xff]
  %v2501 = vld [vmem:[#allocation5 + $0x20] sm:$0xff]
  %v2502 = vld [vmem:[#allocation5 + $0x28] sm:$0xf]
  %2509 = vrot.lane.b32.xlu0 %v2497, 17
  %v2510 = vpop.permute.xlu0 %2509
  %2511 = vrot.lane.b32.xlu0 %v2498, 17
  %v2512 = vpop.permute.xlu0 %2511
  %2513 = vrot.lane.b32.xlu0 %v2499, 17
  %v2514 = vpop.permute.xlu0 %2513
  %2515 = vrot.lane.b32.xlu0 %v2500, 17
  %v2516 = vpop.permute.xlu0 %2515
  %2517 = vrot.lane.b32.xlu0 %v2501, 17
  %v2518 = vpop.permute.xlu0 %2517
  %2519 = vrot.lane.b32.xlu0 %v2502, 17
  %v2520 = vpop.permute.xlu0 %2519
  %v2521 = vrot.slane %v2510, 4
  %v2522 = vrot.slane %v2512, 4
  %v2523 = vrot.slane %v2514, 4
  %v2524 = vrot.slane %v2516, 4
  %v2525 = vrot.slane %v2518, 4
  %v2526 = vrot.slane %v2520, 4
  %v2527 = vsel %vm444, %v2521, %v2510
  %v2528 = vsel %vm334, %v2521, %v2522
  %v2529 = vsel %vm444, %v2528, %v2512
  %v2530 = vsel %vm334, %v2522, %v2523
  %v2531 = vsel %vm444, %v2530, %v2514
  %v2532 = vsel %vm444, %v2524, %v2516
  %v2533 = vsel %vm334, %v2524, %v2525
  %v2534 = vsel %vm444, %v2533, %v2518
  %v2535 = vsel %vm334, %v2525, %v2526
  %v2536 = vsel %vm444, %v2535, %v2520
  %2543 = vst.msk [vmem:[#allocation4 + $0x60] sm:$0xff] %vm462, %v2527
  %2544 = vst [vmem:[#allocation4 + $0x68] sm:$0xff] %v2529
  %2545 = vst.msk [vmem:[#allocation4 + $0x70] sm:$0xff] %vm297, %v2531
  %2546 = vst.msk [vmem:[#allocation4 + $0x78] sm:$0xff] %vm462, %v2532
  %2547 = vst [vmem:[#allocation4 + $0x80] sm:$0xff] %v2534
  %2548 = vst.msk [vmem:[#allocation4 + $0x88] sm:$0xff] %vm297, %v2536
  %v2549 = vld [vmem:[#allocation5] sm:$0xff]
  %v2550 = vld [vmem:[#allocation5 + $0x8] sm:$0xff]
  %v2551 = vld [vmem:[#allocation5 + $0x10] sm:$0xff]
  %v2552 = vld [vmem:[#allocation5 + $0x18] sm:$0xff]
  %v2553 = vld [vmem:[#allocation5 + $0x20] sm:$0xff]
  %v2554 = vld [vmem:[#allocation5 + $0x28] sm:$0xff]
  %2561 = vrot.lane.b32.xlu0 %v2549, 1
  %v2562 = vpop.permute.xlu0 %2561
  %2563 = vrot.lane.b32.xlu0 %v2550, 1
  %v2564 = vpop.permute.xlu0 %2563
  %2565 = vrot.lane.b32.xlu0 %v2551, 1
  %v2566 = vpop.permute.xlu0 %2565
  %2567 = vrot.lane.b32.xlu0 %v2552, 1
  %v2568 = vpop.permute.xlu0 %2567
  %2569 = vrot.lane.b32.xlu0 %v2553, 1
  %v2570 = vpop.permute.xlu0 %2569
  %2571 = vrot.lane.b32.xlu0 %v2554, 1
  %v2572 = vpop.permute.xlu0 %2571
  %v2573 = vrot.slane %v2562, 4
  %v2574 = vrot.slane %v2564, 4
  %v2575 = vrot.slane %v2566, 4
  %v2576 = vrot.slane %v2568, 4
  %v2577 = vrot.slane %v2570, 4
  %v2578 = vrot.slane %v2572, 4
  %v2579 = vsel %vm499, %v2573, %v2562
  %v2580 = vsel %vm334, %v2573, %v2574
  %v2581 = vsel %vm499, %v2580, %v2564
  %v2582 = vsel %vm334, %v2574, %v2575
  %v2583 = vsel %vm499, %v2582, %v2566
  %v2584 = vsel %vm499, %v2576, %v2568
  %v2585 = vsel %vm334, %v2576, %v2577
  %v2586 = vsel %vm499, %v2585, %v2570
  %v2587 = vsel %vm334, %v2577, %v2578
  %v2588 = vsel %vm499, %v2587, %v2572
  %2595 = vst.msk [vmem:[#allocation4 + $0x90] sm:$0xff] %vm517, %v2579
  %2596 = vst [vmem:[#allocation4 + $0x98] sm:$0xff] %v2581
  %2597 = vst.msk [vmem:[#allocation4 + $0xa0] sm:$0xff] %vm297, %v2583
  %2598 = vst.msk [vmem:[#allocation4 + $0xa8] sm:$0xff] %vm517, %v2584
  %2599 = vst [vmem:[#allocation4 + $0xb0] sm:$0xff] %v2586
  %2600 = vst.msk [vmem:[#allocation4 + $0xb8] sm:$0xff] %vm297, %v2588
  %v2601 = vld [vmem:[#allocation5] sm:$0xff]
  %v2602 = vld [vmem:[#allocation5 + $0x8] sm:$0xff]
  %v2603 = vld [vmem:[#allocation5 + $0x10] sm:$0xff]
  %v2604 = vld [vmem:[#allocation5 + $0x18] sm:$0xff]
  %v2605 = vld [vmem:[#allocation5 + $0x20] sm:$0xff]
  %v2606 = vld [vmem:[#allocation5 + $0x28] sm:$0xff]
  %2607 = vst [vmem:[#allocation4 + $0xc0] sm:$0xff] %v2601
  %2608 = vst [vmem:[#allocation4 + $0xc8] sm:$0xff] %v2602
  %2609 = vst.msk [vmem:[#allocation4 + $0xd0] sm:$0xff] %vm297, %v2603
  %2610 = vst [vmem:[#allocation4 + $0xd8] sm:$0xff] %v2604
  %2611 = vst [vmem:[#allocation4 + $0xe0] sm:$0xff] %v2605
  %2612 = vst.msk [vmem:[#allocation4 + $0xe8] sm:$0xff] %vm297, %v2606
  %v2613 = vld [vmem:[#allocation5] sm:$0xff]
  %v2614 = vld [vmem:[#allocation5 + $0x8] sm:$0xff]
  %v2615 = vld [vmem:[#allocation5 + $0x10] sm:$0xff]
  %v2616 = vld [vmem:[#allocation5 + $0x18] sm:$0xff]
  %v2617 = vld [vmem:[#allocation5 + $0x20] sm:$0xff]
  %v2618 = vld [vmem:[#allocation5 + $0x28] sm:$0xff]
  %2625 = vrot.lane.b32.xlu0 %v2613, 127
  %v2626 = vpop.permute.xlu0 %2625
  %2627 = vrot.lane.b32.xlu0 %v2614, 127
  %v2628 = vpop.permute.xlu0 %2627
  %2629 = vrot.lane.b32.xlu0 %v2615, 127
  %v2630 = vpop.permute.xlu0 %2629
  %2631 = vrot.lane.b32.xlu0 %v2616, 127
  %v2632 = vpop.permute.xlu0 %2631
  %2633 = vrot.lane.b32.xlu0 %v2617, 127
  %v2634 = vpop.permute.xlu0 %2633
  %2635 = vrot.lane.b32.xlu0 %v2618, 127
  %v2636 = vpop.permute.xlu0 %2635
  %v2637 = vrot.slane %v2626, 4
  %v2638 = vrot.slane %v2628, 4
  %v2639 = vrot.slane %v2630, 4
  %v2640 = vrot.slane %v2632, 4
  %v2641 = vrot.slane %v2634, 4
  %v2642 = vrot.slane %v2636, 4
  %v2643 = vsel %vm334, %v2637, %v2638
  %v2644 = vsel %vm567, %v2626, %v2643
  %v2645 = vsel %vm334, %v2638, %v2639
  %v2646 = vsel %vm567, %v2628, %v2645
  %v2647 = vsel %vm567, %v2630, %v2639
  %v2648 = vsel %vm334, %v2640, %v2641
  %v2649 = vsel %vm567, %v2632, %v2648
  %v2650 = vsel %vm334, %v2641, %v2642
  %v2651 = vsel %vm567, %v2634, %v2650
  %v2652 = vsel %vm567, %v2636, %v2642
  %2659 = vst [vmem:[#allocation4 + $0xf0] sm:$0xff] %v2644
  %2660 = vst [vmem:[#allocation4 + $0xf8] sm:$0xff] %v2646
  %2661 = vst.msk [vmem:[#allocation4 + $0x100] sm:$0xff] %vm586, %v2647
  %2662 = vst [vmem:[#allocation4 + $0x108] sm:$0xff] %v2649
  %2663 = vst [vmem:[#allocation4 + $0x110] sm:$0xff] %v2651
  %2664 = vst.msk [vmem:[#allocation4 + $0x118] sm:$0xff] %vm586, %v2652
  %v2665 = vld [vmem:[#allocation5] sm:$0xff]
  %v2666 = vld [vmem:[#allocation5 + $0x8] sm:$0xff]
  %v2667 = vld [vmem:[#allocation5 + $0x10] sm:$0xff]
  %v2668 = vld [vmem:[#allocation5 + $0x18] sm:$0xff]
  %v2669 = vld [vmem:[#allocation5 + $0x20] sm:$0xff]
  %v2670 = vld [vmem:[#allocation5 + $0x28] sm:$0xff]
  %2677 = vrot.lane.b32.xlu0 %v2665, 111
  %v2678 = vpop.permute.xlu0 %2677
  %2679 = vrot.lane.b32.xlu0 %v2666, 111
  %v2680 = vpop.permute.xlu0 %2679
  %2681 = vrot.lane.b32.xlu0 %v2667, 111
  %v2682 = vpop.permute.xlu0 %2681
  %2683 = vrot.lane.b32.xlu0 %v2668, 111
  %v2684 = vpop.permute.xlu0 %2683
  %2685 = vrot.lane.b32.xlu0 %v2669, 111
  %v2686 = vpop.permute.xlu0 %2685
  %2687 = vrot.lane.b32.xlu0 %v2670, 111
  %v2688 = vpop.permute.xlu0 %2687
  %v2689 = vrot.slane %v2678, 4
  %v2690 = vrot.slane %v2680, 4
  %v2691 = vrot.slane %v2682, 4
  %v2692 = vrot.slane %v2684, 4
  %v2693 = vrot.slane %v2686, 4
  %v2694 = vrot.slane %v2688, 4
  %v2695 = vsel %vm334, %v2689, %v2690
  %v2696 = vsel %vm622, %v2678, %v2695
  %v2697 = vsel %vm334, %v2690, %v2691
  %v2698 = vsel %vm622, %v2680, %v2697
  %v2699 = vsel %vm622, %v2682, %v2691
  %v2700 = vsel %vm334, %v2692, %v2693
  %v2701 = vsel %vm622, %v2684, %v2700
  %v2702 = vsel %vm334, %v2693, %v2694
  %v2703 = vsel %vm622, %v2686, %v2702
  %v2704 = vsel %vm622, %v2688, %v2694
  %2711 = vst [vmem:[#allocation4 + $0x120] sm:$0xff] %v2696
  %2712 = vst [vmem:[#allocation4 + $0x128] sm:$0xff] %v2698
  %2713 = vst.msk [vmem:[#allocation4 + $0x130] sm:$0xf] %vm640, %v2699
  %2714 = vst [vmem:[#allocation4 + $0x138] sm:$0xff] %v2701
  %2715 = vst [vmem:[#allocation4 + $0x140] sm:$0xff] %v2703
  %2716 = vst.msk [vmem:[#allocation4 + $0x148] sm:$0xf] %vm640, %v2704
  %v2717 = vld [vmem:[#allocation5] sm:$0xff]
  %v2718 = vld [vmem:[#allocation5 + $0x8] sm:$0xff]
  %v2719 = vld [vmem:[#allocation5 + $0x10] sm:$0xff]
  %v2720 = vld [vmem:[#allocation5 + $0x18] sm:$0xff]
  %v2721 = vld [vmem:[#allocation5 + $0x20] sm:$0xff]
  %v2722 = vld [vmem:[#allocation5 + $0x28] sm:$0xff]
  %2729 = vrot.lane.b32.xlu0 %v2717, 110
  %v2730 = vpop.permute.xlu0 %2729
  %2731 = vrot.lane.b32.xlu0 %v2718, 110
  %v2732 = vpop.permute.xlu0 %2731
  %2733 = vrot.lane.b32.xlu0 %v2719, 110
  %v2734 = vpop.permute.xlu0 %2733
  %2735 = vrot.lane.b32.xlu0 %v2720, 110
  %v2736 = vpop.permute.xlu0 %2735
  %2737 = vrot.lane.b32.xlu0 %v2721, 110
  %v2738 = vpop.permute.xlu0 %2737
  %2739 = vrot.lane.b32.xlu0 %v2722, 110
  %v2740 = vpop.permute.xlu0 %2739
  %v2741 = vrot.slane %v2730, 4
  %v2742 = vrot.slane %v2732, 4
  %v2743 = vrot.slane %v2734, 4
  %v2744 = vrot.slane %v2736, 4
  %v2745 = vrot.slane %v2738, 4
  %v2746 = vrot.slane %v2740, 4
  %v2747 = vsel %vm334, %v2741, %v2742
  %v2748 = vsel %vm676, %v2730, %v2747
  %v2749 = vsel %vm334, %v2742, %v2743
  %v2750 = vsel %vm676, %v2732, %v2749
  %v2751 = vsel %vm676, %v2734, %v2743
  %v2752 = vsel %vm334, %v2744, %v2745
  %v2753 = vsel %vm676, %v2736, %v2752
  %v2754 = vsel %vm334, %v2745, %v2746
  %v2755 = vsel %vm676, %v2738, %v2754
  %v2756 = vsel %vm676, %v2740, %v2746
  %2763 = vst [vmem:[#allocation4 + $0x150] sm:$0xff] %v2748
  %2764 = vst [vmem:[#allocation4 + $0x158] sm:$0xff] %v2750
  %2765 = vst.msk [vmem:[#allocation4 + $0x160] sm:$0xf] %vm694, %v2751
  %2766 = vst [vmem:[#allocation4 + $0x168] sm:$0xff] %v2753
  %2767 = vst [vmem:[#allocation4 + $0x170] sm:$0xff] %v2755
  %2768 = vst.msk [vmem:[#allocation4 + $0x178] sm:$0xf] %vm694, %v2756
  %v2769 = vld [vmem:[#allocation5] sm:$0xff]
  %v2770 = vld [vmem:[#allocation5 + $0x8] sm:$0xff]
  %v2771 = vld [vmem:[#allocation5 + $0x10] sm:$0xff]
  %v2772 = vld [vmem:[#allocation5 + $0x18] sm:$0xff]
  %v2773 = vld [vmem:[#allocation5 + $0x20] sm:$0xff]
  %v2774 = vld [vmem:[#allocation5 + $0x28] sm:$0xff]
  %2781 = vrot.lane.b32.xlu0 %v2769, 109
  %v2782 = vpop.permute.xlu0 %2781
  %2783 = vrot.lane.b32.xlu0 %v2770, 109
  %v2784 = vpop.permute.xlu0 %2783
  %2785 = vrot.lane.b32.xlu0 %v2771, 109
  %v2786 = vpop.permute.xlu0 %2785
  %2787 = vrot.lane.b32.xlu0 %v2772, 109
  %v2788 = vpop.permute.xlu0 %2787
  %2789 = vrot.lane.b32.xlu0 %v2773, 109
  %v2790 = vpop.permute.xlu0 %2789
  %2791 = vrot.lane.b32.xlu0 %v2774, 109
  %v2792 = vpop.permute.xlu0 %2791
  %v2793 = vrot.slane %v2782, 4
  %v2794 = vrot.slane %v2784, 4
  %v2795 = vrot.slane %v2786, 4
  %v2796 = vrot.slane %v2788, 4
  %v2797 = vrot.slane %v2790, 4
  %v2798 = vrot.slane %v2792, 4
  %v2799 = vsel %vm334, %v2793, %v2794
  %v2800 = vsel %vm730, %v2782, %v2799
  %v2801 = vsel %vm334, %v2794, %v2795
  %v2802 = vsel %vm730, %v2784, %v2801
  %v2803 = vsel %vm730, %v2786, %v2795
  %v2804 = vsel %vm334, %v2796, %v2797
  %v2805 = vsel %vm730, %v2788, %v2804
  %v2806 = vsel %vm334, %v2797, %v2798
  %v2807 = vsel %vm730, %v2790, %v2806
  %v2808 = vsel %vm730, %v2792, %v2798
  %2815 = vst [vmem:[#allocation4 + $0x180] sm:$0xff] %v2800
  %2816 = vst [vmem:[#allocation4 + $0x188] sm:$0xff] %v2802
  %2817 = vst.msk [vmem:[#allocation4 + $0x190] sm:$0xf] %vm748, %v2803
  %2818 = vst [vmem:[#allocation4 + $0x198] sm:$0xff] %v2805
  %2819 = vst [vmem:[#allocation4 + $0x1a0] sm:$0xff] %v2807
  %2820 = vst.msk [vmem:[#allocation4 + $0x1a8] sm:$0xf] %vm748, %v2808
  %v2821 = vld [vmem:[#allocation4] sm:$0xff]
  %v2822 = vld [vmem:[#allocation4 + $0x8] sm:$0xff]
  %v2823 = vld [vmem:[#allocation4 + $0x10] sm:$0xff]
  %v2824 = vld [vmem:[#allocation4 + $0x18] sm:$0xff]
  %v2825 = vld [vmem:[#allocation4 + $0x20] sm:$0xff]
  %v2826 = vld [vmem:[#allocation4 + $0x28] sm:$0xff]
  %v2827 = vld [vmem:[#allocation4 + $0x30] sm:$0xff]
  %v2828 = vld [vmem:[#allocation4 + $0x38] sm:$0xff]
  %v2829 = vld [vmem:[#allocation4 + $0x40] sm:$0xff]
  %v2830 = vld [vmem:[#allocation4 + $0x48] sm:$0xff]
  %v2831 = vld [vmem:[#allocation4 + $0x50] sm:$0xff]
  %v2832 = vld [vmem:[#allocation4 + $0x58] sm:$0xff]
  %v2833 = vld [vmem:[#allocation4 + $0x60] sm:$0xff]
  %v2834 = vld [vmem:[#allocation4 + $0x68] sm:$0xff]
  %v2835 = vld [vmem:[#allocation4 + $0x70] sm:$0xff]
  %v2836 = vld [vmem:[#allocation4 + $0x78] sm:$0xff]
  %v2837 = vld [vmem:[#allocation4 + $0x80] sm:$0xff]
  %v2838 = vld [vmem:[#allocation4 + $0x88] sm:$0xff]
  %v2839 = vld [vmem:[#allocation4 + $0x90] sm:$0xff]
  %v2840 = vld [vmem:[#allocation4 + $0x98] sm:$0xff]
  %v2841 = vld [vmem:[#allocation4 + $0xa0] sm:$0xff]
  %v2842 = vld [vmem:[#allocation4 + $0xa8] sm:$0xff]
  %v2843 = vld [vmem:[#allocation4 + $0xb0] sm:$0xff]
  %v2844 = vld [vmem:[#allocation4 + $0xb8] sm:$0xff]
  %v2845 = vld [vmem:[#allocation4 + $0xc0] sm:$0xff]
  %v2846 = vld [vmem:[#allocation4 + $0xc8] sm:$0xff]
  %v2847 = vld [vmem:[#allocation4 + $0xd0] sm:$0xff]
  %v2848 = vld [vmem:[#allocation4 + $0xd8] sm:$0xff]
  %v2849 = vld [vmem:[#allocation4 + $0xe0] sm:$0xff]
  %v2850 = vld [vmem:[#allocation4 + $0xe8] sm:$0xff]
  %v2851 = vld [vmem:[#allocation4 + $0xf0] sm:$0xff]
  %v2852 = vld [vmem:[#allocation4 + $0xf8] sm:$0xff]
  %v2853 = vld [vmem:[#allocation4 + $0x100] sm:$0xff]
  %v2854 = vld [vmem:[#allocation4 + $0x108] sm:$0xff]
  %v2855 = vld [vmem:[#allocation4 + $0x110] sm:$0xff]
  %v2856 = vld [vmem:[#allocation4 + $0x118] sm:$0xff]
  %v2857 = vld [vmem:[#allocation4 + $0x120] sm:$0xff]
  %v2858 = vld [vmem:[#allocation4 + $0x128] sm:$0xff]
  %v2859 = vld [vmem:[#allocation4 + $0x130] sm:$0xff]
  %v2860 = vld [vmem:[#allocation4 + $0x138] sm:$0xff]
  %v2861 = vld [vmem:[#allocation4 + $0x140] sm:$0xff]
  %v2862 = vld [vmem:[#allocation4 + $0x148] sm:$0xff]
  %v2863 = vld [vmem:[#allocation4 + $0x150] sm:$0xff]
  %v2864 = vld [vmem:[#allocation4 + $0x158] sm:$0xff]
  %v2865 = vld [vmem:[#allocation4 + $0x160] sm:$0xff]
  %v2866 = vld [vmem:[#allocation4 + $0x168] sm:$0xff]
  %v2867 = vld [vmem:[#allocation4 + $0x170] sm:$0xff]
  %v2868 = vld [vmem:[#allocation4 + $0x178] sm:$0xff]
  %v2869 = vld [vmem:[#allocation4 + $0x180] sm:$0xff]
  %v2870 = vld [vmem:[#allocation4 + $0x188] sm:$0xff]
  %v2871 = vld [vmem:[#allocation4 + $0x190] sm:$0xff]
  %v2872 = vld [vmem:[#allocation4 + $0x198] sm:$0xff]
  %v2873 = vld [vmem:[#allocation4 + $0x1a0] sm:$0xff]
  %v2874 = vld [vmem:[#allocation4 + $0x1a8] sm:$0xff]
  %v2875 = vld [vmem:[#allocation4 + $0x1b0] sm:$0x11]
  %v2876 = vld [vmem:[#allocation4 + $0x1b8] sm:$0x11]
  %v2877 = vld [vmem:[#allocation4 + $0x1c0] sm:$0x11]
  %v2878 = vld [vmem:[%s1 + $0x78] sm:$0xff]
  %v2879 = vld [vmem:[%s1 + $0x8c] sm:$0xff]
  %v2880 = vld [vmem:[%s1 + $0xa0] sm:$0xff]
  %v2881 = vld [vmem:[%s1 + $0xb4] sm:$0xff]
  %v2886 = vunpack.c.l.b16 %v2878
  %v2887 = vunpack.c.h.b16 %v2878
  %v2888 = vunpack.c.l.b16 %v2879
  %v2889 = vunpack.c.h.b16 %v2879
  %v2890 = vunpack.c.l.b16 %v2880
  %v2891 = vunpack.c.h.b16 %v2880
  %v2892 = vunpack.c.l.b16 %v2881
  %v2893 = vunpack.c.h.b16 %v2881
  %v2894 = vpack.c.b16 %v2888, %v2886
  %v2895 = vpack.c.b16 %v2889, %v2887
  %v2896 = vpack.c.b16 %v2892, %v2890
  %v2897 = vpack.c.b16 %v2893, %v2891
  %v2957 = vunpack.c.l.b16 %v2821
  %v2958 = vunpack.c.h.b16 %v2821
  %v2959 = vunpack.c.l.b16 %v2822
  %v2960 = vunpack.c.h.b16 %v2822
  %v2961 = vunpack.c.l.b16 %v2823
  %v2962 = vunpack.c.h.b16 %v2823
  %v2963 = vunpack.c.l.b16 %v2824
  %v2964 = vunpack.c.h.b16 %v2824
  %v2965 = vunpack.c.l.b16 %v2825
  %v2966 = vunpack.c.h.b16 %v2825
  %v2967 = vunpack.c.l.b16 %v2826
  %v2968 = vunpack.c.h.b16 %v2826
  %v2969 = vunpack.c.l.b16 %v2827
  %v2970 = vunpack.c.h.b16 %v2827
  %v2971 = vunpack.c.l.b16 %v2828
  %v2972 = vunpack.c.h.b16 %v2828
  %v2973 = vunpack.c.l.b16 %v2829
  %v2974 = vunpack.c.h.b16 %v2829
  %v2975 = vunpack.c.l.b16 %v2830
  %v2976 = vunpack.c.h.b16 %v2830
  %v2977 = vunpack.c.l.b16 %v2831
  %v2978 = vunpack.c.h.b16 %v2831
  %v2979 = vunpack.c.l.b16 %v2832
  %v2980 = vunpack.c.h.b16 %v2832
  %v2981 = vunpack.c.l.b16 %v2833
  %v2982 = vunpack.c.h.b16 %v2833
  %v2983 = vunpack.c.l.b16 %v2834
  %v2984 = vunpack.c.h.b16 %v2834
  %v2985 = vunpack.c.l.b16 %v2835
  %v2986 = vunpack.c.h.b16 %v2835
  %v2987 = vunpack.c.l.b16 %v2836
  %v2988 = vunpack.c.h.b16 %v2836
  %v2989 = vunpack.c.l.b16 %v2837
  %v2990 = vunpack.c.h.b16 %v2837
  %v2991 = vunpack.c.l.b16 %v2838
  %v2992 = vunpack.c.h.b16 %v2838
  %v2993 = vunpack.c.l.b16 %v2839
  %v2994 = vunpack.c.h.b16 %v2839
  %v2995 = vunpack.c.l.b16 %v2840
  %v2996 = vunpack.c.h.b16 %v2840
  %v2997 = vunpack.c.l.b16 %v2841
  %v2998 = vunpack.c.h.b16 %v2841
  %v2999 = vunpack.c.l.b16 %v2842
  %v3000 = vunpack.c.h.b16 %v2842
  %v3001 = vunpack.c.l.b16 %v2843
  %v3002 = vunpack.c.h.b16 %v2843
  %v3003 = vunpack.c.l.b16 %v2844
  %v3004 = vunpack.c.h.b16 %v2844
  %v3005 = vunpack.c.l.b16 %v2845
  %v3006 = vunpack.c.h.b16 %v2845
  %v3007 = vunpack.c.l.b16 %v2846
  %v3008 = vunpack.c.h.b16 %v2846
  %v3009 = vunpack.c.l.b16 %v2847
  %v3010 = vunpack.c.h.b16 %v2847
  %v3011 = vunpack.c.l.b16 %v2848
  %v3012 = vunpack.c.h.b16 %v2848
  %v3013 = vunpack.c.l.b16 %v2849
  %v3014 = vunpack.c.h.b16 %v2849
  %v3015 = vunpack.c.l.b16 %v2850
  %v3016 = vunpack.c.h.b16 %v2850
  %v3017 = vunpack.c.l.b16 %v2851
  %v3018 = vunpack.c.h.b16 %v2851
  %v3019 = vunpack.c.l.b16 %v2852
  %v3020 = vunpack.c.h.b16 %v2852
  %v3021 = vunpack.c.l.b16 %v2853
  %v3022 = vunpack.c.h.b16 %v2853
  %v3023 = vunpack.c.l.b16 %v2854
  %v3024 = vunpack.c.h.b16 %v2854
  %v3025 = vunpack.c.l.b16 %v2855
  %v3026 = vunpack.c.h.b16 %v2855
  %v3027 = vunpack.c.l.b16 %v2856
  %v3028 = vunpack.c.h.b16 %v2856
  %v3029 = vunpack.c.l.b16 %v2857
  %v3030 = vunpack.c.h.b16 %v2857
  %v3031 = vunpack.c.l.b16 %v2858
  %v3032 = vunpack.c.h.b16 %v2858
  %v3033 = vunpack.c.l.b16 %v2859
  %v3034 = vunpack.c.h.b16 %v2859
  %v3035 = vunpack.c.l.b16 %v2860
  %v3036 = vunpack.c.h.b16 %v2860
  %v3037 = vunpack.c.l.b16 %v2861
  %v3038 = vunpack.c.h.b16 %v2861
  %v3039 = vunpack.c.l.b16 %v2862
  %v3040 = vunpack.c.h.b16 %v2862
  %v3041 = vunpack.c.l.b16 %v2863
  %v3042 = vunpack.c.h.b16 %v2863
  %v3043 = vunpack.c.l.b16 %v2864
  %v3044 = vunpack.c.h.b16 %v2864
  %v3045 = vunpack.c.l.b16 %v2865
  %v3046 = vunpack.c.h.b16 %v2865
  %v3047 = vunpack.c.l.b16 %v2866
  %v3048 = vunpack.c.h.b16 %v2866
  %v3049 = vunpack.c.l.b16 %v2867
  %v3050 = vunpack.c.h.b16 %v2867
  %v3051 = vunpack.c.l.b16 %v2868
  %v3052 = vunpack.c.h.b16 %v2868
  %v3053 = vunpack.c.l.b16 %v2869
  %v3054 = vunpack.c.h.b16 %v2869
  %v3055 = vunpack.c.l.b16 %v2870
  %v3056 = vunpack.c.h.b16 %v2870
  %v3057 = vunpack.c.l.b16 %v2871
  %v3058 = vunpack.c.h.b16 %v2871
  %v3059 = vunpack.c.l.b16 %v2872
  %v3060 = vunpack.c.h.b16 %v2872
  %v3061 = vunpack.c.l.b16 %v2873
  %v3062 = vunpack.c.h.b16 %v2873
  %v3063 = vunpack.c.l.b16 %v2874
  %v3064 = vunpack.c.h.b16 %v2874
  %v3065 = vunpack.c.l.b16 %v2875
  %v3066 = vunpack.c.h.b16 %v2875
  %v3067 = vunpack.c.l.b16 %v2876
  %v3068 = vunpack.c.h.b16 %v2876
  %v3069 = vunpack.c.l.b16 %v2877
  %v3070 = vunpack.c.h.b16 %v2877
  %v3071 = vpack.c.b16 %v2963, %v2957
  %v3072 = vpack.c.b16 %v2964, %v2958
  %v3073 = vpack.c.b16 %v2965, %v2959
  %v3074 = vpack.c.b16 %v2966, %v2960
  %v3075 = vpack.c.b16 %v2967, %v2961
  %v3076 = vpack.c.b16 %v2968, %v2962
  %v3077 = vpack.c.b16 %v2975, %v2969
  %v3078 = vpack.c.b16 %v2976, %v2970
  %v3079 = vpack.c.b16 %v2977, %v2971
  %v3080 = vpack.c.b16 %v2978, %v2972
  %v3081 = vpack.c.b16 %v2979, %v2973
  %v3082 = vpack.c.b16 %v2980, %v2974
  %v3083 = vpack.c.b16 %v2987, %v2981
  %v3084 = vpack.c.b16 %v2988, %v2982
  %v3085 = vpack.c.b16 %v2989, %v2983
  %v3086 = vpack.c.b16 %v2990, %v2984
  %v3087 = vpack.c.b16 %v2991, %v2985
  %v3088 = vpack.c.b16 %v2992, %v2986
  %v3089 = vpack.c.b16 %v2999, %v2993
  %v3090 = vpack.c.b16 %v3000, %v2994
  %v3091 = vpack.c.b16 %v3001, %v2995
  %v3092 = vpack.c.b16 %v3002, %v2996
  %v3093 = vpack.c.b16 %v3003, %v2997
  %v3094 = vpack.c.b16 %v3004, %v2998
  %v3095 = vpack.c.b16 %v3011, %v3005
  %v3096 = vpack.c.b16 %v3012, %v3006
  %v3097 = vpack.c.b16 %v3013, %v3007
  %v3098 = vpack.c.b16 %v3014, %v3008
  %v3099 = vpack.c.b16 %v3015, %v3009
  %v3100 = vpack.c.b16 %v3016, %v3010
  %v3101 = vpack.c.b16 %v3023, %v3017
  %v3102 = vpack.c.b16 %v3024, %v3018
  %v3103 = vpack.c.b16 %v3025, %v3019
  %v3104 = vpack.c.b16 %v3026, %v3020
  %v3105 = vpack.c.b16 %v3027, %v3021
  %v3106 = vpack.c.b16 %v3028, %v3022
  %v3107 = vpack.c.b16 %v3035, %v3029
  %v3108 = vpack.c.b16 %v3036, %v3030
  %v3109 = vpack.c.b16 %v3037, %v3031
  %v3110 = vpack.c.b16 %v3038, %v3032
  %v3111 = vpack.c.b16 %v3039, %v3033
  %v3112 = vpack.c.b16 %v3040, %v3034
  %v3113 = vpack.c.b16 %v3047, %v3041
  %v3114 = vpack.c.b16 %v3048, %v3042
  %v3115 = vpack.c.b16 %v3049, %v3043
  %v3116 = vpack.c.b16 %v3050, %v3044
  %v3117 = vpack.c.b16 %v3051, %v3045
  %v3118 = vpack.c.b16 %v3052, %v3046
  %v3119 = vpack.c.b16 %v3059, %v3053
  %v3120 = vpack.c.b16 %v3060, %v3054
  %v3121 = vpack.c.b16 %v3061, %v3055
  %v3122 = vpack.c.b16 %v3062, %v3056
  %v3123 = vpack.c.b16 %v3063, %v3057
  %v3124 = vpack.c.b16 %v3064, %v3058
  %v3125 = vpack.c.b16 %v3065, %v3065
  %v3126 = vpack.c.b16 %v3066, %v3066
  %v3127 = vpack.c.b16 %v3067, %v3067
  %v3128 = vpack.c.b16 %v3068, %v3068
  %v3129 = vpack.c.b16 %v3069, %v3069
  %v3130 = vpack.c.b16 %v3070, %v3070
  %v3186 = vsel %vm1106, %v2895, 0
  %v3189 = vsel %vm1106, %v2897, 0
  %v3192 = vand.u32 %v3125, %v1112
  %v3195 = vand.u32 %v3126, %v1112
  %v3198 = vand.u32 %v3127, %v1112
  %v3201 = vand.u32 %v3128, %v1112
  %v3204 = vand.u32 %v3129, %v1112
  %v3207 = vand.u32 %v3130, %v1112
  %3209 = vmatpush.bf16.msra.mxu0 %v3113
  %3210 = vmatpush.bf16.msra.mxu0 %v3107
  %3211 = vmatpush.bf16.msra.mxu0 %v3101
  %3212 = vmatpush.bf16.msra.mxu0 %v3095
  %3213 = vmatpush.bf16.msra.mxu0 %v3089
  %3214 = vmatpush.bf16.msra.mxu0 %v3083
  %3215 = vmatpush.bf16.msra.mxu0 %v3077
  %3216 = vmatpush.bf16.msra.mxu0 %v3071
  %3217 = vmatmul.bf16.gmra.mxu0 %v2894
  %v3218 = vpop.f32.mrf.mxu0
  %v3219 = vadd.f32 0.0, %v3218
  %v3220 = vpop.f32.mrf.mxu0
  %v3221 = vadd.f32 0.0, %v3220
  %3222 = vmatmul.bf16.gmra.mxu0 %v2896
  %v3223 = vpop.f32.mrf.mxu0
  %v3224 = vadd.f32 0.0, %v3223
  %v3225 = vpop.f32.mrf.mxu0
  %v3226 = vadd.f32 0.0, %v3225
  %3227 = vdwg.mxu0
  %3228 = vmatpush.bf16.msra.mxu0 0
  %3229 = vmatpush.bf16.msra.mxu0 0
  %3230 = vmatpush.bf16.msra.mxu0 0
  %3231 = vmatpush.bf16.msra.mxu0 0
  %3232 = vmatpush.bf16.msra.mxu0 0
  %3233 = vmatpush.bf16.msra.mxu0 0
  %3234 = vmatpush.bf16.msra.mxu0 %v3192
  %3235 = vmatpush.bf16.msra.mxu0 %v3119
  %3236 = vmatmul.bf16.gmra.mxu0 %v3186
  %v3237 = vpop.f32.mrf.mxu0
  %v3238 = vadd.f32 %v3219, %v3237
  %v3239 = vpop.f32.mrf.mxu0
  %v3240 = vadd.f32 %v3221, %v3239
  %3241 = vmatmul.bf16.gmra.mxu0 %v3189
  %v3242 = vpop.f32.mrf.mxu0
  %v3243 = vadd.f32 %v3224, %v3242
  %v3244 = vpop.f32.mrf.mxu0
  %v3245 = vadd.f32 %v3226, %v3244
  %3246 = vdwg.mxu0
  %3247 = vmatpush.bf16.msra.mxu0 %v3114
  %3248 = vmatpush.bf16.msra.mxu0 %v3108
  %3249 = vmatpush.bf16.msra.mxu0 %v3102
  %3250 = vmatpush.bf16.msra.mxu0 %v3096
  %3251 = vmatpush.bf16.msra.mxu0 %v3090
  %3252 = vmatpush.bf16.msra.mxu0 %v3084
  %3253 = vmatpush.bf16.msra.mxu0 %v3078
  %3254 = vmatpush.bf16.msra.mxu0 %v3072
  %3255 = vmatmul.bf16.gmra.mxu0 %v2894
  %v3256 = vpop.f32.mrf.mxu0
  %v3257 = vadd.f32 0.0, %v3256
  %v3258 = vpop.f32.mrf.mxu0
  %v3259 = vadd.f32 0.0, %v3258
  %3260 = vmatmul.bf16.gmra.mxu0 %v2896
  %v3261 = vpop.f32.mrf.mxu0
  %v3262 = vadd.f32 0.0, %v3261
  %v3263 = vpop.f32.mrf.mxu0
  %v3264 = vadd.f32 0.0, %v3263
  %3265 = vdwg.mxu0
  %3266 = vmatpush.bf16.msra.mxu0 0
  %3267 = vmatpush.bf16.msra.mxu0 0
  %3268 = vmatpush.bf16.msra.mxu0 0
  %3269 = vmatpush.bf16.msra.mxu0 0
  %3270 = vmatpush.bf16.msra.mxu0 0
  %3271 = vmatpush.bf16.msra.mxu0 0
  %3272 = vmatpush.bf16.msra.mxu0 %v3195
  %3273 = vmatpush.bf16.msra.mxu0 %v3120
  %3274 = vmatmul.bf16.gmra.mxu0 %v3186
  %v3275 = vpop.f32.mrf.mxu0
  %v3276 = vadd.f32 %v3257, %v3275
  %v3277 = vpop.f32.mrf.mxu0
  %v3278 = vadd.f32 %v3259, %v3277
  %3279 = vmatmul.bf16.gmra.mxu0 %v3189
  %v3280 = vpop.f32.mrf.mxu0
  %v3281 = vadd.f32 %v3262, %v3280
  %v3282 = vpop.f32.mrf.mxu0
  %v3283 = vadd.f32 %v3264, %v3282
  %3284 = vdwg.mxu0
  %3285 = vmatpush.bf16.msra.mxu0 %v3115
  %3286 = vmatpush.bf16.msra.mxu0 %v3109
  %3287 = vmatpush.bf16.msra.mxu0 %v3103
  %3288 = vmatpush.bf16.msra.mxu0 %v3097
  %3289 = vmatpush.bf16.msra.mxu0 %v3091
  %3290 = vmatpush.bf16.msra.mxu0 %v3085
  %3291 = vmatpush.bf16.msra.mxu0 %v3079
  %3292 = vmatpush.bf16.msra.mxu0 %v3073
  %3293 = vmatmul.bf16.gmra.mxu0 %v2894
  %v3294 = vpop.f32.mrf.mxu0
  %v3295 = vadd.f32 0.0, %v3294
  %v3296 = vpop.f32.mrf.mxu0
  %v3297 = vadd.f32 0.0, %v3296
  %3298 = vmatmul.bf16.gmra.mxu0 %v2896
  %v3299 = vpop.f32.mrf.mxu0
  %v3300 = vadd.f32 0.0, %v3299
  %v3301 = vpop.f32.mrf.mxu0
  %v3302 = vadd.f32 0.0, %v3301
  %3303 = vdwg.mxu0
  %3304 = vmatpush.bf16.msra.mxu0 0
  %3305 = vmatpush.bf16.msra.mxu0 0
  %3306 = vmatpush.bf16.msra.mxu0 0
  %3307 = vmatpush.bf16.msra.mxu0 0
  %3308 = vmatpush.bf16.msra.mxu0 0
  %3309 = vmatpush.bf16.msra.mxu0 0
  %3310 = vmatpush.bf16.msra.mxu0 %v3198
  %3311 = vmatpush.bf16.msra.mxu0 %v3121
  %3312 = vmatmul.bf16.gmra.mxu0 %v3186
  %v3313 = vpop.f32.mrf.mxu0
  %v3314 = vadd.f32 %v3295, %v3313
  %v3315 = vpop.f32.mrf.mxu0
  %v3316 = vadd.f32 %v3297, %v3315
  %3317 = vmatmul.bf16.gmra.mxu0 %v3189
  %v3318 = vpop.f32.mrf.mxu0
  %v3319 = vadd.f32 %v3300, %v3318
  %v3320 = vpop.f32.mrf.mxu0
  %v3321 = vadd.f32 %v3302, %v3320
  %3322 = vdwg.mxu0
  %3323 = vmatpush.bf16.msra.mxu0 %v3116
  %3324 = vmatpush.bf16.msra.mxu0 %v3110
  %3325 = vmatpush.bf16.msra.mxu0 %v3104
  %3326 = vmatpush.bf16.msra.mxu0 %v3098
  %3327 = vmatpush.bf16.msra.mxu0 %v3092
  %3328 = vmatpush.bf16.msra.mxu0 %v3086
  %3329 = vmatpush.bf16.msra.mxu0 %v3080
  %3330 = vmatpush.bf16.msra.mxu0 %v3074
  %3331 = vmatmul.bf16.gmra.mxu0 %v2894
  %v3332 = vpop.f32.mrf.mxu0
  %v3333 = vadd.f32 0.0, %v3332
  %v3334 = vpop.f32.mrf.mxu0
  %v3335 = vadd.f32 0.0, %v3334
  %3336 = vmatmul.bf16.gmra.mxu0 %v2896
  %v3337 = vpop.f32.mrf.mxu0
  %v3338 = vadd.f32 0.0, %v3337
  %v3339 = vpop.f32.mrf.mxu0
  %v3340 = vadd.f32 0.0, %v3339
  %3341 = vdwg.mxu0
  %3342 = vmatpush.bf16.msra.mxu0 0
  %3343 = vmatpush.bf16.msra.mxu0 0
  %3344 = vmatpush.bf16.msra.mxu0 0
  %3345 = vmatpush.bf16.msra.mxu0 0
  %3346 = vmatpush.bf16.msra.mxu0 0
  %3347 = vmatpush.bf16.msra.mxu0 0
  %3348 = vmatpush.bf16.msra.mxu0 %v3201
  %3349 = vmatpush.bf16.msra.mxu0 %v3122
  %3350 = vmatmul.bf16.gmra.mxu0 %v3186
  %v3351 = vpop.f32.mrf.mxu0
  %v3352 = vadd.f32 %v3333, %v3351
  %v3353 = vpop.f32.mrf.mxu0
  %v3354 = vadd.f32 %v3335, %v3353
  %3355 = vmatmul.bf16.gmra.mxu0 %v3189
  %v3356 = vpop.f32.mrf.mxu0
  %v3357 = vadd.f32 %v3338, %v3356
  %v3358 = vpop.f32.mrf.mxu0
  %v3359 = vadd.f32 %v3340, %v3358
  %3360 = vdwg.mxu0
  %3361 = vmatpush.bf16.msra.mxu0 %v3117
  %3362 = vmatpush.bf16.msra.mxu0 %v3111
  %3363 = vmatpush.bf16.msra.mxu0 %v3105
  %3364 = vmatpush.bf16.msra.mxu0 %v3099
  %3365 = vmatpush.bf16.msra.mxu0 %v3093
  %3366 = vmatpush.bf16.msra.mxu0 %v3087
  %3367 = vmatpush.bf16.msra.mxu0 %v3081
  %3368 = vmatpush.bf16.msra.mxu0 %v3075
  %3369 = vmatmul.bf16.gmra.mxu0 %v2894
  %v3370 = vpop.f32.mrf.mxu0
  %v3371 = vadd.f32 0.0, %v3370
  %v3372 = vpop.f32.mrf.mxu0
  %v3373 = vadd.f32 0.0, %v3372
  %3374 = vmatmul.bf16.gmra.mxu0 %v2896
  %v3375 = vpop.f32.mrf.mxu0
  %v3376 = vadd.f32 0.0, %v3375
  %v3377 = vpop.f32.mrf.mxu0
  %v3378 = vadd.f32 0.0, %v3377
  %3379 = vdwg.mxu0
  %3380 = vmatpush.bf16.msra.mxu0 0
  %3381 = vmatpush.bf16.msra.mxu0 0
  %3382 = vmatpush.bf16.msra.mxu0 0
  %3383 = vmatpush.bf16.msra.mxu0 0
  %3384 = vmatpush.bf16.msra.mxu0 0
  %3385 = vmatpush.bf16.msra.mxu0 0
  %3386 = vmatpush.bf16.msra.mxu0 %v3204
  %3387 = vmatpush.bf16.msra.mxu0 %v3123
  %3388 = vmatmul.bf16.gmra.mxu0 %v3186
  %v3389 = vpop.f32.mrf.mxu0
  %v3390 = vadd.f32 %v3371, %v3389
  %v3391 = vpop.f32.mrf.mxu0
  %v3392 = vadd.f32 %v3373, %v3391
  %3393 = vmatmul.bf16.gmra.mxu0 %v3189
  %v3394 = vpop.f32.mrf.mxu0
  %v3395 = vadd.f32 %v3376, %v3394
  %v3396 = vpop.f32.mrf.mxu0
  %v3397 = vadd.f32 %v3378, %v3396
  %3398 = vdwg.mxu0
  %3399 = vmatpush.bf16.msra.mxu0 %v3118
  %3400 = vmatpush.bf16.msra.mxu0 %v3112
  %3401 = vmatpush.bf16.msra.mxu0 %v3106
  %3402 = vmatpush.bf16.msra.mxu0 %v3100
  %3403 = vmatpush.bf16.msra.mxu0 %v3094
  %3404 = vmatpush.bf16.msra.mxu0 %v3088
  %3405 = vmatpush.bf16.msra.mxu0 %v3082
  %3406 = vmatpush.bf16.msra.mxu0 %v3076
  %3407 = vmatmul.bf16.gmra.mxu0 %v2894
  %v3408 = vpop.f32.mrf.mxu0
  %v3409 = vadd.f32 0.0, %v3408
  %v3410 = vpop.f32.mrf.mxu0
  %v3411 = vadd.f32 0.0, %v3410
  %3412 = vmatmul.bf16.gmra.mxu0 %v2896
  %v3413 = vpop.f32.mrf.mxu0
  %v3414 = vadd.f32 0.0, %v3413
  %v3415 = vpop.f32.mrf.mxu0
  %v3416 = vadd.f32 0.0, %v3415
  %3417 = vdwg.mxu0
  %3418 = vmatpush.bf16.msra.mxu0 0
  %3419 = vmatpush.bf16.msra.mxu0 0
  %3420 = vmatpush.bf16.msra.mxu0 0
  %3421 = vmatpush.bf16.msra.mxu0 0
  %3422 = vmatpush.bf16.msra.mxu0 0
  %3423 = vmatpush.bf16.msra.mxu0 0
  %3424 = vmatpush.bf16.msra.mxu0 %v3207
  %3425 = vmatpush.bf16.msra.mxu0 %v3124
  %3426 = vmatmul.bf16.gmra.mxu0 %v3186
  %v3427 = vpop.f32.mrf.mxu0
  %v3428 = vadd.f32 %v3409, %v3427
  %v3429 = vpop.f32.mrf.mxu0
  %v3430 = vadd.f32 %v3411, %v3429
  %3431 = vmatmul.bf16.gmra.mxu0 %v3189
  %v3432 = vpop.f32.mrf.mxu0
  %v3433 = vadd.f32 %v3414, %v3432
  %v3434 = vpop.f32.mrf.mxu0
  %v3435 = vadd.f32 %v3416, %v3434
  %3436 = vdwg.mxu0
  %v3437 = vld [vmem:[%s2] ss:$8 sm:$0xf]
  %v3438 = vld [vmem:[%s2] ss:$8 sm:$0x30]
  %v3439 = vor.u32 %v3437, %v3438
  %vm3440 = vcmp.gt.f32.partialorder %v3439, 0.0
  %v3441 = vsel %vm3440, 1, 0
  %v3442 = vperm.slane %v3441, 0
  %v3443 = vperm.slane %v3441, 1
  %v3444 = vperm.slane %v3441, 2
  %v3445 = vperm.slane %v3441, 3
  %v3446 = vperm.slane %v3441, 4
  %v3447 = vperm.slane %v3441, 5
  %vm3448 = vcmp.eq.s32.totalorder %v3442, 1
  %vm3449 = vcmp.eq.s32.totalorder %v3443, 1
  %vm3450 = vcmp.eq.s32.totalorder %v3444, 1
  %vm3451 = vcmp.eq.s32.totalorder %v3445, 1
  %vm3452 = vcmp.eq.s32.totalorder %v3446, 1
  %vm3453 = vcmp.eq.s32.totalorder %v3447, 1
  %v3454 = vsel %vm3448, %v3238, 0.0
  %v3455 = vsel %vm3449, %v3276, 0.0
  %v3456 = vsel %vm3450, %v3314, 0.0
  %v3457 = vsel %vm3451, %v3352, 0.0
  %v3458 = vsel %vm3452, %v3390, 0.0
  %v3459 = vsel %vm3453, %v3428, 0.0
  %v3460 = vsel %vm3448, %v3240, 0.0
  %v3461 = vsel %vm3449, %v3278, 0.0
  %v3462 = vsel %vm3450, %v3316, 0.0
  %v3463 = vsel %vm3451, %v3354, 0.0
  %v3464 = vsel %vm3452, %v3392, 0.0
  %v3465 = vsel %vm3453, %v3430, 0.0
  %v3466 = vsel %vm3448, %v3243, 0.0
  %v3467 = vsel %vm3449, %v3281, 0.0
  %v3468 = vsel %vm3450, %v3319, 0.0
  %v3469 = vsel %vm3451, %v3357, 0.0
  %v3470 = vsel %vm3452, %v3395, 0.0
  %v3471 = vsel %vm3453, %v3433, 0.0
  %v3472 = vsel %vm3448, %v3245, 0.0
  %v3473 = vsel %vm3449, %v3283, 0.0
  %v3474 = vsel %vm3450, %v3321, 0.0
  %v3475 = vsel %vm3451, %v3359, 0.0
  %v3476 = vsel %vm3452, %v3397, 0.0
  %v3477 = vsel %vm3453, %v3435, 0.0
  %v3478 = vpack.c.bf16 %v3455, %v3454
  %v3479 = vpack.c.bf16 %v3457, %v3456
  %v3480 = vpack.c.bf16 %v3459, %v3458
  %v3481 = vpack.c.bf16 %v3461, %v3460
  %v3482 = vpack.c.bf16 %v3463, %v3462
  %v3483 = vpack.c.bf16 %v3465, %v3464
  %v3484 = vpack.c.bf16 %v3467, %v3466
  %v3485 = vpack.c.bf16 %v3469, %v3468
  %v3486 = vpack.c.bf16 %v3471, %v3470
  %v3487 = vpack.c.bf16 %v3473, %v3472
  %v3488 = vpack.c.bf16 %v3475, %v3474
  %v3489 = vpack.c.bf16 %v3477, %v3476
  %v3490 = vld [vmem:[%s3] sm:$0xf]
  %v3491 = vld [vmem:[%s3 + $0x4] sm:$0xf]
  %v3492 = vld [vmem:[%s3 + $0x8] sm:$0xf]
  %v3493 = vld [vmem:[%s3 + $0xc] sm:$0xf]
  %v3494 = vld [vmem:[%s3 + $0x10] sm:$0xf]
  %v3495 = vld [vmem:[%s3 + $0x14] sm:$0xf]
  %v3496 = vld [vmem:[%s3 + $0x18] sm:$0xf]
  %v3497 = vld [vmem:[%s3 + $0x1c] sm:$0xf]
  %v3498 = vld [vmem:[%s3 + $0x20] sm:$0xf]
  %v3499 = vld [vmem:[%s3 + $0x24] sm:$0xf]
  %v3500 = vld [vmem:[%s3 + $0x28] sm:$0xf]
  %v3501 = vld [vmem:[%s3 + $0x2c] sm:$0xf]
  %v3502 = vld [vmem:[%s3 + $0x30] sm:$0xf]
  %v3503 = vld [vmem:[%s3 + $0x34] sm:$0xf]
  %v3504 = vld [vmem:[%s3 + $0x38] sm:$0xf]
  %v3505 = vld [vmem:[%s3 + $0x3c] sm:$0xf]
  %v3506 = vld [vmem:[%s3 + $0x40] sm:$0xf]
  %v3507 = vld [vmem:[%s3 + $0x44] sm:$0xf]
  %v3508 = vld [vmem:[%s3 + $0x48] sm:$0xf]
  %v3509 = vld [vmem:[%s3 + $0x4c] sm:$0xf]
  %v3510 = vld [vmem:[%s3 + $0x50] sm:$0xf]
  %v3511 = vld [vmem:[%s3 + $0x54] sm:$0xf]
  %v3512 = vld [vmem:[%s3 + $0x58] sm:$0xf]
  %v3513 = vld [vmem:[%s3 + $0x5c] sm:$0xf]
  %v3514 = vld [vmem:[%s3 + $0x60] sm:$0xf]
  %v3515 = vld [vmem:[%s3 + $0x64] sm:$0xf]
  %v3516 = vld [vmem:[%s3 + $0x68] sm:$0xf]
  %v3517 = vld [vmem:[%s3 + $0x6c] sm:$0xf]
  %v3518 = vld [vmem:[%s3 + $0x70] sm:$0xf]
  %v3519 = vld [vmem:[%s3 + $0x74] sm:$0xf]
  %v3520 = vld [vmem:[%s3 + $0x78] sm:$0xf]
  %v3521 = vld [vmem:[%s3 + $0x7c] sm:$0xf]
  %v3522 = vld [vmem:[%s3 + $0x80] sm:$0xf]
  %v3523 = vld [vmem:[%s3 + $0x84] sm:$0xf]
  %v3524 = vld [vmem:[%s3 + $0x88] sm:$0xf]
  %v3525 = vld [vmem:[%s3 + $0x8c] sm:$0xf]
  %v3526 = vld [vmem:[%s3 + $0x90] sm:$0xf]
  %v3527 = vld [vmem:[%s3 + $0x94] sm:$0xf]
  %v3528 = vld [vmem:[%s3 + $0x98] sm:$0xf]
  %v3529 = vld [vmem:[%s3 + $0x9c] sm:$0xf]
  %v3530 = vld [vmem:[%s3 + $0xa0] sm:$0x3]
  %v3539 = vunpack.c.l.b16 %v3478
  %v3540 = vunpack.c.h.b16 %v3478
  %v3541 = vunpack.c.l.b16 %v3479
  %v3542 = vunpack.c.l.b16 %v3481
  %v3543 = vunpack.c.h.b16 %v3481
  %v3544 = vunpack.c.l.b16 %v3482
  %v3545 = vunpack.c.l.b16 %v3484
  %v3546 = vunpack.c.h.b16 %v3484
  %v3547 = vunpack.c.l.b16 %v3485
  %v3548 = vunpack.c.l.b16 %v3487
  %v3549 = vunpack.c.h.b16 %v3487
  %v3550 = vunpack.c.l.b16 %v3488
  %v3551 = vpack.c.b16 %v3542, %v3539
  %v3552 = vpack.c.b16 %v3543, %v3540
  %v3553 = vpack.c.b16 %v3544, %v3541
  %v3554 = vpack.c.b16 %v3548, %v3545
  %v3555 = vpack.c.b16 %v3549, %v3546
  %v3556 = vpack.c.b16 %v3550, %v3547
  %v3602 = vunpack.c.l.b16 %v3490
  %v3603 = vunpack.c.l.b16 %v3491
  %v3604 = vunpack.c.l.b16 %v3492
  %v3605 = vunpack.c.l.b16 %v3493
  %v3606 = vunpack.c.l.b16 %v3494
  %v3607 = vunpack.c.l.b16 %v3495
  %v3608 = vunpack.c.l.b16 %v3496
  %v3609 = vunpack.c.l.b16 %v3497
  %v3610 = vunpack.c.l.b16 %v3498
  %v3611 = vunpack.c.l.b16 %v3499
  %v3612 = vunpack.c.l.b16 %v3500
  %v3613 = vunpack.c.l.b16 %v3501
  %v3614 = vunpack.c.l.b16 %v3502
  %v3615 = vunpack.c.l.b16 %v3503
  %v3616 = vunpack.c.l.b16 %v3504
  %v3617 = vunpack.c.l.b16 %v3505
  %v3618 = vunpack.c.l.b16 %v3506
  %v3619 = vunpack.c.l.b16 %v3507
  %v3620 = vunpack.c.l.b16 %v3508
  %v3621 = vunpack.c.l.b16 %v3509
  %v3622 = vunpack.c.l.b16 %v3510
  %v3623 = vunpack.c.l.b16 %v3511
  %v3624 = vunpack.c.l.b16 %v3512
  %v3625 = vunpack.c.l.b16 %v3513
  %v3626 = vunpack.c.l.b16 %v3514
  %v3627 = vunpack.c.l.b16 %v3515
  %v3628 = vunpack.c.l.b16 %v3516
  %v3629 = vunpack.c.l.b16 %v3517
  %v3630 = vunpack.c.l.b16 %v3518
  %v3631 = vunpack.c.l.b16 %v3519
  %v3632 = vunpack.c.l.b16 %v3520
  %v3633 = vunpack.c.l.b16 %v3521
  %v3634 = vunpack.c.l.b16 %v3522
  %v3635 = vunpack.c.l.b16 %v3523
  %v3636 = vunpack.c.l.b16 %v3524
  %v3637 = vunpack.c.l.b16 %v3525
  %v3638 = vunpack.c.l.b16 %v3526
  %v3639 = vunpack.c.l.b16 %v3527
  %v3640 = vunpack.c.l.b16 %v3528
  %v3641 = vunpack.c.l.b16 %v3529
  %v3642 = vunpack.c.l.b16 %v3530
  %v3643 = vpack.c.b16 %v3603, %v3602
  %v3644 = vpack.c.b16 %v3605, %v3604
  %v3645 = vpack.c.b16 %v3607, %v3606
  %v3646 = vpack.c.b16 %v3609, %v3608
  %v3647 = vpack.c.b16 %v3611, %v3610
  %v3648 = vpack.c.b16 %v3613, %v3612
  %v3649 = vpack.c.b16 %v3615, %v3614
  %v3650 = vpack.c.b16 %v3617, %v3616
  %v3651 = vpack.c.b16 %v3619, %v3618
  %v3652 = vpack.c.b16 %v3621, %v3620
  %v3653 = vpack.c.b16 %v3623, %v3622
  %v3654 = vpack.c.b16 %v3625, %v3624
  %v3655 = vpack.c.b16 %v3627, %v3626
  %v3656 = vpack.c.b16 %v3629, %v3628
  %v3657 = vpack.c.b16 %v3631, %v3630
  %v3658 = vpack.c.b16 %v3633, %v3632
  %v3659 = vpack.c.b16 %v3635, %v3634
  %v3660 = vpack.c.b16 %v3637, %v3636
  %v3661 = vpack.c.b16 %v3639, %v3638
  %v3662 = vpack.c.b16 %v3641, %v3640
  %v3663 = vpack.c.b16 %v3642, %v3642
  %vm3684 = vcmask 556032
  %v3686 = vsel %vm3684, %v3553, 0
  %v3689 = vsel %vm3684, %v3556, 0
  %vm3691 = vcmask 1041408
  %v3693 = vsel %vm3691, %v3663, 0
  %3695 = vmatpush.bf16.msra.mxu0 %v3650
  %3696 = vmatpush.bf16.msra.mxu0 %v3649
  %3697 = vmatpush.bf16.msra.mxu0 %v3648
  %3698 = vmatpush.bf16.msra.mxu0 %v3647
  %3699 = vmatpush.bf16.msra.mxu0 %v3646
  %3700 = vmatpush.bf16.msra.mxu0 %v3645
  %3701 = vmatpush.bf16.msra.mxu0 %v3644
  %3702 = vmatpush.bf16.msra.mxu0 %v3643
  %3703 = vmatmul.bf16.gmra.mxu0 %v3551
  %v3704 = vpop.f32.mrf.mxu0
  %v3705 = vadd.f32 0.0, %v3704
  %v3706 = vpop.f32.mrf.mxu0
  %v3707 = vadd.f32 0.0, %v3706
  %3708 = vmatmul.bf16.gmra.mxu0 %v3554
  %v3709 = vpop.f32.mrf.mxu0
  %v3710 = vadd.f32 0.0, %v3709
  %v3711 = vpop.f32.mrf.mxu0
  %v3712 = vadd.f32 0.0, %v3711
  %3713 = vdwg.mxu0
  %3714 = vmatpush.bf16.msra.mxu0 %v3658
  %3715 = vmatpush.bf16.msra.mxu0 %v3657
  %3716 = vmatpush.bf16.msra.mxu0 %v3656
  %3717 = vmatpush.bf16.msra.mxu0 %v3655
  %3718 = vmatpush.bf16.msra.mxu0 %v3654
  %3719 = vmatpush.bf16.msra.mxu0 %v3653
  %3720 = vmatpush.bf16.msra.mxu0 %v3652
  %3721 = vmatpush.bf16.msra.mxu0 %v3651
  %3722 = vmatmul.bf16.gmra.mxu0 %v3552
  %v3723 = vpop.f32.mrf.mxu0
  %v3724 = vadd.f32 %v3705, %v3723
  %v3725 = vpop.f32.mrf.mxu0
  %v3726 = vadd.f32 %v3707, %v3725
  %3727 = vmatmul.bf16.gmra.mxu0 %v3555
  %v3728 = vpop.f32.mrf.mxu0
  %v3729 = vadd.f32 %v3710, %v3728
  %v3730 = vpop.f32.mrf.mxu0
  %v3731 = vadd.f32 %v3712, %v3730
  %3732 = vdwg.mxu0
  %3733 = vmatpush.bf16.msra.mxu0 0
  %3734 = vmatpush.bf16.msra.mxu0 0
  %3735 = vmatpush.bf16.msra.mxu0 0
  %3736 = vmatpush.bf16.msra.mxu0 %v3693
  %3737 = vmatpush.bf16.msra.mxu0 %v3662
  %3738 = vmatpush.bf16.msra.mxu0 %v3661
  %3739 = vmatpush.bf16.msra.mxu0 %v3660
  %3740 = vmatpush.bf16.msra.mxu0 %v3659
  %3741 = vmatmul.bf16.gmra.mxu0 %v3686
  %v3742 = vpop.f32.mrf.mxu0
  %v3743 = vadd.f32 %v3724, %v3742
  %v3744 = vpop.f32.mrf.mxu0
  %v3745 = vadd.f32 %v3726, %v3744
  %3746 = vmatmul.bf16.gmra.mxu0 %v3689
  %v3747 = vpop.f32.mrf.mxu0
  %v3748 = vadd.f32 %v3729, %v3747
  %v3749 = vpop.f32.mrf.mxu0
  %v3750 = vadd.f32 %v3731, %v3749
  %3751 = vdwg.mxu0
  %v3756 = vunpack.c.h.b16 %v3479
  %v3757 = vunpack.c.l.b16 %v3480
  %v3758 = vunpack.c.h.b16 %v3480
  %v3759 = vunpack.c.h.b16 %v3482
  %v3760 = vunpack.c.l.b16 %v3483
  %v3761 = vunpack.c.h.b16 %v3483
  %v3762 = vunpack.c.h.b16 %v3485
  %v3763 = vunpack.c.l.b16 %v3486
  %v3764 = vunpack.c.h.b16 %v3486
  %v3765 = vunpack.c.h.b16 %v3488
  %v3766 = vunpack.c.l.b16 %v3489
  %v3767 = vunpack.c.h.b16 %v3489
  %v3768 = vpack.c.b16 %v3759, %v3756
  %v3769 = vpack.c.b16 %v3760, %v3757
  %v3770 = vpack.c.b16 %v3761, %v3758
  %v3771 = vpack.c.b16 %v3765, %v3762
  %v3772 = vpack.c.b16 %v3766, %v3763
  %v3773 = vpack.c.b16 %v3767, %v3764
  %3774 = vrot.lane.b32.xlu0 %v3553, 60
  %v3775 = vpop.permute.xlu0 %3774
  %3776 = vrot.lane.b32.xlu0 %v3768, 60
  %v3777 = vpop.permute.xlu0 %3776
  %3778 = vrot.lane.b32.xlu0 %v3769, 60
  %v3779 = vpop.permute.xlu0 %3778
  %3780 = vrot.lane.b32.xlu0 %v3770, 60
  %v3781 = vpop.permute.xlu0 %3780
  %3782 = vrot.lane.b32.xlu0 %v3556, 60
  %v3783 = vpop.permute.xlu0 %3782
  %3784 = vrot.lane.b32.xlu0 %v3771, 60
  %v3785 = vpop.permute.xlu0 %3784
  %3786 = vrot.lane.b32.xlu0 %v3772, 60
  %v3787 = vpop.permute.xlu0 %3786
  %3788 = vrot.lane.b32.xlu0 %v3773, 60
  %v3789 = vpop.permute.xlu0 %3788
  %vm3790 = vcmask 490496
  %v3791 = vsel %vm3790, %v3775, %v3777
  %v3792 = vsel %vm3790, %v3777, %v3779
  %v3793 = vsel %vm3790, %v3779, %v3781
  %v3794 = vsel %vm3790, %v3783, %v3785
  %v3795 = vsel %vm3790, %v3785, %v3787
  %v3796 = vsel %vm3790, %v3787, %v3789
  %v3802 = vsel %vm3684, %v3793, 0
  %v3805 = vsel %vm3684, %v3796, 0
  %3807 = vmatpush.bf16.msra.mxu0 %v3650
  %3808 = vmatpush.bf16.msra.mxu0 %v3649
  %3809 = vmatpush.bf16.msra.mxu0 %v3648
  %3810 = vmatpush.bf16.msra.mxu0 %v3647
  %3811 = vmatpush.bf16.msra.mxu0 %v3646
  %3812 = vmatpush.bf16.msra.mxu0 %v3645
  %3813 = vmatpush.bf16.msra.mxu0 %v3644
  %3814 = vmatpush.bf16.msra.mxu0 %v3643
  %3815 = vmatmul.bf16.gmra.mxu0 %v3791
  %v3816 = vpop.f32.mrf.mxu0
  %v3817 = vadd.f32 0.0, %v3816
  %v3818 = vpop.f32.mrf.mxu0
  %v3819 = vadd.f32 0.0, %v3818
  %3820 = vmatmul.bf16.gmra.mxu0 %v3794
  %v3821 = vpop.f32.mrf.mxu0
  %v3822 = vadd.f32 0.0, %v3821
  %v3823 = vpop.f32.mrf.mxu0
  %v3824 = vadd.f32 0.0, %v3823
  %3825 = vdwg.mxu0
  %3826 = vmatpush.bf16.msra.mxu0 %v3658
  %3827 = vmatpush.bf16.msra.mxu0 %v3657
  %3828 = vmatpush.bf16.msra.mxu0 %v3656
  %3829 = vmatpush.bf16.msra.mxu0 %v3655
  %3830 = vmatpush.bf16.msra.mxu0 %v3654
  %3831 = vmatpush.bf16.msra.mxu0 %v3653
  %3832 = vmatpush.bf16.msra.mxu0 %v3652
  %3833 = vmatpush.bf16.msra.mxu0 %v3651
  %3834 = vmatmul.bf16.gmra.mxu0 %v3792
  %v3835 = vpop.f32.mrf.mxu0
  %v3836 = vadd.f32 %v3817, %v3835
  %v3837 = vpop.f32.mrf.mxu0
  %v3838 = vadd.f32 %v3819, %v3837
  %3839 = vmatmul.bf16.gmra.mxu0 %v3795
  %v3840 = vpop.f32.mrf.mxu0
  %v3841 = vadd.f32 %v3822, %v3840
  %v3842 = vpop.f32.mrf.mxu0
  %v3843 = vadd.f32 %v3824, %v3842
  %3844 = vdwg.mxu0
  %3845 = vmatpush.bf16.msra.mxu0 0
  %3846 = vmatpush.bf16.msra.mxu0 0
  %3847 = vmatpush.bf16.msra.mxu0 0
  %3848 = vmatpush.bf16.msra.mxu0 %v3693
  %3849 = vmatpush.bf16.msra.mxu0 %v3662
  %3850 = vmatpush.bf16.msra.mxu0 %v3661
  %3851 = vmatpush.bf16.msra.mxu0 %v3660
  %3852 = vmatpush.bf16.msra.mxu0 %v3659
  %3853 = vmatmul.bf16.gmra.mxu0 %v3802
  %v3854 = vpop.f32.mrf.mxu0
  %v3855 = vadd.f32 %v3836, %v3854
  %v3856 = vpop.f32.mrf.mxu0
  %v3857 = vadd.f32 %v3838, %v3856
  %3858 = vmatmul.bf16.gmra.mxu0 %v3805
  %v3859 = vpop.f32.mrf.mxu0
  %v3860 = vadd.f32 %v3841, %v3859
  %v3861 = vpop.f32.mrf.mxu0
  %v3862 = vadd.f32 %v3843, %v3861
  %3863 = vdwg.mxu0
  %3868 = vrot.lane.b32.xlu0 %v3855, 100
  %v3869 = vpop.permute.xlu0 %3868
  %3870 = vrot.lane.b32.xlu0 %v3857, 100
  %v3871 = vpop.permute.xlu0 %3870
  %3872 = vrot.lane.b32.xlu0 %v3860, 100
  %v3873 = vpop.permute.xlu0 %3872
  %3874 = vrot.lane.b32.xlu0 %v3862, 100
  %v3875 = vpop.permute.xlu0 %3874
  %vm3880 = vcmask 818176
  %v3881 = vsel %vm3880, %v3743, %v3869
  %v3882 = vsel %vm3880, %v3745, %v3871
  %v3883 = vsel %vm3880, %v3748, %v3873
  %v3884 = vsel %vm3880, %v3750, %v3875
  %s3885 = scalar_lea.vmem %s2, 1
  %v3886 = vld [vmem:[%s3885] ss:$8 sm:$0x3]
  %vm3887 = vcmp.gt.f32.partialorder %v3886, 0.0
  %v3888 = vmax.f32 %v3881, 0.0
  %v3889 = vmax.f32 %v3869, 0.0
  %v3890 = vmax.f32 %v3882, 0.0
  %v3891 = vmax.f32 %v3871, 0.0
  %v3892 = vmax.f32 %v3883, 0.0
  %v3893 = vmax.f32 %v3873, 0.0
  %v3894 = vmax.f32 %v3884, 0.0
  %v3895 = vmax.f32 %v3875, 0.0
  %v3896 = vsel %vm3887, 1, 0
  %v3897 = vperm.slane %v3896, 0
  %v3898 = vperm.slane %v3896, 1
  %vm3899 = vcmp.eq.s32.totalorder %v3897, 1
  %vm3900 = vcmp.eq.s32.totalorder %v3898, 1
  %v3901 = vsel %vm3899, %v3888, 0.0
  %v3902 = vsel %vm3900, %v3889, 0.0
  %v3903 = vsel %vm3899, %v3890, 0.0
  %v3904 = vsel %vm3900, %v3891, 0.0
  %v3905 = vsel %vm3899, %v3892, 0.0
  %v3906 = vsel %vm3900, %v3893, 0.0
  %v3907 = vsel %vm3899, %v3894, 0.0
  %v3908 = vsel %vm3900, %v3895, 0.0
  %v3909 = vpack.c.bf16 %v3902, %v3901
  %v3910 = vpack.c.bf16 %v3904, %v3903
  %v3911 = vpack.c.bf16 %v3906, %v3905
  %v3912 = vpack.c.bf16 %v3908, %v3907
  %vm3913 = vcmask 588804
  %vm3914 = vmor %vm3913, %vm295
  %3915 = vst.msk [vmem:[#allocation6] sm:$0xff] %vm3914, %v3909
  %3916 = vst.msk [vmem:[#allocation6 + $0x8] sm:$0xff] %vm3914, %v3910
  %3917 = vst.msk [vmem:[#allocation6 + $0x10] sm:$0xff] %vm3914, %v3911
  %3918 = vst.msk [vmem:[#allocation6 + $0x18] sm:$0xff] %vm3914, %v3912
  %v3919 = vld [vmem:[#allocation6] sm:$0xff]
  %v3920 = vld [vmem:[#allocation6 + $0x8] sm:$0xff]
  %v3921 = vld [vmem:[#allocation6 + $0x10] sm:$0xff]
  %v3922 = vld [vmem:[#allocation6 + $0x18] sm:$0xff]
  %3927 = vrot.lane.b32.xlu0 %v3919, 11
  %v3928 = vpop.permute.xlu0 %3927
  %3929 = vrot.lane.b32.xlu0 %v3920, 11
  %v3930 = vpop.permute.xlu0 %3929
  %3931 = vrot.lane.b32.xlu0 %v3921, 11
  %v3932 = vpop.permute.xlu0 %3931
  %3933 = vrot.lane.b32.xlu0 %v3922, 11
  %v3934 = vpop.permute.xlu0 %3933
  %v3935 = vrot.slane %v3928, 4
  %v3936 = vrot.slane %v3930, 4
  %v3937 = vrot.slane %v3932, 4
  %v3938 = vrot.slane %v3934, 4
  %vm3939 = vcmask 89088
  %v3940 = vsel %vm3939, %v3935, %v3928
  %v3941 = vsel %vm3939, %v3936, %v3930
  %v3942 = vsel %vm3939, %v3937, %v3932
  %v3943 = vsel %vm3939, %v3938, %v3934
  %vm3948 = vcmask 1043544
  %vm3949 = vmor %vm3913, %vm3948
  %3950 = vst.msk [vmem:[#allocation8] sm:$0xff] %vm3949, %v3940
  %3951 = vst.msk [vmem:[#allocation8 + $0x8] sm:$0xff] %vm3949, %v3941
  %3952 = vst.msk [vmem:[#allocation8 + $0x10] sm:$0xff] %vm3949, %v3942
  %3953 = vst.msk [vmem:[#allocation8 + $0x18] sm:$0xff] %vm3949, %v3943
  %v3954 = vld [vmem:[#allocation6] sm:$0xff]
  %v3955 = vld [vmem:[#allocation6 + $0x8] sm:$0xff]
  %v3956 = vld [vmem:[#allocation6 + $0x10] sm:$0xff]
  %v3957 = vld [vmem:[#allocation6 + $0x18] sm:$0xff]
  %3962 = vrot.lane.b32.xlu0 %v3954, 10
  %v3963 = vpop.permute.xlu0 %3962
  %3964 = vrot.lane.b32.xlu0 %v3955, 10
  %v3965 = vpop.permute.xlu0 %3964
  %3966 = vrot.lane.b32.xlu0 %v3956, 10
  %v3967 = vpop.permute.xlu0 %3966
  %3968 = vrot.lane.b32.xlu0 %v3957, 10
  %v3969 = vpop.permute.xlu0 %3968
  %v3970 = vrot.slane %v3963, 4
  %v3971 = vrot.slane %v3965, 4
  %v3972 = vrot.slane %v3967, 4
  %v3973 = vrot.slane %v3969, 4
  %vm3974 = vcmask 80896
  %v3975 = vsel %vm3974, %v3970, %v3963
  %v3976 = vsel %vm3974, %v3971, %v3965
  %v3977 = vsel %vm3974, %v3972, %v3967
  %v3978 = vsel %vm3974, %v3973, %v3969
  %vm3983 = vcmask 1043536
  %vm3984 = vmor %vm3913, %vm3983
  %3985 = vst.msk [vmem:[#allocation8 + $0x20] sm:$0xff] %vm3984, %v3975
  %3986 = vst.msk [vmem:[#allocation8 + $0x28] sm:$0xff] %vm3984, %v3976
  %3987 = vst.msk [vmem:[#allocation8 + $0x30] sm:$0xff] %vm3984, %v3977
  %3988 = vst.msk [vmem:[#allocation8 + $0x38] sm:$0xff] %vm3984, %v3978
  %v3989 = vld [vmem:[#allocation6] sm:$0xff]
  %v3990 = vld [vmem:[#allocation6 + $0x8] sm:$0xff]
  %v3991 = vld [vmem:[#allocation6 + $0x10] sm:$0xff]
  %v3992 = vld [vmem:[#allocation6 + $0x18] sm:$0xff]
  %3997 = vrot.lane.b32.xlu0 %v3989, 9
  %v3998 = vpop.permute.xlu0 %3997
  %3999 = vrot.lane.b32.xlu0 %v3990, 9
  %v4000 = vpop.permute.xlu0 %3999
  %4001 = vrot.lane.b32.xlu0 %v3991, 9
  %v4002 = vpop.permute.xlu0 %4001
  %4003 = vrot.lane.b32.xlu0 %v3992, 9
  %v4004 = vpop.permute.xlu0 %4003
  %v4005 = vrot.slane %v3998, 4
  %v4006 = vrot.slane %v4000, 4
  %v4007 = vrot.slane %v4002, 4
  %v4008 = vrot.slane %v4004, 4
  %vm4009 = vcmask 72704
  %v4010 = vsel %vm4009, %v4005, %v3998
  %v4011 = vsel %vm4009, %v4006, %v4000
  %v4012 = vsel %vm4009, %v4007, %v4002
  %v4013 = vsel %vm4009, %v4008, %v4004
  %vm4018 = vcmask 1043528
  %vm4019 = vmor %vm3913, %vm4018
  %4020 = vst.msk [vmem:[#allocation8 + $0x40] sm:$0xff] %vm4019, %v4010
  %4021 = vst.msk [vmem:[#allocation8 + $0x48] sm:$0xff] %vm4019, %v4011
  %4022 = vst.msk [vmem:[#allocation8 + $0x50] sm:$0xff] %vm4019, %v4012
  %4023 = vst.msk [vmem:[#allocation8 + $0x58] sm:$0xff] %vm4019, %v4013
  %v4024 = vld [vmem:[#allocation6] sm:$0xff]
  %v4025 = vld [vmem:[#allocation6 + $0x8] sm:$0xff]
  %v4026 = vld [vmem:[#allocation6 + $0x10] sm:$0xff]
  %v4027 = vld [vmem:[#allocation6 + $0x18] sm:$0xff]
  %4032 = vrot.lane.b32.xlu0 %v4024, 1
  %v4033 = vpop.permute.xlu0 %4032
  %4034 = vrot.lane.b32.xlu0 %v4025, 1
  %v4035 = vpop.permute.xlu0 %4034
  %4036 = vrot.lane.b32.xlu0 %v4026, 1
  %v4037 = vpop.permute.xlu0 %4036
  %4038 = vrot.lane.b32.xlu0 %v4027, 1
  %v4039 = vpop.permute.xlu0 %4038
  %v4040 = vrot.slane %v4033, 4
  %v4041 = vrot.slane %v4035, 4
  %v4042 = vrot.slane %v4037, 4
  %v4043 = vrot.slane %v4039, 4
  %v4044 = vsel %vm499, %v4040, %v4033
  %v4045 = vsel %vm499, %v4041, %v4035
  %v4046 = vsel %vm499, %v4042, %v4037
  %v4047 = vsel %vm499, %v4043, %v4039
  %vm4052 = vmor %vm3913, %vm516
  %4053 = vst.msk [vmem:[#allocation8 + $0x60] sm:$0xff] %vm4052, %v4044
  %4054 = vst.msk [vmem:[#allocation8 + $0x68] sm:$0xff] %vm4052, %v4045
  %4055 = vst.msk [vmem:[#allocation8 + $0x70] sm:$0xff] %vm4052, %v4046
  %4056 = vst.msk [vmem:[#allocation8 + $0x78] sm:$0xff] %vm4052, %v4047
  %v4057 = vld [vmem:[#allocation6] sm:$0xff]
  %v4058 = vld [vmem:[#allocation6 + $0x8] sm:$0xff]
  %v4059 = vld [vmem:[#allocation6 + $0x10] sm:$0xff]
  %v4060 = vld [vmem:[#allocation6 + $0x18] sm:$0xff]
  %4061 = vst.msk [vmem:[#allocation8 + $0x80] sm:$0xff] %vm3914, %v4057
  %4062 = vst.msk [vmem:[#allocation8 + $0x88] sm:$0xff] %vm3914, %v4058
  %4063 = vst.msk [vmem:[#allocation8 + $0x90] sm:$0xff] %vm3914, %v4059
  %4064 = vst.msk [vmem:[#allocation8 + $0x98] sm:$0xff] %vm3914, %v4060
  %v4065 = vld [vmem:[#allocation6] sm:$0xff]
  %v4066 = vld [vmem:[#allocation6 + $0x8] sm:$0xff]
  %v4067 = vld [vmem:[#allocation6 + $0x10] sm:$0xff]
  %v4068 = vld [vmem:[#allocation6 + $0x18] sm:$0xff]
  %4073 = vrot.lane.b32.xlu0 %v4065, 127
  %v4074 = vpop.permute.xlu0 %4073
  %4075 = vrot.lane.b32.xlu0 %v4066, 127
  %v4076 = vpop.permute.xlu0 %4075
  %4077 = vrot.lane.b32.xlu0 %v4067, 127
  %v4078 = vpop.permute.xlu0 %4077
  %4079 = vrot.lane.b32.xlu0 %v4068, 127
  %v4080 = vpop.permute.xlu0 %4079
  %v4081 = vrot.slane %v4074, 4
  %v4082 = vrot.slane %v4076, 4
  %v4083 = vrot.slane %v4078, 4
  %v4084 = vrot.slane %v4080, 4
  %v4085 = vsel %vm567, %v4074, %v4081
  %v4086 = vsel %vm567, %v4076, %v4082
  %v4087 = vsel %vm567, %v4078, %v4083
  %v4088 = vsel %vm567, %v4080, %v4084
  %vm4093 = vcmask 580612
  %vm4094 = vmor %vm4093, %vm295
  %4095 = vst.msk [vmem:[#allocation8 + $0xa0] sm:$0xff] %vm4094, %v4085
  %4096 = vst.msk [vmem:[#allocation8 + $0xa8] sm:$0xff] %vm4094, %v4086
  %4097 = vst.msk [vmem:[#allocation8 + $0xb0] sm:$0xff] %vm4094, %v4087
  %4098 = vst.msk [vmem:[#allocation8 + $0xb8] sm:$0xff] %vm4094, %v4088
  %v4099 = vld [vmem:[#allocation6] sm:$0xff]
  %v4100 = vld [vmem:[#allocation6 + $0x8] sm:$0xff]
  %v4101 = vld [vmem:[#allocation6 + $0x10] sm:$0xff]
  %v4102 = vld [vmem:[#allocation6 + $0x18] sm:$0xff]
  %4107 = vrot.lane.b32.xlu0 %v4099, 119
  %v4108 = vpop.permute.xlu0 %4107
  %4109 = vrot.lane.b32.xlu0 %v4100, 119
  %v4110 = vpop.permute.xlu0 %4109
  %4111 = vrot.lane.b32.xlu0 %v4101, 119
  %v4112 = vpop.permute.xlu0 %4111
  %4113 = vrot.lane.b32.xlu0 %v4102, 119
  %v4114 = vpop.permute.xlu0 %4113
  %v4115 = vrot.slane %v4108, 4
  %v4116 = vrot.slane %v4110, 4
  %v4117 = vrot.slane %v4112, 4
  %v4118 = vrot.slane %v4114, 4
  %vm4119 = vcmask 973824
  %v4120 = vsel %vm4119, %v4108, %v4115
  %v4121 = vsel %vm4119, %v4110, %v4116
  %v4122 = vsel %vm4119, %v4112, %v4117
  %v4123 = vsel %vm4119, %v4114, %v4118
  %vm4128 = vcmask 515076
  %vm4129 = vmor %vm4128, %vm295
  %4130 = vst.msk [vmem:[#allocation8 + $0xc0] sm:$0xff] %vm4129, %v4120
  %4131 = vst.msk [vmem:[#allocation8 + $0xc8] sm:$0xff] %vm4129, %v4121
  %4132 = vst.msk [vmem:[#allocation8 + $0xd0] sm:$0xff] %vm4129, %v4122
  %4133 = vst.msk [vmem:[#allocation8 + $0xd8] sm:$0xff] %vm4129, %v4123
  %v4134 = vld [vmem:[#allocation6] sm:$0xff]
  %v4135 = vld [vmem:[#allocation6 + $0x8] sm:$0xff]
  %v4136 = vld [vmem:[#allocation6 + $0x10] sm:$0xff]
  %v4137 = vld [vmem:[#allocation6 + $0x18] sm:$0xff]
  %4142 = vrot.lane.b32.xlu0 %v4134, 118
  %v4143 = vpop.permute.xlu0 %4142
  %4144 = vrot.lane.b32.xlu0 %v4135, 118
  %v4145 = vpop.permute.xlu0 %4144
  %4146 = vrot.lane.b32.xlu0 %v4136, 118
  %v4147 = vpop.permute.xlu0 %4146
  %4148 = vrot.lane.b32.xlu0 %v4137, 118
  %v4149 = vpop.permute.xlu0 %4148
  %v4150 = vrot.slane %v4143, 4
  %v4151 = vrot.slane %v4145, 4
  %v4152 = vrot.slane %v4147, 4
  %v4153 = vrot.slane %v4149, 4
  %vm4154 = vcmask 965632
  %v4155 = vsel %vm4154, %v4143, %v4150
  %v4156 = vsel %vm4154, %v4145, %v4151
  %v4157 = vsel %vm4154, %v4147, %v4152
  %v4158 = vsel %vm4154, %v4149, %v4153
  %vm4163 = vcmask 506884
  %vm4164 = vmor %vm4163, %vm295
  %4165 = vst.msk [vmem:[#allocation8 + $0xe0] sm:$0xff] %vm4164, %v4155
  %4166 = vst.msk [vmem:[#allocation8 + $0xe8] sm:$0xff] %vm4164, %v4156
  %4167 = vst.msk [vmem:[#allocation8 + $0xf0] sm:$0xff] %vm4164, %v4157
  %4168 = vst.msk [vmem:[#allocation8 + $0xf8] sm:$0xff] %vm4164, %v4158
  %v4169 = vld [vmem:[#allocation6] sm:$0xff]
  %v4170 = vld [vmem:[#allocation6 + $0x8] sm:$0xff]
  %v4171 = vld [vmem:[#allocation6 + $0x10] sm:$0xff]
  %v4172 = vld [vmem:[#allocation6 + $0x18] sm:$0xff]
  %4177 = vrot.lane.b32.xlu0 %v4169, 117
  %v4178 = vpop.permute.xlu0 %4177
  %4179 = vrot.lane.b32.xlu0 %v4170, 117
  %v4180 = vpop.permute.xlu0 %4179
  %4181 = vrot.lane.b32.xlu0 %v4171, 117
  %v4182 = vpop.permute.xlu0 %4181
  %4183 = vrot.lane.b32.xlu0 %v4172, 117
  %v4184 = vpop.permute.xlu0 %4183
  %v4185 = vrot.slane %v4178, 4
  %v4186 = vrot.slane %v4180, 4
  %v4187 = vrot.slane %v4182, 4
  %v4188 = vrot.slane %v4184, 4
  %vm4189 = vcmask 957440
  %v4190 = vsel %vm4189, %v4178, %v4185
  %v4191 = vsel %vm4189, %v4180, %v4186
  %v4192 = vsel %vm4189, %v4182, %v4187
  %v4193 = vsel %vm4189, %v4184, %v4188
  %vm4198 = vcmask 498692
  %vm4199 = vmor %vm4198, %vm295
  %4200 = vst.msk [vmem:[#allocation8 + $0x100] sm:$0xff] %vm4199, %v4190
  %4201 = vst.msk [vmem:[#allocation8 + $0x108] sm:$0xff] %vm4199, %v4191
  %4202 = vst.msk [vmem:[#allocation8 + $0x110] sm:$0xff] %vm4199, %v4192
  %4203 = vst.msk [vmem:[#allocation8 + $0x118] sm:$0xff] %vm4199, %v4193
  %v4204 = vld [vmem:[#allocation8] sm:$0xff]
  %v4205 = vld [vmem:[#allocation8 + $0x8] sm:$0xff]
  %v4206 = vld [vmem:[#allocation8 + $0x10] sm:$0xff]
  %v4207 = vld [vmem:[#allocation8 + $0x18] sm:$0xff]
  %v4208 = vld [vmem:[#allocation8 + $0x20] sm:$0xff]
  %v4209 = vld [vmem:[#allocation8 + $0x28] sm:$0xff]
  %v4210 = vld [vmem:[#allocation8 + $0x30] sm:$0xff]
  %v4211 = vld [vmem:[#allocation8 + $0x38] sm:$0xff]
  %v4212 = vld [vmem:[#allocation8 + $0x40] sm:$0xff]
  %v4213 = vld [vmem:[#allocation8 + $0x48] sm:$0xff]
  %v4214 = vld [vmem:[#allocation8 + $0x50] sm:$0xff]
  %v4215 = vld [vmem:[#allocation8 + $0x58] sm:$0xff]
  %v4216 = vld [vmem:[#allocation8 + $0x60] sm:$0xff]
  %v4217 = vld [vmem:[#allocation8 + $0x68] sm:$0xff]
  %v4218 = vld [vmem:[#allocation8 + $0x70] sm:$0xff]
  %v4219 = vld [vmem:[#allocation8 + $0x78] sm:$0xff]
  %v4220 = vld [vmem:[#allocation8 + $0x80] sm:$0xff]
  %v4221 = vld [vmem:[#allocation8 + $0x88] sm:$0xff]
  %v4222 = vld [vmem:[#allocation8 + $0x90] sm:$0xff]
  %v4223 = vld [vmem:[#allocation8 + $0x98] sm:$0xff]
  %v4224 = vld [vmem:[#allocation8 + $0xa0] sm:$0xff]
  %v4225 = vld [vmem:[#allocation8 + $0xa8] sm:$0xff]
  %v4226 = vld [vmem:[#allocation8 + $0xb0] sm:$0xff]
  %v4227 = vld [vmem:[#allocation8 + $0xb8] sm:$0xff]
  %v4228 = vld [vmem:[#allocation8 + $0xc0] sm:$0xff]
  %v4229 = vld [vmem:[#allocation8 + $0xc8] sm:$0xff]
  %v4230 = vld [vmem:[#allocation8 + $0xd0] sm:$0xff]
  %v4231 = vld [vmem:[#allocation8 + $0xd8] sm:$0xff]
  %v4232 = vld [vmem:[#allocation8 + $0xe0] sm:$0xff]
  %v4233 = vld [vmem:[#allocation8 + $0xe8] sm:$0xff]
  %v4234 = vld [vmem:[#allocation8 + $0xf0] sm:$0xff]
  %v4235 = vld [vmem:[#allocation8 + $0xf8] sm:$0xff]
  %v4236 = vld [vmem:[#allocation8 + $0x100] sm:$0xff]
  %v4237 = vld [vmem:[#allocation8 + $0x108] sm:$0xff]
  %v4238 = vld [vmem:[#allocation8 + $0x110] sm:$0xff]
  %v4239 = vld [vmem:[#allocation8 + $0x118] sm:$0xff]
  %v4240 = vld [vmem:[#allocation8 + $0x120] sm:$0x11]
  %v4241 = vld [vmem:[%s1 + $0xc8] sm:$0xff]
  %v4242 = vld [vmem:[%s1 + $0xd0] sm:$0xf]
  %v4243 = vld [vmem:[%s1 + $0xdc] sm:$0xff]
  %v4244 = vld [vmem:[%s1 + $0xe4] sm:$0xf]
  %v4245 = vld [vmem:[%s1 + $0xf0] sm:$0xff]
  %v4246 = vld [vmem:[%s1 + $0xf8] sm:$0xf]
  %v4247 = vld [vmem:[%s1 + $0x104] sm:$0xff]
  %v4248 = vld [vmem:[%s1 + $0x10c] sm:$0xf]
  %v4249 = vld [vmem:[#allocation5] sm:$0xff]
  %v4250 = vld [vmem:[#allocation5 + $0x8] sm:$0xff]
  %v4251 = vld [vmem:[#allocation5 + $0x10] sm:$0xff]
  %v4252 = vld [vmem:[#allocation5 + $0x18] sm:$0xff]
  %v4253 = vld [vmem:[#allocation5 + $0x20] sm:$0xff]
  %v4254 = vld [vmem:[#allocation5 + $0x28] sm:$0xff]
  %v4255 = vld [vmem:[%s3] sm:$0xf]
  %v4256 = vld [vmem:[%s3 + $0x4] sm:$0xf]
  %v4257 = vld [vmem:[%s3 + $0x8] sm:$0xf]
  %v4258 = vld [vmem:[%s3 + $0xc] sm:$0xf]
  %v4259 = vld [vmem:[%s3 + $0x10] sm:$0xf]
  %v4260 = vld [vmem:[%s3 + $0x14] sm:$0xf]
  %v4261 = vld [vmem:[%s3 + $0x18] sm:$0xf]
  %v4262 = vld [vmem:[%s3 + $0x1c] sm:$0xf]
  %v4263 = vld [vmem:[%s3 + $0x20] sm:$0xf]
  %v4264 = vld [vmem:[%s3 + $0x24] sm:$0xf]
  %v4265 = vld [vmem:[%s3 + $0x28] sm:$0xf]
  %v4266 = vld [vmem:[%s3 + $0x2c] sm:$0xf]
  %v4267 = vld [vmem:[%s3 + $0x30] sm:$0xf]
  %v4268 = vld [vmem:[%s3 + $0x34] sm:$0xf]
  %v4269 = vld [vmem:[%s3 + $0x38] sm:$0xf]
  %v4270 = vld [vmem:[%s3 + $0x3c] sm:$0xf]
  %v4271 = vld [vmem:[%s3 + $0x40] sm:$0xf]
  %v4272 = vld [vmem:[%s3 + $0x44] sm:$0xf]
  %v4273 = vld [vmem:[%s3 + $0x48] sm:$0xf]
  %v4274 = vld [vmem:[%s3 + $0x4c] sm:$0xf]
  %v4275 = vld [vmem:[%s3 + $0x50] sm:$0xf]
  %v4276 = vld [vmem:[%s3 + $0x54] sm:$0xf]
  %v4277 = vld [vmem:[%s3 + $0x58] sm:$0xf]
  %v4278 = vld [vmem:[%s3 + $0x5c] sm:$0xf]
  %v4279 = vld [vmem:[%s3 + $0x60] sm:$0xf]
  %v4280 = vld [vmem:[%s3 + $0x64] sm:$0xf]
  %v4281 = vld [vmem:[%s3 + $0x68] sm:$0xf]
  %v4282 = vld [vmem:[%s3 + $0x6c] sm:$0xf]
  %v4283 = vld [vmem:[%s3 + $0x70] sm:$0xf]
  %v4284 = vld [vmem:[%s3 + $0x74] sm:$0xf]
  %v4285 = vld [vmem:[%s3 + $0x78] sm:$0xf]
  %v4286 = vld [vmem:[%s3 + $0x7c] sm:$0xf]
  %v4287 = vld [vmem:[%s3 + $0x80] sm:$0xf]
  %v4288 = vld [vmem:[%s3 + $0x84] sm:$0xf]
  %v4289 = vld [vmem:[%s3 + $0x88] sm:$0xf]
  %v4290 = vld [vmem:[%s3 + $0x8c] sm:$0xf]
  %v4291 = vld [vmem:[%s3 + $0x90] sm:$0xf]
  %v4292 = vld [vmem:[%s3 + $0x94] sm:$0xf]
  %v4293 = vld [vmem:[%s3 + $0x98] sm:$0xf]
  %v4294 = vld [vmem:[%s3 + $0x9c] sm:$0xf]
  %v4295 = vld [vmem:[%s3 + $0xa0] sm:$0x3]
  %v4300 = vunpack.c.l.b16 %v4249
  %v4301 = vunpack.c.h.b16 %v4249
  %v4302 = vunpack.c.l.b16 %v4250
  %v4303 = vunpack.c.l.b16 %v4252
  %v4304 = vunpack.c.h.b16 %v4252
  %v4305 = vunpack.c.l.b16 %v4253
  %v4306 = vpack.c.b16 %v4303, %v4300
  %v4307 = vpack.c.b16 %v4304, %v4301
  %v4308 = vpack.c.b16 %v4305, %v4302
  %v4352 = vunpack.c.l.b16 %v4255
  %v4353 = vunpack.c.l.b16 %v4256
  %v4354 = vunpack.c.l.b16 %v4257
  %v4355 = vunpack.c.l.b16 %v4258
  %v4356 = vunpack.c.l.b16 %v4259
  %v4357 = vunpack.c.l.b16 %v4260
  %v4358 = vunpack.c.l.b16 %v4261
  %v4359 = vunpack.c.l.b16 %v4262
  %v4360 = vunpack.c.l.b16 %v4263
  %v4361 = vunpack.c.l.b16 %v4264
  %v4362 = vunpack.c.l.b16 %v4265
  %v4363 = vunpack.c.l.b16 %v4266
  %v4364 = vunpack.c.l.b16 %v4267
  %v4365 = vunpack.c.l.b16 %v4268
  %v4366 = vunpack.c.l.b16 %v4269
  %v4367 = vunpack.c.l.b16 %v4270
  %v4368 = vunpack.c.l.b16 %v4271
  %v4369 = vunpack.c.l.b16 %v4272
  %v4370 = vunpack.c.l.b16 %v4273
  %v4371 = vunpack.c.l.b16 %v4274
  %v4372 = vunpack.c.l.b16 %v4275
  %v4373 = vunpack.c.l.b16 %v4276
  %v4374 = vunpack.c.l.b16 %v4277
  %v4375 = vunpack.c.l.b16 %v4278
  %v4376 = vunpack.c.l.b16 %v4279
  %v4377 = vunpack.c.l.b16 %v4280
  %v4378 = vunpack.c.l.b16 %v4281
  %v4379 = vunpack.c.l.b16 %v4282
  %v4380 = vunpack.c.l.b16 %v4283
  %v4381 = vunpack.c.l.b16 %v4284
  %v4382 = vunpack.c.l.b16 %v4285
  %v4383 = vunpack.c.l.b16 %v4286
  %v4384 = vunpack.c.l.b16 %v4287
  %v4385 = vunpack.c.l.b16 %v4288
  %v4386 = vunpack.c.l.b16 %v4289
  %v4387 = vunpack.c.l.b16 %v4290
  %v4388 = vunpack.c.l.b16 %v4291
  %v4389 = vunpack.c.l.b16 %v4292
  %v4390 = vunpack.c.l.b16 %v4293
  %v4391 = vunpack.c.l.b16 %v4294
  %v4392 = vunpack.c.l.b16 %v4295
  %v4393 = vpack.c.b16 %v4353, %v4352
  %v4394 = vpack.c.b16 %v4355, %v4354
  %v4395 = vpack.c.b16 %v4357, %v4356
  %v4396 = vpack.c.b16 %v4359, %v4358
  %v4397 = vpack.c.b16 %v4361, %v4360
  %v4398 = vpack.c.b16 %v4363, %v4362
  %v4399 = vpack.c.b16 %v4365, %v4364
  %v4400 = vpack.c.b16 %v4367, %v4366
  %v4401 = vpack.c.b16 %v4369, %v4368
  %v4402 = vpack.c.b16 %v4371, %v4370
  %v4403 = vpack.c.b16 %v4373, %v4372
  %v4404 = vpack.c.b16 %v4375, %v4374
  %v4405 = vpack.c.b16 %v4377, %v4376
  %v4406 = vpack.c.b16 %v4379, %v4378
  %v4407 = vpack.c.b16 %v4381, %v4380
  %v4408 = vpack.c.b16 %v4383, %v4382
  %v4409 = vpack.c.b16 %v4385, %v4384
  %v4410 = vpack.c.b16 %v4387, %v4386
  %v4411 = vpack.c.b16 %v4389, %v4388
  %v4412 = vpack.c.b16 %v4391, %v4390
  %v4413 = vpack.c.b16 %v4392, %v4392
  %v4435 = vsel %vm3684, %v4308, 0
  %v4438 = vsel %vm3691, %v4413, 0
  %4440 = vmatpush.bf16.msra.mxu0 %v4400
  %4441 = vmatpush.bf16.msra.mxu0 %v4399
  %4442 = vmatpush.bf16.msra.mxu0 %v4398
  %4443 = vmatpush.bf16.msra.mxu0 %v4397
  %4444 = vmatpush.bf16.msra.mxu0 %v4396
  %4445 = vmatpush.bf16.msra.mxu0 %v4395
  %4446 = vmatpush.bf16.msra.mxu0 %v4394
  %4447 = vmatpush.bf16.msra.mxu0 %v4393
  %4448 = vmatmul.bf16.gmra.mxu0 %v4306
  %v4449 = vpop.f32.mrf.mxu0
  %v4450 = vadd.f32 0.0, %v4449
  %v4451 = vpop.f32.mrf.mxu0
  %v4452 = vadd.f32 0.0, %v4451
  %4453 = vdwg.mxu0
  %4454 = vmatpush.bf16.msra.mxu0 %v4408
  %4455 = vmatpush.bf16.msra.mxu0 %v4407
  %4456 = vmatpush.bf16.msra.mxu0 %v4406
  %4457 = vmatpush.bf16.msra.mxu0 %v4405
  %4458 = vmatpush.bf16.msra.mxu0 %v4404
  %4459 = vmatpush.bf16.msra.mxu0 %v4403
  %4460 = vmatpush.bf16.msra.mxu0 %v4402
  %4461 = vmatpush.bf16.msra.mxu0 %v4401
  %4462 = vmatmul.bf16.gmra.mxu0 %v4307
  %v4463 = vpop.f32.mrf.mxu0
  %v4464 = vadd.f32 %v4450, %v4463
  %v4465 = vpop.f32.mrf.mxu0
  %v4466 = vadd.f32 %v4452, %v4465
  %4467 = vdwg.mxu0
  %4468 = vmatpush.bf16.msra.mxu0 0
  %4469 = vmatpush.bf16.msra.mxu0 0
  %4470 = vmatpush.bf16.msra.mxu0 0
  %4471 = vmatpush.bf16.msra.mxu0 %v4438
  %4472 = vmatpush.bf16.msra.mxu0 %v4412
  %4473 = vmatpush.bf16.msra.mxu0 %v4411
  %4474 = vmatpush.bf16.msra.mxu0 %v4410
  %4475 = vmatpush.bf16.msra.mxu0 %v4409
  %4476 = vmatmul.bf16.gmra.mxu0 %v4435
  %v4477 = vpop.f32.mrf.mxu0
  %v4478 = vadd.f32 %v4464, %v4477
  %v4479 = vpop.f32.mrf.mxu0
  %v4480 = vadd.f32 %v4466, %v4479
  %4481 = vdwg.mxu0
  %v4484 = vunpack.c.h.b16 %v4250
  %v4485 = vunpack.c.l.b16 %v4251
  %v4486 = vunpack.c.h.b16 %v4251
  %v4487 = vunpack.c.h.b16 %v4253
  %v4488 = vunpack.c.l.b16 %v4254
  %v4489 = vunpack.c.h.b16 %v4254
  %v4490 = vpack.c.b16 %v4487, %v4484
  %v4491 = vpack.c.b16 %v4488, %v4485
  %v4492 = vpack.c.b16 %v4489, %v4486
  %4493 = vrot.lane.b32.xlu0 %v4308, 60
  %v4494 = vpop.permute.xlu0 %4493
  %4495 = vrot.lane.b32.xlu0 %v4490, 60
  %v4496 = vpop.permute.xlu0 %4495
  %4497 = vrot.lane.b32.xlu0 %v4491, 60
  %v4498 = vpop.permute.xlu0 %4497
  %4499 = vrot.lane.b32.xlu0 %v4492, 60
  %v4500 = vpop.permute.xlu0 %4499
  %v4501 = vsel %vm3790, %v4494, %v4496
  %v4502 = vsel %vm3790, %v4496, %v4498
  %v4503 = vsel %vm3790, %v4498, %v4500
  %v4507 = vsel %vm3684, %v4503, 0
  %4509 = vmatpush.bf16.msra.mxu0 %v4400
  %4510 = vmatpush.bf16.msra.mxu0 %v4399
  %4511 = vmatpush.bf16.msra.mxu0 %v4398
  %4512 = vmatpush.bf16.msra.mxu0 %v4397
  %4513 = vmatpush.bf16.msra.mxu0 %v4396
  %4514 = vmatpush.bf16.msra.mxu0 %v4395
  %4515 = vmatpush.bf16.msra.mxu0 %v4394
  %4516 = vmatpush.bf16.msra.mxu0 %v4393
  %4517 = vmatmul.bf16.gmra.mxu0 %v4501
  %v4518 = vpop.f32.mrf.mxu0
  %v4519 = vadd.f32 0.0, %v4518
  %v4520 = vpop.f32.mrf.mxu0
  %v4521 = vadd.f32 0.0, %v4520
  %4522 = vdwg.mxu0
  %4523 = vmatpush.bf16.msra.mxu0 %v4408
  %4524 = vmatpush.bf16.msra.mxu0 %v4407
  %4525 = vmatpush.bf16.msra.mxu0 %v4406
  %4526 = vmatpush.bf16.msra.mxu0 %v4405
  %4527 = vmatpush.bf16.msra.mxu0 %v4404
  %4528 = vmatpush.bf16.msra.mxu0 %v4403
  %4529 = vmatpush.bf16.msra.mxu0 %v4402
  %4530 = vmatpush.bf16.msra.mxu0 %v4401
  %4531 = vmatmul.bf16.gmra.mxu0 %v4502
  %v4532 = vpop.f32.mrf.mxu0
  %v4533 = vadd.f32 %v4519, %v4532
  %v4534 = vpop.f32.mrf.mxu0
  %v4535 = vadd.f32 %v4521, %v4534
  %4536 = vdwg.mxu0
  %4537 = vmatpush.bf16.msra.mxu0 0
  %4538 = vmatpush.bf16.msra.mxu0 0
  %4539 = vmatpush.bf16.msra.mxu0 0
  %4540 = vmatpush.bf16.msra.mxu0 %v4438
  %4541 = vmatpush.bf16.msra.mxu0 %v4412
  %4542 = vmatpush.bf16.msra.mxu0 %v4411
  %4543 = vmatpush.bf16.msra.mxu0 %v4410
  %4544 = vmatpush.bf16.msra.mxu0 %v4409
  %4545 = vmatmul.bf16.gmra.mxu0 %v4507
  %v4546 = vpop.f32.mrf.mxu0
  %v4547 = vadd.f32 %v4533, %v4546
  %v4548 = vpop.f32.mrf.mxu0
  %v4549 = vadd.f32 %v4535, %v4548
  %4550 = vdwg.mxu0
  %4553 = vrot.lane.b32.xlu0 %v4547, 100
  %v4554 = vpop.permute.xlu0 %4553
  %4555 = vrot.lane.b32.xlu0 %v4549, 100
  %v4556 = vpop.permute.xlu0 %4555
  %v4559 = vsel %vm3880, %v4478, %v4554
  %v4560 = vsel %vm3880, %v4480, %v4556
  %v4561 = vld [vmem:[%s5] sm:$0xf]
  %v4562 = vld [vmem:[%s5 + $0x4] sm:$0xf]
  %v4563 = vld [vmem:[%s5 + $0x8] sm:$0xf]
  %v4564 = vld [vmem:[%s5 + $0xc] sm:$0xf]
  %v4565 = vpack.c.bf16 %v4560, %v4559
  %v4566 = vpack.c.bf16 %v4556, %v4554
  %v4571 = vunpack.c.l.b16 %v4561
  %v4572 = vunpack.c.l.b16 %v4562
  %v4573 = vunpack.c.l.b16 %v4563
  %v4574 = vunpack.c.l.b16 %v4564
  %v4575 = vpack.c.b16 %v4572, %v4571
  %v4576 = vpack.c.b16 %v4574, %v4573
  %vm4577 = vcmask 130048
  %v4579 = vsel %vm4577, %v4575, 0
  %v4582 = vsel %vm4577, %v4576, 0
  %4584 = vmatpush.bf16.msra.mxu0 0
  %4585 = vmatpush.bf16.msra.mxu0 0
  %4586 = vmatpush.bf16.msra.mxu0 0
  %4587 = vmatpush.bf16.msra.mxu0 0
  %4588 = vmatpush.bf16.msra.mxu0 0
  %4589 = vmatpush.bf16.msra.mxu0 0
  %4590 = vmatpush.bf16.msra.mxu0 0
  %4591 = vmatpush.bf16.msra.mxu0 %v4565
  %4592 = vmatmul.bf16.gmra.mxu0 %v4579
  %v4593 = vpop.f32.mrf.mxu0
  %v4594 = vadd.f32 0.0, %v4593
  %v4595 = vpop.f32.mrf.mxu0
  %v4596 = vadd.f32 0.0, %v4595
  %4597 = vmatmul.bf16.gmra.mxu0 %v4582
  %v4598 = vpop.f32.mrf.mxu0
  %v4599 = vadd.f32 0.0, %v4598
  %v4600 = vpop.f32.mrf.mxu0
  %v4601 = vadd.f32 0.0, %v4600
  %4602 = vdwg.mxu0
  %4603 = vmatpush.bf16.msra.mxu0 0
  %4604 = vmatpush.bf16.msra.mxu0 0
  %4605 = vmatpush.bf16.msra.mxu0 0
  %4606 = vmatpush.bf16.msra.mxu0 0
  %4607 = vmatpush.bf16.msra.mxu0 0
  %4608 = vmatpush.bf16.msra.mxu0 0
  %4609 = vmatpush.bf16.msra.mxu0 0
  %4610 = vmatpush.bf16.msra.mxu0 %v4566
  %4611 = vmatmul.bf16.gmra.mxu0 %v4579
  %v4612 = vpop.f32.mrf.mxu0
  %v4613 = vadd.f32 0.0, %v4612
  %v4614 = vpop.f32.mrf.mxu0
  %v4615 = vadd.f32 0.0, %v4614
  %4616 = vmatmul.bf16.gmra.mxu0 %v4582
  %v4617 = vpop.f32.mrf.mxu0
  %v4618 = vadd.f32 0.0, %v4617
  %v4619 = vpop.f32.mrf.mxu0
  %v4620 = vadd.f32 0.0, %v4619
  %4621 = vdwg.mxu0
  %v4630 = vunpack.c.l.b16 %v4241
  %v4631 = vunpack.c.h.b16 %v4241
  %v4632 = vunpack.c.l.b16 %v4242
  %v4633 = vunpack.c.l.b16 %v4243
  %v4634 = vunpack.c.h.b16 %v4243
  %v4635 = vunpack.c.l.b16 %v4244
  %v4636 = vunpack.c.l.b16 %v4245
  %v4637 = vunpack.c.h.b16 %v4245
  %v4638 = vunpack.c.l.b16 %v4246
  %v4639 = vunpack.c.l.b16 %v4247
  %v4640 = vunpack.c.h.b16 %v4247
  %v4641 = vunpack.c.l.b16 %v4248
  %v4642 = vpack.c.b16 %v4633, %v4630
  %v4643 = vpack.c.b16 %v4634, %v4631
  %v4644 = vpack.c.b16 %v4635, %v4632
  %v4645 = vpack.c.b16 %v4639, %v4636
  %v4646 = vpack.c.b16 %v4640, %v4637
  %v4647 = vpack.c.b16 %v4641, %v4638
  %v4689 = vunpack.c.l.b16 %v4204
  %v4690 = vunpack.c.h.b16 %v4204
  %v4691 = vunpack.c.l.b16 %v4205
  %v4692 = vunpack.c.h.b16 %v4205
  %v4693 = vunpack.c.l.b16 %v4206
  %v4694 = vunpack.c.h.b16 %v4206
  %v4695 = vunpack.c.l.b16 %v4207
  %v4696 = vunpack.c.h.b16 %v4207
  %v4697 = vunpack.c.l.b16 %v4208
  %v4698 = vunpack.c.h.b16 %v4208
  %v4699 = vunpack.c.l.b16 %v4209
  %v4700 = vunpack.c.h.b16 %v4209
  %v4701 = vunpack.c.l.b16 %v4210
  %v4702 = vunpack.c.h.b16 %v4210
  %v4703 = vunpack.c.l.b16 %v4211
  %v4704 = vunpack.c.h.b16 %v4211
  %v4705 = vunpack.c.l.b16 %v4212
  %v4706 = vunpack.c.h.b16 %v4212
  %v4707 = vunpack.c.l.b16 %v4213
  %v4708 = vunpack.c.h.b16 %v4213
  %v4709 = vunpack.c.l.b16 %v4214
  %v4710 = vunpack.c.h.b16 %v4214
  %v4711 = vunpack.c.l.b16 %v4215
  %v4712 = vunpack.c.h.b16 %v4215
  %v4713 = vunpack.c.l.b16 %v4216
  %v4714 = vunpack.c.h.b16 %v4216
  %v4715 = vunpack.c.l.b16 %v4217
  %v4716 = vunpack.c.h.b16 %v4217
  %v4717 = vunpack.c.l.b16 %v4218
  %v4718 = vunpack.c.h.b16 %v4218
  %v4719 = vunpack.c.l.b16 %v4219
  %v4720 = vunpack.c.h.b16 %v4219
  %v4721 = vunpack.c.l.b16 %v4220
  %v4722 = vunpack.c.h.b16 %v4220
  %v4723 = vunpack.c.l.b16 %v4221
  %v4724 = vunpack.c.h.b16 %v4221
  %v4725 = vunpack.c.l.b16 %v4222
  %v4726 = vunpack.c.h.b16 %v4222
  %v4727 = vunpack.c.l.b16 %v4223
  %v4728 = vunpack.c.h.b16 %v4223
  %v4729 = vunpack.c.l.b16 %v4224
  %v4730 = vunpack.c.h.b16 %v4224
  %v4731 = vunpack.c.l.b16 %v4225
  %v4732 = vunpack.c.h.b16 %v4225
  %v4733 = vunpack.c.l.b16 %v4226
  %v4734 = vunpack.c.h.b16 %v4226
  %v4735 = vunpack.c.l.b16 %v4227
  %v4736 = vunpack.c.h.b16 %v4227
  %v4737 = vunpack.c.l.b16 %v4228
  %v4738 = vunpack.c.h.b16 %v4228
  %v4739 = vunpack.c.l.b16 %v4229
  %v4740 = vunpack.c.h.b16 %v4229
  %v4741 = vunpack.c.l.b16 %v4230
  %v4742 = vunpack.c.h.b16 %v4230
  %v4743 = vunpack.c.l.b16 %v4231
  %v4744 = vunpack.c.h.b16 %v4231
  %v4745 = vunpack.c.l.b16 %v4232
  %v4746 = vunpack.c.h.b16 %v4232
  %v4747 = vunpack.c.l.b16 %v4233
  %v4748 = vunpack.c.h.b16 %v4233
  %v4749 = vunpack.c.l.b16 %v4234
  %v4750 = vunpack.c.h.b16 %v4234
  %v4751 = vunpack.c.l.b16 %v4235
  %v4752 = vunpack.c.h.b16 %v4235
  %v4753 = vunpack.c.l.b16 %v4236
  %v4754 = vunpack.c.h.b16 %v4236
  %v4755 = vunpack.c.l.b16 %v4237
  %v4756 = vunpack.c.h.b16 %v4237
  %v4757 = vunpack.c.l.b16 %v4238
  %v4758 = vunpack.c.h.b16 %v4238
  %v4759 = vunpack.c.l.b16 %v4239
  %v4760 = vunpack.c.h.b16 %v4239
  %v4761 = vunpack.c.l.b16 %v4240
  %v4762 = vunpack.c.h.b16 %v4240
  %v4763 = vpack.c.b16 %v4691, %v4689
  %v4764 = vpack.c.b16 %v4692, %v4690
  %v4765 = vpack.c.b16 %v4695, %v4693
  %v4766 = vpack.c.b16 %v4696, %v4694
  %v4767 = vpack.c.b16 %v4699, %v4697
  %v4768 = vpack.c.b16 %v4700, %v4698
  %v4769 = vpack.c.b16 %v4703, %v4701
  %v4770 = vpack.c.b16 %v4704, %v4702
  %v4771 = vpack.c.b16 %v4707, %v4705
  %v4772 = vpack.c.b16 %v4708, %v4706
  %v4773 = vpack.c.b16 %v4711, %v4709
  %v4774 = vpack.c.b16 %v4712, %v4710
  %v4775 = vpack.c.b16 %v4715, %v4713
  %v4776 = vpack.c.b16 %v4716, %v4714
  %v4777 = vpack.c.b16 %v4719, %v4717
  %v4778 = vpack.c.b16 %v4720, %v4718
  %v4779 = vpack.c.b16 %v4723, %v4721
  %v4780 = vpack.c.b16 %v4724, %v4722
  %v4781 = vpack.c.b16 %v4727, %v4725
  %v4782 = vpack.c.b16 %v4728, %v4726
  %v4783 = vpack.c.b16 %v4731, %v4729
  %v4784 = vpack.c.b16 %v4732, %v4730
  %v4785 = vpack.c.b16 %v4735, %v4733
  %v4786 = vpack.c.b16 %v4736, %v4734
  %v4787 = vpack.c.b16 %v4739, %v4737
  %v4788 = vpack.c.b16 %v4740, %v4738
  %v4789 = vpack.c.b16 %v4743, %v4741
  %v4790 = vpack.c.b16 %v4744, %v4742
  %v4791 = vpack.c.b16 %v4747, %v4745
  %v4792 = vpack.c.b16 %v4748, %v4746
  %v4793 = vpack.c.b16 %v4751, %v4749
  %v4794 = vpack.c.b16 %v4752, %v4750
  %v4795 = vpack.c.b16 %v4755, %v4753
  %v4796 = vpack.c.b16 %v4756, %v4754
  %v4797 = vpack.c.b16 %v4759, %v4757
  %v4798 = vpack.c.b16 %v4760, %v4758
  %v4799 = vpack.c.b16 %v4761, %v4761
  %v4800 = vpack.c.b16 %v4762, %v4762
  %vm4837 = vcmask 269312
  %v4839 = vsel %vm4837, %v4644, 0
  %v4842 = vsel %vm4837, %v4647, 0
  %v4845 = vand.u32 %v4799, %v1112
  %v4848 = vand.u32 %v4800, %v1112
  %4850 = vmatpush.bf16.msra.mxu0 %v4777
  %4851 = vmatpush.bf16.msra.mxu0 %v4775
  %4852 = vmatpush.bf16.msra.mxu0 %v4773
  %4853 = vmatpush.bf16.msra.mxu0 %v4771
  %4854 = vmatpush.bf16.msra.mxu0 %v4769
  %4855 = vmatpush.bf16.msra.mxu0 %v4767
  %4856 = vmatpush.bf16.msra.mxu0 %v4765
  %4857 = vmatpush.bf16.msra.mxu0 %v4763
  %4858 = vmatmul.bf16.gmra.mxu0 %v4642
  %v4859 = vpop.f32.mrf.mxu0
  %v4860 = vadd.f32 %v4594, %v4859
  %v4861 = vpop.f32.mrf.mxu0
  %v4862 = vadd.f32 %v4596, %v4861
  %4863 = vmatmul.bf16.gmra.mxu0 %v4645
  %v4864 = vpop.f32.mrf.mxu0
  %v4865 = vadd.f32 %v4599, %v4864
  %v4866 = vpop.f32.mrf.mxu0
  %v4867 = vadd.f32 %v4601, %v4866
  %4868 = vdwg.mxu0
  %4869 = vmatpush.bf16.msra.mxu0 %v4793
  %4870 = vmatpush.bf16.msra.mxu0 %v4791
  %4871 = vmatpush.bf16.msra.mxu0 %v4789
  %4872 = vmatpush.bf16.msra.mxu0 %v4787
  %4873 = vmatpush.bf16.msra.mxu0 %v4785
  %4874 = vmatpush.bf16.msra.mxu0 %v4783
  %4875 = vmatpush.bf16.msra.mxu0 %v4781
  %4876 = vmatpush.bf16.msra.mxu0 %v4779
  %4877 = vmatmul.bf16.gmra.mxu0 %v4643
  %v4878 = vpop.f32.mrf.mxu0
  %v4879 = vadd.f32 %v4860, %v4878
  %v4880 = vpop.f32.mrf.mxu0
  %v4881 = vadd.f32 %v4862, %v4880
  %4882 = vmatmul.bf16.gmra.mxu0 %v4646
  %v4883 = vpop.f32.mrf.mxu0
  %v4884 = vadd.f32 %v4865, %v4883
  %v4885 = vpop.f32.mrf.mxu0
  %v4886 = vadd.f32 %v4867, %v4885
  %4887 = vdwg.mxu0
  %4888 = vmatpush.bf16.msra.mxu0 0
  %4889 = vmatpush.bf16.msra.mxu0 0
  %4890 = vmatpush.bf16.msra.mxu0 0
  %4891 = vmatpush.bf16.msra.mxu0 0
  %4892 = vmatpush.bf16.msra.mxu0 0
  %4893 = vmatpush.bf16.msra.mxu0 %v4845
  %4894 = vmatpush.bf16.msra.mxu0 %v4797
  %4895 = vmatpush.bf16.msra.mxu0 %v4795
  %4896 = vmatmul.bf16.gmra.mxu0 %v4839
  %v4897 = vpop.f32.mrf.mxu0
  %v4898 = vadd.f32 %v4879, %v4897
  %v4899 = vpop.f32.mrf.mxu0
  %v4900 = vadd.f32 %v4881, %v4899
  %4901 = vmatmul.bf16.gmra.mxu0 %v4842
  %v4902 = vpop.f32.mrf.mxu0
  %v4903 = vadd.f32 %v4884, %v4902
  %v4904 = vpop.f32.mrf.mxu0
  %v4905 = vadd.f32 %v4886, %v4904
  %4906 = vdwg.mxu0
  %4907 = vmatpush.bf16.msra.mxu0 %v4778
  %4908 = vmatpush.bf16.msra.mxu0 %v4776
  %4909 = vmatpush.bf16.msra.mxu0 %v4774
  %4910 = vmatpush.bf16.msra.mxu0 %v4772
  %4911 = vmatpush.bf16.msra.mxu0 %v4770
  %4912 = vmatpush.bf16.msra.mxu0 %v4768
  %4913 = vmatpush.bf16.msra.mxu0 %v4766
  %4914 = vmatpush.bf16.msra.mxu0 %v4764
  %4915 = vmatmul.bf16.gmra.mxu0 %v4642
  %v4916 = vpop.f32.mrf.mxu0
  %v4917 = vadd.f32 %v4613, %v4916
  %v4918 = vpop.f32.mrf.mxu0
  %v4919 = vadd.f32 %v4615, %v4918
  %4920 = vmatmul.bf16.gmra.mxu0 %v4645
  %v4921 = vpop.f32.mrf.mxu0
  %v4922 = vadd.f32 %v4618, %v4921
  %v4923 = vpop.f32.mrf.mxu0
  %v4924 = vadd.f32 %v4620, %v4923
  %4925 = vdwg.mxu0
  %4926 = vmatpush.bf16.msra.mxu0 %v4794
  %4927 = vmatpush.bf16.msra.mxu0 %v4792
  %4928 = vmatpush.bf16.msra.mxu0 %v4790
  %4929 = vmatpush.bf16.msra.mxu0 %v4788
  %4930 = vmatpush.bf16.msra.mxu0 %v4786
  %4931 = vmatpush.bf16.msra.mxu0 %v4784
  %4932 = vmatpush.bf16.msra.mxu0 %v4782
  %4933 = vmatpush.bf16.msra.mxu0 %v4780
  %4934 = vmatmul.bf16.gmra.mxu0 %v4643
  %v4935 = vpop.f32.mrf.mxu0
  %v4936 = vadd.f32 %v4917, %v4935
  %v4937 = vpop.f32.mrf.mxu0
  %v4938 = vadd.f32 %v4919, %v4937
  %4939 = vmatmul.bf16.gmra.mxu0 %v4646
  %v4940 = vpop.f32.mrf.mxu0
  %v4941 = vadd.f32 %v4922, %v4940
  %v4942 = vpop.f32.mrf.mxu0
  %v4943 = vadd.f32 %v4924, %v4942
  %4944 = vdwg.mxu0
  %4945 = vmatpush.bf16.msra.mxu0 0
  %4946 = vmatpush.bf16.msra.mxu0 0
  %4947 = vmatpush.bf16.msra.mxu0 0
  %4948 = vmatpush.bf16.msra.mxu0 0
  %4949 = vmatpush.bf16.msra.mxu0 0
  %4950 = vmatpush.bf16.msra.mxu0 %v4848
  %4951 = vmatpush.bf16.msra.mxu0 %v4798
  %4952 = vmatpush.bf16.msra.mxu0 %v4796
  %4953 = vmatmul.bf16.gmra.mxu0 %v4839
  %v4954 = vpop.f32.mrf.mxu0
  %v4955 = vadd.f32 %v4936, %v4954
  %v4956 = vpop.f32.mrf.mxu0
  %v4957 = vadd.f32 %v4938, %v4956
  %4958 = vmatmul.bf16.gmra.mxu0 %v4842
  %v4959 = vpop.f32.mrf.mxu0
  %v4960 = vadd.f32 %v4941, %v4959
  %v4961 = vpop.f32.mrf.mxu0
  %v4962 = vadd.f32 %v4943, %v4961
  %4963 = vdwg.mxu0
  %v4964 = vld [vmem:[%s3885] ss:$8 sm:$0x3]
  %vm4965 = vcmp.gt.f32.partialorder %v4964, 0.0
  %v4966 = vmax.f32 %v4898, 0.0
  %v4967 = vmax.f32 %v4955, 0.0
  %v4968 = vmax.f32 %v4900, 0.0
  %v4969 = vmax.f32 %v4957, 0.0
  %v4970 = vmax.f32 %v4903, 0.0
  %v4971 = vmax.f32 %v4960, 0.0
  %v4972 = vmax.f32 %v4905, 0.0
  %v4973 = vmax.f32 %v4962, 0.0
  %v4974 = vsel %vm4965, 1, 0
  %v4975 = vperm.slane %v4974, 0
  %v4976 = vperm.slane %v4974, 1
  %vm4977 = vcmp.eq.s32.totalorder %v4975, 1
  %vm4978 = vcmp.eq.s32.totalorder %v4976, 1
  %v4979 = vsel %vm4977, %v4966, 0.0
  %v4980 = vsel %vm4978, %v4967, 0.0
  %v4981 = vsel %vm4977, %v4968, 0.0
  %v4982 = vsel %vm4978, %v4969, 0.0
  %v4983 = vsel %vm4977, %v4970, 0.0
  %v4984 = vsel %vm4978, %v4971, 0.0
  %v4985 = vsel %vm4977, %v4972, 0.0
  %v4986 = vsel %vm4978, %v4973, 0.0
  %v4987 = vpack.c.bf16 %v4980, %v4979
  %v4988 = vpack.c.bf16 %v4982, %v4981
  %v4989 = vpack.c.bf16 %v4984, %v4983
  %v4990 = vpack.c.bf16 %v4986, %v4985
  %4991 = vst.msk [vmem:[#allocation7] sm:$0xff] %vm3914, %v4987
  %4992 = vst.msk [vmem:[#allocation7 + $0x8] sm:$0xff] %vm3914, %v4988
  %4993 = vst.msk [vmem:[#allocation7 + $0x10] sm:$0xff] %vm3914, %v4989
  %4994 = vst.msk [vmem:[#allocation7 + $0x18] sm:$0xff] %vm3914, %v4990
  %v4995 = vld [vmem:[#allocation7] sm:$0xff]
  %v4996 = vld [vmem:[#allocation7 + $0x8] sm:$0xff]
  %v4997 = vld [vmem:[#allocation7 + $0x10] sm:$0xff]
  %v4998 = vld [vmem:[#allocation7 + $0x18] sm:$0xff]
  %5003 = vrot.lane.b32.xlu0 %v4995, 11
  %v5004 = vpop.permute.xlu0 %5003
  %5005 = vrot.lane.b32.xlu0 %v4996, 11
  %v5006 = vpop.permute.xlu0 %5005
  %5007 = vrot.lane.b32.xlu0 %v4997, 11
  %v5008 = vpop.permute.xlu0 %5007
  %5009 = vrot.lane.b32.xlu0 %v4998, 11
  %v5010 = vpop.permute.xlu0 %5009
  %v5011 = vrot.slane %v5004, 4
  %v5012 = vrot.slane %v5006, 4
  %v5013 = vrot.slane %v5008, 4
  %v5014 = vrot.slane %v5010, 4
  %v5015 = vsel %vm3939, %v5011, %v5004
  %v5016 = vsel %vm3939, %v5012, %v5006
  %v5017 = vsel %vm3939, %v5013, %v5008
  %v5018 = vsel %vm3939, %v5014, %v5010
  %5023 = vst.msk [vmem:[#allocation8] sm:$0xff] %vm3949, %v5015
  %5024 = vst.msk [vmem:[#allocation8 + $0x8] sm:$0xff] %vm3949, %v5016
  %5025 = vst.msk [vmem:[#allocation8 + $0x10] sm:$0xff] %vm3949, %v5017
  %5026 = vst.msk [vmem:[#allocation8 + $0x18] sm:$0xff] %vm3949, %v5018
  %v5027 = vld [vmem:[#allocation7] sm:$0xff]
  %v5028 = vld [vmem:[#allocation7 + $0x8] sm:$0xff]
  %v5029 = vld [vmem:[#allocation7 + $0x10] sm:$0xff]
  %v5030 = vld [vmem:[#allocation7 + $0x18] sm:$0xff]
  %5035 = vrot.lane.b32.xlu0 %v5027, 10
  %v5036 = vpop.permute.xlu0 %5035
  %5037 = vrot.lane.b32.xlu0 %v5028, 10
  %v5038 = vpop.permute.xlu0 %5037
  %5039 = vrot.lane.b32.xlu0 %v5029, 10
  %v5040 = vpop.permute.xlu0 %5039
  %5041 = vrot.lane.b32.xlu0 %v5030, 10
  %v5042 = vpop.permute.xlu0 %5041
  %v5043 = vrot.slane %v5036, 4
  %v5044 = vrot.slane %v5038, 4
  %v5045 = vrot.slane %v5040, 4
  %v5046 = vrot.slane %v5042, 4
  %v5047 = vsel %vm3974, %v5043, %v5036
  %v5048 = vsel %vm3974, %v5044, %v5038
  %v5049 = vsel %vm3974, %v5045, %v5040
  %v5050 = vsel %vm3974, %v5046, %v5042
  %5055 = vst.msk [vmem:[#allocation8 + $0x20] sm:$0xff] %vm3984, %v5047
  %5056 = vst.msk [vmem:[#allocation8 + $0x28] sm:$0xff] %vm3984, %v5048
  %5057 = vst.msk [vmem:[#allocation8 + $0x30] sm:$0xff] %vm3984, %v5049
  %5058 = vst.msk [vmem:[#allocation8 + $0x38] sm:$0xff] %vm3984, %v5050
  %v5059 = vld [vmem:[#allocation7] sm:$0xff]
  %v5060 = vld [vmem:[#allocation7 + $0x8] sm:$0xff]
  %v5061 = vld [vmem:[#allocation7 + $0x10] sm:$0xff]
  %v5062 = vld [vmem:[#allocation7 + $0x18] sm:$0xff]
  %5067 = vrot.lane.b32.xlu0 %v5059, 9
  %v5068 = vpop.permute.xlu0 %5067
  %5069 = vrot.lane.b32.xlu0 %v5060, 9
  %v5070 = vpop.permute.xlu0 %5069
  %5071 = vrot.lane.b32.xlu0 %v5061, 9
  %v5072 = vpop.permute.xlu0 %5071
  %5073 = vrot.lane.b32.xlu0 %v5062, 9
  %v5074 = vpop.permute.xlu0 %5073
  %v5075 = vrot.slane %v5068, 4
  %v5076 = vrot.slane %v5070, 4
  %v5077 = vrot.slane %v5072, 4
  %v5078 = vrot.slane %v5074, 4
  %v5079 = vsel %vm4009, %v5075, %v5068
  %v5080 = vsel %vm4009, %v5076, %v5070
  %v5081 = vsel %vm4009, %v5077, %v5072
  %v5082 = vsel %vm4009, %v5078, %v5074
  %5087 = vst.msk [vmem:[#allocation8 + $0x40] sm:$0xff] %vm4019, %v5079
  %5088 = vst.msk [vmem:[#allocation8 + $0x48] sm:$0xff] %vm4019, %v5080
  %5089 = vst.msk [vmem:[#allocation8 + $0x50] sm:$0xff] %vm4019, %v5081
  %5090 = vst.msk [vmem:[#allocation8 + $0x58] sm:$0xff] %vm4019, %v5082
  %v5091 = vld [vmem:[#allocation7] sm:$0xff]
  %v5092 = vld [vmem:[#allocation7 + $0x8] sm:$0xff]
  %v5093 = vld [vmem:[#allocation7 + $0x10] sm:$0xff]
  %v5094 = vld [vmem:[#allocation7 + $0x18] sm:$0xff]
  %5099 = vrot.lane.b32.xlu0 %v5091, 1
  %v5100 = vpop.permute.xlu0 %5099
  %5101 = vrot.lane.b32.xlu0 %v5092, 1
  %v5102 = vpop.permute.xlu0 %5101
  %5103 = vrot.lane.b32.xlu0 %v5093, 1
  %v5104 = vpop.permute.xlu0 %5103
  %5105 = vrot.lane.b32.xlu0 %v5094, 1
  %v5106 = vpop.permute.xlu0 %5105
  %v5107 = vrot.slane %v5100, 4
  %v5108 = vrot.slane %v5102, 4
  %v5109 = vrot.slane %v5104, 4
  %v5110 = vrot.slane %v5106, 4
  %v5111 = vsel %vm499, %v5107, %v5100
  %v5112 = vsel %vm499, %v5108, %v5102
  %v5113 = vsel %vm499, %v5109, %v5104
  %v5114 = vsel %vm499, %v5110, %v5106
  %5119 = vst.msk [vmem:[#allocation8 + $0x60] sm:$0xff] %vm4052, %v5111
  %5120 = vst.msk [vmem:[#allocation8 + $0x68] sm:$0xff] %vm4052, %v5112
  %5121 = vst.msk [vmem:[#allocation8 + $0x70] sm:$0xff] %vm4052, %v5113
  %5122 = vst.msk [vmem:[#allocation8 + $0x78] sm:$0xff] %vm4052, %v5114
  %v5123 = vld [vmem:[#allocation7] sm:$0xff]
  %v5124 = vld [vmem:[#allocation7 + $0x8] sm:$0xff]
  %v5125 = vld [vmem:[#allocation7 + $0x10] sm:$0xff]
  %v5126 = vld [vmem:[#allocation7 + $0x18] sm:$0xff]
  %5127 = vst.msk [vmem:[#allocation8 + $0x80] sm:$0xff] %vm3914, %v5123
  %5128 = vst.msk [vmem:[#allocation8 + $0x88] sm:$0xff] %vm3914, %v5124
  %5129 = vst.msk [vmem:[#allocation8 + $0x90] sm:$0xff] %vm3914, %v5125
  %5130 = vst.msk [vmem:[#allocation8 + $0x98] sm:$0xff] %vm3914, %v5126
  %v5131 = vld [vmem:[#allocation7] sm:$0xff]
  %v5132 = vld [vmem:[#allocation7 + $0x8] sm:$0xff]
  %v5133 = vld [vmem:[#allocation7 + $0x10] sm:$0xff]
  %v5134 = vld [vmem:[#allocation7 + $0x18] sm:$0xff]
  %5139 = vrot.lane.b32.xlu0 %v5131, 127
  %v5140 = vpop.permute.xlu0 %5139
  %5141 = vrot.lane.b32.xlu0 %v5132, 127
  %v5142 = vpop.permute.xlu0 %5141
  %5143 = vrot.lane.b32.xlu0 %v5133, 127
  %v5144 = vpop.permute.xlu0 %5143
  %5145 = vrot.lane.b32.xlu0 %v5134, 127
  %v5146 = vpop.permute.xlu0 %5145
  %v5147 = vrot.slane %v5140, 4
  %v5148 = vrot.slane %v5142, 4
  %v5149 = vrot.slane %v5144, 4
  %v5150 = vrot.slane %v5146, 4
  %v5151 = vsel %vm567, %v5140, %v5147
  %v5152 = vsel %vm567, %v5142, %v5148
  %v5153 = vsel %vm567, %v5144, %v5149
  %v5154 = vsel %vm567, %v5146, %v5150
  %5159 = vst.msk [vmem:[#allocation8 + $0xa0] sm:$0xff] %vm4094, %v5151
  %5160 = vst.msk [vmem:[#allocation8 + $0xa8] sm:$0xff] %vm4094, %v5152
  %5161 = vst.msk [vmem:[#allocation8 + $0xb0] sm:$0xff] %vm4094, %v5153
  %5162 = vst.msk [vmem:[#allocation8 + $0xb8] sm:$0xff] %vm4094, %v5154
  %v5163 = vld [vmem:[#allocation7] sm:$0xff]
  %v5164 = vld [vmem:[#allocation7 + $0x8] sm:$0xff]
  %v5165 = vld [vmem:[#allocation7 + $0x10] sm:$0xff]
  %v5166 = vld [vmem:[#allocation7 + $0x18] sm:$0xff]
  %5171 = vrot.lane.b32.xlu0 %v5163, 119
  %v5172 = vpop.permute.xlu0 %5171
  %5173 = vrot.lane.b32.xlu0 %v5164, 119
  %v5174 = vpop.permute.xlu0 %5173
  %5175 = vrot.lane.b32.xlu0 %v5165, 119
  %v5176 = vpop.permute.xlu0 %5175
  %5177 = vrot.lane.b32.xlu0 %v5166, 119
  %v5178 = vpop.permute.xlu0 %5177
  %v5179 = vrot.slane %v5172, 4
  %v5180 = vrot.slane %v5174, 4
  %v5181 = vrot.slane %v5176, 4
  %v5182 = vrot.slane %v5178, 4
  %v5183 = vsel %vm4119, %v5172, %v5179
  %v5184 = vsel %vm4119, %v5174, %v5180
  %v5185 = vsel %vm4119, %v5176, %v5181
  %v5186 = vsel %vm4119, %v5178, %v5182
  %5191 = vst.msk [vmem:[#allocation8 + $0xc0] sm:$0xff] %vm4129, %v5183
  %5192 = vst.msk [vmem:[#allocation8 + $0xc8] sm:$0xff] %vm4129, %v5184
  %5193 = vst.msk [vmem:[#allocation8 + $0xd0] sm:$0xff] %vm4129, %v5185
  %5194 = vst.msk [vmem:[#allocation8 + $0xd8] sm:$0xff] %vm4129, %v5186
  %v5195 = vld [vmem:[#allocation7] sm:$0xff]
  %v5196 = vld [vmem:[#allocation7 + $0x8] sm:$0xff]
  %v5197 = vld [vmem:[#allocation7 + $0x10] sm:$0xff]
  %v5198 = vld [vmem:[#allocation7 + $0x18] sm:$0xff]
  %5203 = vrot.lane.b32.xlu0 %v5195, 118
  %v5204 = vpop.permute.xlu0 %5203
  %5205 = vrot.lane.b32.xlu0 %v5196, 118
  %v5206 = vpop.permute.xlu0 %5205
  %5207 = vrot.lane.b32.xlu0 %v5197, 118
  %v5208 = vpop.permute.xlu0 %5207
  %5209 = vrot.lane.b32.xlu0 %v5198, 118
  %v5210 = vpop.permute.xlu0 %5209
  %v5211 = vrot.slane %v5204, 4
  %v5212 = vrot.slane %v5206, 4
  %v5213 = vrot.slane %v5208, 4
  %v5214 = vrot.slane %v5210, 4
  %v5215 = vsel %vm4154, %v5204, %v5211
  %v5216 = vsel %vm4154, %v5206, %v5212
  %v5217 = vsel %vm4154, %v5208, %v5213
  %v5218 = vsel %vm4154, %v5210, %v5214
  %5223 = vst.msk [vmem:[#allocation8 + $0xe0] sm:$0xff] %vm4164, %v5215
  %5224 = vst.msk [vmem:[#allocation8 + $0xe8] sm:$0xff] %vm4164, %v5216
  %5225 = vst.msk [vmem:[#allocation8 + $0xf0] sm:$0xff] %vm4164, %v5217
  %5226 = vst.msk [vmem:[#allocation8 + $0xf8] sm:$0xff] %vm4164, %v5218
  %v5227 = vld [vmem:[#allocation7] sm:$0xff]
  %v5228 = vld [vmem:[#allocation7 + $0x8] sm:$0xff]
  %v5229 = vld [vmem:[#allocation7 + $0x10] sm:$0xff]
  %v5230 = vld [vmem:[#allocation7 + $0x18] sm:$0xff]
  %5235 = vrot.lane.b32.xlu0 %v5227, 117
  %v5236 = vpop.permute.xlu0 %5235
  %5237 = vrot.lane.b32.xlu0 %v5228, 117
  %v5238 = vpop.permute.xlu0 %5237
  %5239 = vrot.lane.b32.xlu0 %v5229, 117
  %v5240 = vpop.permute.xlu0 %5239
  %5241 = vrot.lane.b32.xlu0 %v5230, 117
  %v5242 = vpop.permute.xlu0 %5241
  %v5243 = vrot.slane %v5236, 4
  %v5244 = vrot.slane %v5238, 4
  %v5245 = vrot.slane %v5240, 4
  %v5246 = vrot.slane %v5242, 4
  %v5247 = vsel %vm4189, %v5236, %v5243
  %v5248 = vsel %vm4189, %v5238, %v5244
  %v5249 = vsel %vm4189, %v5240, %v5245
  %v5250 = vsel %vm4189, %v5242, %v5246
  %5255 = vst.msk [vmem:[#allocation8 + $0x100] sm:$0xff] %vm4199, %v5247
  %5256 = vst.msk [vmem:[#allocation8 + $0x108] sm:$0xff] %vm4199, %v5248
  %5257 = vst.msk [vmem:[#allocation8 + $0x110] sm:$0xff] %vm4199, %v5249
  %5258 = vst.msk [vmem:[#allocation8 + $0x118] sm:$0xff] %vm4199, %v5250
  %v5259 = vld [vmem:[#allocation8] sm:$0xff]
  %v5260 = vld [vmem:[#allocation8 + $0x8] sm:$0xff]
  %v5261 = vld [vmem:[#allocation8 + $0x10] sm:$0xff]
  %v5262 = vld [vmem:[#allocation8 + $0x18] sm:$0xff]
  %v5263 = vld [vmem:[#allocation8 + $0x20] sm:$0xff]
  %v5264 = vld [vmem:[#allocation8 + $0x28] sm:$0xff]
  %v5265 = vld [vmem:[#allocation8 + $0x30] sm:$0xff]
  %v5266 = vld [vmem:[#allocation8 + $0x38] sm:$0xff]
  %v5267 = vld [vmem:[#allocation8 + $0x40] sm:$0xff]
  %v5268 = vld [vmem:[#allocation8 + $0x48] sm:$0xff]
  %v5269 = vld [vmem:[#allocation8 + $0x50] sm:$0xff]
  %v5270 = vld [vmem:[#allocation8 + $0x58] sm:$0xff]
  %v5271 = vld [vmem:[#allocation8 + $0x60] sm:$0xff]
  %v5272 = vld [vmem:[#allocation8 + $0x68] sm:$0xff]
  %v5273 = vld [vmem:[#allocation8 + $0x70] sm:$0xff]
  %v5274 = vld [vmem:[#allocation8 + $0x78] sm:$0xff]
  %v5275 = vld [vmem:[#allocation8 + $0x80] sm:$0xff]
  %v5276 = vld [vmem:[#allocation8 + $0x88] sm:$0xff]
  %v5277 = vld [vmem:[#allocation8 + $0x90] sm:$0xff]
  %v5278 = vld [vmem:[#allocation8 + $0x98] sm:$0xff]
  %v5279 = vld [vmem:[#allocation8 + $0xa0] sm:$0xff]
  %v5280 = vld [vmem:[#allocation8 + $0xa8] sm:$0xff]
  %v5281 = vld [vmem:[#allocation8 + $0xb0] sm:$0xff]
  %v5282 = vld [vmem:[#allocation8 + $0xb8] sm:$0xff]
  %v5283 = vld [vmem:[#allocation8 + $0xc0] sm:$0xff]
  %v5284 = vld [vmem:[#allocation8 + $0xc8] sm:$0xff]
  %v5285 = vld [vmem:[#allocation8 + $0xd0] sm:$0xff]
  %v5286 = vld [vmem:[#allocation8 + $0xd8] sm:$0xff]
  %v5287 = vld [vmem:[#allocation8 + $0xe0] sm:$0xff]
  %v5288 = vld [vmem:[#allocation8 + $0xe8] sm:$0xff]
  %v5289 = vld [vmem:[#allocation8 + $0xf0] sm:$0xff]
  %v5290 = vld [vmem:[#allocation8 + $0xf8] sm:$0xff]
  %v5291 = vld [vmem:[#allocation8 + $0x100] sm:$0xff]
  %v5292 = vld [vmem:[#allocation8 + $0x108] sm:$0xff]
  %v5293 = vld [vmem:[#allocation8 + $0x110] sm:$0xff]
  %v5294 = vld [vmem:[#allocation8 + $0x118] sm:$0xff]
  %v5295 = vld [vmem:[#allocation8 + $0x120] sm:$0x11]
  %v5296 = vld [vmem:[%s1 + $0x118] sm:$0xff]
  %v5297 = vld [vmem:[%s1 + $0x120] sm:$0xf]
  %v5298 = vld [vmem:[%s1 + $0x12c] sm:$0xff]
  %v5299 = vld [vmem:[%s1 + $0x134] sm:$0xf]
  %v5300 = vld [vmem:[%s1 + $0x140] sm:$0xff]
  %v5301 = vld [vmem:[%s1 + $0x148] sm:$0xf]
  %v5302 = vld [vmem:[%s1 + $0x154] sm:$0xff]
  %v5303 = vld [vmem:[%s1 + $0x15c] sm:$0xf]
  %v5304 = vld [vmem:[%s1 + $0x168] sm:$0xff]
  %v5305 = vld [vmem:[%s1 + $0x170] sm:$0xf]
  %v5306 = vld [vmem:[%s1 + $0x17c] sm:$0xff]
  %v5307 = vld [vmem:[%s1 + $0x184] sm:$0xf]
  %v5308 = vld [vmem:[%s1 + $0x190] sm:$0xff]
  %v5309 = vld [vmem:[%s1 + $0x198] sm:$0xf]
  %v5310 = vld [vmem:[%s1 + $0x1a4] sm:$0xff]
  %v5311 = vld [vmem:[%s1 + $0x1ac] sm:$0xf]
  %v5328 = vunpack.c.l.b16 %v5296
  %v5329 = vunpack.c.h.b16 %v5296
  %v5330 = vunpack.c.l.b16 %v5297
  %v5331 = vunpack.c.l.b16 %v5298
  %v5332 = vunpack.c.h.b16 %v5298
  %v5333 = vunpack.c.l.b16 %v5299
  %v5334 = vunpack.c.l.b16 %v5300
  %v5335 = vunpack.c.h.b16 %v5300
  %v5336 = vunpack.c.l.b16 %v5301
  %v5337 = vunpack.c.l.b16 %v5302
  %v5338 = vunpack.c.h.b16 %v5302
  %v5339 = vunpack.c.l.b16 %v5303
  %v5340 = vunpack.c.l.b16 %v5304
  %v5341 = vunpack.c.h.b16 %v5304
  %v5342 = vunpack.c.l.b16 %v5305
  %v5343 = vunpack.c.l.b16 %v5306
  %v5344 = vunpack.c.h.b16 %v5306
  %v5345 = vunpack.c.l.b16 %v5307
  %v5346 = vunpack.c.l.b16 %v5308
  %v5347 = vunpack.c.h.b16 %v5308
  %v5348 = vunpack.c.l.b16 %v5309
  %v5349 = vunpack.c.l.b16 %v5310
  %v5350 = vunpack.c.h.b16 %v5310
  %v5351 = vunpack.c.l.b16 %v5311
  %v5352 = vpack.c.b16 %v5331, %v5328
  %v5353 = vpack.c.b16 %v5332, %v5329
  %v5354 = vpack.c.b16 %v5333, %v5330
  %v5355 = vpack.c.b16 %v5337, %v5334
  %v5356 = vpack.c.b16 %v5338, %v5335
  %v5357 = vpack.c.b16 %v5339, %v5336
  %v5358 = vpack.c.b16 %v5343, %v5340
  %v5359 = vpack.c.b16 %v5344, %v5341
  %v5360 = vpack.c.b16 %v5345, %v5342
  %v5361 = vpack.c.b16 %v5349, %v5346
  %v5362 = vpack.c.b16 %v5350, %v5347
  %v5363 = vpack.c.b16 %v5351, %v5348
  %v5409 = vunpack.c.l.b16 %v5259
  %v5410 = vunpack.c.h.b16 %v5259
  %v5411 = vunpack.c.l.b16 %v5260
  %v5412 = vunpack.c.h.b16 %v5260
  %v5413 = vunpack.c.l.b16 %v5261
  %v5414 = vunpack.c.h.b16 %v5261
  %v5415 = vunpack.c.l.b16 %v5262
  %v5416 = vunpack.c.h.b16 %v5262
  %v5417 = vunpack.c.l.b16 %v5263
  %v5418 = vunpack.c.h.b16 %v5263
  %v5419 = vunpack.c.l.b16 %v5264
  %v5420 = vunpack.c.h.b16 %v5264
  %v5421 = vunpack.c.l.b16 %v5265
  %v5422 = vunpack.c.h.b16 %v5265
  %v5423 = vunpack.c.l.b16 %v5266
  %v5424 = vunpack.c.h.b16 %v5266
  %v5425 = vunpack.c.l.b16 %v5267
  %v5426 = vunpack.c.h.b16 %v5267
  %v5427 = vunpack.c.l.b16 %v5268
  %v5428 = vunpack.c.h.b16 %v5268
  %v5429 = vunpack.c.l.b16 %v5269
  %v5430 = vunpack.c.h.b16 %v5269
  %v5431 = vunpack.c.l.b16 %v5270
  %v5432 = vunpack.c.h.b16 %v5270
  %v5433 = vunpack.c.l.b16 %v5271
  %v5434 = vunpack.c.h.b16 %v5271
  %v5435 = vunpack.c.l.b16 %v5272
  %v5436 = vunpack.c.h.b16 %v5272
  %v5437 = vunpack.c.l.b16 %v5273
  %v5438 = vunpack.c.h.b16 %v5273
  %v5439 = vunpack.c.l.b16 %v5274
  %v5440 = vunpack.c.h.b16 %v5274
  %v5441 = vunpack.c.l.b16 %v5275
  %v5442 = vunpack.c.h.b16 %v5275
  %v5443 = vunpack.c.l.b16 %v5276
  %v5444 = vunpack.c.h.b16 %v5276
  %v5445 = vunpack.c.l.b16 %v5277
  %v5446 = vunpack.c.h.b16 %v5277
  %v5447 = vunpack.c.l.b16 %v5278
  %v5448 = vunpack.c.h.b16 %v5278
  %v5449 = vunpack.c.l.b16 %v5279
  %v5450 = vunpack.c.h.b16 %v5279
  %v5451 = vunpack.c.l.b16 %v5280
  %v5452 = vunpack.c.h.b16 %v5280
  %v5453 = vunpack.c.l.b16 %v5281
  %v5454 = vunpack.c.h.b16 %v5281
  %v5455 = vunpack.c.l.b16 %v5282
  %v5456 = vunpack.c.h.b16 %v5282
  %v5457 = vunpack.c.l.b16 %v5283
  %v5458 = vunpack.c.h.b16 %v5283
  %v5459 = vunpack.c.l.b16 %v5284
  %v5460 = vunpack.c.h.b16 %v5284
  %v5461 = vunpack.c.l.b16 %v5285
  %v5462 = vunpack.c.h.b16 %v5285
  %v5463 = vunpack.c.l.b16 %v5286
  %v5464 = vunpack.c.h.b16 %v5286
  %v5465 = vunpack.c.l.b16 %v5287
  %v5466 = vunpack.c.h.b16 %v5287
  %v5467 = vunpack.c.l.b16 %v5288
  %v5468 = vunpack.c.h.b16 %v5288
  %v5469 = vunpack.c.l.b16 %v5289
  %v5470 = vunpack.c.h.b16 %v5289
  %v5471 = vunpack.c.l.b16 %v5290
  %v5472 = vunpack.c.h.b16 %v5290
  %v5473 = vunpack.c.l.b16 %v5291
  %v5474 = vunpack.c.h.b16 %v5291
  %v5475 = vunpack.c.l.b16 %v5292
  %v5476 = vunpack.c.h.b16 %v5292
  %v5477 = vunpack.c.l.b16 %v5293
  %v5478 = vunpack.c.h.b16 %v5293
  %v5479 = vunpack.c.l.b16 %v5294
  %v5480 = vunpack.c.h.b16 %v5294
  %v5481 = vunpack.c.l.b16 %v5295
  %v5482 = vunpack.c.h.b16 %v5295
  %v5483 = vpack.c.b16 %v5411, %v5409
  %v5484 = vpack.c.b16 %v5412, %v5410
  %v5485 = vpack.c.b16 %v5415, %v5413
  %v5486 = vpack.c.b16 %v5416, %v5414
  %v5487 = vpack.c.b16 %v5419, %v5417
  %v5488 = vpack.c.b16 %v5420, %v5418
  %v5489 = vpack.c.b16 %v5423, %v5421
  %v5490 = vpack.c.b16 %v5424, %v5422
  %v5491 = vpack.c.b16 %v5427, %v5425
  %v5492 = vpack.c.b16 %v5428, %v5426
  %v5493 = vpack.c.b16 %v5431, %v5429
  %v5494 = vpack.c.b16 %v5432, %v5430
  %v5495 = vpack.c.b16 %v5435, %v5433
  %v5496 = vpack.c.b16 %v5436, %v5434
  %v5497 = vpack.c.b16 %v5439, %v5437
  %v5498 = vpack.c.b16 %v5440, %v5438
  %v5499 = vpack.c.b16 %v5443, %v5441
  %v5500 = vpack.c.b16 %v5444, %v5442
  %v5501 = vpack.c.b16 %v5447, %v5445
  %v5502 = vpack.c.b16 %v5448, %v5446
  %v5503 = vpack.c.b16 %v5451, %v5449
  %v5504 = vpack.c.b16 %v5452, %v5450
  %v5505 = vpack.c.b16 %v5455, %v5453
  %v5506 = vpack.c.b16 %v5456, %v5454
  %v5507 = vpack.c.b16 %v5459, %v5457
  %v5508 = vpack.c.b16 %v5460, %v5458
  %v5509 = vpack.c.b16 %v5463, %v5461
  %v5510 = vpack.c.b16 %v5464, %v5462
  %v5511 = vpack.c.b16 %v5467, %v5465
  %v5512 = vpack.c.b16 %v5468, %v5466
  %v5513 = vpack.c.b16 %v5471, %v5469
  %v5514 = vpack.c.b16 %v5472, %v5470
  %v5515 = vpack.c.b16 %v5475, %v5473
  %v5516 = vpack.c.b16 %v5476, %v5474
  %v5517 = vpack.c.b16 %v5479, %v5477
  %v5518 = vpack.c.b16 %v5480, %v5478
  %v5519 = vpack.c.b16 %v5481, %v5481
  %v5520 = vpack.c.b16 %v5482, %v5482
  %v5558 = vsel %vm4837, %v5354, 0
  %v5561 = vsel %vm4837, %v5357, 0
  %v5564 = vsel %vm4837, %v5360, 0
  %v5567 = vsel %vm4837, %v5363, 0
  %v5570 = vand.u32 %v5519, %v1112
  %v5573 = vand.u32 %v5520, %v1112
  %5575 = vmatpush.bf16.msra.mxu0 %v5497
  %5576 = vmatpush.bf16.msra.mxu0 %v5495
  %5577 = vmatpush.bf16.msra.mxu0 %v5493
  %5578 = vmatpush.bf16.msra.mxu0 %v5491
  %5579 = vmatpush.bf16.msra.mxu0 %v5489
  %5580 = vmatpush.bf16.msra.mxu0 %v5487
  %5581 = vmatpush.bf16.msra.mxu0 %v5485
  %5582 = vmatpush.bf16.msra.mxu0 %v5483
  %5583 = vmatmul.bf16.gmra.mxu0 %v5352
  %v5584 = vpop.f32.mrf.mxu0
  %v5585 = vadd.f32 0.0, %v5584
  %v5586 = vpop.f32.mrf.mxu0
  %v5587 = vadd.f32 0.0, %v5586
  %5588 = vmatmul.bf16.gmra.mxu0 %v5355
  %v5589 = vpop.f32.mrf.mxu0
  %v5590 = vadd.f32 0.0, %v5589
  %v5591 = vpop.f32.mrf.mxu0
  %v5592 = vadd.f32 0.0, %v5591
  %5593 = vmatmul.bf16.gmra.mxu0 %v5358
  %v5594 = vpop.f32.mrf.mxu0
  %v5595 = vadd.f32 0.0, %v5594
  %v5596 = vpop.f32.mrf.mxu0
  %v5597 = vadd.f32 0.0, %v5596
  %5598 = vmatmul.bf16.gmra.mxu0 %v5361
  %v5599 = vpop.f32.mrf.mxu0
  %v5600 = vadd.f32 0.0, %v5599
  %v5601 = vpop.f32.mrf.mxu0
  %v5602 = vadd.f32 0.0, %v5601
  %5603 = vdwg.mxu0
  %5604 = vmatpush.bf16.msra.mxu0 %v5513
  %5605 = vmatpush.bf16.msra.mxu0 %v5511
  %5606 = vmatpush.bf16.msra.mxu0 %v5509
  %5607 = vmatpush.bf16.msra.mxu0 %v5507
  %5608 = vmatpush.bf16.msra.mxu0 %v5505
  %5609 = vmatpush.bf16.msra.mxu0 %v5503
  %5610 = vmatpush.bf16.msra.mxu0 %v5501
  %5611 = vmatpush.bf16.msra.mxu0 %v5499
  %5612 = vmatmul.bf16.gmra.mxu0 %v5353
  %v5613 = vpop.f32.mrf.mxu0
  %v5614 = vadd.f32 %v5585, %v5613
  %v5615 = vpop.f32.mrf.mxu0
  %v5616 = vadd.f32 %v5587, %v5615
  %5617 = vmatmul.bf16.gmra.mxu0 %v5356
  %v5618 = vpop.f32.mrf.mxu0
  %v5619 = vadd.f32 %v5590, %v5618
  %v5620 = vpop.f32.mrf.mxu0
  %v5621 = vadd.f32 %v5592, %v5620
  %5622 = vmatmul.bf16.gmra.mxu0 %v5359
  %v5623 = vpop.f32.mrf.mxu0
  %v5624 = vadd.f32 %v5595, %v5623
  %v5625 = vpop.f32.mrf.mxu0
  %v5626 = vadd.f32 %v5597, %v5625
  %5627 = vmatmul.bf16.gmra.mxu0 %v5362
  %v5628 = vpop.f32.mrf.mxu0
  %v5629 = vadd.f32 %v5600, %v5628
  %v5630 = vpop.f32.mrf.mxu0
  %v5631 = vadd.f32 %v5602, %v5630
  %5632 = vdwg.mxu0
  %5633 = vmatpush.bf16.msra.mxu0 0
  %5634 = vmatpush.bf16.msra.mxu0 0
  %5635 = vmatpush.bf16.msra.mxu0 0
  %5636 = vmatpush.bf16.msra.mxu0 0
  %5637 = vmatpush.bf16.msra.mxu0 0
  %5638 = vmatpush.bf16.msra.mxu0 %v5570
  %5639 = vmatpush.bf16.msra.mxu0 %v5517
  %5640 = vmatpush.bf16.msra.mxu0 %v5515
  %5641 = vmatmul.bf16.gmra.mxu0 %v5558
  %v5642 = vpop.f32.mrf.mxu0
  %v5643 = vadd.f32 %v5614, %v5642
  %v5644 = vpop.f32.mrf.mxu0
  %v5645 = vadd.f32 %v5616, %v5644
  %5646 = vmatmul.bf16.gmra.mxu0 %v5561
  %v5647 = vpop.f32.mrf.mxu0
  %v5648 = vadd.f32 %v5619, %v5647
  %v5649 = vpop.f32.mrf.mxu0
  %v5650 = vadd.f32 %v5621, %v5649
  %5651 = vmatmul.bf16.gmra.mxu0 %v5564
  %v5652 = vpop.f32.mrf.mxu0
  %v5653 = vadd.f32 %v5624, %v5652
  %v5654 = vpop.f32.mrf.mxu0
  %v5655 = vadd.f32 %v5626, %v5654
  %5656 = vmatmul.bf16.gmra.mxu0 %v5567
  %v5657 = vpop.f32.mrf.mxu0
  %v5658 = vadd.f32 %v5629, %v5657
  %v5659 = vpop.f32.mrf.mxu0
  %v5660 = vadd.f32 %v5631, %v5659
  %5661 = vdwg.mxu0
  %5662 = vmatpush.bf16.msra.mxu0 %v5498
  %5663 = vmatpush.bf16.msra.mxu0 %v5496
  %5664 = vmatpush.bf16.msra.mxu0 %v5494
  %5665 = vmatpush.bf16.msra.mxu0 %v5492
  %5666 = vmatpush.bf16.msra.mxu0 %v5490
  %5667 = vmatpush.bf16.msra.mxu0 %v5488
  %5668 = vmatpush.bf16.msra.mxu0 %v5486
  %5669 = vmatpush.bf16.msra.mxu0 %v5484
  %5670 = vmatmul.bf16.gmra.mxu0 %v5352
  %v5671 = vpop.f32.mrf.mxu0
  %v5672 = vadd.f32 0.0, %v5671
  %v5673 = vpop.f32.mrf.mxu0
  %v5674 = vadd.f32 0.0, %v5673
  %5675 = vmatmul.bf16.gmra.mxu0 %v5355
  %v5676 = vpop.f32.mrf.mxu0
  %v5677 = vadd.f32 0.0, %v5676
  %v5678 = vpop.f32.mrf.mxu0
  %v5679 = vadd.f32 0.0, %v5678
  %5680 = vmatmul.bf16.gmra.mxu0 %v5358
  %v5681 = vpop.f32.mrf.mxu0
  %v5682 = vadd.f32 0.0, %v5681
  %v5683 = vpop.f32.mrf.mxu0
  %v5684 = vadd.f32 0.0, %v5683
  %5685 = vmatmul.bf16.gmra.mxu0 %v5361
  %v5686 = vpop.f32.mrf.mxu0
  %v5687 = vadd.f32 0.0, %v5686
  %v5688 = vpop.f32.mrf.mxu0
  %v5689 = vadd.f32 0.0, %v5688
  %5690 = vdwg.mxu0
  %5691 = vmatpush.bf16.msra.mxu0 %v5514
  %5692 = vmatpush.bf16.msra.mxu0 %v5512
  %5693 = vmatpush.bf16.msra.mxu0 %v5510
  %5694 = vmatpush.bf16.msra.mxu0 %v5508
  %5695 = vmatpush.bf16.msra.mxu0 %v5506
  %5696 = vmatpush.bf16.msra.mxu0 %v5504
  %5697 = vmatpush.bf16.msra.mxu0 %v5502
  %5698 = vmatpush.bf16.msra.mxu0 %v5500
  %5699 = vmatmul.bf16.gmra.mxu0 %v5353
  %v5700 = vpop.f32.mrf.mxu0
  %v5701 = vadd.f32 %v5672, %v5700
  %v5702 = vpop.f32.mrf.mxu0
  %v5703 = vadd.f32 %v5674, %v5702
  %5704 = vmatmul.bf16.gmra.mxu0 %v5356
  %v5705 = vpop.f32.mrf.mxu0
  %v5706 = vadd.f32 %v5677, %v5705
  %v5707 = vpop.f32.mrf.mxu0
  %v5708 = vadd.f32 %v5679, %v5707
  %5709 = vmatmul.bf16.gmra.mxu0 %v5359
  %v5710 = vpop.f32.mrf.mxu0
  %v5711 = vadd.f32 %v5682, %v5710
  %v5712 = vpop.f32.mrf.mxu0
  %v5713 = vadd.f32 %v5684, %v5712
  %5714 = vmatmul.bf16.gmra.mxu0 %v5362
  %v5715 = vpop.f32.mrf.mxu0
  %v5716 = vadd.f32 %v5687, %v5715
  %v5717 = vpop.f32.mrf.mxu0
  %v5718 = vadd.f32 %v5689, %v5717
  %5719 = vdwg.mxu0
  %5720 = vmatpush.bf16.msra.mxu0 0
  %5721 = vmatpush.bf16.msra.mxu0 0
  %5722 = vmatpush.bf16.msra.mxu0 0
  %5723 = vmatpush.bf16.msra.mxu0 0
  %5724 = vmatpush.bf16.msra.mxu0 0
  %5725 = vmatpush.bf16.msra.mxu0 %v5573
  %5726 = vmatpush.bf16.msra.mxu0 %v5518
  %5727 = vmatpush.bf16.msra.mxu0 %v5516
  %5728 = vmatmul.bf16.gmra.mxu0 %v5558
  %v5729 = vpop.f32.mrf.mxu0
  %v5730 = vadd.f32 %v5701, %v5729
  %v5731 = vpop.f32.mrf.mxu0
  %v5732 = vadd.f32 %v5703, %v5731
  %5733 = vmatmul.bf16.gmra.mxu0 %v5561
  %v5734 = vpop.f32.mrf.mxu0
  %v5735 = vadd.f32 %v5706, %v5734
  %v5736 = vpop.f32.mrf.mxu0
  %v5737 = vadd.f32 %v5708, %v5736
  %5738 = vmatmul.bf16.gmra.mxu0 %v5564
  %v5739 = vpop.f32.mrf.mxu0
  %v5740 = vadd.f32 %v5711, %v5739
  %v5741 = vpop.f32.mrf.mxu0
  %v5742 = vadd.f32 %v5713, %v5741
  %5743 = vmatmul.bf16.gmra.mxu0 %v5567
  %v5744 = vpop.f32.mrf.mxu0
  %v5745 = vadd.f32 %v5716, %v5744
  %v5746 = vpop.f32.mrf.mxu0
  %v5747 = vadd.f32 %v5718, %v5746
  %5748 = vdwg.mxu0
  %v5749 = vld [vmem:[%s3885] ss:$8 sm:$0x3]
  %vm5750 = vcmp.gt.f32.partialorder %v5749, 0.0
  %v5751 = vsel %vm5750, 1, 0
  %v5752 = vperm.slane %v5751, 0
  %v5753 = vperm.slane %v5751, 1
  %vm5754 = vcmp.eq.s32.totalorder %v5752, 1
  %vm5755 = vcmp.eq.s32.totalorder %v5753, 1
  %v5756 = vsel %vm5754, %v5643, 0.0
  %v5757 = vsel %vm5755, %v5730, 0.0
  %v5758 = vsel %vm5754, %v5645, 0.0
  %v5759 = vsel %vm5755, %v5732, 0.0
  %v5760 = vsel %vm5754, %v5648, 0.0
  %v5761 = vsel %vm5755, %v5735, 0.0
  %v5762 = vsel %vm5754, %v5650, 0.0
  %v5763 = vsel %vm5755, %v5737, 0.0
  %v5764 = vsel %vm5754, %v5653, 0.0
  %v5765 = vsel %vm5755, %v5740, 0.0
  %v5766 = vsel %vm5754, %v5655, 0.0
  %v5767 = vsel %vm5755, %v5742, 0.0
  %v5768 = vsel %vm5754, %v5658, 0.0
  %v5769 = vsel %vm5755, %v5745, 0.0
  %v5770 = vsel %vm5754, %v5660, 0.0
  %v5771 = vsel %vm5755, %v5747, 0.0
  %v5772 = vpack.c.bf16 %v5757, %v5756
  %v5773 = vpack.c.bf16 %v5759, %v5758
  %v5774 = vpack.c.bf16 %v5761, %v5760
  %v5775 = vpack.c.bf16 %v5763, %v5762
  %v5776 = vpack.c.bf16 %v5765, %v5764
  %v5777 = vpack.c.bf16 %v5767, %v5766
  %v5778 = vpack.c.bf16 %v5769, %v5768
  %v5779 = vpack.c.bf16 %v5771, %v5770
  %v5780 = vld [vmem:[%s4] sm:$0xf]
  %v5781 = vld [vmem:[%s4 + $0x4] sm:$0xf]
  %v5782 = vld [vmem:[%s4 + $0x8] sm:$0xf]
  %v5783 = vld [vmem:[%s4 + $0xc] sm:$0xf]
  %v5784 = vld [vmem:[%s4 + $0x10] sm:$0xf]
  %v5785 = vld [vmem:[%s4 + $0x14] sm:$0xf]
  %v5786 = vld [vmem:[%s4 + $0x18] sm:$0xf]
  %v5787 = vld [vmem:[%s4 + $0x1c] sm:$0xf]
  %v5788 = vld [vmem:[%s4 + $0x20] sm:$0xf]
  %v5789 = vld [vmem:[%s4 + $0x24] sm:$0xf]
  %v5790 = vld [vmem:[%s4 + $0x28] sm:$0xf]
  %v5791 = vld [vmem:[%s4 + $0x2c] sm:$0xf]
  %v5792 = vld [vmem:[%s4 + $0x30] sm:$0x3]
  %v5801 = vunpack.c.l.b16 %v5772
  %v5802 = vunpack.c.l.b16 %v5773
  %v5803 = vunpack.c.l.b16 %v5774
  %v5804 = vunpack.c.l.b16 %v5775
  %v5805 = vunpack.c.l.b16 %v5776
  %v5806 = vunpack.c.l.b16 %v5777
  %v5807 = vunpack.c.l.b16 %v5778
  %v5808 = vunpack.c.l.b16 %v5779
  %v5809 = vpack.c.b16 %v5802, %v5801
  %v5810 = vpack.c.b16 %v5804, %v5803
  %v5811 = vpack.c.b16 %v5806, %v5805
  %v5812 = vpack.c.b16 %v5808, %v5807
  %v5826 = vunpack.c.l.b16 %v5780
  %v5827 = vunpack.c.l.b16 %v5781
  %v5828 = vunpack.c.l.b16 %v5782
  %v5829 = vunpack.c.l.b16 %v5783
  %v5830 = vunpack.c.l.b16 %v5784
  %v5831 = vunpack.c.l.b16 %v5785
  %v5832 = vunpack.c.l.b16 %v5786
  %v5833 = vunpack.c.l.b16 %v5787
  %v5834 = vunpack.c.l.b16 %v5788
  %v5835 = vunpack.c.l.b16 %v5789
  %v5836 = vunpack.c.l.b16 %v5790
  %v5837 = vunpack.c.l.b16 %v5791
  %v5838 = vunpack.c.l.b16 %v5792
  %v5839 = vpack.c.b16 %v5827, %v5826
  %v5840 = vpack.c.b16 %v5829, %v5828
  %v5841 = vpack.c.b16 %v5831, %v5830
  %v5842 = vpack.c.b16 %v5833, %v5832
  %v5843 = vpack.c.b16 %v5835, %v5834
  %v5844 = vpack.c.b16 %v5837, %v5836
  %v5845 = vpack.c.b16 %v5838, %v5838
  %v5853 = vsel %vm3880, %v5809, 0
  %v5856 = vsel %vm3880, %v5810, 0
  %v5859 = vsel %vm3880, %v5811, 0
  %v5862 = vsel %vm3880, %v5812, 0
  %v5865 = vsel %vm3691, %v5845, 0
  %5867 = vmatpush.bf16.msra.mxu0 0
  %5868 = vmatpush.bf16.msra.mxu0 %v5865
  %5869 = vmatpush.bf16.msra.mxu0 %v5844
  %5870 = vmatpush.bf16.msra.mxu0 %v5843
  %5871 = vmatpush.bf16.msra.mxu0 %v5842
  %5872 = vmatpush.bf16.msra.mxu0 %v5841
  %5873 = vmatpush.bf16.msra.mxu0 %v5840
  %5874 = vmatpush.bf16.msra.mxu0 %v5839
  %5875 = vmatmul.bf16.gmra.mxu0 %v5853
  %v5876 = vpop.f32.mrf.mxu0
  %v5877 = vadd.f32 0.0, %v5876
  %v5878 = vpop.f32.mrf.mxu0
  %v5879 = vadd.f32 0.0, %v5878
  %5880 = vmatmul.bf16.gmra.mxu0 %v5856
  %v5881 = vpop.f32.mrf.mxu0
  %v5882 = vadd.f32 0.0, %v5881
  %v5883 = vpop.f32.mrf.mxu0
  %v5884 = vadd.f32 0.0, %v5883
  %5885 = vmatmul.bf16.gmra.mxu0 %v5859
  %v5886 = vpop.f32.mrf.mxu0
  %v5887 = vadd.f32 0.0, %v5886
  %v5888 = vpop.f32.mrf.mxu0
  %v5889 = vadd.f32 0.0, %v5888
  %5890 = vmatmul.bf16.gmra.mxu0 %v5862
  %v5891 = vpop.f32.mrf.mxu0
  %v5892 = vadd.f32 0.0, %v5891
  %v5893 = vpop.f32.mrf.mxu0
  %v5894 = vadd.f32 0.0, %v5893
  %5895 = vdwg.mxu0
  %v5896 = vunpack.c.h.b16 %v5772
  %v5897 = vunpack.c.h.b16 %v5773
  %v5898 = vunpack.c.h.b16 %v5774
  %v5899 = vunpack.c.h.b16 %v5775
  %v5900 = vunpack.c.h.b16 %v5776
  %v5901 = vunpack.c.h.b16 %v5777
  %v5902 = vunpack.c.h.b16 %v5778
  %v5903 = vunpack.c.h.b16 %v5779
  %v5904 = vpack.c.b16 %v5897, %v5896
  %v5905 = vpack.c.b16 %v5899, %v5898
  %v5906 = vpack.c.b16 %v5901, %v5900
  %v5907 = vpack.c.b16 %v5903, %v5902
  %5908 = vrot.lane.b32.xlu0 %v5809, 28
  %v5909 = vpop.permute.xlu0 %5908
  %5910 = vrot.lane.b32.xlu0 %v5904, 28
  %v5911 = vpop.permute.xlu0 %5910
  %5912 = vrot.lane.b32.xlu0 %v5810, 28
  %v5913 = vpop.permute.xlu0 %5912
  %5914 = vrot.lane.b32.xlu0 %v5905, 28
  %v5915 = vpop.permute.xlu0 %5914
  %5916 = vrot.lane.b32.xlu0 %v5811, 28
  %v5917 = vpop.permute.xlu0 %5916
  %5918 = vrot.lane.b32.xlu0 %v5906, 28
  %v5919 = vpop.permute.xlu0 %5918
  %5920 = vrot.lane.b32.xlu0 %v5812, 28
  %v5921 = vpop.permute.xlu0 %5920
  %5922 = vrot.lane.b32.xlu0 %v5907, 28
  %v5923 = vpop.permute.xlu0 %5922
  %vm5924 = vcmask 228352
  %v5925 = vsel %vm5924, %v5909, %v5911
  %v5926 = vsel %vm5924, %v5913, %v5915
  %v5927 = vsel %vm5924, %v5917, %v5919
  %v5928 = vsel %vm5924, %v5921, %v5923
  %v5930 = vsel %vm3880, %v5925, 0
  %v5933 = vsel %vm3880, %v5926, 0
  %v5936 = vsel %vm3880, %v5927, 0
  %v5939 = vsel %vm3880, %v5928, 0
  %5941 = vmatpush.bf16.msra.mxu0 0
  %5942 = vmatpush.bf16.msra.mxu0 %v5865
  %5943 = vmatpush.bf16.msra.mxu0 %v5844
  %5944 = vmatpush.bf16.msra.mxu0 %v5843
  %5945 = vmatpush.bf16.msra.mxu0 %v5842
  %5946 = vmatpush.bf16.msra.mxu0 %v5841
  %5947 = vmatpush.bf16.msra.mxu0 %v5840
  %5948 = vmatpush.bf16.msra.mxu0 %v5839
  %5949 = vmatmul.bf16.gmra.mxu0 %v5930
  %v5950 = vpop.f32.mrf.mxu0
  %v5951 = vadd.f32 0.0, %v5950
  %v5952 = vpop.f32.mrf.mxu0
  %v5953 = vadd.f32 0.0, %v5952
  %5954 = vmatmul.bf16.gmra.mxu0 %v5933
  %v5955 = vpop.f32.mrf.mxu0
  %v5956 = vadd.f32 0.0, %v5955
  %v5957 = vpop.f32.mrf.mxu0
  %v5958 = vadd.f32 0.0, %v5957
  %5959 = vmatmul.bf16.gmra.mxu0 %v5936
  %v5960 = vpop.f32.mrf.mxu0
  %v5961 = vadd.f32 0.0, %v5960
  %v5962 = vpop.f32.mrf.mxu0
  %v5963 = vadd.f32 0.0, %v5962
  %5964 = vmatmul.bf16.gmra.mxu0 %v5939
  %v5965 = vpop.f32.mrf.mxu0
  %v5966 = vadd.f32 0.0, %v5965
  %v5967 = vpop.f32.mrf.mxu0
  %v5968 = vadd.f32 0.0, %v5967
  %5969 = vdwg.mxu0
  %5978 = vrot.lane.b32.xlu0 %v5951, 36
  %v5979 = vpop.permute.xlu0 %5978
  %5980 = vrot.lane.b32.xlu0 %v5953, 36
  %v5981 = vpop.permute.xlu0 %5980
  %5982 = vrot.lane.b32.xlu0 %v5956, 36
  %v5983 = vpop.permute.xlu0 %5982
  %5984 = vrot.lane.b32.xlu0 %v5958, 36
  %v5985 = vpop.permute.xlu0 %5984
  %5986 = vrot.lane.b32.xlu0 %v5961, 36
  %v5987 = vpop.permute.xlu0 %5986
  %5988 = vrot.lane.b32.xlu0 %v5963, 36
  %v5989 = vpop.permute.xlu0 %5988
  %5990 = vrot.lane.b32.xlu0 %v5966, 36
  %v5991 = vpop.permute.xlu0 %5990
  %5992 = vrot.lane.b32.xlu0 %v5968, 36
  %v5993 = vpop.permute.xlu0 %5992
  %vm6002 = vcmask 293888
  %v6003 = vsel %vm6002, %v5877, %v5979
  %v6004 = vsel %vm6002, %v5879, %v5981
  %v6005 = vsel %vm6002, %v5882, %v5983
  %v6006 = vsel %vm6002, %v5884, %v5985
  %v6007 = vsel %vm6002, %v5887, %v5987
  %v6008 = vsel %vm6002, %v5889, %v5989
  %v6009 = vsel %vm6002, %v5892, %v5991
  %v6010 = vsel %vm6002, %v5894, %v5993
  %v6011 = vld [vmem:[%s2 + $0x2] ss:$0 sm:$0xff]
  %vm6012 = vcmp.gt.f32.partialorder %v6011, 0.0
  %v6013 = vmax.f32 %v6003, 0.0
  %v6014 = vmax.f32 %v6004, 0.0
  %v6015 = vmax.f32 %v6005, 0.0
  %v6016 = vmax.f32 %v6006, 0.0
  %v6017 = vmax.f32 %v6007, 0.0
  %v6018 = vmax.f32 %v6008, 0.0
  %v6019 = vmax.f32 %v6009, 0.0
  %v6020 = vmax.f32 %v6010, 0.0
  %v6021 = vsel %vm6012, 1, 0
  %vm6022 = vcmp.eq.s32.totalorder %v6021, 1
  %v6023 = vsel %vm6022, %v6013, 0.0
  %v6024 = vsel %vm6022, %v6014, 0.0
  %v6025 = vsel %vm6022, %v6015, 0.0
  %v6026 = vsel %vm6022, %v6016, 0.0
  %v6027 = vsel %vm6022, %v6017, 0.0
  %v6028 = vsel %vm6022, %v6018, 0.0
  %v6029 = vsel %vm6022, %v6019, 0.0
  %v6030 = vsel %vm6022, %v6020, 0.0
  %v6031 = vpack.c.bf16 %v6023, %v6023
  %v6032 = vpack.c.bf16 %v6024, %v6024
  %v6033 = vpack.c.bf16 %v6025, %v6025
  %v6034 = vpack.c.bf16 %v6026, %v6026
  %v6035 = vpack.c.bf16 %v6027, %v6027
  %v6036 = vpack.c.bf16 %v6028, %v6028
  %v6037 = vpack.c.bf16 %v6029, %v6029
  %v6038 = vpack.c.bf16 %v6030, %v6030
  %vm6039 = vcmask 584704
  %6040 = vst.msk [vmem:[#allocation9] sm:$0xf] %vm6039, %v6031
  %6041 = vst.msk [vmem:[#allocation9 + $0x4] sm:$0xf] %vm6039, %v6032
  %6042 = vst.msk [vmem:[#allocation9 + $0x8] sm:$0xf] %vm6039, %v6033
  %6043 = vst.msk [vmem:[#allocation9 + $0xc] sm:$0xf] %vm6039, %v6034
  %6044 = vst.msk [vmem:[#allocation9 + $0x10] sm:$0xf] %vm6039, %v6035
  %6045 = vst.msk [vmem:[#allocation9 + $0x14] sm:$0xf] %vm6039, %v6036
  %6046 = vst.msk [vmem:[#allocation9 + $0x18] sm:$0xf] %vm6039, %v6037
  %6047 = vst.msk [vmem:[#allocation9 + $0x1c] sm:$0xf] %vm6039, %v6038
  %v6048 = vld [vmem:[#allocation9] sm:$0xf]
  %v6049 = vld [vmem:[#allocation9 + $0x4] sm:$0xf]
  %v6050 = vld [vmem:[#allocation9 + $0x8] sm:$0xf]
  %v6051 = vld [vmem:[#allocation9 + $0xc] sm:$0xf]
  %v6052 = vld [vmem:[#allocation9 + $0x10] sm:$0xf]
  %v6053 = vld [vmem:[#allocation9 + $0x14] sm:$0xf]
  %v6054 = vld [vmem:[#allocation9 + $0x18] sm:$0xf]
  %v6055 = vld [vmem:[#allocation9 + $0x1c] sm:$0xf]
  %6064 = vrot.lane.b32.xlu0 %v6048, 7
  %v6065 = vpop.permute.xlu0 %6064
  %6066 = vrot.lane.b32.xlu0 %v6049, 7
  %v6067 = vpop.permute.xlu0 %6066
  %6068 = vrot.lane.b32.xlu0 %v6050, 7
  %v6069 = vpop.permute.xlu0 %6068
  %6070 = vrot.lane.b32.xlu0 %v6051, 7
  %v6071 = vpop.permute.xlu0 %6070
  %6072 = vrot.lane.b32.xlu0 %v6052, 7
  %v6073 = vpop.permute.xlu0 %6072
  %6074 = vrot.lane.b32.xlu0 %v6053, 7
  %v6075 = vpop.permute.xlu0 %6074
  %6076 = vrot.lane.b32.xlu0 %v6054, 7
  %v6077 = vpop.permute.xlu0 %6076
  %6078 = vrot.lane.b32.xlu0 %v6055, 7
  %v6079 = vpop.permute.xlu0 %6078
  %vm6088 = vcmask 584760
  %6089 = vst.msk [vmem:[#allocation10] sm:$0xf] %vm6088, %v6065
  %6090 = vst.msk [vmem:[#allocation10 + $0x4] sm:$0xf] %vm6088, %v6067
  %6091 = vst.msk [vmem:[#allocation10 + $0x8] sm:$0xf] %vm6088, %v6069
  %6092 = vst.msk [vmem:[#allocation10 + $0xc] sm:$0xf] %vm6088, %v6071
  %6093 = vst.msk [vmem:[#allocation10 + $0x10] sm:$0xf] %vm6088, %v6073
  %6094 = vst.msk [vmem:[#allocation10 + $0x14] sm:$0xf] %vm6088, %v6075
  %6095 = vst.msk [vmem:[#allocation10 + $0x18] sm:$0xf] %vm6088, %v6077
  %6096 = vst.msk [vmem:[#allocation10 + $0x1c] sm:$0xf] %vm6088, %v6079
  %v6097 = vld [vmem:[#allocation9] sm:$0xf]
  %v6098 = vld [vmem:[#allocation9 + $0x4] sm:$0xf]
  %v6099 = vld [vmem:[#allocation9 + $0x8] sm:$0xf]
  %v6100 = vld [vmem:[#allocation9 + $0xc] sm:$0xf]
  %v6101 = vld [vmem:[#allocation9 + $0x10] sm:$0xf]
  %v6102 = vld [vmem:[#allocation9 + $0x14] sm:$0xf]
  %v6103 = vld [vmem:[#allocation9 + $0x18] sm:$0xf]
  %v6104 = vld [vmem:[#allocation9 + $0x1c] sm:$0xf]
  %6113 = vrot.lane.b32.xlu0 %v6097, 6
  %v6114 = vpop.permute.xlu0 %6113
  %6115 = vrot.lane.b32.xlu0 %v6098, 6
  %v6116 = vpop.permute.xlu0 %6115
  %6117 = vrot.lane.b32.xlu0 %v6099, 6
  %v6118 = vpop.permute.xlu0 %6117
  %6119 = vrot.lane.b32.xlu0 %v6100, 6
  %v6120 = vpop.permute.xlu0 %6119
  %6121 = vrot.lane.b32.xlu0 %v6101, 6
  %v6122 = vpop.permute.xlu0 %6121
  %6123 = vrot.lane.b32.xlu0 %v6102, 6
  %v6124 = vpop.permute.xlu0 %6123
  %6125 = vrot.lane.b32.xlu0 %v6103, 6
  %v6126 = vpop.permute.xlu0 %6125
  %6127 = vrot.lane.b32.xlu0 %v6104, 6
  %v6128 = vpop.permute.xlu0 %6127
  %vm6137 = vcmask 584752
  %6138 = vst.msk [vmem:[#allocation10 + $0x20] sm:$0xf] %vm6137, %v6114
  %6139 = vst.msk [vmem:[#allocation10 + $0x24] sm:$0xf] %vm6137, %v6116
  %6140 = vst.msk [vmem:[#allocation10 + $0x28] sm:$0xf] %vm6137, %v6118
  %6141 = vst.msk [vmem:[#allocation10 + $0x2c] sm:$0xf] %vm6137, %v6120
  %6142 = vst.msk [vmem:[#allocation10 + $0x30] sm:$0xf] %vm6137, %v6122
  %6143 = vst.msk [vmem:[#allocation10 + $0x34] sm:$0xf] %vm6137, %v6124
  %6144 = vst.msk [vmem:[#allocation10 + $0x38] sm:$0xf] %vm6137, %v6126
  %6145 = vst.msk [vmem:[#allocation10 + $0x3c] sm:$0xf] %vm6137, %v6128
  %v6146 = vld [vmem:[#allocation9] sm:$0xf]
  %v6147 = vld [vmem:[#allocation9 + $0x4] sm:$0xf]
  %v6148 = vld [vmem:[#allocation9 + $0x8] sm:$0xf]
  %v6149 = vld [vmem:[#allocation9 + $0xc] sm:$0xf]
  %v6150 = vld [vmem:[#allocation9 + $0x10] sm:$0xf]
  %v6151 = vld [vmem:[#allocation9 + $0x14] sm:$0xf]
  %v6152 = vld [vmem:[#allocation9 + $0x18] sm:$0xf]
  %v6153 = vld [vmem:[#allocation9 + $0x1c] sm:$0xf]
  %6162 = vrot.lane.b32.xlu0 %v6146, 5
  %v6163 = vpop.permute.xlu0 %6162
  %6164 = vrot.lane.b32.xlu0 %v6147, 5
  %v6165 = vpop.permute.xlu0 %6164
  %6166 = vrot.lane.b32.xlu0 %v6148, 5
  %v6167 = vpop.permute.xlu0 %6166
  %6168 = vrot.lane.b32.xlu0 %v6149, 5
  %v6169 = vpop.permute.xlu0 %6168
  %6170 = vrot.lane.b32.xlu0 %v6150, 5
  %v6171 = vpop.permute.xlu0 %6170
  %6172 = vrot.lane.b32.xlu0 %v6151, 5
  %v6173 = vpop.permute.xlu0 %6172
  %6174 = vrot.lane.b32.xlu0 %v6152, 5
  %v6175 = vpop.permute.xlu0 %6174
  %6176 = vrot.lane.b32.xlu0 %v6153, 5
  %v6177 = vpop.permute.xlu0 %6176
  %vm6186 = vcmask 584744
  %6187 = vst.msk [vmem:[#allocation10 + $0x40] sm:$0xf] %vm6186, %v6163
  %6188 = vst.msk [vmem:[#allocation10 + $0x44] sm:$0xf] %vm6186, %v6165
  %6189 = vst.msk [vmem:[#allocation10 + $0x48] sm:$0xf] %vm6186, %v6167
  %6190 = vst.msk [vmem:[#allocation10 + $0x4c] sm:$0xf] %vm6186, %v6169
  %6191 = vst.msk [vmem:[#allocation10 + $0x50] sm:$0xf] %vm6186, %v6171
  %6192 = vst.msk [vmem:[#allocation10 + $0x54] sm:$0xf] %vm6186, %v6173
  %6193 = vst.msk [vmem:[#allocation10 + $0x58] sm:$0xf] %vm6186, %v6175
  %6194 = vst.msk [vmem:[#allocation10 + $0x5c] sm:$0xf] %vm6186, %v6177
  %v6195 = vld [vmem:[#allocation9] sm:$0xf]
  %v6196 = vld [vmem:[#allocation9 + $0x4] sm:$0xf]
  %v6197 = vld [vmem:[#allocation9 + $0x8] sm:$0xf]
  %v6198 = vld [vmem:[#allocation9 + $0xc] sm:$0xf]
  %v6199 = vld [vmem:[#allocation9 + $0x10] sm:$0xf]
  %v6200 = vld [vmem:[#allocation9 + $0x14] sm:$0xf]
  %v6201 = vld [vmem:[#allocation9 + $0x18] sm:$0xf]
  %v6202 = vld [vmem:[#allocation9 + $0x1c] sm:$0xf]
  %6211 = vrot.lane.b32.xlu0 %v6195, 1
  %v6212 = vpop.permute.xlu0 %6211
  %6213 = vrot.lane.b32.xlu0 %v6196, 1
  %v6214 = vpop.permute.xlu0 %6213
  %6215 = vrot.lane.b32.xlu0 %v6197, 1
  %v6216 = vpop.permute.xlu0 %6215
  %6217 = vrot.lane.b32.xlu0 %v6198, 1
  %v6218 = vpop.permute.xlu0 %6217
  %6219 = vrot.lane.b32.xlu0 %v6199, 1
  %v6220 = vpop.permute.xlu0 %6219
  %6221 = vrot.lane.b32.xlu0 %v6200, 1
  %v6222 = vpop.permute.xlu0 %6221
  %6223 = vrot.lane.b32.xlu0 %v6201, 1
  %v6224 = vpop.permute.xlu0 %6223
  %6225 = vrot.lane.b32.xlu0 %v6202, 1
  %v6226 = vpop.permute.xlu0 %6225
  %vm6235 = vcmask 584712
  %6236 = vst.msk [vmem:[#allocation10 + $0x60] sm:$0xf] %vm6235, %v6212
  %6237 = vst.msk [vmem:[#allocation10 + $0x64] sm:$0xf] %vm6235, %v6214
  %6238 = vst.msk [vmem:[#allocation10 + $0x68] sm:$0xf] %vm6235, %v6216
  %6239 = vst.msk [vmem:[#allocation10 + $0x6c] sm:$0xf] %vm6235, %v6218
  %6240 = vst.msk [vmem:[#allocation10 + $0x70] sm:$0xf] %vm6235, %v6220
  %6241 = vst.msk [vmem:[#allocation10 + $0x74] sm:$0xf] %vm6235, %v6222
  %6242 = vst.msk [vmem:[#allocation10 + $0x78] sm:$0xf] %vm6235, %v6224
  %6243 = vst.msk [vmem:[#allocation10 + $0x7c] sm:$0xf] %vm6235, %v6226
  %v6244 = vld [vmem:[#allocation9] sm:$0xf]
  %v6245 = vld [vmem:[#allocation9 + $0x4] sm:$0xf]
  %v6246 = vld [vmem:[#allocation9 + $0x8] sm:$0xf]
  %v6247 = vld [vmem:[#allocation9 + $0xc] sm:$0xf]
  %v6248 = vld [vmem:[#allocation9 + $0x10] sm:$0xf]
  %v6249 = vld [vmem:[#allocation9 + $0x14] sm:$0xf]
  %v6250 = vld [vmem:[#allocation9 + $0x18] sm:$0xf]
  %v6251 = vld [vmem:[#allocation9 + $0x1c] sm:$0xf]
  %6252 = vst.msk [vmem:[#allocation10 + $0x80] sm:$0xf] %vm6039, %v6244
  %6253 = vst.msk [vmem:[#allocation10 + $0x84] sm:$0xf] %vm6039, %v6245
  %6254 = vst.msk [vmem:[#allocation10 + $0x88] sm:$0xf] %vm6039, %v6246
  %6255 = vst.msk [vmem:[#allocation10 + $0x8c] sm:$0xf] %vm6039, %v6247
  %6256 = vst.msk [vmem:[#allocation10 + $0x90] sm:$0xf] %vm6039, %v6248
  %6257 = vst.msk [vmem:[#allocation10 + $0x94] sm:$0xf] %vm6039, %v6249
  %6258 = vst.msk [vmem:[#allocation10 + $0x98] sm:$0xf] %vm6039, %v6250
  %6259 = vst.msk [vmem:[#allocation10 + $0x9c] sm:$0xf] %vm6039, %v6251
  %v6260 = vld [vmem:[#allocation9] sm:$0xf]
  %v6261 = vld [vmem:[#allocation9 + $0x4] sm:$0xf]
  %v6262 = vld [vmem:[#allocation9 + $0x8] sm:$0xf]
  %v6263 = vld [vmem:[#allocation9 + $0xc] sm:$0xf]
  %v6264 = vld [vmem:[#allocation9 + $0x10] sm:$0xf]
  %v6265 = vld [vmem:[#allocation9 + $0x14] sm:$0xf]
  %v6266 = vld [vmem:[#allocation9 + $0x18] sm:$0xf]
  %v6267 = vld [vmem:[#allocation9 + $0x1c] sm:$0xf]
  %6276 = vrot.lane.b32.xlu0 %v6260, 127
  %v6277 = vpop.permute.xlu0 %6276
  %6278 = vrot.lane.b32.xlu0 %v6261, 127
  %v6279 = vpop.permute.xlu0 %6278
  %6280 = vrot.lane.b32.xlu0 %v6262, 127
  %v6281 = vpop.permute.xlu0 %6280
  %6282 = vrot.lane.b32.xlu0 %v6263, 127
  %v6283 = vpop.permute.xlu0 %6282
  %6284 = vrot.lane.b32.xlu0 %v6264, 127
  %v6285 = vpop.permute.xlu0 %6284
  %6286 = vrot.lane.b32.xlu0 %v6265, 127
  %v6287 = vpop.permute.xlu0 %6286
  %6288 = vrot.lane.b32.xlu0 %v6266, 127
  %v6289 = vpop.permute.xlu0 %6288
  %6290 = vrot.lane.b32.xlu0 %v6267, 127
  %v6291 = vpop.permute.xlu0 %6290
  %vm6300 = vcmask 576512
  %6301 = vst.msk [vmem:[#allocation10 + $0xa0] sm:$0xf] %vm6300, %v6277
  %6302 = vst.msk [vmem:[#allocation10 + $0xa4] sm:$0xf] %vm6300, %v6279
  %6303 = vst.msk [vmem:[#allocation10 + $0xa8] sm:$0xf] %vm6300, %v6281
  %6304 = vst.msk [vmem:[#allocation10 + $0xac] sm:$0xf] %vm6300, %v6283
  %6305 = vst.msk [vmem:[#allocation10 + $0xb0] sm:$0xf] %vm6300, %v6285
  %6306 = vst.msk [vmem:[#allocation10 + $0xb4] sm:$0xf] %vm6300, %v6287
  %6307 = vst.msk [vmem:[#allocation10 + $0xb8] sm:$0xf] %vm6300, %v6289
  %6308 = vst.msk [vmem:[#allocation10 + $0xbc] sm:$0xf] %vm6300, %v6291
  %v6309 = vld [vmem:[#allocation9] sm:$0xf]
  %v6310 = vld [vmem:[#allocation9 + $0x4] sm:$0xf]
  %v6311 = vld [vmem:[#allocation9 + $0x8] sm:$0xf]
  %v6312 = vld [vmem:[#allocation9 + $0xc] sm:$0xf]
  %v6313 = vld [vmem:[#allocation9 + $0x10] sm:$0xf]
  %v6314 = vld [vmem:[#allocation9 + $0x14] sm:$0xf]
  %v6315 = vld [vmem:[#allocation9 + $0x18] sm:$0xf]
  %v6316 = vld [vmem:[#allocation9 + $0x1c] sm:$0xf]
  %6325 = vrot.lane.b32.xlu0 %v6309, 123
  %v6326 = vpop.permute.xlu0 %6325
  %6327 = vrot.lane.b32.xlu0 %v6310, 123
  %v6328 = vpop.permute.xlu0 %6327
  %6329 = vrot.lane.b32.xlu0 %v6311, 123
  %v6330 = vpop.permute.xlu0 %6329
  %6331 = vrot.lane.b32.xlu0 %v6312, 123
  %v6332 = vpop.permute.xlu0 %6331
  %6333 = vrot.lane.b32.xlu0 %v6313, 123
  %v6334 = vpop.permute.xlu0 %6333
  %6335 = vrot.lane.b32.xlu0 %v6314, 123
  %v6336 = vpop.permute.xlu0 %6335
  %6337 = vrot.lane.b32.xlu0 %v6315, 123
  %v6338 = vpop.permute.xlu0 %6337
  %6339 = vrot.lane.b32.xlu0 %v6316, 123
  %v6340 = vpop.permute.xlu0 %6339
  %vm6349 = vcmask 543744
  %6350 = vst.msk [vmem:[#allocation10 + $0xc0] sm:$0xf] %vm6349, %v6326
  %6351 = vst.msk [vmem:[#allocation10 + $0xc4] sm:$0xf] %vm6349, %v6328
  %6352 = vst.msk [vmem:[#allocation10 + $0xc8] sm:$0xf] %vm6349, %v6330
  %6353 = vst.msk [vmem:[#allocation10 + $0xcc] sm:$0xf] %vm6349, %v6332
  %6354 = vst.msk [vmem:[#allocation10 + $0xd0] sm:$0xf] %vm6349, %v6334
  %6355 = vst.msk [vmem:[#allocation10 + $0xd4] sm:$0xf] %vm6349, %v6336
  %6356 = vst.msk [vmem:[#allocation10 + $0xd8] sm:$0xf] %vm6349, %v6338
  %6357 = vst.msk [vmem:[#allocation10 + $0xdc] sm:$0xf] %vm6349, %v6340
  %v6358 = vld [vmem:[#allocation9] sm:$0xf]
  %v6359 = vld [vmem:[#allocation9 + $0x4] sm:$0xf]
  %v6360 = vld [vmem:[#allocation9 + $0x8] sm:$0xf]
  %v6361 = vld [vmem:[#allocation9 + $0xc] sm:$0xf]
  %v6362 = vld [vmem:[#allocation9 + $0x10] sm:$0xf]
  %v6363 = vld [vmem:[#allocation9 + $0x14] sm:$0xf]
  %v6364 = vld [vmem:[#allocation9 + $0x18] sm:$0xf]
  %v6365 = vld [vmem:[#allocation9 + $0x1c] sm:$0xf]
  %6374 = vrot.lane.b32.xlu0 %v6358, 122
  %v6375 = vpop.permute.xlu0 %6374
  %6376 = vrot.lane.b32.xlu0 %v6359, 122
  %v6377 = vpop.permute.xlu0 %6376
  %6378 = vrot.lane.b32.xlu0 %v6360, 122
  %v6379 = vpop.permute.xlu0 %6378
  %6380 = vrot.lane.b32.xlu0 %v6361, 122
  %v6381 = vpop.permute.xlu0 %6380
  %6382 = vrot.lane.b32.xlu0 %v6362, 122
  %v6383 = vpop.permute.xlu0 %6382
  %6384 = vrot.lane.b32.xlu0 %v6363, 122
  %v6385 = vpop.permute.xlu0 %6384
  %6386 = vrot.lane.b32.xlu0 %v6364, 122
  %v6387 = vpop.permute.xlu0 %6386
  %6388 = vrot.lane.b32.xlu0 %v6365, 122
  %v6389 = vpop.permute.xlu0 %6388
  %vm6398 = vcmask 535552
  %6399 = vst.msk [vmem:[#allocation10 + $0xe0] sm:$0xf] %vm6398, %v6375
  %6400 = vst.msk [vmem:[#allocation10 + $0xe4] sm:$0xf] %vm6398, %v6377
  %6401 = vst.msk [vmem:[#allocation10 + $0xe8] sm:$0xf] %vm6398, %v6379
  %6402 = vst.msk [vmem:[#allocation10 + $0xec] sm:$0xf] %vm6398, %v6381
  %6403 = vst.msk [vmem:[#allocation10 + $0xf0] sm:$0xf] %vm6398, %v6383
  %6404 = vst.msk [vmem:[#allocation10 + $0xf4] sm:$0xf] %vm6398, %v6385
  %6405 = vst.msk [vmem:[#allocation10 + $0xf8] sm:$0xf] %vm6398, %v6387
  %6406 = vst.msk [vmem:[#allocation10 + $0xfc] sm:$0xf] %vm6398, %v6389
  %v6407 = vld [vmem:[#allocation9] sm:$0xf]
  %v6408 = vld [vmem:[#allocation9 + $0x4] sm:$0xf]
  %v6409 = vld [vmem:[#allocation9 + $0x8] sm:$0xf]
  %v6410 = vld [vmem:[#allocation9 + $0xc] sm:$0xf]
  %v6411 = vld [vmem:[#allocation9 + $0x10] sm:$0xf]
  %v6412 = vld [vmem:[#allocation9 + $0x14] sm:$0xf]
  %v6413 = vld [vmem:[#allocation9 + $0x18] sm:$0xf]
  %v6414 = vld [vmem:[#allocation9 + $0x1c] sm:$0xf]
  %6423 = vrot.lane.b32.xlu0 %v6407, 121
  %v6424 = vpop.permute.xlu0 %6423
  %6425 = vrot.lane.b32.xlu0 %v6408, 121
  %v6426 = vpop.permute.xlu0 %6425
  %6427 = vrot.lane.b32.xlu0 %v6409, 121
  %v6428 = vpop.permute.xlu0 %6427
  %6429 = vrot.lane.b32.xlu0 %v6410, 121
  %v6430 = vpop.permute.xlu0 %6429
  %6431 = vrot.lane.b32.xlu0 %v6411, 121
  %v6432 = vpop.permute.xlu0 %6431
  %6433 = vrot.lane.b32.xlu0 %v6412, 121
  %v6434 = vpop.permute.xlu0 %6433
  %6435 = vrot.lane.b32.xlu0 %v6413, 121
  %v6436 = vpop.permute.xlu0 %6435
  %6437 = vrot.lane.b32.xlu0 %v6414, 121
  %v6438 = vpop.permute.xlu0 %6437
  %vm6447 = vcmask 527360
  %6448 = vst.msk [vmem:[#allocation10 + $0x100] sm:$0xf] %vm6447, %v6424
  %6449 = vst.msk [vmem:[#allocation10 + $0x104] sm:$0xf] %vm6447, %v6426
  %6450 = vst.msk [vmem:[#allocation10 + $0x108] sm:$0xf] %vm6447, %v6428
  %6451 = vst.msk [vmem:[#allocation10 + $0x10c] sm:$0xf] %vm6447, %v6430
  %6452 = vst.msk [vmem:[#allocation10 + $0x110] sm:$0xf] %vm6447, %v6432
  %6453 = vst.msk [vmem:[#allocation10 + $0x114] sm:$0xf] %vm6447, %v6434
  %6454 = vst.msk [vmem:[#allocation10 + $0x118] sm:$0xf] %vm6447, %v6436
  %6455 = vst.msk [vmem:[#allocation10 + $0x11c] sm:$0xf] %vm6447, %v6438
  %v6456 = vld [vmem:[#allocation10] sm:$0xf]
  %v6457 = vld [vmem:[#allocation10 + $0x4] sm:$0xf]
  %v6458 = vld [vmem:[#allocation10 + $0x8] sm:$0xf]
  %v6459 = vld [vmem:[#allocation10 + $0xc] sm:$0xf]
  %v6460 = vld [vmem:[#allocation10 + $0x10] sm:$0xf]
  %v6461 = vld [vmem:[#allocation10 + $0x14] sm:$0xf]
  %v6462 = vld [vmem:[#allocation10 + $0x18] sm:$0xf]
  %v6463 = vld [vmem:[#allocation10 + $0x1c] sm:$0xf]
  %v6464 = vld [vmem:[#allocation10 + $0x20] sm:$0xf]
  %v6465 = vld [vmem:[#allocation10 + $0x24] sm:$0xf]
  %v6466 = vld [vmem:[#allocation10 + $0x28] sm:$0xf]
  %v6467 = vld [vmem:[#allocation10 + $0x2c] sm:$0xf]
  %v6468 = vld [vmem:[#allocation10 + $0x30] sm:$0xf]
  %v6469 = vld [vmem:[#allocation10 + $0x34] sm:$0xf]
  %v6470 = vld [vmem:[#allocation10 + $0x38] sm:$0xf]
  %v6471 = vld [vmem:[#allocation10 + $0x3c] sm:$0xf]
  %v6472 = vld [vmem:[#allocation10 + $0x40] sm:$0xf]
  %v6473 = vld [vmem:[#allocation10 + $0x44] sm:$0xf]
  %v6474 = vld [vmem:[#allocation10 + $0x48] sm:$0xf]
  %v6475 = vld [vmem:[#allocation10 + $0x4c] sm:$0xf]
  %v6476 = vld [vmem:[#allocation10 + $0x50] sm:$0xf]
  %v6477 = vld [vmem:[#allocation10 + $0x54] sm:$0xf]
  %v6478 = vld [vmem:[#allocation10 + $0x58] sm:$0xf]
  %v6479 = vld [vmem:[#allocation10 + $0x5c] sm:$0xf]
  %v6480 = vld [vmem:[#allocation10 + $0x60] sm:$0xf]
  %v6481 = vld [vmem:[#allocation10 + $0x64] sm:$0xf]
  %v6482 = vld [vmem:[#allocation10 + $0x68] sm:$0xf]
  %v6483 = vld [vmem:[#allocation10 + $0x6c] sm:$0xf]
  %v6484 = vld [vmem:[#allocation10 + $0x70] sm:$0xf]
  %v6485 = vld [vmem:[#allocation10 + $0x74] sm:$0xf]
  %v6486 = vld [vmem:[#allocation10 + $0x78] sm:$0xf]
  %v6487 = vld [vmem:[#allocation10 + $0x7c] sm:$0xf]
  %v6488 = vld [vmem:[#allocation10 + $0x80] sm:$0xf]
  %v6489 = vld [vmem:[#allocation10 + $0x84] sm:$0xf]
  %v6490 = vld [vmem:[#allocation10 + $0x88] sm:$0xf]
  %v6491 = vld [vmem:[#allocation10 + $0x8c] sm:$0xf]
  %v6492 = vld [vmem:[#allocation10 + $0x90] sm:$0xf]
  %v6493 = vld [vmem:[#allocation10 + $0x94] sm:$0xf]
  %v6494 = vld [vmem:[#allocation10 + $0x98] sm:$0xf]
  %v6495 = vld [vmem:[#allocation10 + $0x9c] sm:$0xf]
  %v6496 = vld [vmem:[#allocation10 + $0xa0] sm:$0xf]
  %v6497 = vld [vmem:[#allocation10 + $0xa4] sm:$0xf]
  %v6498 = vld [vmem:[#allocation10 + $0xa8] sm:$0xf]
  %v6499 = vld [vmem:[#allocation10 + $0xac] sm:$0xf]
  %v6500 = vld [vmem:[#allocation10 + $0xb0] sm:$0xf]
  %v6501 = vld [vmem:[#allocation10 + $0xb4] sm:$0xf]
  %v6502 = vld [vmem:[#allocation10 + $0xb8] sm:$0xf]
  %v6503 = vld [vmem:[#allocation10 + $0xbc] sm:$0xf]
  %v6504 = vld [vmem:[#allocation10 + $0xc0] sm:$0xf]
  %v6505 = vld [vmem:[#allocation10 + $0xc4] sm:$0xf]
  %v6506 = vld [vmem:[#allocation10 + $0xc8] sm:$0xf]
  %v6507 = vld [vmem:[#allocation10 + $0xcc] sm:$0xf]
  %v6508 = vld [vmem:[#allocation10 + $0xd0] sm:$0xf]
  %v6509 = vld [vmem:[#allocation10 + $0xd4] sm:$0xf]
  %v6510 = vld [vmem:[#allocation10 + $0xd8] sm:$0xf]
  %v6511 = vld [vmem:[#allocation10 + $0xdc] sm:$0xf]
  %v6512 = vld [vmem:[#allocation10 + $0xe0] sm:$0xf]
  %v6513 = vld [vmem:[#allocation10 + $0xe4] sm:$0xf]
  %v6514 = vld [vmem:[#allocation10 + $0xe8] sm:$0xf]
  %v6515 = vld [vmem:[#allocation10 + $0xec] sm:$0xf]
  %v6516 = vld [vmem:[#allocation10 + $0xf0] sm:$0xf]
  %v6517 = vld [vmem:[#allocation10 + $0xf4] sm:$0xf]
  %v6518 = vld [vmem:[#allocation10 + $0xf8] sm:$0xf]
  %v6519 = vld [vmem:[#allocation10 + $0xfc] sm:$0xf]
  %v6520 = vld [vmem:[#allocation10 + $0x100] sm:$0xf]
  %v6521 = vld [vmem:[#allocation10 + $0x104] sm:$0xf]
  %v6522 = vld [vmem:[#allocation10 + $0x108] sm:$0xf]
  %v6523 = vld [vmem:[#allocation10 + $0x10c] sm:$0xf]
  %v6524 = vld [vmem:[#allocation10 + $0x110] sm:$0xf]
  %v6525 = vld [vmem:[#allocation10 + $0x114] sm:$0xf]
  %v6526 = vld [vmem:[#allocation10 + $0x118] sm:$0xf]
  %v6527 = vld [vmem:[#allocation10 + $0x11c] sm:$0xf]
  %v6528 = vld [vmem:[#allocation10 + $0x120] sm:$0x1]
  %v6529 = vld [vmem:[%s1 + $0x1b8] sm:$0xff]
  %v6530 = vld [vmem:[%s1 + $0x1c0] sm:$0xff]
  %v6531 = vld [vmem:[%s1 + $0x1c8] sm:$0xf]
  %v6532 = vld [vmem:[%s1 + $0x1cc] sm:$0xff]
  %v6533 = vld [vmem:[%s1 + $0x1d4] sm:$0xff]
  %v6534 = vld [vmem:[%s1 + $0x1dc] sm:$0xf]
  %v6535 = vld [vmem:[%s1 + $0x1e0] sm:$0xff]
  %v6536 = vld [vmem:[%s1 + $0x1e8] sm:$0xff]
  %v6537 = vld [vmem:[%s1 + $0x1f0] sm:$0xf]
  %v6538 = vld [vmem:[%s1 + $0x1f4] sm:$0xff]
  %v6539 = vld [vmem:[%s1 + $0x1fc] sm:$0xff]
  %v6540 = vld [vmem:[%s1 + $0x204] sm:$0xf]
  %v6541 = vld [vmem:[%s1 + $0x208] sm:$0xff]
  %v6542 = vld [vmem:[%s1 + $0x210] sm:$0xff]
  %v6543 = vld [vmem:[%s1 + $0x218] sm:$0xf]
  %v6544 = vld [vmem:[%s1 + $0x21c] sm:$0xff]
  %v6545 = vld [vmem:[%s1 + $0x224] sm:$0xff]
  %v6546 = vld [vmem:[%s1 + $0x22c] sm:$0xf]
  %v6547 = vld [vmem:[%s1 + $0x230] sm:$0xff]
  %v6548 = vld [vmem:[%s1 + $0x238] sm:$0xff]
  %v6549 = vld [vmem:[%s1 + $0x240] sm:$0xf]
  %v6550 = vld [vmem:[%s1 + $0x244] sm:$0xff]
  %v6551 = vld [vmem:[%s1 + $0x24c] sm:$0xff]
  %v6552 = vld [vmem:[%s1 + $0x254] sm:$0xf]
  %v6553 = vld [vmem:[#allocation7] sm:$0xff]
  %v6554 = vld [vmem:[#allocation7 + $0x8] sm:$0xff]
  %v6555 = vld [vmem:[#allocation7 + $0x10] sm:$0xff]
  %v6556 = vld [vmem:[#allocation7 + $0x18] sm:$0xff]
  %v6557 = vld [vmem:[%s4] sm:$0xf]
  %v6558 = vld [vmem:[%s4 + $0x4] sm:$0xf]
  %v6559 = vld [vmem:[%s4 + $0x8] sm:$0xf]
  %v6560 = vld [vmem:[%s4 + $0xc] sm:$0xf]
  %v6561 = vld [vmem:[%s4 + $0x10] sm:$0xf]
  %v6562 = vld [vmem:[%s4 + $0x14] sm:$0xf]
  %v6563 = vld [vmem:[%s4 + $0x18] sm:$0xf]
  %v6564 = vld [vmem:[%s4 + $0x1c] sm:$0xf]
  %v6565 = vld [vmem:[%s4 + $0x20] sm:$0xf]
  %v6566 = vld [vmem:[%s4 + $0x24] sm:$0xf]
  %v6567 = vld [vmem:[%s4 + $0x28] sm:$0xf]
  %v6568 = vld [vmem:[%s4 + $0x2c] sm:$0xf]
  %v6569 = vld [vmem:[%s4 + $0x30] sm:$0x3]
  %v6574 = vunpack.c.l.b16 %v6553
  %v6575 = vunpack.c.l.b16 %v6554
  %v6576 = vunpack.c.l.b16 %v6555
  %v6577 = vunpack.c.l.b16 %v6556
  %v6578 = vpack.c.b16 %v6575, %v6574
  %v6579 = vpack.c.b16 %v6577, %v6576
  %v6593 = vunpack.c.l.b16 %v6557
  %v6594 = vunpack.c.l.b16 %v6558
  %v6595 = vunpack.c.l.b16 %v6559
  %v6596 = vunpack.c.l.b16 %v6560
  %v6597 = vunpack.c.l.b16 %v6561
  %v6598 = vunpack.c.l.b16 %v6562
  %v6599 = vunpack.c.l.b16 %v6563
  %v6600 = vunpack.c.l.b16 %v6564
  %v6601 = vunpack.c.l.b16 %v6565
  %v6602 = vunpack.c.l.b16 %v6566
  %v6603 = vunpack.c.l.b16 %v6567
  %v6604 = vunpack.c.l.b16 %v6568
  %v6605 = vunpack.c.l.b16 %v6569
  %v6606 = vpack.c.b16 %v6594, %v6593
  %v6607 = vpack.c.b16 %v6596, %v6595
  %v6608 = vpack.c.b16 %v6598, %v6597
  %v6609 = vpack.c.b16 %v6600, %v6599
  %v6610 = vpack.c.b16 %v6602, %v6601
  %v6611 = vpack.c.b16 %v6604, %v6603
  %v6612 = vpack.c.b16 %v6605, %v6605
  %v6620 = vsel %vm3880, %v6578, 0
  %v6623 = vsel %vm3880, %v6579, 0
  %v6626 = vsel %vm3691, %v6612, 0
  %6628 = vmatpush.bf16.msra.mxu0 0
  %6629 = vmatpush.bf16.msra.mxu0 %v6626
  %6630 = vmatpush.bf16.msra.mxu0 %v6611
  %6631 = vmatpush.bf16.msra.mxu0 %v6610
  %6632 = vmatpush.bf16.msra.mxu0 %v6609
  %6633 = vmatpush.bf16.msra.mxu0 %v6608
  %6634 = vmatpush.bf16.msra.mxu0 %v6607
  %6635 = vmatpush.bf16.msra.mxu0 %v6606
  %6636 = vmatmul.bf16.gmra.mxu0 %v6620
  %v6637 = vpop.f32.mrf.mxu0
  %v6638 = vadd.f32 0.0, %v6637
  %v6639 = vpop.f32.mrf.mxu0
  %v6640 = vadd.f32 0.0, %v6639
  %6641 = vmatmul.bf16.gmra.mxu0 %v6623
  %v6642 = vpop.f32.mrf.mxu0
  %v6643 = vadd.f32 0.0, %v6642
  %v6644 = vpop.f32.mrf.mxu0
  %v6645 = vadd.f32 0.0, %v6644
  %6646 = vdwg.mxu0
  %v6647 = vunpack.c.h.b16 %v6553
  %v6648 = vunpack.c.h.b16 %v6554
  %v6649 = vunpack.c.h.b16 %v6555
  %v6650 = vunpack.c.h.b16 %v6556
  %v6651 = vpack.c.b16 %v6648, %v6647
  %v6652 = vpack.c.b16 %v6650, %v6649
  %6653 = vrot.lane.b32.xlu0 %v6578, 28
  %v6654 = vpop.permute.xlu0 %6653
  %6655 = vrot.lane.b32.xlu0 %v6651, 28
  %v6656 = vpop.permute.xlu0 %6655
  %6657 = vrot.lane.b32.xlu0 %v6579, 28
  %v6658 = vpop.permute.xlu0 %6657
  %6659 = vrot.lane.b32.xlu0 %v6652, 28
  %v6660 = vpop.permute.xlu0 %6659
  %v6661 = vsel %vm5924, %v6654, %v6656
  %v6662 = vsel %vm5924, %v6658, %v6660
  %v6664 = vsel %vm3880, %v6661, 0
  %v6667 = vsel %vm3880, %v6662, 0
  %6669 = vmatpush.bf16.msra.mxu0 0
  %6670 = vmatpush.bf16.msra.mxu0 %v6626
  %6671 = vmatpush.bf16.msra.mxu0 %v6611
  %6672 = vmatpush.bf16.msra.mxu0 %v6610
  %6673 = vmatpush.bf16.msra.mxu0 %v6609
  %6674 = vmatpush.bf16.msra.mxu0 %v6608
  %6675 = vmatpush.bf16.msra.mxu0 %v6607
  %6676 = vmatpush.bf16.msra.mxu0 %v6606
  %6677 = vmatmul.bf16.gmra.mxu0 %v6664
  %v6678 = vpop.f32.mrf.mxu0
  %v6679 = vadd.f32 0.0, %v6678
  %v6680 = vpop.f32.mrf.mxu0
  %v6681 = vadd.f32 0.0, %v6680
  %6682 = vmatmul.bf16.gmra.mxu0 %v6667
  %v6683 = vpop.f32.mrf.mxu0
  %v6684 = vadd.f32 0.0, %v6683
  %v6685 = vpop.f32.mrf.mxu0
  %v6686 = vadd.f32 0.0, %v6685
  %6687 = vdwg.mxu0
  %6692 = vrot.lane.b32.xlu0 %v6679, 36
  %v6693 = vpop.permute.xlu0 %6692
  %6694 = vrot.lane.b32.xlu0 %v6681, 36
  %v6695 = vpop.permute.xlu0 %6694
  %6696 = vrot.lane.b32.xlu0 %v6684, 36
  %v6697 = vpop.permute.xlu0 %6696
  %6698 = vrot.lane.b32.xlu0 %v6686, 36
  %v6699 = vpop.permute.xlu0 %6698
  %v6704 = vsel %vm6002, %v6638, %v6693
  %v6705 = vsel %vm6002, %v6640, %v6695
  %v6706 = vsel %vm6002, %v6643, %v6697
  %v6707 = vsel %vm6002, %v6645, %v6699
  %v6708 = vld [vmem:[%s5 + $0x10] sm:$0xf]
  %v6709 = vld [vmem:[%s5 + $0x14] sm:$0xf]
  %v6710 = vld [vmem:[%s5 + $0x18] sm:$0xf]
  %v6711 = vld [vmem:[%s5 + $0x1c] sm:$0xf]
  %v6712 = vld [vmem:[%s5 + $0x20] sm:$0xf]
  %v6713 = vld [vmem:[%s5 + $0x24] sm:$0xf]
  %v6714 = vld [vmem:[%s5 + $0x28] sm:$0xf]
  %v6715 = vld [vmem:[%s5 + $0x2c] sm:$0xf]
  %v6716 = vpack.c.bf16 %v6705, %v6704
  %v6717 = vpack.c.bf16 %v6707, %v6706
  %v6726 = vunpack.c.l.b16 %v6708
  %v6727 = vunpack.c.l.b16 %v6709
  %v6728 = vunpack.c.l.b16 %v6710
  %v6729 = vunpack.c.l.b16 %v6711
  %v6730 = vunpack.c.l.b16 %v6712
  %v6731 = vunpack.c.l.b16 %v6713
  %v6732 = vunpack.c.l.b16 %v6714
  %v6733 = vunpack.c.l.b16 %v6715
  %v6734 = vpack.c.b16 %v6727, %v6726
  %v6735 = vpack.c.b16 %v6729, %v6728
  %v6736 = vpack.c.b16 %v6731, %v6730
  %v6737 = vpack.c.b16 %v6733, %v6732
  %vm6738 = vcmask 261120
  %v6740 = vsel %vm6738, %v6734, 0
  %v6743 = vsel %vm6738, %v6735, 0
  %v6746 = vsel %vm6738, %v6736, 0
  %v6749 = vsel %vm6738, %v6737, 0
  %6751 = vmatpush.bf16.msra.mxu0 0
  %6752 = vmatpush.bf16.msra.mxu0 0
  %6753 = vmatpush.bf16.msra.mxu0 0
  %6754 = vmatpush.bf16.msra.mxu0 0
  %6755 = vmatpush.bf16.msra.mxu0 0
  %6756 = vmatpush.bf16.msra.mxu0 0
  %6757 = vmatpush.bf16.msra.mxu0 %v6717
  %6758 = vmatpush.bf16.msra.mxu0 %v6716
  %6759 = vmatmul.bf16.gmra.mxu0 %v6740
  %v6760 = vpop.f32.mrf.mxu0
  %v6761 = vadd.f32 0.0, %v6760
  %v6762 = vpop.f32.mrf.mxu0
  %v6763 = vadd.f32 0.0, %v6762
  %6764 = vmatmul.bf16.gmra.mxu0 %v6743
  %v6765 = vpop.f32.mrf.mxu0
  %v6766 = vadd.f32 0.0, %v6765
  %v6767 = vpop.f32.mrf.mxu0
  %v6768 = vadd.f32 0.0, %v6767
  %6769 = vmatmul.bf16.gmra.mxu0 %v6746
  %v6770 = vpop.f32.mrf.mxu0
  %v6771 = vadd.f32 0.0, %v6770
  %v6772 = vpop.f32.mrf.mxu0
  %v6773 = vadd.f32 0.0, %v6772
  %6774 = vmatmul.bf16.gmra.mxu0 %v6749
  %v6775 = vpop.f32.mrf.mxu0
  %v6776 = vadd.f32 0.0, %v6775
  %v6777 = vpop.f32.mrf.mxu0
  %v6778 = vadd.f32 0.0, %v6777
  %6779 = vdwg.mxu0
  %v6804 = vunpack.c.l.b16 %v6529
  %v6805 = vunpack.c.h.b16 %v6529
  %v6806 = vunpack.c.l.b16 %v6530
  %v6807 = vunpack.c.h.b16 %v6530
  %v6808 = vunpack.c.l.b16 %v6531
  %v6809 = vunpack.c.l.b16 %v6532
  %v6810 = vunpack.c.h.b16 %v6532
  %v6811 = vunpack.c.l.b16 %v6533
  %v6812 = vunpack.c.h.b16 %v6533
  %v6813 = vunpack.c.l.b16 %v6534
  %v6814 = vunpack.c.l.b16 %v6535
  %v6815 = vunpack.c.h.b16 %v6535
  %v6816 = vunpack.c.l.b16 %v6536
  %v6817 = vunpack.c.h.b16 %v6536
  %v6818 = vunpack.c.l.b16 %v6537
  %v6819 = vunpack.c.l.b16 %v6538
  %v6820 = vunpack.c.h.b16 %v6538
  %v6821 = vunpack.c.l.b16 %v6539
  %v6822 = vunpack.c.h.b16 %v6539
  %v6823 = vunpack.c.l.b16 %v6540
  %v6824 = vunpack.c.l.b16 %v6541
  %v6825 = vunpack.c.h.b16 %v6541
  %v6826 = vunpack.c.l.b16 %v6542
  %v6827 = vunpack.c.h.b16 %v6542
  %v6828 = vunpack.c.l.b16 %v6543
  %v6829 = vunpack.c.l.b16 %v6544
  %v6830 = vunpack.c.h.b16 %v6544
  %v6831 = vunpack.c.l.b16 %v6545
  %v6832 = vunpack.c.h.b16 %v6545
  %v6833 = vunpack.c.l.b16 %v6546
  %v6834 = vunpack.c.l.b16 %v6547
  %v6835 = vunpack.c.h.b16 %v6547
  %v6836 = vunpack.c.l.b16 %v6548
  %v6837 = vunpack.c.h.b16 %v6548
  %v6838 = vunpack.c.l.b16 %v6549
  %v6839 = vunpack.c.l.b16 %v6550
  %v6840 = vunpack.c.h.b16 %v6550
  %v6841 = vunpack.c.l.b16 %v6551
  %v6842 = vunpack.c.h.b16 %v6551
  %v6843 = vunpack.c.l.b16 %v6552
  %v6844 = vpack.c.b16 %v6809, %v6804
  %v6845 = vpack.c.b16 %v6810, %v6805
  %v6846 = vpack.c.b16 %v6811, %v6806
  %v6847 = vpack.c.b16 %v6812, %v6807
  %v6848 = vpack.c.b16 %v6813, %v6808
  %v6849 = vpack.c.b16 %v6819, %v6814
  %v6850 = vpack.c.b16 %v6820, %v6815
  %v6851 = vpack.c.b16 %v6821, %v6816
  %v6852 = vpack.c.b16 %v6822, %v6817
  %v6853 = vpack.c.b16 %v6823, %v6818
  %v6854 = vpack.c.b16 %v6829, %v6824
  %v6855 = vpack.c.b16 %v6830, %v6825
  %v6856 = vpack.c.b16 %v6831, %v6826
  %v6857 = vpack.c.b16 %v6832, %v6827
  %v6858 = vpack.c.b16 %v6833, %v6828
  %v6859 = vpack.c.b16 %v6839, %v6834
  %v6860 = vpack.c.b16 %v6840, %v6835
  %v6861 = vpack.c.b16 %v6841, %v6836
  %v6862 = vpack.c.b16 %v6842, %v6837
  %v6863 = vpack.c.b16 %v6843, %v6838
  %v6953 = vunpack.c.l.b16 %v6456
  %v6954 = vunpack.c.l.b16 %v6457
  %v6955 = vunpack.c.l.b16 %v6458
  %v6956 = vunpack.c.l.b16 %v6459
  %v6957 = vunpack.c.l.b16 %v6460
  %v6958 = vunpack.c.l.b16 %v6461
  %v6959 = vunpack.c.l.b16 %v6462
  %v6960 = vunpack.c.l.b16 %v6463
  %v6961 = vunpack.c.l.b16 %v6464
  %v6962 = vunpack.c.l.b16 %v6465
  %v6963 = vunpack.c.l.b16 %v6466
  %v6964 = vunpack.c.l.b16 %v6467
  %v6965 = vunpack.c.l.b16 %v6468
  %v6966 = vunpack.c.l.b16 %v6469
  %v6967 = vunpack.c.l.b16 %v6470
  %v6968 = vunpack.c.l.b16 %v6471
  %v6969 = vunpack.c.l.b16 %v6472
  %v6970 = vunpack.c.l.b16 %v6473
  %v6971 = vunpack.c.l.b16 %v6474
  %v6972 = vunpack.c.l.b16 %v6475
  %v6973 = vunpack.c.l.b16 %v6476
  %v6974 = vunpack.c.l.b16 %v6477
  %v6975 = vunpack.c.l.b16 %v6478
  %v6976 = vunpack.c.l.b16 %v6479
  %v6977 = vunpack.c.l.b16 %v6480
  %v6978 = vunpack.c.l.b16 %v6481
  %v6979 = vunpack.c.l.b16 %v6482
  %v6980 = vunpack.c.l.b16 %v6483
  %v6981 = vunpack.c.l.b16 %v6484
  %v6982 = vunpack.c.l.b16 %v6485
  %v6983 = vunpack.c.l.b16 %v6486
  %v6984 = vunpack.c.l.b16 %v6487
  %v6985 = vunpack.c.l.b16 %v6488
  %v6986 = vunpack.c.l.b16 %v6489
  %v6987 = vunpack.c.l.b16 %v6490
  %v6988 = vunpack.c.l.b16 %v6491
  %v6989 = vunpack.c.l.b16 %v6492
  %v6990 = vunpack.c.l.b16 %v6493
  %v6991 = vunpack.c.l.b16 %v6494
  %v6992 = vunpack.c.l.b16 %v6495
  %v6993 = vunpack.c.l.b16 %v6496
  %v6994 = vunpack.c.l.b16 %v6497
  %v6995 = vunpack.c.l.b16 %v6498
  %v6996 = vunpack.c.l.b16 %v6499
  %v6997 = vunpack.c.l.b16 %v6500
  %v6998 = vunpack.c.l.b16 %v6501
  %v6999 = vunpack.c.l.b16 %v6502
  %v7000 = vunpack.c.l.b16 %v6503
  %v7001 = vunpack.c.l.b16 %v6504
  %v7002 = vunpack.c.l.b16 %v6505
  %v7003 = vunpack.c.l.b16 %v6506
  %v7004 = vunpack.c.l.b16 %v6507
  %v7005 = vunpack.c.l.b16 %v6508
  %v7006 = vunpack.c.l.b16 %v6509
  %v7007 = vunpack.c.l.b16 %v6510
  %v7008 = vunpack.c.l.b16 %v6511
  %v7009 = vunpack.c.l.b16 %v6512
  %v7010 = vunpack.c.l.b16 %v6513
  %v7011 = vunpack.c.l.b16 %v6514
  %v7012 = vunpack.c.l.b16 %v6515
  %v7013 = vunpack.c.l.b16 %v6516
  %v7014 = vunpack.c.l.b16 %v6517
  %v7015 = vunpack.c.l.b16 %v6518
  %v7016 = vunpack.c.l.b16 %v6519
  %v7017 = vunpack.c.l.b16 %v6520
  %v7018 = vunpack.c.l.b16 %v6521
  %v7019 = vunpack.c.l.b16 %v6522
  %v7020 = vunpack.c.l.b16 %v6523
  %v7021 = vunpack.c.l.b16 %v6524
  %v7022 = vunpack.c.l.b16 %v6525
  %v7023 = vunpack.c.l.b16 %v6526
  %v7024 = vunpack.c.l.b16 %v6527
  %v7025 = vunpack.c.l.b16 %v6528
  %v7026 = vpack.c.b16 %v6954, %v6953
  %v7027 = vpack.c.b16 %v6956, %v6955
  %v7028 = vpack.c.b16 %v6958, %v6957
  %v7029 = vpack.c.b16 %v6960, %v6959
  %v7030 = vpack.c.b16 %v6962, %v6961
  %v7031 = vpack.c.b16 %v6964, %v6963
  %v7032 = vpack.c.b16 %v6966, %v6965
  %v7033 = vpack.c.b16 %v6968, %v6967
  %v7034 = vpack.c.b16 %v6970, %v6969
  %v7035 = vpack.c.b16 %v6972, %v6971
  %v7036 = vpack.c.b16 %v6974, %v6973
  %v7037 = vpack.c.b16 %v6976, %v6975
  %v7038 = vpack.c.b16 %v6978, %v6977
  %v7039 = vpack.c.b16 %v6980, %v6979
  %v7040 = vpack.c.b16 %v6982, %v6981
  %v7041 = vpack.c.b16 %v6984, %v6983
  %v7042 = vpack.c.b16 %v6986, %v6985
  %v7043 = vpack.c.b16 %v6988, %v6987
  %v7044 = vpack.c.b16 %v6990, %v6989
  %v7045 = vpack.c.b16 %v6992, %v6991
  %v7046 = vpack.c.b16 %v6994, %v6993
  %v7047 = vpack.c.b16 %v6996, %v6995
  %v7048 = vpack.c.b16 %v6998, %v6997
  %v7049 = vpack.c.b16 %v7000, %v6999
  %v7050 = vpack.c.b16 %v7002, %v7001
  %v7051 = vpack.c.b16 %v7004, %v7003
  %v7052 = vpack.c.b16 %v7006, %v7005
  %v7053 = vpack.c.b16 %v7008, %v7007
  %v7054 = vpack.c.b16 %v7010, %v7009
  %v7055 = vpack.c.b16 %v7012, %v7011
  %v7056 = vpack.c.b16 %v7014, %v7013
  %v7057 = vpack.c.b16 %v7016, %v7015
  %v7058 = vpack.c.b16 %v7018, %v7017
  %v7059 = vpack.c.b16 %v7020, %v7019
  %v7060 = vpack.c.b16 %v7022, %v7021
  %v7061 = vpack.c.b16 %v7024, %v7023
  %v7062 = vpack.c.b16 %v7025, %v7025
  %vm7099 = vcmask 531456
  %v7101 = vsel %vm7099, %v6848, 0
  %v7104 = vsel %vm7099, %v6853, 0
  %v7107 = vsel %vm7099, %v6858, 0
  %v7110 = vsel %vm7099, %v6863, 0
  %v7113 = vand.u32 %v7062, %v1112
  %7115 = vmatpush.bf16.msra.mxu0 %v7033
  %7116 = vmatpush.bf16.msra.mxu0 %v7032
  %7117 = vmatpush.bf16.msra.mxu0 %v7031
  %7118 = vmatpush.bf16.msra.mxu0 %v7030
  %7119 = vmatpush.bf16.msra.mxu0 %v7029
  %7120 = vmatpush.bf16.msra.mxu0 %v7028
  %7121 = vmatpush.bf16.msra.mxu0 %v7027
  %7122 = vmatpush.bf16.msra.mxu0 %v7026
  %7123 = vmatmul.bf16.gmra.mxu0 %v6844
  %v7124 = vpop.f32.mrf.mxu0
  %v7125 = vadd.f32 %v6761, %v7124
  %v7126 = vpop.f32.mrf.mxu0
  %v7127 = vadd.f32 %v6763, %v7126
  %7128 = vmatmul.bf16.gmra.mxu0 %v6849
  %v7129 = vpop.f32.mrf.mxu0
  %v7130 = vadd.f32 %v6766, %v7129
  %v7131 = vpop.f32.mrf.mxu0
  %v7132 = vadd.f32 %v6768, %v7131
  %7133 = vmatmul.bf16.gmra.mxu0 %v6854
  %v7134 = vpop.f32.mrf.mxu0
  %v7135 = vadd.f32 %v6771, %v7134
  %v7136 = vpop.f32.mrf.mxu0
  %v7137 = vadd.f32 %v6773, %v7136
  %7138 = vmatmul.bf16.gmra.mxu0 %v6859
  %v7139 = vpop.f32.mrf.mxu0
  %v7140 = vadd.f32 %v6776, %v7139
  %v7141 = vpop.f32.mrf.mxu0
  %v7142 = vadd.f32 %v6778, %v7141
  %7143 = vdwg.mxu0
  %7144 = vmatpush.bf16.msra.mxu0 %v7041
  %7145 = vmatpush.bf16.msra.mxu0 %v7040
  %7146 = vmatpush.bf16.msra.mxu0 %v7039
  %7147 = vmatpush.bf16.msra.mxu0 %v7038
  %7148 = vmatpush.bf16.msra.mxu0 %v7037
  %7149 = vmatpush.bf16.msra.mxu0 %v7036
  %7150 = vmatpush.bf16.msra.mxu0 %v7035
  %7151 = vmatpush.bf16.msra.mxu0 %v7034
  %7152 = vmatmul.bf16.gmra.mxu0 %v6845
  %v7153 = vpop.f32.mrf.mxu0
  %v7154 = vadd.f32 %v7125, %v7153
  %v7155 = vpop.f32.mrf.mxu0
  %v7156 = vadd.f32 %v7127, %v7155
  %7157 = vmatmul.bf16.gmra.mxu0 %v6850
  %v7158 = vpop.f32.mrf.mxu0
  %v7159 = vadd.f32 %v7130, %v7158
  %v7160 = vpop.f32.mrf.mxu0
  %v7161 = vadd.f32 %v7132, %v7160
  %7162 = vmatmul.bf16.gmra.mxu0 %v6855
  %v7163 = vpop.f32.mrf.mxu0
  %v7164 = vadd.f32 %v7135, %v7163
  %v7165 = vpop.f32.mrf.mxu0
  %v7166 = vadd.f32 %v7137, %v7165
  %7167 = vmatmul.bf16.gmra.mxu0 %v6860
  %v7168 = vpop.f32.mrf.mxu0
  %v7169 = vadd.f32 %v7140, %v7168
  %v7170 = vpop.f32.mrf.mxu0
  %v7171 = vadd.f32 %v7142, %v7170
  %7172 = vdwg.mxu0
  %7173 = vmatpush.bf16.msra.mxu0 %v7049
  %7174 = vmatpush.bf16.msra.mxu0 %v7048
  %7175 = vmatpush.bf16.msra.mxu0 %v7047
  %7176 = vmatpush.bf16.msra.mxu0 %v7046
  %7177 = vmatpush.bf16.msra.mxu0 %v7045
  %7178 = vmatpush.bf16.msra.mxu0 %v7044
  %7179 = vmatpush.bf16.msra.mxu0 %v7043
  %7180 = vmatpush.bf16.msra.mxu0 %v7042
  %7181 = vmatmul.bf16.gmra.mxu0 %v6846
  %v7182 = vpop.f32.mrf.mxu0
  %v7183 = vadd.f32 %v7154, %v7182
  %v7184 = vpop.f32.mrf.mxu0
  %v7185 = vadd.f32 %v7156, %v7184
  %7186 = vmatmul.bf16.gmra.mxu0 %v6851
  %v7187 = vpop.f32.mrf.mxu0
  %v7188 = vadd.f32 %v7159, %v7187
  %v7189 = vpop.f32.mrf.mxu0
  %v7190 = vadd.f32 %v7161, %v7189
  %7191 = vmatmul.bf16.gmra.mxu0 %v6856
  %v7192 = vpop.f32.mrf.mxu0
  %v7193 = vadd.f32 %v7164, %v7192
  %v7194 = vpop.f32.mrf.mxu0
  %v7195 = vadd.f32 %v7166, %v7194
  %7196 = vmatmul.bf16.gmra.mxu0 %v6861
  %v7197 = vpop.f32.mrf.mxu0
  %v7198 = vadd.f32 %v7169, %v7197
  %v7199 = vpop.f32.mrf.mxu0
  %v7200 = vadd.f32 %v7171, %v7199
  %7201 = vdwg.mxu0
  %7202 = vmatpush.bf16.msra.mxu0 %v7057
  %7203 = vmatpush.bf16.msra.mxu0 %v7056
  %7204 = vmatpush.bf16.msra.mxu0 %v7055
  %7205 = vmatpush.bf16.msra.mxu0 %v7054
  %7206 = vmatpush.bf16.msra.mxu0 %v7053
  %7207 = vmatpush.bf16.msra.mxu0 %v7052
  %7208 = vmatpush.bf16.msra.mxu0 %v7051
  %7209 = vmatpush.bf16.msra.mxu0 %v7050
  %7210 = vmatmul.bf16.gmra.mxu0 %v6847
  %v7211 = vpop.f32.mrf.mxu0
  %v7212 = vadd.f32 %v7183, %v7211
  %v7213 = vpop.f32.mrf.mxu0
  %v7214 = vadd.f32 %v7185, %v7213
  %7215 = vmatmul.bf16.gmra.mxu0 %v6852
  %v7216 = vpop.f32.mrf.mxu0
  %v7217 = vadd.f32 %v7188, %v7216
  %v7218 = vpop.f32.mrf.mxu0
  %v7219 = vadd.f32 %v7190, %v7218
  %7220 = vmatmul.bf16.gmra.mxu0 %v6857
  %v7221 = vpop.f32.mrf.mxu0
  %v7222 = vadd.f32 %v7193, %v7221
  %v7223 = vpop.f32.mrf.mxu0
  %v7224 = vadd.f32 %v7195, %v7223
  %7225 = vmatmul.bf16.gmra.mxu0 %v6862
  %v7226 = vpop.f32.mrf.mxu0
  %v7227 = vadd.f32 %v7198, %v7226
  %v7228 = vpop.f32.mrf.mxu0
  %v7229 = vadd.f32 %v7200, %v7228
  %7230 = vdwg.mxu0
  %7231 = vmatpush.bf16.msra.mxu0 0
  %7232 = vmatpush.bf16.msra.mxu0 0
  %7233 = vmatpush.bf16.msra.mxu0 0
  %7234 = vmatpush.bf16.msra.mxu0 %v7113
  %7235 = vmatpush.bf16.msra.mxu0 %v7061
  %7236 = vmatpush.bf16.msra.mxu0 %v7060
  %7237 = vmatpush.bf16.msra.mxu0 %v7059
  %7238 = vmatpush.bf16.msra.mxu0 %v7058
  %7239 = vmatmul.bf16.gmra.mxu0 %v7101
  %v7240 = vpop.f32.mrf.mxu0
  %v7241 = vadd.f32 %v7212, %v7240
  %v7242 = vpop.f32.mrf.mxu0
  %v7243 = vadd.f32 %v7214, %v7242
  %7244 = vmatmul.bf16.gmra.mxu0 %v7104
  %v7245 = vpop.f32.mrf.mxu0
  %v7246 = vadd.f32 %v7217, %v7245
  %v7247 = vpop.f32.mrf.mxu0
  %v7248 = vadd.f32 %v7219, %v7247
  %7249 = vmatmul.bf16.gmra.mxu0 %v7107
  %v7250 = vpop.f32.mrf.mxu0
  %v7251 = vadd.f32 %v7222, %v7250
  %v7252 = vpop.f32.mrf.mxu0
  %v7253 = vadd.f32 %v7224, %v7252
  %7254 = vmatmul.bf16.gmra.mxu0 %v7110
  %v7255 = vpop.f32.mrf.mxu0
  %v7256 = vadd.f32 %v7227, %v7255
  %v7257 = vpop.f32.mrf.mxu0
  %v7258 = vadd.f32 %v7229, %v7257
  %7259 = vdwg.mxu0
  %v7260 = vld [vmem:[%s2 + $0x2] ss:$0 sm:$0xff]
  %vm7261 = vcmp.gt.f32.partialorder %v7260, 0.0
  %v7262 = vmax.f32 %v7241, 0.0
  %v7263 = vmax.f32 %v7243, 0.0
  %v7264 = vmax.f32 %v7246, 0.0
  %v7265 = vmax.f32 %v7248, 0.0
  %v7266 = vmax.f32 %v7251, 0.0
  %v7267 = vmax.f32 %v7253, 0.0
  %v7268 = vmax.f32 %v7256, 0.0
  %v7269 = vmax.f32 %v7258, 0.0
  %v7270 = vsel %vm7261, 1, 0
  %vm7271 = vcmp.eq.s32.totalorder %v7270, 1
  %v7272 = vsel %vm7271, %v7262, 0.0
  %v7273 = vsel %vm7271, %v7263, 0.0
  %v7274 = vsel %vm7271, %v7264, 0.0
  %v7275 = vsel %vm7271, %v7265, 0.0
  %v7276 = vsel %vm7271, %v7266, 0.0
  %v7277 = vsel %vm7271, %v7267, 0.0
  %v7278 = vsel %vm7271, %v7268, 0.0
  %v7279 = vsel %vm7271, %v7269, 0.0
  %v7280 = vpack.c.bf16 %v7273, %v7272
  %v7281 = vpack.c.bf16 %v7275, %v7274
  %v7282 = vpack.c.bf16 %v7277, %v7276
  %v7283 = vpack.c.bf16 %v7279, %v7278
  %v7284 = vld [vmem:[%s6] sm:$0xf]
  %v7285 = vld [vmem:[%s6 + $0x4] sm:$0xf]
  %v7286 = vld [vmem:[%s6 + $0x8] sm:$0xf]
  %v7287 = vld [vmem:[%s6 + $0xc] sm:$0xf]
  %v7288 = vld [vmem:[%s6 + $0x10] sm:$0xf]
  %v7289 = vld [vmem:[%s6 + $0x14] sm:$0xf]
  %v7290 = vld [vmem:[%s6 + $0x18] sm:$0xf]
  %v7291 = vld [vmem:[%s6 + $0x1c] sm:$0xf]
  %v7292 = vld [vmem:[%s6 + $0x20] sm:$0xf]
  %v7302 = vunpack.c.l.b16 %v7284
  %v7303 = vunpack.c.l.b16 %v7285
  %v7304 = vunpack.c.l.b16 %v7286
  %v7305 = vunpack.c.l.b16 %v7287
  %v7306 = vunpack.c.l.b16 %v7288
  %v7307 = vunpack.c.l.b16 %v7289
  %v7308 = vunpack.c.l.b16 %v7290
  %v7309 = vunpack.c.l.b16 %v7291
  %v7310 = vunpack.c.l.b16 %v7292
  %v7311 = vpack.c.b16 %v7303, %v7302
  %v7312 = vpack.c.b16 %v7305, %v7304
  %v7313 = vpack.c.b16 %v7307, %v7306
  %v7314 = vpack.c.b16 %v7309, %v7308
  %v7315 = vpack.c.b16 %v7310, %v7310
  %vm7320 = vcmask 588800
  %v7322 = vsel %vm7320, %v7280, 0
  %v7325 = vsel %vm7320, %v7281, 0
  %v7328 = vsel %vm7320, %v7282, 0
  %v7331 = vsel %vm7320, %v7283, 0
  %v7334 = vsel %vm295, %v7315, 0
  %7336 = vmatpush.bf16.msra.mxu0 0
  %7337 = vmatpush.bf16.msra.mxu0 0
  %7338 = vmatpush.bf16.msra.mxu0 0
  %7339 = vmatpush.bf16.msra.mxu0 %v7334
  %7340 = vmatpush.bf16.msra.mxu0 %v7314
  %7341 = vmatpush.bf16.msra.mxu0 %v7313
  %7342 = vmatpush.bf16.msra.mxu0 %v7312
  %7343 = vmatpush.bf16.msra.mxu0 %v7311
  %7344 = vmatmul.bf16.gmra.mxu0 %v7322
  %v7345 = vpop.f32.mrf.mxu0
  %v7346 = vadd.f32 0.0, %v7345
  %v7347 = vpop.f32.mrf.mxu0
  %v7348 = vadd.f32 0.0, %v7347
  %7349 = vmatmul.bf16.gmra.mxu0 %v7325
  %v7350 = vpop.f32.mrf.mxu0
  %v7351 = vadd.f32 0.0, %v7350
  %v7352 = vpop.f32.mrf.mxu0
  %v7353 = vadd.f32 0.0, %v7352
  %7354 = vmatmul.bf16.gmra.mxu0 %v7328
  %v7355 = vpop.f32.mrf.mxu0
  %v7356 = vadd.f32 0.0, %v7355
  %v7357 = vpop.f32.mrf.mxu0
  %v7358 = vadd.f32 0.0, %v7357
  %7359 = vmatmul.bf16.gmra.mxu0 %v7331
  %v7360 = vpop.f32.mrf.mxu0
  %v7361 = vadd.f32 0.0, %v7360
  %v7362 = vpop.f32.mrf.mxu0
  %v7363 = vadd.f32 0.0, %v7362
  %7364 = vdwg.mxu0
  %v7365 = vld [vmem:[%s7] sm:$0xf]
  %v7366 = vpack.c.bf16 %v7348, %v7346
  %v7367 = vpack.c.bf16 %v7353, %v7351
  %v7368 = vpack.c.bf16 %v7358, %v7356
  %v7369 = vpack.c.bf16 %v7363, %v7361
  %v7370 = vld [vmem:[%s8] sm:$0xff]
  %7372 = vset.pattern.permute.xlu0 0
  %7373 = vperm.xlu0 %7372, %v7370
  %v7374 = vpop.permute.xlu0 %7373
  %vm7376 = vcmask 523264
  %v7378 = vsel %vm7376, %v7365, 0
  %7380 = vmatpush.bf16.msra.mxu0 0
  %7381 = vmatpush.bf16.msra.mxu0 0
  %7382 = vmatpush.bf16.msra.mxu0 0
  %7383 = vmatpush.bf16.msra.mxu0 0
  %7384 = vmatpush.bf16.msra.mxu0 %v7369
  %7385 = vmatpush.bf16.msra.mxu0 %v7368
  %7386 = vmatpush.bf16.msra.mxu0 %v7367
  %7387 = vmatpush.bf16.msra.mxu0 %v7366
  %7388 = vmatmul.bf16.gmra.mxu0 %v7378
  %v7389 = vpop.f32.mrf.mxu0
  %v7390 = vadd.f32 %v7374, %v7389
  %v7391 = vpop.f32.mrf.mxu0
  %7392 = vdwg.mxu0
  %v7393 = vld [vmem:[%s7 + $0x4] sm:$0xf]
  %v7394 = vld [vmem:[%s7 + $0x8] sm:$0x1]
  %v7395 = vpack.c.bf16 %v7390, %v7390
  %v7396 = vld [vmem:[%s8] sm:$0xff]
  %v7397 = vld [vmem:[%s8 + $0x8] sm:$0x3]
  %7399 = vset.pattern.permute.xlu0 1
  %7400 = vperm.xlu0 %7399, %v7396
  %v7401 = vpop.permute.xlu0 %7400
  %7404 = vset.pattern.permute.xlu0 1
  %7405 = vperm.xlu0 %7404, %v7397
  %v7406 = vpop.permute.xlu0 %7405
  %v7410 = vunpack.c.l.b16 %v7393
  %v7411 = vunpack.c.l.b16 %v7394
  %v7412 = vpack.c.b16 %v7411, %v7410
  %vm7413 = vcmask 64512
  %v7415 = vsel %vm7413, %v7412, 0
  %v7418 = vsel %vm295, %v7395, 0
  %7420 = vmatpush.bf16.msra.mxu0 0
  %7421 = vmatpush.bf16.msra.mxu0 0
  %7422 = vmatpush.bf16.msra.mxu0 0
  %7423 = vmatpush.bf16.msra.mxu0 0
  %7424 = vmatpush.bf16.msra.mxu0 0
  %7425 = vmatpush.bf16.msra.mxu0 0
  %7426 = vmatpush.bf16.msra.mxu0 0
  %7427 = vmatpush.bf16.msra.mxu0 %v7418
  %7428 = vmatmul.bf16.gmra.mxu0 %v7415
  %v7429 = vpop.f32.mrf.mxu0
  %v7430 = vadd.f32 %v7401, %v7429
  %v7431 = vpop.f32.mrf.mxu0
  %v7432 = vadd.f32 %v7406, %v7431
  %7433 = vdwg.mxu0
  %vm7434 = vcmask 15360
  %7435 = vst.msk [vmem:[%s9] sm:$0xff] %vm7434, %v7430
  %vm7436 = vcmask 9216
  %7437 = vst.msk [vmem:[%s9 + $0x8] sm:$0x3] %vm7436, %v7432
  %7438 = vst.msk [vmem:[%s10] sm:$0xff] %vm7434, %v7390
  // Predicated region
  $region38: #{resnet_forward.1} parent=0 // pred_check
    _
  $region39: #{resnet_forward.1} parent=0 // pred_check_branch
    %7440 = sbr.rel (0) target = $region41
  $region40: #{resnet_forward.1} parent=0 // pred_region
    _
  $region41: #{resnet_forward.1} parent=0 // pred_fallthru
    _
  // Predicated region
  $region42: #{resnet_forward.1} parent=0 // pred_check
    _
  $region43: #{resnet_forward.1} parent=0 // pred_check_branch
    %7442 = sbr.rel (0) target = $region45
  $region44: #{resnet_forward.1} parent=0 // pred_region
    _
  $region45: #{resnet_forward.1} parent=0 // pred_fallthru
    _
  // Predicated region
  $region46: #{resnet_forward.1} parent=0 // pred_check
    _
  $region47: #{resnet_forward.1} parent=0 // pred_check_branch
    %7444 = sbr.rel (0) target = $region49
  $region48: #{resnet_forward.1} parent=0 // pred_region
    _
  $region49: #{resnet_forward.1} parent=0 // pred_fallthru
    _
  // Predicated region
  $region50: #{resnet_forward.1} parent=0 // pred_check
    _
  $region51: #{resnet_forward.1} parent=0 // pred_check_branch
    %7446 = sbr.rel (0) target = $region53
  $region52: #{resnet_forward.1} parent=0 // pred_region
    _
  $region53: #{resnet_forward.1} parent=0 // pred_fallthru
    _

</llo_original>
